<compile_context>
chip_gen: v7x
topology: tpu7x:2x2x1
jax: 0.10.0
libtpu: 0.0.40
codegen_flags: <defaults>
</compile_context>

<pallas_src>
import numpy as np
import jax
import jax.numpy as jnp
from jax.experimental import pallas as pl
from jax.experimental.pallas import tpu as pltpu

# ---------------- static "args" (Namespace equivalent) ----------------
A = 8                 # atoms per molecule
MG = 16               # molecules per grid step (group)
NG = 2                # number of groups (grid size)
B = NG * MG           # molecules in the batch
BA = MG * A           # atoms per group (= 128 -> full lane width)
NP = BA * A           # block-diagonal pairs per group (= 1024)
F = 32                # args.n_atom_basis
FF = 32               # args.n_filters
G = 16                # args.n_gaussians
T = 3                 # args.n_interactions
H = F // 2            # Atomwise hidden width (2-layer MLP: F -> F//2 -> n_out)
CUTOFF = 5.0          # args.cutoff (CosineCutoff)
BASE_OUT = 1          # args.output_size
OUT = BASE_OUT * 4    # evidence regression: output_size *= 4
NAUX = OUT - 1        # aux_outputs ("bayesian_outputs") n_out
MIN_VAL = 1e-6
LOG2 = 0.6931471805599453
GAMMA = 0.5 / (CUTOFF / (G - 1)) ** 2   # GaussianSmearing gamma
MAX_Z = 10

# ---------------- packed parameter blob layout (rows x 128 lanes, f32) --
# every section starts on an 8-row boundary; weights are stored TRANSPOSED
ROW_FW1T = 0                     # (T*FF, G)  fused filter dense-1^T (cols 0:G), bias col G
ROW_FW2T = ROW_FW1T + T * FF     # (T*FF, T*FF) block-diag filter dense-2^T, bias col T*FF
ROW_IN2FT = ROW_FW2T + T * FF    # per-t (FF, F) in2f^T at rows +t*FF
ROW_F2OT = ROW_IN2FT + T * FF    # per-t (F, FF) f2out^T at rows +t*F, bias col FF
ROW_DNST = ROW_F2OT + T * F      # per-t (F, F) dense^T at rows +t*F, bias col F
ROW_HW1T = ROW_DNST + T * F      # (2H, F) fused Atomwise layer-1^T, bias col F
ROW_HW2T = ROW_HW1T + 2 * H      # (OUT, 2H) block-diag Atomwise layer-2^T, bias col 2H
BLOB_ROWS = ROW_HW2T + 8         # = 520 (multiple of 8)
BLOB_COLS = 128


def _softplus(v):
    # numerically safe softplus (matches torch.nn.functional.softplus)
    return jnp.where(v > 20.0, v, jnp.log1p(jnp.exp(jnp.minimum(v, 20.0))))


def _ssp(v):
    # SchNet shifted softplus activation
    return _softplus(v) - LOG2


# ------------------------------ kernel ---------------------------------
def schnet_evidence_kernel(xT_ref, geom_ref, blob_ref, repj_ref, ssum_ref,
                           poolt_ref, out_ref):
    f32 = jnp.float32
    bf16 = jnp.bfloat16

    xT = xT_ref[...]                                   # (F, BA)  features^T, f32
    geom = geom_ref[...]                               # (8, NP)  rows 0:3 = r_i, 4:7 = r_j

    # ---- pairwise distances, lane-dense (1, NP) ----
    diff = geom[0:3, :] - geom[4:7, :]                 # (3, NP)
    d = jnp.sqrt(jnp.sum(diff * diff, axis=0, keepdims=True))      # (1, NP)

    # ---- cosine cutoff (self / cross-molecule masking folded into SSUM) ----
    fcut = 0.5 * (jnp.cos(d * (jnp.pi / CUTOFF)) + 1.0)
    fcut = fcut * jnp.where(d < CUTOFF, 1.0, 0.0)      # (1, NP)

    # ---- Gaussian RBF expansion, transposed lane-dense (G, NP) ----
    mu = jax.lax.broadcasted_iota(jnp.int32, (G, 1), 0).astype(f32) * (CUTOFF / (G - 1))
    rbfT = jnp.exp(-GAMMA * (d - mu) ** 2)             # (G, NP)

    # ---- filter network for all T interactions at once (transposed, bf16 MXU) ----
    fw1t = blob_ref[ROW_FW1T:ROW_FW1T + T * FF, 0:G].astype(bf16)            # (96, 16)
    fb1t = blob_ref[ROW_FW1T:ROW_FW1T + T * FF, G:G + 1]                     # (96, 1)
    fw2t = blob_ref[ROW_FW2T:ROW_FW2T + T * FF, 0:T * FF].astype(bf16)       # (96, 96)
    fb2t = blob_ref[ROW_FW2T:ROW_FW2T + T * FF, T * FF:T * FF + 1]           # (96, 1)
    w1T = _ssp(jnp.dot(fw1t, rbfT.astype(bf16), preferred_element_type=f32) + fb1t)
    w_allT = (jnp.dot(fw2t, w1T.astype(bf16), preferred_element_type=f32) + fb2t) * fcut
    # w_allT: (T*FF, NP)

    repj = repj_ref[...]                               # (BA, NP) bf16, 0/1 neighbour replication
    ssum = ssum_ref[...]                               # (NP, BA) bf16, 0/1 segment-sum (self masked)

    # ---- SchNet interaction blocks ----
    x_cur = xT                                         # (F, BA) f32 residual stream
    for t in range(T):
        in2ft = blob_ref[ROW_IN2FT + t * FF: ROW_IN2FT + (t + 1) * FF, 0:F]     # (FF, F)
        f2ot = blob_ref[ROW_F2OT + t * F: ROW_F2OT + (t + 1) * F, 0:FF]         # (F, FF)
        f2obt = blob_ref[ROW_F2OT + t * F: ROW_F2OT + (t + 1) * F, FF:FF + 1]   # (F, 1)
        dnst = blob_ref[ROW_DNST + t * F: ROW_DNST + (t + 1) * F, 0:F]          # (F, F)
        dnsbt = blob_ref[ROW_DNST + t * F: ROW_DNST + (t + 1) * F, F:F + 1]     # (F, 1)

        yT = jnp.dot(in2ft, x_cur, preferred_element_type=f32)                  # (FF, BA)
        # neighbour replication via static 0/1 matmul on the MXU
        ytT = jnp.dot(yT.astype(bf16), repj, preferred_element_type=f32)        # (FF, NP)
        wy = w_allT[t * FF:(t + 1) * FF, :] * ytT                               # (FF, NP) f32
        # masked neighbour aggregation on the MXU
        aggT = jnp.dot(wy.astype(bf16), ssum, preferred_element_type=f32)       # (FF, BA)
        vT = _ssp(jnp.dot(f2ot, aggT, preferred_element_type=f32) + f2obt)      # (F, BA)
        vT = jnp.dot(dnst, vT, preferred_element_type=f32) + dnsbt              # (F, BA)
        x_cur = x_cur + vT

    # ---- fused Atomwise heads [U0 | bayesian_outputs] (small, f32) ----
    hw1t = blob_ref[ROW_HW1T:ROW_HW1T + 2 * H, 0:F]                   # (2H, F)
    hb1t = blob_ref[ROW_HW1T:ROW_HW1T + 2 * H, F:F + 1]               # (2H, 1)
    hw2t = blob_ref[ROW_HW2T:ROW_HW2T + OUT, 0:2 * H]                 # (OUT, 2H)
    hb2t = blob_ref[ROW_HW2T:ROW_HW2T + OUT, 2 * H:2 * H + 1]         # (OUT, 1)
    hT = _ssp(jnp.dot(hw1t, x_cur, preferred_element_type=f32) + hb1t)          # (2H, BA)
    atom_outT = jnp.dot(hw2t, hT, preferred_element_type=f32) + hb2t            # (OUT, BA)

    # ---- per-molecule sum pooling via static 0/1 matmul ----
    pooledT = jnp.dot(atom_outT, poolt_ref[...], preferred_element_type=f32)    # (OUT, MG)

    # ---- evidential confidence transform (BASE_OUT=1 -> interleave == concat) ----
    ridx = jax.lax.broadcasted_iota(jnp.int32, (OUT, MG), 0)
    sp = _softplus(pooledT)
    result = jnp.where(ridx == 0, pooledT,                     # means
                       jnp.where(ridx == 2, sp + (MIN_VAL + 1.0),   # alphas
                                 sp + MIN_VAL))                 # lambdas / betas
    out_ref[...] = result[None]                                 # (1, OUT, MG)


# --------------------------- wrapper / glue -----------------------------
@jax.jit
def atomistic_forward(Z, R, embedding, blob, repj, ssum, poolt):
    # glue: embedding gather + per-pair neighbour position gather (transposed)
    xT = embedding[Z].reshape(B * A, F).T                              # (F, NG*BA)
    ri = jnp.broadcast_to(R[:, :, None, :], (B, A, A, 3)).reshape(B * A * A, 3).T
    rj = jnp.broadcast_to(R[:, None, :, :], (B, A, A, 3)).reshape(B * A * A, 3).T
    geom = jnp.zeros((8, NG * NP), jnp.float32)
    geom = geom.at[0:3, :].set(ri).at[4:7, :].set(rj)                  # (8, NG*NP)

    out = pl.pallas_call(
        schnet_evidence_kernel,
        out_shape=jax.ShapeDtypeStruct((NG, OUT, MG), jnp.float32),
        grid=(NG,),
        in_specs=[
            pl.BlockSpec((F, BA), lambda g: (0, g)),          # streamed activations
            pl.BlockSpec((8, NP), lambda g: (0, g)),          # streamed pair geometry
            pl.BlockSpec((BLOB_ROWS, BLOB_COLS), lambda g: (0, 0)),   # resident params
            pl.BlockSpec((BA, NP), lambda g: (0, 0)),         # resident REPJ (bf16)
            pl.BlockSpec((NP, BA), lambda g: (0, 0)),         # resident SSUM (bf16)
            pl.BlockSpec((BA, MG), lambda g: (0, 0)),         # resident pooling matrix
        ],
        out_specs=pl.BlockSpec((1, OUT, MG), lambda g: (g, 0, 0)),
        compiler_params=pltpu.CompilerParams(
            dimension_semantics=("parallel",),
            vmem_limit_bytes=32 * 1024 * 1024,
        ),
    )(xT, geom, blob, repj, ssum, poolt)

    # layout plumbing: (NG, OUT, MG) -> (B, OUT)
    return out.transpose(0, 2, 1).reshape(B, OUT)


def build_static_aux():
    """Host-built 0/1 matrices: neighbour replication, masked segment-sum, pooling."""
    k = np.arange(NP)
    c = k // A                       # within-group center atom index of pair k
    j = k % A                        # local neighbour index
    m = c // A                       # molecule within group
    i = c % A                        # local center index
    a = np.arange(BA)
    repj = (a[:, None] == (m * A + j)[None, :]).astype(np.float32)            # (BA, NP)
    ssum = ((c[:, None] == a[None, :]) & (j != i)[:, None]).astype(np.float32)  # (NP, BA)
    poolt = ((a[:, None] // A) == np.arange(MG)[None, :]).astype(np.float32)    # (BA, MG)
    return (jnp.asarray(repj, jnp.bfloat16),
            jnp.asarray(ssum, jnp.bfloat16),
            jnp.asarray(poolt, jnp.float32))


def pack_params(p):
    """Host-side packing of all weights/biases (transposed) into one (520, 128) f32 blob."""
    blob = jnp.zeros((BLOB_ROWS, BLOB_COLS), jnp.float32)

    def put(b, r, c, arr):
        rr, cc = arr.shape
        return b.at[r:r + rr, c:c + cc].set(arr.astype(jnp.float32))

    # fused filter dense-1 (transposed) + bias column
    fw1t = jnp.concatenate([p["fw1"][t].T for t in range(T)], axis=0)         # (T*FF, G)
    blob = put(blob, ROW_FW1T, 0, fw1t)
    blob = put(blob, ROW_FW1T, G, p["fb1"].reshape(T * FF, 1))
    # fused block-diagonal filter dense-2 (transposed) + bias column
    fw2t = jnp.zeros((T * FF, T * FF), jnp.float32)
    for t in range(T):
        fw2t = fw2t.at[t * FF:(t + 1) * FF, t * FF:(t + 1) * FF].set(p["fw2"][t].T)
    blob = put(blob, ROW_FW2T, 0, fw2t)
    blob = put(blob, ROW_FW2T, T * FF, p["fb2"].reshape(T * FF, 1))
    # per-interaction in2f / f2out / dense (transposed), biases as columns
    for t in range(T):
        blob = put(blob, ROW_IN2FT + t * FF, 0, p["in2f_w"][t].T)             # (FF, F)
        blob = put(blob, ROW_F2OT + t * F, 0, p["f2out_w"][t].T)              # (F, FF)
        blob = put(blob, ROW_F2OT + t * F, FF, p["f2out_b"][t].reshape(F, 1))
        blob = put(blob, ROW_DNST + t * F, 0, p["dense_w"][t].T)              # (F, F)
        blob = put(blob, ROW_DNST + t * F, F, p["dense_b"][t].reshape(F, 1))
    # fused Atomwise heads (transposed)
    hw1t = jnp.concatenate([p["u0_w1"], p["ax_w1"]], axis=1).T                # (2H, F)
    hb1t = jnp.concatenate([p["u0_b1"], p["ax_b1"]], axis=1).T                # (2H, 1)
    blob = put(blob, ROW_HW1T, 0, hw1t)
    blob = put(blob, ROW_HW1T, F, hb1t)
    hw2t = jnp.zeros((OUT, 2 * H), jnp.float32)
    hw2t = hw2t.at[0:BASE_OUT, 0:H].set(p["u0_w2"].T)
    hw2t = hw2t.at[BASE_OUT:, H:].set(p["ax_w2"].T)
    blob = put(blob, ROW_HW2T, 0, hw2t)
    hb2t = jnp.concatenate([p["u0_b2"], p["ax_b2"]], axis=1).T                # (OUT, 1)
    blob = put(blob, ROW_HW2T, 2 * H, hb2t)
    return blob


def init_params(key):
    ks = jax.random.split(key, 20)

    def w(k, shape, fan_in, scale=1.0):
        return (jax.random.normal(k, shape, jnp.float32) *
                (scale / jnp.sqrt(float(fan_in)))).astype(jnp.float32)

    def br(x):
        # pre-round to bf16 precision: these weights feed bf16 MXU operands
        return x.astype(jnp.bfloat16).astype(jnp.float32)

    p = {
        "embedding": jax.random.normal(ks[0], (MAX_Z, F), jnp.float32) * 0.5,
        # interaction blocks (stacked over T)
        "fw1": br(w(ks[1], (T, G, FF), G)), "fb1": jnp.zeros((T, FF), jnp.float32),
        "fw2": br(w(ks[2], (T, FF, FF), FF)), "fb2": jnp.zeros((T, FF), jnp.float32),
        "in2f_w": w(ks[3], (T, F, FF), F),
        "f2out_w": w(ks[4], (T, FF, F), FF),
        "f2out_b": 0.01 * jax.random.normal(ks[5], (T, F), jnp.float32),
        "dense_w": w(ks[6], (T, F, F), F),
        "dense_b": 0.01 * jax.random.normal(ks[7], (T, F), jnp.float32),
        # Atomwise U0 head
        "u0_w1": w(ks[8], (F, H), F), "u0_b1": 0.01 * jax.random.normal(ks[9], (1, H), jnp.float32),
        "u0_w2": w(ks[10], (H, BASE_OUT), H), "u0_b2": 0.01 * jax.random.normal(ks[11], (1, BASE_OUT), jnp.float32),
        # Atomwise aux ("bayesian_outputs") head
        "ax_w1": w(ks[12], (F, H), F), "ax_b1": 0.01 * jax.random.normal(ks[13], (1, H), jnp.float32),
        "ax_w2": w(ks[14], (H, NAUX), H), "ax_b2": 0.01 * jax.random.normal(ks[15], (1, NAUX), jnp.float32),
    }
    return p


# ------------------------ pure-JAX reference ----------------------------
def reference_forward(Z, R, params):
    x = params["embedding"][Z]                                          # (B, A, F)
    diff = R[:, :, None, :] - R[:, None, :, :]
    d = jnp.sqrt(jnp.maximum(jnp.sum(diff * diff, axis=-1), 0.0))       # (B, A, A)
    mu = jnp.arange(G, dtype=jnp.float32) * (CUTOFF / (G - 1))
    rbf = jnp.exp(-GAMMA * (d[..., None] - mu) ** 2)
    fcut = 0.5 * (jnp.cos(d * jnp.pi / CUTOFF) + 1.0) * jnp.where(d < CUTOFF, 1.0, 0.0)
    fcut = fcut * (1.0 - jnp.eye(A, dtype=jnp.float32))[None]
    for t in range(T):
        w_ = _ssp(jnp.einsum("bijg,gf->bijf", rbf, params["fw1"][t]) + params["fb1"][t])
        w_ = jnp.einsum("bijf,fk->bijk", w_, params["fw2"][t]) + params["fb2"][t]
        w_ = w_ * fcut[..., None]
        y = jnp.einsum("bif,fk->bik", x, params["in2f_w"][t])
        agg = jnp.sum(w_ * y[:, None, :, :], axis=2)
        v = _ssp(jnp.einsum("bif,fk->bik", agg, params["f2out_w"][t]) + params["f2out_b"][t])
        v = jnp.einsum("bif,fk->bik", v, params["dense_w"][t]) + params["dense_b"][t]
        x = x + v
    h = _ssp(jnp.einsum("bif,fh->bih", x, params["u0_w1"]) + params["u0_b1"])
    u0 = jnp.sum(jnp.einsum("bih,ho->bio", h, params["u0_w2"]) + params["u0_b2"], axis=1)
    ha = _ssp(jnp.einsum("bif,fh->bih", x, params["ax_w1"]) + params["ax_b1"])
    aux = jnp.sum(jnp.einsum("bih,ho->bio", ha, params["ax_w2"]) + params["ax_b2"], axis=1)
    raw = jnp.concatenate([u0, aux], axis=1)
    K = OUT // 4
    means = raw[:, :K]
    lambdas = _softplus(raw[:, K:2 * K]) + MIN_VAL
    alphas = _softplus(raw[:, 2 * K:3 * K]) + MIN_VAL + 1.0
    betas = _softplus(raw[:, 3 * K:4 * K]) + MIN_VAL
    return jnp.stack([means, lambdas, alphas, betas], axis=2).reshape(B, OUT)


if __name__ == "__main__":
    key = jax.random.PRNGKey(0)
    kz, kr, kp = jax.random.split(key, 3)
    Z = jax.random.randint(kz, (B, A), 1, MAX_Z)                 # atomic numbers
    R = jax.random.normal(kr, (B, A, 3), jnp.float32) * 1.5      # positions (Angstrom-ish)
    params = init_params(kp)
    blob = pack_params(params)                                   # one-time host-side packing
    repj, ssum, poolt = build_static_aux()                       # one-time static 0/1 matrices

    out = jax.block_until_ready(
        atomistic_forward(Z, R, params["embedding"], blob, repj, ssum, poolt))
    ref = jax.block_until_ready(reference_forward(Z, R, params))

    assert out.shape == (B, OUT), out.shape
    # tolerance accounts for bf16 MXU operands on the pair-space matmuls
    if not bool(jnp.allclose(out, ref, rtol=3e-2, atol=3e-2)):
        err = float(jnp.max(jnp.abs(out - ref)))
        raise SystemExit(f"mismatch vs reference (max abs err {err}):\n{out}\n{ref}")
    print("KERNEL_OK")
</pallas_src>

<mosaic_0001>
module attributes {stable_mosaic.version = 11 : i64} {
  func.func @schnet_evidence_kernel(%arg0: i32, %arg1: memref<32x128xf32, #tpu.memory_space<vmem>>, %arg2: memref<8x1024xf32, #tpu.memory_space<vmem>>, %arg3: memref<520x128xf32, #tpu.memory_space<vmem>>, %arg4: memref<128x1024xbf16, #tpu.memory_space<vmem>>, %arg5: memref<1024x128xbf16, #tpu.memory_space<vmem>>, %arg6: memref<128x16xf32, #tpu.memory_space<vmem>>, %arg7: memref<1x4x16xf32, #tpu.memory_space<vmem>>) attributes {dimension_semantics = [#tpu.dimension_semantics<parallel>], iteration_bounds = array<i64: 2>, scalar_prefetch = 0 : i64, scratch_operands = 0 : i64, tpu.core_type = #tpu.core_type<tc>, window_params = [{transform_indices = @transform_0, window_bounds = array<i64: 32, 128>}, {transform_indices = @transform_1, window_bounds = array<i64: 8, 1024>}, {pipeline_mode = #tpu.pipeline_mode<synchronous>, transform_indices = @transform_2, window_bounds = array<i64: 520, 128>}, {pipeline_mode = #tpu.pipeline_mode<synchronous>, transform_indices = @transform_3, window_bounds = array<i64: 128, 1024>}, {pipeline_mode = #tpu.pipeline_mode<synchronous>, transform_indices = @transform_4, window_bounds = array<i64: 1024, 128>}, {pipeline_mode = #tpu.pipeline_mode<synchronous>, transform_indices = @transform_5, window_bounds = array<i64: 128, 16>}, {transform_indices = @transform_6, window_bounds = array<i64: 1, 4, 16>}]} {
    %c0 = arith.constant 0 : index
    %c0_0 = arith.constant 0 : index
    %0 = vector.load %arg1[%c0, %c0_0] : memref<32x128xf32, #tpu.memory_space<vmem>>, vector<32x128xf32>
    %c0_1 = arith.constant 0 : index
    %c0_2 = arith.constant 0 : index
    %1 = vector.load %arg2[%c0_1, %c0_2] : memref<8x1024xf32, #tpu.memory_space<vmem>>, vector<8x1024xf32>
    %2 = vector.extract_strided_slice %1 {offsets = [0, 0], sizes = [3, 1024], strides = [1, 1]} : vector<8x1024xf32> to vector<3x1024xf32>
    %3 = vector.extract_strided_slice %1 {offsets = [4, 0], sizes = [3, 1024], strides = [1, 1]} : vector<8x1024xf32> to vector<3x1024xf32>
    %4 = arith.subf %2, %3 : vector<3x1024xf32>
    %5 = arith.mulf %4, %4 : vector<3x1024xf32>
    %cst = arith.constant dense<0.000000e+00> : vector<1024xf32>
    %6 = vector.multi_reduction <add>, %5, %cst [0] : vector<3x1024xf32> to vector<1024xf32>
    %7 = vector.shape_cast %6 : vector<1024xf32> to vector<1x1024xf32>
    %8 = math.sqrt %7 : vector<1x1024xf32>
    %cst_3 = arith.constant 0.628318548 : f32
    %9 = vector.broadcast %cst_3 : f32 to vector<1x1024xf32>
    %10 = arith.mulf %8, %9 : vector<1x1024xf32>
    %11 = math.cos %10 : vector<1x1024xf32>
    %cst_4 = arith.constant 1.000000e+00 : f32
    %12 = vector.broadcast %cst_4 : f32 to vector<1x1024xf32>
    %13 = arith.addf %11, %12 : vector<1x1024xf32>
    %cst_5 = arith.constant 5.000000e-01 : f32
    %14 = vector.broadcast %cst_5 : f32 to vector<1x1024xf32>
    %15 = arith.mulf %14, %13 : vector<1x1024xf32>
    %cst_6 = arith.constant 5.000000e+00 : f32
    %16 = vector.broadcast %cst_6 : f32 to vector<1x1024xf32>
    %17 = arith.cmpf olt, %8, %16 : vector<1x1024xf32>
    %cst_7 = arith.constant 1.000000e+00 : f32
    %cst_8 = arith.constant 0.000000e+00 : f32
    %18 = vector.broadcast %cst_7 : f32 to vector<1x1024xf32>
    %19 = vector.broadcast %cst_8 : f32 to vector<1x1024xf32>
    %20 = arith.select %17, %18, %19 : vector<1x1024xi1>, vector<1x1024xf32>
    %21 = arith.mulf %15, %20 : vector<1x1024xf32>
    %22 = tpu.iota {dimensions = array<i32: 0>} : vector<16x1xi32>
    %23 = arith.sitofp %22 : vector<16x1xi32> to vector<16x1xf32>
    %cst_9 = arith.constant 0.333333343 : f32
    %24 = vector.broadcast %cst_9 : f32 to vector<16x1xf32>
    %25 = arith.mulf %23, %24 : vector<16x1xf32>
    %26 = vector.broadcast %8 : vector<1x1024xf32> to vector<16x1024xf32>
    %27 = vector.broadcast %25 : vector<16x1xf32> to vector<16x1024xf32>
    %28 = arith.subf %26, %27 : vector<16x1024xf32>
    %29 = arith.mulf %28, %28 : vector<16x1024xf32>
    %cst_10 = arith.constant -4.500000e+00 : f32
    %30 = vector.broadcast %cst_10 : f32 to vector<16x1024xf32>
    %31 = arith.mulf %30, %29 : vector<16x1024xf32>
    %32 = math.exp %31 : vector<16x1024xf32>
    %c0_11 = arith.constant 0 : index
    %c0_12 = arith.constant 0 : index
    %33 = vector.load %arg3[%c0_11, %c0_12] : memref<520x128xf32, #tpu.memory_space<vmem>>, vector<96x16xf32>
    %34 = arith.truncf %33 : vector<96x16xf32> to vector<96x16xbf16>
    %c0_13 = arith.constant 0 : index
    %c16 = arith.constant 16 : index
    %35 = vector.load %arg3[%c0_13, %c16] : memref<520x128xf32, #tpu.memory_space<vmem>>, vector<96x1xf32>
    %c96 = arith.constant 96 : index
    %c0_14 = arith.constant 0 : index
    %36 = vector.load %arg3[%c96, %c0_14] : memref<520x128xf32, #tpu.memory_space<vmem>>, vector<96x96xf32>
    %37 = arith.truncf %36 : vector<96x96xf32> to vector<96x96xbf16>
    %c96_15 = arith.constant 96 : index
    %c96_16 = arith.constant 96 : index
    %38 = vector.load %arg3[%c96_15, %c96_16] : memref<520x128xf32, #tpu.memory_space<vmem>>, vector<96x1xf32>
    %39 = arith.truncf %32 : vector<16x1024xf32> to vector<16x1024xbf16>
    %cst_17 = arith.constant dense<0.000000e+00> : vector<96x1024xf32>
    %40 = tpu.matmul %34, %39, %cst_17 {dimension_numbers = #tpu.dot_dimension_numbers<[1], [0], [0], [1], [0, 0, 1, 1], [], []>} : vector<96x16xbf16>, vector<16x1024xbf16>, vector<96x1024xf32> -> vector<96x1024xf32>
    %41 = vector.broadcast %35 : vector<96x1xf32> to vector<96x1024xf32>
    %42 = arith.addf %40, %41 : vector<96x1024xf32>
    %cst_18 = arith.constant 2.000000e+01 : f32
    %43 = vector.broadcast %cst_18 : f32 to vector<96x1024xf32>
    %44 = arith.cmpf ogt, %42, %43 : vector<96x1024xf32>
    %cst_19 = arith.constant 2.000000e+01 : f32
    %45 = vector.broadcast %cst_19 : f32 to vector<96x1024xf32>
    %46 = arith.minimumf %42, %45 : vector<96x1024xf32>
    %47 = math.exp %46 : vector<96x1024xf32>
    %48 = math.log1p %47 : vector<96x1024xf32>
    %49 = arith.select %44, %42, %48 : vector<96x1024xi1>, vector<96x1024xf32>
    %cst_20 = arith.constant 0.693147182 : f32
    %50 = vector.broadcast %cst_20 : f32 to vector<96x1024xf32>
    %51 = arith.subf %49, %50 : vector<96x1024xf32>
    %52 = arith.truncf %51 : vector<96x1024xf32> to vector<96x1024xbf16>
    %cst_21 = arith.constant dense<0.000000e+00> : vector<96x1024xf32>
    %53 = tpu.matmul %37, %52, %cst_21 {dimension_numbers = #tpu.dot_dimension_numbers<[1], [0], [0], [1], [0, 0, 1, 1], [], []>} : vector<96x96xbf16>, vector<96x1024xbf16>, vector<96x1024xf32> -> vector<96x1024xf32>
    %54 = vector.broadcast %38 : vector<96x1xf32> to vector<96x1024xf32>
    %55 = arith.addf %53, %54 : vector<96x1024xf32>
    %56 = vector.broadcast %21 : vector<1x1024xf32> to vector<96x1024xf32>
    %57 = arith.mulf %55, %56 : vector<96x1024xf32>
    %c0_22 = arith.constant 0 : index
    %c0_23 = arith.constant 0 : index
    %58 = vector.load %arg4[%c0_22, %c0_23] : memref<128x1024xbf16, #tpu.memory_space<vmem>>, vector<128x1024xbf16>
    %c0_24 = arith.constant 0 : index
    %c0_25 = arith.constant 0 : index
    %59 = vector.load %arg5[%c0_24, %c0_25] : memref<1024x128xbf16, #tpu.memory_space<vmem>>, vector<1024x128xbf16>
    %c192 = arith.constant 192 : index
    %c0_26 = arith.constant 0 : index
    %60 = vector.load %arg3[%c192, %c0_26] : memref<520x128xf32, #tpu.memory_space<vmem>>, vector<32x32xf32>
    %c288 = arith.constant 288 : index
    %c0_27 = arith.constant 0 : index
    %61 = vector.load %arg3[%c288, %c0_27] : memref<520x128xf32, #tpu.memory_space<vmem>>, vector<32x32xf32>
    %c288_28 = arith.constant 288 : index
    %c32 = arith.constant 32 : index
    %62 = vector.load %arg3[%c288_28, %c32] : memref<520x128xf32, #tpu.memory_space<vmem>>, vector<32x1xf32>
    %c384 = arith.constant 384 : index
    %c0_29 = arith.constant 0 : index
    %63 = vector.load %arg3[%c384, %c0_29] : memref<520x128xf32, #tpu.memory_space<vmem>>, vector<32x32xf32>
    %c384_30 = arith.constant 384 : index
    %c32_31 = arith.constant 32 : index
    %64 = vector.load %arg3[%c384_30, %c32_31] : memref<520x128xf32, #tpu.memory_space<vmem>>, vector<32x1xf32>
    %cst_32 = arith.constant dense<0.000000e+00> : vector<32x128xf32>
    %65 = tpu.matmul %60, %0, %cst_32 {dimension_numbers = #tpu.dot_dimension_numbers<[1], [0], [0], [1], [0, 0, 1, 1], [], []>} : vector<32x32xf32>, vector<32x128xf32>, vector<32x128xf32> -> vector<32x128xf32>
    %66 = arith.truncf %65 : vector<32x128xf32> to vector<32x128xbf16>
    %cst_33 = arith.constant dense<0.000000e+00> : vector<32x1024xf32>
    %67 = tpu.matmul %66, %58, %cst_33 {dimension_numbers = #tpu.dot_dimension_numbers<[1], [0], [0], [1], [0, 0, 1, 1], [], []>} : vector<32x128xbf16>, vector<128x1024xbf16>, vector<32x1024xf32> -> vector<32x1024xf32>
    %68 = vector.extract_strided_slice %57 {offsets = [0, 0], sizes = [32, 1024], strides = [1, 1]} : vector<96x1024xf32> to vector<32x1024xf32>
    %69 = arith.mulf %68, %67 : vector<32x1024xf32>
    %70 = arith.truncf %69 : vector<32x1024xf32> to vector<32x1024xbf16>
    %cst_34 = arith.constant dense<0.000000e+00> : vector<32x128xf32>
    %71 = tpu.matmul %70, %59, %cst_34 {dimension_numbers = #tpu.dot_dimension_numbers<[1], [0], [0], [1], [0, 0, 1, 1], [], []>} : vector<32x1024xbf16>, vector<1024x128xbf16>, vector<32x128xf32> -> vector<32x128xf32>
    %cst_35 = arith.constant dense<0.000000e+00> : vector<32x128xf32>
    %72 = tpu.matmul %61, %71, %cst_35 {dimension_numbers = #tpu.dot_dimension_numbers<[1], [0], [0], [1], [0, 0, 1, 1], [], []>} : vector<32x32xf32>, vector<32x128xf32>, vector<32x128xf32> -> vector<32x128xf32>
    %73 = vector.broadcast %62 : vector<32x1xf32> to vector<32x128xf32>
    %74 = arith.addf %72, %73 : vector<32x128xf32>
    %cst_36 = arith.constant 2.000000e+01 : f32
    %75 = vector.broadcast %cst_36 : f32 to vector<32x128xf32>
    %76 = arith.cmpf ogt, %74, %75 : vector<32x128xf32>
    %cst_37 = arith.constant 2.000000e+01 : f32
    %77 = vector.broadcast %cst_37 : f32 to vector<32x128xf32>
    %78 = arith.minimumf %74, %77 : vector<32x128xf32>
    %79 = math.exp %78 : vector<32x128xf32>
    %80 = math.log1p %79 : vector<32x128xf32>
    %81 = arith.select %76, %74, %80 : vector<32x128xi1>, vector<32x128xf32>
    %cst_38 = arith.constant 0.693147182 : f32
    %82 = vector.broadcast %cst_38 : f32 to vector<32x128xf32>
    %83 = arith.subf %81, %82 : vector<32x128xf32>
    %cst_39 = arith.constant dense<0.000000e+00> : vector<32x128xf32>
    %84 = tpu.matmul %63, %83, %cst_39 {dimension_numbers = #tpu.dot_dimension_numbers<[1], [0], [0], [1], [0, 0, 1, 1], [], []>} : vector<32x32xf32>, vector<32x128xf32>, vector<32x128xf32> -> vector<32x128xf32>
    %85 = vector.broadcast %64 : vector<32x1xf32> to vector<32x128xf32>
    %86 = arith.addf %84, %85 : vector<32x128xf32>
    %87 = arith.addf %0, %86 : vector<32x128xf32>
    %c224 = arith.constant 224 : index
    %c0_40 = arith.constant 0 : index
    %88 = vector.load %arg3[%c224, %c0_40] : memref<520x128xf32, #tpu.memory_space<vmem>>, vector<32x32xf32>
    %c320 = arith.constant 320 : index
    %c0_41 = arith.constant 0 : index
    %89 = vector.load %arg3[%c320, %c0_41] : memref<520x128xf32, #tpu.memory_space<vmem>>, vector<32x32xf32>
    %c320_42 = arith.constant 320 : index
    %c32_43 = arith.constant 32 : index
    %90 = vector.load %arg3[%c320_42, %c32_43] : memref<520x128xf32, #tpu.memory_space<vmem>>, vector<32x1xf32>
    %c416 = arith.constant 416 : index
    %c0_44 = arith.constant 0 : index
    %91 = vector.load %arg3[%c416, %c0_44] : memref<520x128xf32, #tpu.memory_space<vmem>>, vector<32x32xf32>
    %c416_45 = arith.constant 416 : index
    %c32_46 = arith.constant 32 : index
    %92 = vector.load %arg3[%c416_45, %c32_46] : memref<520x128xf32, #tpu.memory_space<vmem>>, vector<32x1xf32>
    %cst_47 = arith.constant dense<0.000000e+00> : vector<32x128xf32>
    %93 = tpu.matmul %88, %87, %cst_47 {dimension_numbers = #tpu.dot_dimension_numbers<[1], [0], [0], [1], [0, 0, 1, 1], [], []>} : vector<32x32xf32>, vector<32x128xf32>, vector<32x128xf32> -> vector<32x128xf32>
    %94 = arith.truncf %93 : vector<32x128xf32> to vector<32x128xbf16>
    %cst_48 = arith.constant dense<0.000000e+00> : vector<32x1024xf32>
    %95 = tpu.matmul %94, %58, %cst_48 {dimension_numbers = #tpu.dot_dimension_numbers<[1], [0], [0], [1], [0, 0, 1, 1], [], []>} : vector<32x128xbf16>, vector<128x1024xbf16>, vector<32x1024xf32> -> vector<32x1024xf32>
    %96 = vector.extract_strided_slice %57 {offsets = [32, 0], sizes = [32, 1024], strides = [1, 1]} : vector<96x1024xf32> to vector<32x1024xf32>
    %97 = arith.mulf %96, %95 : vector<32x1024xf32>
    %98 = arith.truncf %97 : vector<32x1024xf32> to vector<32x1024xbf16>
    %cst_49 = arith.constant dense<0.000000e+00> : vector<32x128xf32>
    %99 = tpu.matmul %98, %59, %cst_49 {dimension_numbers = #tpu.dot_dimension_numbers<[1], [0], [0], [1], [0, 0, 1, 1], [], []>} : vector<32x1024xbf16>, vector<1024x128xbf16>, vector<32x128xf32> -> vector<32x128xf32>
    %cst_50 = arith.constant dense<0.000000e+00> : vector<32x128xf32>
    %100 = tpu.matmul %89, %99, %cst_50 {dimension_numbers = #tpu.dot_dimension_numbers<[1], [0], [0], [1], [0, 0, 1, 1], [], []>} : vector<32x32xf32>, vector<32x128xf32>, vector<32x128xf32> -> vector<32x128xf32>
    %101 = vector.broadcast %90 : vector<32x1xf32> to vector<32x128xf32>
    %102 = arith.addf %100, %101 : vector<32x128xf32>
    %cst_51 = arith.constant 2.000000e+01 : f32
    %103 = vector.broadcast %cst_51 : f32 to vector<32x128xf32>
    %104 = arith.cmpf ogt, %102, %103 : vector<32x128xf32>
    %cst_52 = arith.constant 2.000000e+01 : f32
    %105 = vector.broadcast %cst_52 : f32 to vector<32x128xf32>
    %106 = arith.minimumf %102, %105 : vector<32x128xf32>
    %107 = math.exp %106 : vector<32x128xf32>
    %108 = math.log1p %107 : vector<32x128xf32>
    %109 = arith.select %104, %102, %108 : vector<32x128xi1>, vector<32x128xf32>
    %cst_53 = arith.constant 0.693147182 : f32
    %110 = vector.broadcast %cst_53 : f32 to vector<32x128xf32>
    %111 = arith.subf %109, %110 : vector<32x128xf32>
    %cst_54 = arith.constant dense<0.000000e+00> : vector<32x128xf32>
    %112 = tpu.matmul %91, %111, %cst_54 {dimension_numbers = #tpu.dot_dimension_numbers<[1], [0], [0], [1], [0, 0, 1, 1], [], []>} : vector<32x32xf32>, vector<32x128xf32>, vector<32x128xf32> -> vector<32x128xf32>
    %113 = vector.broadcast %92 : vector<32x1xf32> to vector<32x128xf32>
    %114 = arith.addf %112, %113 : vector<32x128xf32>
    %115 = arith.addf %87, %114 : vector<32x128xf32>
    %c256 = arith.constant 256 : index
    %c0_55 = arith.constant 0 : index
    %116 = vector.load %arg3[%c256, %c0_55] : memref<520x128xf32, #tpu.memory_space<vmem>>, vector<32x32xf32>
    %c352 = arith.constant 352 : index
    %c0_56 = arith.constant 0 : index
    %117 = vector.load %arg3[%c352, %c0_56] : memref<520x128xf32, #tpu.memory_space<vmem>>, vector<32x32xf32>
    %c352_57 = arith.constant 352 : index
    %c32_58 = arith.constant 32 : index
    %118 = vector.load %arg3[%c352_57, %c32_58] : memref<520x128xf32, #tpu.memory_space<vmem>>, vector<32x1xf32>
    %c448 = arith.constant 448 : index
    %c0_59 = arith.constant 0 : index
    %119 = vector.load %arg3[%c448, %c0_59] : memref<520x128xf32, #tpu.memory_space<vmem>>, vector<32x32xf32>
    %c448_60 = arith.constant 448 : index
    %c32_61 = arith.constant 32 : index
    %120 = vector.load %arg3[%c448_60, %c32_61] : memref<520x128xf32, #tpu.memory_space<vmem>>, vector<32x1xf32>
    %cst_62 = arith.constant dense<0.000000e+00> : vector<32x128xf32>
    %121 = tpu.matmul %116, %115, %cst_62 {dimension_numbers = #tpu.dot_dimension_numbers<[1], [0], [0], [1], [0, 0, 1, 1], [], []>} : vector<32x32xf32>, vector<32x128xf32>, vector<32x128xf32> -> vector<32x128xf32>
    %122 = arith.truncf %121 : vector<32x128xf32> to vector<32x128xbf16>
    %cst_63 = arith.constant dense<0.000000e+00> : vector<32x1024xf32>
    %123 = tpu.matmul %122, %58, %cst_63 {dimension_numbers = #tpu.dot_dimension_numbers<[1], [0], [0], [1], [0, 0, 1, 1], [], []>} : vector<32x128xbf16>, vector<128x1024xbf16>, vector<32x1024xf32> -> vector<32x1024xf32>
    %124 = vector.extract_strided_slice %57 {offsets = [64, 0], sizes = [32, 1024], strides = [1, 1]} : vector<96x1024xf32> to vector<32x1024xf32>
    %125 = arith.mulf %124, %123 : vector<32x1024xf32>
    %126 = arith.truncf %125 : vector<32x1024xf32> to vector<32x1024xbf16>
    %cst_64 = arith.constant dense<0.000000e+00> : vector<32x128xf32>
    %127 = tpu.matmul %126, %59, %cst_64 {dimension_numbers = #tpu.dot_dimension_numbers<[1], [0], [0], [1], [0, 0, 1, 1], [], []>} : vector<32x1024xbf16>, vector<1024x128xbf16>, vector<32x128xf32> -> vector<32x128xf32>
    %cst_65 = arith.constant dense<0.000000e+00> : vector<32x128xf32>
    %128 = tpu.matmul %117, %127, %cst_65 {dimension_numbers = #tpu.dot_dimension_numbers<[1], [0], [0], [1], [0, 0, 1, 1], [], []>} : vector<32x32xf32>, vector<32x128xf32>, vector<32x128xf32> -> vector<32x128xf32>
    %129 = vector.broadcast %118 : vector<32x1xf32> to vector<32x128xf32>
    %130 = arith.addf %128, %129 : vector<32x128xf32>
    %cst_66 = arith.constant 2.000000e+01 : f32
    %131 = vector.broadcast %cst_66 : f32 to vector<32x128xf32>
    %132 = arith.cmpf ogt, %130, %131 : vector<32x128xf32>
    %cst_67 = arith.constant 2.000000e+01 : f32
    %133 = vector.broadcast %cst_67 : f32 to vector<32x128xf32>
    %134 = arith.minimumf %130, %133 : vector<32x128xf32>
    %135 = math.exp %134 : vector<32x128xf32>
    %136 = math.log1p %135 : vector<32x128xf32>
    %137 = arith.select %132, %130, %136 : vector<32x128xi1>, vector<32x128xf32>
    %cst_68 = arith.constant 0.693147182 : f32
    %138 = vector.broadcast %cst_68 : f32 to vector<32x128xf32>
    %139 = arith.subf %137, %138 : vector<32x128xf32>
    %cst_69 = arith.constant dense<0.000000e+00> : vector<32x128xf32>
    %140 = tpu.matmul %119, %139, %cst_69 {dimension_numbers = #tpu.dot_dimension_numbers<[1], [0], [0], [1], [0, 0, 1, 1], [], []>} : vector<32x32xf32>, vector<32x128xf32>, vector<32x128xf32> -> vector<32x128xf32>
    %141 = vector.broadcast %120 : vector<32x1xf32> to vector<32x128xf32>
    %142 = arith.addf %140, %141 : vector<32x128xf32>
    %143 = arith.addf %115, %142 : vector<32x128xf32>
    %c480 = arith.constant 480 : index
    %c0_70 = arith.constant 0 : index
    %144 = vector.load %arg3[%c480, %c0_70] : memref<520x128xf32, #tpu.memory_space<vmem>>, vector<32x32xf32>
    %c480_71 = arith.constant 480 : index
    %c32_72 = arith.constant 32 : index
    %145 = vector.load %arg3[%c480_71, %c32_72] : memref<520x128xf32, #tpu.memory_space<vmem>>, vector<32x1xf32>
    %c512 = arith.constant 512 : index
    %c0_73 = arith.constant 0 : index
    %146 = vector.load %arg3[%c512, %c0_73] : memref<520x128xf32, #tpu.memory_space<vmem>>, vector<4x32xf32>
    %c512_74 = arith.constant 512 : index
    %c32_75 = arith.constant 32 : index
    %147 = vector.load %arg3[%c512_74, %c32_75] : memref<520x128xf32, #tpu.memory_space<vmem>>, vector<4x1xf32>
    %cst_76 = arith.constant dense<0.000000e+00> : vector<32x128xf32>
    %148 = tpu.matmul %144, %143, %cst_76 {dimension_numbers = #tpu.dot_dimension_numbers<[1], [0], [0], [1], [0, 0, 1, 1], [], []>} : vector<32x32xf32>, vector<32x128xf32>, vector<32x128xf32> -> vector<32x128xf32>
    %149 = vector.broadcast %145 : vector<32x1xf32> to vector<32x128xf32>
    %150 = arith.addf %148, %149 : vector<32x128xf32>
    %cst_77 = arith.constant 2.000000e+01 : f32
    %151 = vector.broadcast %cst_77 : f32 to vector<32x128xf32>
    %152 = arith.cmpf ogt, %150, %151 : vector<32x128xf32>
    %cst_78 = arith.constant 2.000000e+01 : f32
    %153 = vector.broadcast %cst_78 : f32 to vector<32x128xf32>
    %154 = arith.minimumf %150, %153 : vector<32x128xf32>
    %155 = math.exp %154 : vector<32x128xf32>
    %156 = math.log1p %155 : vector<32x128xf32>
    %157 = arith.select %152, %150, %156 : vector<32x128xi1>, vector<32x128xf32>
    %cst_79 = arith.constant 0.693147182 : f32
    %158 = vector.broadcast %cst_79 : f32 to vector<32x128xf32>
    %159 = arith.subf %157, %158 : vector<32x128xf32>
    %cst_80 = arith.constant dense<0.000000e+00> : vector<4x128xf32>
    %160 = tpu.matmul %146, %159, %cst_80 {dimension_numbers = #tpu.dot_dimension_numbers<[1], [0], [0], [1], [0, 0, 1, 1], [], []>} : vector<4x32xf32>, vector<32x128xf32>, vector<4x128xf32> -> vector<4x128xf32>
    %161 = vector.broadcast %147 : vector<4x1xf32> to vector<4x128xf32>
    %162 = arith.addf %160, %161 : vector<4x128xf32>
    %c0_81 = arith.constant 0 : index
    %c0_82 = arith.constant 0 : index
    %163 = vector.load %arg6[%c0_81, %c0_82] : memref<128x16xf32, #tpu.memory_space<vmem>>, vector<128x16xf32>
    %cst_83 = arith.constant dense<0.000000e+00> : vector<4x16xf32>
    %164 = tpu.matmul %162, %163, %cst_83 {dimension_numbers = #tpu.dot_dimension_numbers<[1], [0], [0], [1], [0, 0, 1, 1], [], []>} : vector<4x128xf32>, vector<128x16xf32>, vector<4x16xf32> -> vector<4x16xf32>
    %165 = tpu.iota {dimensions = array<i32: 0>} : vector<4x16xi32>
    %cst_84 = arith.constant 2.000000e+01 : f32
    %166 = vector.broadcast %cst_84 : f32 to vector<4x16xf32>
    %167 = arith.cmpf ogt, %164, %166 : vector<4x16xf32>
    %cst_85 = arith.constant 2.000000e+01 : f32
    %168 = vector.broadcast %cst_85 : f32 to vector<4x16xf32>
    %169 = arith.minimumf %164, %168 : vector<4x16xf32>
    %170 = math.exp %169 : vector<4x16xf32>
    %171 = math.log1p %170 : vector<4x16xf32>
    %172 = arith.select %167, %164, %171 : vector<4x16xi1>, vector<4x16xf32>
    %c0_i32 = arith.constant 0 : i32
    %173 = vector.broadcast %c0_i32 : i32 to vector<4x16xi32>
    %174 = arith.cmpi eq, %165, %173 : vector<4x16xi32>
    %c2_i32 = arith.constant 2 : i32
    %175 = vector.broadcast %c2_i32 : i32 to vector<4x16xi32>
    %176 = arith.cmpi eq, %165, %175 : vector<4x16xi32>
    %cst_86 = arith.constant 1.00000095 : f32
    %177 = vector.broadcast %cst_86 : f32 to vector<4x16xf32>
    %178 = arith.addf %172, %177 : vector<4x16xf32>
    %cst_87 = arith.constant 9.99999997E-7 : f32
    %179 = vector.broadcast %cst_87 : f32 to vector<4x16xf32>
    %180 = arith.addf %172, %179 : vector<4x16xf32>
    %181 = arith.select %176, %178, %180 : vector<4x16xi1>, vector<4x16xf32>
    %182 = arith.select %174, %164, %181 : vector<4x16xi1>, vector<4x16xf32>
    %183 = vector.shape_cast %182 : vector<4x16xf32> to vector<1x4x16xf32>
    %c0_88 = arith.constant 0 : index
    %c0_89 = arith.constant 0 : index
    %c0_90 = arith.constant 0 : index
    %184 = vector.load %arg7[%c0_88, %c0_89, %c0_90] : memref<1x4x16xf32, #tpu.memory_space<vmem>>, vector<1x4x16xf32>
    tpu.vector_store %arg7[%c0_88, %c0_89, %c0_90], %183 {strides = array<i32>} : memref<1x4x16xf32, #tpu.memory_space<vmem>>, vector<1x4x16xf32>,
    return
  }
  func.func @transform_0(%arg0: i32) -> (i32, i32) {
    %c0_i32 = arith.constant 0 : i32
    %c0_i32_0 = arith.constant 0 : i32
    return %c0_i32, %arg0 : i32, i32
  }
  func.func @transform_1(%arg0: i32) -> (i32, i32) {
    %c0_i32 = arith.constant 0 : i32
    %c0_i32_0 = arith.constant 0 : i32
    return %c0_i32, %arg0 : i32, i32
  }
  func.func @transform_2(%arg0: i32) -> (i32, i32) {
    %c0_i32 = arith.constant 0 : i32
    %c0_i32_0 = arith.constant 0 : i32
    %c0_i32_1 = arith.constant 0 : i32
    return %c0_i32, %c0_i32_0 : i32, i32
  }
  func.func @transform_3(%arg0: i32) -> (i32, i32) {
    %c0_i32 = arith.constant 0 : i32
    %c0_i32_0 = arith.constant 0 : i32
    %c0_i32_1 = arith.constant 0 : i32
    return %c0_i32, %c0_i32_0 : i32, i32
  }
  func.func @transform_4(%arg0: i32) -> (i32, i32) {
    %c0_i32 = arith.constant 0 : i32
    %c0_i32_0 = arith.constant 0 : i32
    %c0_i32_1 = arith.constant 0 : i32
    return %c0_i32, %c0_i32_0 : i32, i32
  }
  func.func @transform_5(%arg0: i32) -> (i32, i32) {
    %c0_i32 = arith.constant 0 : i32
    %c0_i32_0 = arith.constant 0 : i32
    %c0_i32_1 = arith.constant 0 : i32
    return %c0_i32, %c0_i32_0 : i32, i32
  }
  func.func @transform_6(%arg0: i32) -> (i32, i32, i32) {
    %c0_i32 = arith.constant 0 : i32
    %c0_i32_0 = arith.constant 0 : i32
    %c0_i32_1 = arith.constant 0 : i32
    return %arg0, %c0_i32, %c0_i32_0 : i32, i32, i32
  }
}

</mosaic_0001>

<llo_original>
// kernel: atomistic_forward.1
$region0: #{atomistic_forward.1}
  #allocation0 [shape = 'u32[]', space=smem, size = 0x4, offset = 0x4, fixed_abs, tag = 'smem constant byte address 0x4 - core index']
  #allocation1 [shape = 'u32[144,128]{1,0:T(1,128)}', space=vmem, size = 0x12000, scoped, tag = 'internal scratch']
  %s0 = inlined_call_operand.vmem [shape: f32[32,256], index: 0, kind: input, shape index: {}]
  %s1 = inlined_call_operand.vmem [shape: f32[8,2048], index: 1, kind: input, shape index: {}]
  %s2 = inlined_call_operand.vmem [shape: f32[520,128], index: 2, kind: input, shape index: {}]
  %s3 = inlined_call_operand.vmem [shape: bf16[128,1024], index: 3, kind: input, shape index: {}]
  %s4 = inlined_call_operand.vmem [shape: bf16[1024,128], index: 4, kind: input, shape index: {}]
  %s5 = inlined_call_operand.vmem [shape: f32[128,16], index: 5, kind: input, shape index: {}]
  %s6 = inlined_call_operand.vmem [shape: f32[2,4,16], index: 6, kind: output, shape index: {}]
  %s7 = sld [smem:[#allocation0]]
  $region95: #{atomistic_forward.1} parent=0
    _
  %s9 = ssub.s32 1, %s7
  %s10 = scalar_select 0, %s9, %s7
  $region1: #{atomistic_forward.1} parent=0
    #allocation2 [shape = 'u8[32768]{0}', space=vmem, size = 0x8000, scoped, tag = 'input window, operand 0']
    loop: start=0, step=1, limit=4
    $region2: #{atomistic_forward.1} parent=1 // loop_pre_header
      _
    $region3: #{atomistic_forward.1} parent=1 // loop_header
      %s12 = sphi 0, %s16
      %p13 = scmp.ge.s32.totalorder %s12, 4
      %s22 = sphi 0, %s24
      %s25 = sphi 0, %s22
      %s26 = sphi 0, %s25
      %s42 = sphi 0, %s26
      %s48 = sphi 0, %s50
      %s51 = sphi 0, %s48
      %s52 = sphi 0, %s51
      %s68 = sphi 0, %s52
      %s72 = sphi 0, %s72
      %s74 = sphi 0, %s72
      %s75 = sphi 0, %s74
      %s89 = sphi 0, %s75
      %s93 = sphi 0, %s93
      %s95 = sphi 0, %s93
      %s96 = sphi 0, %s95
      %s110 = sphi 0, %s96
      %s114 = sphi 0, %s114
      %s116 = sphi 0, %s114
      %s117 = sphi 0, %s116
      %s131 = sphi 0, %s117
      %s135 = sphi 0, %s135
      %s137 = sphi 0, %s135
      %s138 = sphi 0, %s137
      %s152 = sphi 0, %s138
      %s158 = sphi 0, %s160
      %s161 = sphi 0, %s158
      %s162 = sphi 0, %s161
      %s178 = sphi 0, %s162
    $region4: #{atomistic_forward.1} parent=1 // loop_header_branch
      %15 = sbr.rel (%p13) target = $region8
    $region5: #{atomistic_forward.1} parent=1 // loop_body
      %s17 = ssub.s32 %s12, 1
      %s18 = ssub.s32 %s12, 2
      %s19 = sadd.s32 %s12, 1
      %s20 = ssub.s32 %s12, %s19
      %p21 = scmp.eq.s32.totalorder %s20, 0
      %s23 = sadd.s32 %s22, 1
      %s24 = scalar_select %p21, %s22, %s23
      %p27 = pneg %p21
      %p28 = scmp.eq.s32.totalorder %s12, 1
      %p29 = por %p27, %p28
      %p30 = scmp.ne.s32.totalorder %s22, %s25
      %p31 = scmp.eq.s32.totalorder %s12, 0
      %p32 = por %p30, %p31
      %p33 = scmp.ne.s32.totalorder %s22, %s25
      %p34 = scmp.eq.s32.totalorder %s17, 1
      %p35 = por %p33, %p34
      %p36 = scmp.ne.s32.totalorder %s25, %s26
      %p37 = scmp.eq.s32.totalorder %s17, 0
      %p38 = por %p36, %p37
      %p39 = scmp.ne.s32.totalorder %s25, %s26
      %p40 = scmp.eq.s32.totalorder %s18, 1
      %p41 = por %p39, %p40
      %p43 = scmp.ne.s32.totalorder %s26, %s42
      %p44 = scmp.eq.s32.totalorder %s18, 0
      %p45 = por %p43, %p44
      %s46 = ssub.s32 %s12, %s19
      %p47 = scmp.eq.s32.totalorder %s46, 0
      %s49 = sadd.s32 %s48, 1
      %s50 = scalar_select %p47, %s48, %s49
      %p53 = pneg %p47
      %p54 = scmp.eq.s32.totalorder %s12, 1
      %p55 = por %p53, %p54
      %p56 = scmp.ne.s32.totalorder %s48, %s51
      %p57 = scmp.eq.s32.totalorder %s12, 0
      %p58 = por %p56, %p57
      %p59 = scmp.ne.s32.totalorder %s48, %s51
      %p60 = scmp.eq.s32.totalorder %s17, 1
      %p61 = por %p59, %p60
      %p62 = scmp.ne.s32.totalorder %s51, %s52
      %p63 = scmp.eq.s32.totalorder %s17, 0
      %p64 = por %p62, %p63
      %p65 = scmp.ne.s32.totalorder %s51, %s52
      %p66 = scmp.eq.s32.totalorder %s18, 1
      %p67 = por %p65, %p66
      %p69 = scmp.ne.s32.totalorder %s52, %s68
      %p70 = scmp.eq.s32.totalorder %s18, 0
      %p71 = por %p69, %p70
      %s73 = sadd.s32 %s72, 1
      %p76 = scmp.eq.s32.totalorder %s12, 1
      %p77 = scmp.ne.s32.totalorder %s72, %s74
      %p78 = scmp.eq.s32.totalorder %s12, 0
      %p79 = por %p77, %p78
      %p80 = scmp.ne.s32.totalorder %s72, %s74
      %p81 = scmp.eq.s32.totalorder %s17, 1
      %p82 = por %p80, %p81
      %p83 = scmp.ne.s32.totalorder %s74, %s75
      %p84 = scmp.eq.s32.totalorder %s17, 0
      %p85 = por %p83, %p84
      %p86 = scmp.ne.s32.totalorder %s74, %s75
      %p87 = scmp.eq.s32.totalorder %s18, 1
      %p88 = por %p86, %p87
      %p90 = scmp.ne.s32.totalorder %s75, %s89
      %p91 = scmp.eq.s32.totalorder %s18, 0
      %p92 = por %p90, %p91
      %s94 = sadd.s32 %s93, 1
      %p97 = scmp.eq.s32.totalorder %s12, 1
      %p98 = scmp.ne.s32.totalorder %s93, %s95
      %p99 = scmp.eq.s32.totalorder %s12, 0
      %p100 = por %p98, %p99
      %p101 = scmp.ne.s32.totalorder %s93, %s95
      %p102 = scmp.eq.s32.totalorder %s17, 1
      %p103 = por %p101, %p102
      %p104 = scmp.ne.s32.totalorder %s95, %s96
      %p105 = scmp.eq.s32.totalorder %s17, 0
      %p106 = por %p104, %p105
      %p107 = scmp.ne.s32.totalorder %s95, %s96
      %p108 = scmp.eq.s32.totalorder %s18, 1
      %p109 = por %p107, %p108
      %p111 = scmp.ne.s32.totalorder %s96, %s110
      %p112 = scmp.eq.s32.totalorder %s18, 0
      %p113 = por %p111, %p112
      %s115 = sadd.s32 %s114, 1
      %p118 = scmp.eq.s32.totalorder %s12, 1
      %p119 = scmp.ne.s32.totalorder %s114, %s116
      %p120 = scmp.eq.s32.totalorder %s12, 0
      %p121 = por %p119, %p120
      %p122 = scmp.ne.s32.totalorder %s114, %s116
      %p123 = scmp.eq.s32.totalorder %s17, 1
      %p124 = por %p122, %p123
      %p125 = scmp.ne.s32.totalorder %s116, %s117
      %p126 = scmp.eq.s32.totalorder %s17, 0
      %p127 = por %p125, %p126
      %p128 = scmp.ne.s32.totalorder %s116, %s117
      %p129 = scmp.eq.s32.totalorder %s18, 1
      %p130 = por %p128, %p129
      %p132 = scmp.ne.s32.totalorder %s117, %s131
      %p133 = scmp.eq.s32.totalorder %s18, 0
      %p134 = por %p132, %p133
      %s136 = sadd.s32 %s135, 1
      %p139 = scmp.eq.s32.totalorder %s12, 1
      %p140 = scmp.ne.s32.totalorder %s135, %s137
      %p141 = scmp.eq.s32.totalorder %s12, 0
      %p142 = por %p140, %p141
      %p143 = scmp.ne.s32.totalorder %s135, %s137
      %p144 = scmp.eq.s32.totalorder %s17, 1
      %p145 = por %p143, %p144
      %p146 = scmp.ne.s32.totalorder %s137, %s138
      %p147 = scmp.eq.s32.totalorder %s17, 0
      %p148 = por %p146, %p147
      %p149 = scmp.ne.s32.totalorder %s137, %s138
      %p150 = scmp.eq.s32.totalorder %s18, 1
      %p151 = por %p149, %p150
      %p153 = scmp.ne.s32.totalorder %s138, %s152
      %p154 = scmp.eq.s32.totalorder %s18, 0
      %p155 = por %p153, %p154
      %s156 = ssub.s32 %s12, %s19
      %p157 = scmp.eq.s32.totalorder %s156, 0
      %s159 = sadd.s32 %s158, 1
      %s160 = scalar_select %p157, %s158, %s159
      %p163 = pneg %p157
      %p164 = scmp.eq.s32.totalorder %s12, 1
      %p165 = por %p163, %p164
      %p166 = scmp.ne.s32.totalorder %s158, %s161
      %p167 = scmp.eq.s32.totalorder %s12, 0
      %p168 = por %p166, %p167
      %p169 = scmp.ne.s32.totalorder %s158, %s161
      %p170 = scmp.eq.s32.totalorder %s17, 1
      %p171 = por %p169, %p170
      %p172 = scmp.ne.s32.totalorder %s161, %s162
      %p173 = scmp.eq.s32.totalorder %s17, 0
      %p174 = por %p172, %p173
      %p175 = scmp.ne.s32.totalorder %s161, %s162
      %p176 = scmp.eq.s32.totalorder %s18, 1
      %p177 = por %p175, %p176
      %p179 = scmp.ne.s32.totalorder %s162, %s178
      %p180 = scmp.eq.s32.totalorder %s18, 0
      %p181 = por %p179, %p180
      %p182 = scmp.le.s32.totalorder 1, %s12
      %p183 = scmp.lt.s32.totalorder %s12, 3
      %p184 = pnand %p182, %p183
      %p185 = pneg %p184
      // Predicated region
      $region9: #{atomistic_forward.1} parent=5 // pred_check
        _
      $region10: #{atomistic_forward.1} parent=5 // pred_check_branch
        %187 = sbr.rel (%p184) target = $region12
      $region11: #{atomistic_forward.1} parent=5 // pred_region
        %s188 = ssub.s32 %s12, 1
        // Predicated region
        $region13: #{atomistic_forward.1} parent=11 // pred_check
          %p189 = pneg %p85
        $region14: #{atomistic_forward.1} parent=11 // pred_check_branch
          %191 = sbr.rel (%p189) target = $region16
        $region15: #{atomistic_forward.1} parent=11 // pred_region
          _
        $region16: #{atomistic_forward.1} parent=11 // pred_fallthru
          _
        // Predicated region
        $region17: #{atomistic_forward.1} parent=11 // pred_check
          %p192 = pneg %p106
        $region18: #{atomistic_forward.1} parent=11 // pred_check_branch
          %194 = sbr.rel (%p192) target = $region20
        $region19: #{atomistic_forward.1} parent=11 // pred_region
          _
        $region20: #{atomistic_forward.1} parent=11 // pred_fallthru
          _
        // Predicated region
        $region21: #{atomistic_forward.1} parent=11 // pred_check
          %p195 = pneg %p127
        $region22: #{atomistic_forward.1} parent=11 // pred_check_branch
          %197 = sbr.rel (%p195) target = $region24
        $region23: #{atomistic_forward.1} parent=11 // pred_region
          _
        $region24: #{atomistic_forward.1} parent=11 // pred_fallthru
          _
        // Predicated region
        $region25: #{atomistic_forward.1} parent=11 // pred_check
          %p198 = pneg %p148
        $region26: #{atomistic_forward.1} parent=11 // pred_check_branch
          %200 = sbr.rel (%p198) target = $region28
        $region27: #{atomistic_forward.1} parent=11 // pred_region
          _
        $region28: #{atomistic_forward.1} parent=11 // pred_fallthru
          _
      $region12: #{atomistic_forward.1} parent=5 // pred_fallthru
        _
      %p201 = scmp.lt.s32.totalorder %s12, 2
      // Predicated region
      $region29: #{atomistic_forward.1} parent=5 // pred_check
        %p202 = pneg %p201
      $region30: #{atomistic_forward.1} parent=5 // pred_check_branch
        %204 = sbr.rel (%p202) target = $region32
      $region31: #{atomistic_forward.1} parent=5 // pred_region
        // Predicated region
        $region33: #{atomistic_forward.1} parent=31 // pred_check
          %p205 = pneg %p32
        $region34: #{atomistic_forward.1} parent=31 // pred_check_branch
          %207 = sbr.rel (%p205) target = $region36
        $region35: #{atomistic_forward.1} parent=31 // pred_region
          %s208 = sand.u32 %s22, 1
          %s209 = sand.u32 %s22, 1
          %s210 = smul.addr %s209, 32
          %s211 = scalar_lea.vmem [#allocation2], %s210
          %s212 = smul.addr %s12, 8
          %s213 = scalar_lea.vmem %s0, %s212
          // Predicated region
          $region37: #{atomistic_forward.1} parent=35 // pred_check
            _
          $region38: #{atomistic_forward.1} parent=35 // pred_check_branch
            %215 = sbr.rel (0) target = $region40
          $region39: #{atomistic_forward.1} parent=35 // pred_region
            // Predicated region
            $region41: #{atomistic_forward.1} parent=39 // pred_check
              _
            $region42: #{atomistic_forward.1} parent=39 // pred_check_branch
              %217 = sbr.rel (0) target = $region44
            $region43: #{atomistic_forward.1} parent=39 // pred_region
              // Predicated region
              $region56: #{atomistic_forward.1} parent=43 // pred_check
                _
              $region57: #{atomistic_forward.1} parent=43 // pred_check_branch
                %238 = sbr.rel (0) target = $region59
              $region58: #{atomistic_forward.1} parent=43 // pred_region
                loop: start=0, step=1, limit=1
                $region60: #{atomistic_forward.1} parent=58 // loop_pre_header
                  _
                $region61: #{atomistic_forward.1} parent=58 // loop_header
                  %s240 = sphi 0, %s244
                  %p241 = scmp.ge.s32.totalorder %s240, 1
                  %s245 = sphi %s213, %s213
                  %s246 = sphi %s211, %s211
                $region62: #{atomistic_forward.1} parent=58 // loop_header_branch
                  %243 = sbr.rel (%p241) target = $region66
                $region63: #{atomistic_forward.1} parent=58 // loop_body
                  %v247 = vld [vmem:[%s245] sm:$0xff]
                  %248 = vst [vmem:[%s246] sm:$0xff] %v247
                  %v249 = vld [vmem:[%s245 + $0x10] sm:$0xff]
                  %250 = vst [vmem:[%s246 + $0x8] sm:$0xff] %v249
                  %v251 = vld [vmem:[%s245 + $0x20] sm:$0xff]
                  %252 = vst [vmem:[%s246 + $0x10] sm:$0xff] %v251
                  %v253 = vld [vmem:[%s245 + $0x30] sm:$0xff]
                  %254 = vst [vmem:[%s246 + $0x18] sm:$0xff] %v253
                $region64: #{atomistic_forward.1} parent=58 // loop_footer
                  %s244 = sadd.s32 1, %s240
                $region65: #{atomistic_forward.1} parent=58 // loop_footer_branch
                  %239 = sbr.rel target = $region61
                $region66: #{atomistic_forward.1} parent=58 // loop_exit
                  _
              $region59: #{atomistic_forward.1} parent=43 // pred_fallthru
                _
              // Predicated region
              $region67: #{atomistic_forward.1} parent=43 // pred_check
                _
              $region68: #{atomistic_forward.1} parent=43 // pred_check_branch
                %256 = sbr.rel target = $region70
              $region69: #{atomistic_forward.1} parent=43 // pred_region
                _
              $region70: #{atomistic_forward.1} parent=43 // pred_fallthru
                _
            $region44: #{atomistic_forward.1} parent=39 // pred_fallthru
              _
            // Predicated region
            $region45: #{atomistic_forward.1} parent=39 // pred_check
              _
            $region46: #{atomistic_forward.1} parent=39 // pred_check_branch
              %219 = sbr.rel target = $region48
            $region47: #{atomistic_forward.1} parent=39 // pred_region
              loop: start=0, step=1, limit=1
              $region49: #{atomistic_forward.1} parent=47 // loop_pre_header
                _
              $region50: #{atomistic_forward.1} parent=47 // loop_header
                %s222 = sphi 0, %s226
                %p223 = scmp.ge.s32.totalorder %s222, 1
                %s227 = sphi %s213, %s213
                %s228 = sphi %s211, %s211
              $region51: #{atomistic_forward.1} parent=47 // loop_header_branch
                %225 = sbr.rel (%p223) target = $region55
              $region52: #{atomistic_forward.1} parent=47 // loop_body
                %v229 = vld [vmem:[%s227] sm:$0xff]
                %230 = vst [vmem:[%s228] sm:$0xff] %v229
                %v231 = vld [vmem:[%s227 + $0x10] sm:$0xff]
                %232 = vst [vmem:[%s228 + $0x8] sm:$0xff] %v231
                %v233 = vld [vmem:[%s227 + $0x20] sm:$0xff]
                %234 = vst [vmem:[%s228 + $0x10] sm:$0xff] %v233
                %v235 = vld [vmem:[%s227 + $0x30] sm:$0xff]
                %236 = vst [vmem:[%s228 + $0x18] sm:$0xff] %v235
              $region53: #{atomistic_forward.1} parent=47 // loop_footer
                %s226 = sadd.s32 1, %s222
              $region54: #{atomistic_forward.1} parent=47 // loop_footer_branch
                %221 = sbr.rel target = $region50
              $region55: #{atomistic_forward.1} parent=47 // loop_exit
                _
            $region48: #{atomistic_forward.1} parent=39 // pred_fallthru
              _
          $region40: #{atomistic_forward.1} parent=35 // pred_fallthru
            _
          %257 = vnop
        $region36: #{atomistic_forward.1} parent=31 // pred_fallthru
          _
        // Predicated region
        $region71: #{atomistic_forward.1} parent=31 // pred_check
          %p258 = pneg %p58
        $region72: #{atomistic_forward.1} parent=31 // pred_check_branch
          %260 = sbr.rel (%p258) target = $region74
        $region73: #{atomistic_forward.1} parent=31 // pred_region
          %s261 = smul.u32 8, %s12
          %p262 = scmp.lt.s32.totalorder %s261, 15
          %s263 = scalar_select %p262, %s261, 15
          %s264 = smul.addr %s263, 8
          %s265 = scalar_lea.vmem %s1, %s264
          %s266 = smul.u32 8, %s12
        $region74: #{atomistic_forward.1} parent=31 // pred_fallthru
          _
      $region32: #{atomistic_forward.1} parent=5 // pred_fallthru
        _
      %p267 = scmp.le.s32.totalorder 1, %s12
      %p268 = scmp.lt.s32.totalorder %s12, 3
      %p269 = pnand %p267, %p268
      %p270 = pneg %p269
      // Predicated region
      $region75: #{atomistic_forward.1} parent=5 // pred_check
        _
      $region76: #{atomistic_forward.1} parent=5 // pred_check_branch
        %272 = sbr.rel (%p269) target = $region78
      $region77: #{atomistic_forward.1} parent=5 // pred_region
        %s273 = ssub.s32 %s12, 1
        %s274 = sand.u32 %s25, 1
        %s275 = sand.u32 %s25, 1
        %s276 = smul.addr %s275, 32
        %s277 = scalar_lea.vmem [#allocation2], %s276
        // Predicated region
        $region79: #{atomistic_forward.1} parent=77 // pred_check
          %p278 = pneg %p38
        $region80: #{atomistic_forward.1} parent=77 // pred_check_branch
          %280 = sbr.rel (%p278) target = $region82
        $region81: #{atomistic_forward.1} parent=77 // pred_region
          _
        $region82: #{atomistic_forward.1} parent=77 // pred_fallthru
          _
        %s281 = sand.u32 %s25, 1
        %s282 = sand.u32 %s25, 1
        %s283 = smul.addr %s282, 32
        %s284 = scalar_lea.vmem [#allocation2], %s283
        %p285 = pneg %p38
        %p286 = pneg %p35
        %s287 = smul.u32 8, %s17
        %p288 = scmp.lt.s32.totalorder %s287, 15
        %s289 = scalar_select %p288, %s287, 15
        %s290 = smul.addr %s289, 8
        %s291 = scalar_lea.vmem %s1, %s290
        %p292 = pneg %p64
        %p293 = pneg %p61
        %p294 = pneg %p85
        %p295 = pneg %p82
        %p296 = pneg %p106
        %p297 = pneg %p103
        %p298 = pneg %p127
        %p299 = pneg %p124
        %p300 = pneg %p148
        %p301 = pneg %p145
        %p302 = pneg %p174
        %p303 = pneg %p171
        %p304 = scmp.lt.s32.totalorder %s17, 1
        %s305 = scalar_select %p304, %s17, 1
        %s306 = smul.addr %s305, 4
        %s307 = scalar_lea.vmem %s6, %s306
        %s308 = smul.u32 8, %s17
        %p309 = scmp.lt.s32.totalorder %s308, 15
        %s310 = scalar_select %p309, %s308, 15
        %s311 = smul.addr %s310, 8
        %s312 = scalar_lea.vmem %s1, %s311
        %s313 = smul.u32 8, %s17
        %p314 = scmp.lt.s32.totalorder %s17, 1
        %s315 = scalar_select %p314, %s17, 1
        %s316 = smul.addr %s315, 4
        %s317 = scalar_lea.vmem %s6, %s316
        %v319 = vld [vmem:[%s277] sm:$0xff]
        %v320 = vld [vmem:[%s277 + $0x8] sm:$0xff]
        %v321 = vld [vmem:[%s277 + $0x10] sm:$0xff]
        %v322 = vld [vmem:[%s277 + $0x18] sm:$0xff]
        %v323 = vld [vmem:[%s312] sm:$0xff]
        %v324 = vld [vmem:[%s312 + $0x8] sm:$0xff]
        %v325 = vld [vmem:[%s312 + $0x10] sm:$0xff]
        %v326 = vld [vmem:[%s312 + $0x18] sm:$0xff]
        %v327 = vld [vmem:[%s312 + $0x20] sm:$0xff]
        %v328 = vld [vmem:[%s312 + $0x28] sm:$0xff]
        %v329 = vld [vmem:[%s312 + $0x30] sm:$0xff]
        %v330 = vld [vmem:[%s312 + $0x38] sm:$0xff]
        %v339 = vrot.slane %v323, 4
        %v340 = vrot.slane %v324, 4
        %v341 = vrot.slane %v325, 4
        %v342 = vrot.slane %v326, 4
        %v343 = vrot.slane %v327, 4
        %v344 = vrot.slane %v328, 4
        %v345 = vrot.slane %v329, 4
        %v346 = vrot.slane %v330, 4
        %v355 = vsub.f32 %v323, %v339
        %v356 = vsub.f32 %v324, %v340
        %v357 = vsub.f32 %v325, %v341
        %v358 = vsub.f32 %v326, %v342
        %v359 = vsub.f32 %v327, %v343
        %v360 = vsub.f32 %v328, %v344
        %v361 = vsub.f32 %v329, %v345
        %v362 = vsub.f32 %v330, %v346
        %v363 = vmul.f32 %v355, %v355
        %v364 = vmul.f32 %v356, %v356
        %v365 = vmul.f32 %v357, %v357
        %v366 = vmul.f32 %v358, %v358
        %v367 = vmul.f32 %v359, %v359
        %v368 = vmul.f32 %v360, %v360
        %v369 = vmul.f32 %v361, %v361
        %v370 = vmul.f32 %v362, %v362
        %vm371 = vcmask 1042432
        %v372 = vsel %vm371, %v363, 0.0
        %v373 = vrot.slane %v372, 4
        %v374 = vadd.f32 %v372, %v373
        %v375 = vrot.slane %v374, 2
        %v376 = vadd.f32 %v374, %v375
        %v377 = vrot.slane %v376, 1
        %v378 = vadd.f32 %v376, %v377
        %v379 = vsel %vm371, %v364, 0.0
        %v380 = vrot.slane %v379, 4
        %v381 = vadd.f32 %v379, %v380
        %v382 = vrot.slane %v381, 2
        %v383 = vadd.f32 %v381, %v382
        %v384 = vrot.slane %v383, 1
        %v385 = vadd.f32 %v383, %v384
        %v386 = vsel %vm371, %v365, 0.0
        %v387 = vrot.slane %v386, 4
        %v388 = vadd.f32 %v386, %v387
        %v389 = vrot.slane %v388, 2
        %v390 = vadd.f32 %v388, %v389
        %v391 = vrot.slane %v390, 1
        %v392 = vadd.f32 %v390, %v391
        %v393 = vsel %vm371, %v366, 0.0
        %v394 = vrot.slane %v393, 4
        %v395 = vadd.f32 %v393, %v394
        %v396 = vrot.slane %v395, 2
        %v397 = vadd.f32 %v395, %v396
        %v398 = vrot.slane %v397, 1
        %v399 = vadd.f32 %v397, %v398
        %v400 = vsel %vm371, %v367, 0.0
        %v401 = vrot.slane %v400, 4
        %v402 = vadd.f32 %v400, %v401
        %v403 = vrot.slane %v402, 2
        %v404 = vadd.f32 %v402, %v403
        %v405 = vrot.slane %v404, 1
        %v406 = vadd.f32 %v404, %v405
        %v407 = vsel %vm371, %v368, 0.0
        %v408 = vrot.slane %v407, 4
        %v409 = vadd.f32 %v407, %v408
        %v410 = vrot.slane %v409, 2
        %v411 = vadd.f32 %v409, %v410
        %v412 = vrot.slane %v411, 1
        %v413 = vadd.f32 %v411, %v412
        %v414 = vsel %vm371, %v369, 0.0
        %v415 = vrot.slane %v414, 4
        %v416 = vadd.f32 %v414, %v415
        %v417 = vrot.slane %v416, 2
        %v418 = vadd.f32 %v416, %v417
        %v419 = vrot.slane %v418, 1
        %v420 = vadd.f32 %v418, %v419
        %v421 = vsel %vm371, %v370, 0.0
        %v422 = vrot.slane %v421, 4
        %v423 = vadd.f32 %v421, %v422
        %v424 = vrot.slane %v423, 2
        %v425 = vadd.f32 %v423, %v424
        %v426 = vrot.slane %v425, 1
        %v427 = vadd.f32 %v425, %v426
        %v428 = vrsqrt.pop %v378
        %v429 = vmul.f32 %v378, %v428
        %vm430 = vcmp.eq.f32.partialorder %v378, inf
        %v431 = vsel %vm430, %v378, %v429
        %vm432 = vcmp.eq.f32.partialorder %v378, 0.0
        %v433 = vand.u32 %v378, 2147483648
        %v434 = vsel %vm432, %v433, %v431
        %v435 = vrsqrt.pop %v385
        %v436 = vmul.f32 %v385, %v435
        %vm437 = vcmp.eq.f32.partialorder %v385, inf
        %v438 = vsel %vm437, %v385, %v436
        %vm439 = vcmp.eq.f32.partialorder %v385, 0.0
        %v440 = vand.u32 %v385, 2147483648
        %v441 = vsel %vm439, %v440, %v438
        %v442 = vrsqrt.pop %v392
        %v443 = vmul.f32 %v392, %v442
        %vm444 = vcmp.eq.f32.partialorder %v392, inf
        %v445 = vsel %vm444, %v392, %v443
        %vm446 = vcmp.eq.f32.partialorder %v392, 0.0
        %v447 = vand.u32 %v392, 2147483648
        %v448 = vsel %vm446, %v447, %v445
        %v449 = vrsqrt.pop %v399
        %v450 = vmul.f32 %v399, %v449
        %vm451 = vcmp.eq.f32.partialorder %v399, inf
        %v452 = vsel %vm451, %v399, %v450
        %vm453 = vcmp.eq.f32.partialorder %v399, 0.0
        %v454 = vand.u32 %v399, 2147483648
        %v455 = vsel %vm453, %v454, %v452
        %v456 = vrsqrt.pop %v406
        %v457 = vmul.f32 %v406, %v456
        %vm458 = vcmp.eq.f32.partialorder %v406, inf
        %v459 = vsel %vm458, %v406, %v457
        %vm460 = vcmp.eq.f32.partialorder %v406, 0.0
        %v461 = vand.u32 %v406, 2147483648
        %v462 = vsel %vm460, %v461, %v459
        %v463 = vrsqrt.pop %v413
        %v464 = vmul.f32 %v413, %v463
        %vm465 = vcmp.eq.f32.partialorder %v413, inf
        %v466 = vsel %vm465, %v413, %v464
        %vm467 = vcmp.eq.f32.partialorder %v413, 0.0
        %v468 = vand.u32 %v413, 2147483648
        %v469 = vsel %vm467, %v468, %v466
        %v470 = vrsqrt.pop %v420
        %v471 = vmul.f32 %v420, %v470
        %vm472 = vcmp.eq.f32.partialorder %v420, inf
        %v473 = vsel %vm472, %v420, %v471
        %vm474 = vcmp.eq.f32.partialorder %v420, 0.0
        %v475 = vand.u32 %v420, 2147483648
        %v476 = vsel %vm474, %v475, %v473
        %v477 = vrsqrt.pop %v427
        %v478 = vmul.f32 %v427, %v477
        %vm479 = vcmp.eq.f32.partialorder %v427, inf
        %v480 = vsel %vm479, %v427, %v478
        %vm481 = vcmp.eq.f32.partialorder %v427, 0.0
        %v482 = vand.u32 %v427, 2147483648
        %v483 = vsel %vm481, %v482, %v480
        %v484 = vmul.f32 %v434, 0.62831855
        %v485 = vmul.f32 %v441, 0.62831855
        %v486 = vmul.f32 %v448, 0.62831855
        %v487 = vmul.f32 %v455, 0.62831855
        %v488 = vmul.f32 %v462, 0.62831855
        %v489 = vmul.f32 %v469, 0.62831855
        %v490 = vmul.f32 %v476, 0.62831855
        %v491 = vmul.f32 %v483, 0.62831855
        %v492 = vand.u32 2147483647, %v484
        %vm493 = vcmp.le.f32.partialorder %v492, 0.7853982
        %vm494 = vcmp.lt.s32.totalorder %v484, 0
        %v495 = vand.u32 %v484, 2139095040
        %v496 = vshrl.u32 %v495, 23
        %v497 = vsub.s32 %v496, 127
        %v498 = vand.u32 2147483647, %v484
        %v499 = vand.u32 %v498, 8388607
        %v500 = vor.u32 %v499, 8388608
        %v501 = vsub.s32 0, %v500
        %v502 = vadd.s32 %v497, 1
        %vm503 = vcmp.gt.s32.totalorder %v502, 0
        %v504 = vsel %vm503, %v502, 0
        %v505 = vshrl.u32 %v504, 5
        %v506 = vand.u32 %v504, 31
        %v507 = vsub.s32 32, %v506
        %v508 = vshrl.u32 683565275, %v507
        %v509 = vshll.u32 683565275, %v506
        %v510 = vshrl.u32 2475754826, %v507
        %v511 = vor.u32 %v509, %v510
        %v512 = vshll.u32 2475754826, %v506
        %v513 = vshrl.u32 2131351028, %v507
        %v514 = vor.u32 %v512, %v513
        %v515 = vshll.u32 2131351028, %v506
        %v516 = vshrl.u32 2102212464, %v507
        %v517 = vor.u32 %v515, %v516
        %v518 = vshll.u32 2102212464, %v506
        %v519 = vshrl.u32 920167782, %v507
        %v520 = vor.u32 %v518, %v519
        %v521 = vshll.u32 920167782, %v506
        %v522 = vshrl.u32 1326507024, %v507
        %v523 = vor.u32 %v521, %v522
        %vm524 = vcmp.lt.s32.totalorder %v505, 1
        %vm525 = vcmp.lt.s32.totalorder %v505, 2
        %vm526 = vcmp.lt.s32.totalorder %v505, 3
        %vm527 = vcmp.lt.s32.totalorder %v505, 4
        %v528 = vsel %vm524, %v508, %v511
        %v529 = vsel %vm527, %v517, 2102212464
        %v530 = vsel %vm526, %v514, %v529
        %v531 = vsel %vm525, %v528, %v530
        %v532 = vsel %vm524, %v511, %v514
        %v533 = vsel %vm527, %v520, 920167782
        %v534 = vsel %vm526, %v517, %v533
        %v535 = vsel %vm525, %v532, %v534
        %v536 = vsel %vm524, %v514, %v517
        %v537 = vsel %vm527, %v523, 1326507024
        %v538 = vsel %vm526, %v520, %v537
        %v539 = vsel %vm525, %v536, %v538
        %v540 = vshll.u32 %v500, 8
        %v541 = vmul.u32.u64.compose %v540, %v539
        %v542 = vextract.low.u32 %v541
        %v543 = vextract.high.u32 %v541
        %v544 = vmul.u32.u64.compose %v540, %v535
        %v545 = vextract.low.u32 %v544
        %v546 = vextract.high.u32 %v544
        %v547 = vmul.u32 %v540, %v531
        %v548 = vadd.s32 %v543, %v545
        %vm549 = vc.u32 %v543, %v545
        %v550 = vadd.s32 %v546, 1
        %v551 = vsel %vm549, %v550, %v546
        %v552 = vadd.s32 %v547, %v551
        %v553 = vadd.s32 %v552, 536870912
        %v554 = vshrl.u32 %v553, 30
        %v555 = vshll.u32 %v554, 30
        %v556 = vsub.s32 %v552, %v555
        %vm557 = vcmp.lt.s32.totalorder %v556, 0
        %v558 = vsub.s32 0, %v556
        %v559 = vsel %vm557, %v558, %v556
        %v560 = vclz %v559
        %v561 = vsub.s32 %v560, 2
        %vm562 = vcmp.gt.s32.totalorder 0, %v561
        %v563 = vsel %vm562, 0, %v561
        %v564 = vsub.s32 32, %v563
        %v565 = vshll.u32 %v556, %v563
        %v566 = vshrl.u32 %v548, %v564
        %v567 = vor.u32 %v565, %v566
        %v568 = vsub.s32 4294967266, %v563
        %v569 = vadd.s32 %v568, 127
        %v570 = vshll.u32 %v569, 23
        %v571 = vor.u32 4788187, %v570
        %v572 = vand.u32 2147483647, %v571
        %v574 = vcvt.s32.f32 %v567
        %v575 = vmul.f32 %v574, %v572
        %v576 = vxor.u32 %v575, 2147483648
        %v577 = vsel %vm494, %v576, %v575
        %v578 = vsub.s32 4, %v554
        %v579 = vsel %vm494, %v578, %v554
        %v580 = vsel %vm493, %v484, %v577
        %v581 = vsel %vm493, 0, %v579
        %v582 = vcosq.f32.pop %v580
        %v583 = vsinq.f32.pop %v580
        %vm584 = vweird.f32 %v484
        %v585 = vand.u32 %v581, 3
        %vm586 = vcmp.lt.s32.totalorder %v585, 2
        %vm587 = vcmp.eq.s32.totalorder %v585, 0
        %v588 = vxor.u32 %v583, 2147483648
        %v589 = vsel %vm587, %v582, %v588
        %vm590 = vcmp.eq.s32.totalorder %v585, 2
        %v591 = vxor.u32 %v582, 2147483648
        %v592 = vsel %vm590, %v591, %v583
        %v593 = vsel %vm586, %v589, %v592
        %v594 = vsel %vm584, nan, %v593
        %v595 = vand.u32 2147483647, %v485
        %vm596 = vcmp.le.f32.partialorder %v595, 0.7853982
        %vm597 = vcmp.lt.s32.totalorder %v485, 0
        %v598 = vand.u32 %v485, 2139095040
        %v599 = vshrl.u32 %v598, 23
        %v600 = vsub.s32 %v599, 127
        %v601 = vand.u32 2147483647, %v485
        %v602 = vand.u32 %v601, 8388607
        %v603 = vor.u32 %v602, 8388608
        %v604 = vsub.s32 0, %v603
        %v605 = vadd.s32 %v600, 1
        %vm606 = vcmp.gt.s32.totalorder %v605, 0
        %v607 = vsel %vm606, %v605, 0
        %v608 = vshrl.u32 %v607, 5
        %v609 = vand.u32 %v607, 31
        %v610 = vsub.s32 32, %v609
        %v611 = vshrl.u32 683565275, %v610
        %v612 = vshll.u32 683565275, %v609
        %v613 = vshrl.u32 2475754826, %v610
        %v614 = vor.u32 %v612, %v613
        %v615 = vshll.u32 2475754826, %v609
        %v616 = vshrl.u32 2131351028, %v610
        %v617 = vor.u32 %v615, %v616
        %v618 = vshll.u32 2131351028, %v609
        %v619 = vshrl.u32 2102212464, %v610
        %v620 = vor.u32 %v618, %v619
        %v621 = vshll.u32 2102212464, %v609
        %v622 = vshrl.u32 920167782, %v610
        %v623 = vor.u32 %v621, %v622
        %v624 = vshll.u32 920167782, %v609
        %v625 = vshrl.u32 1326507024, %v610
        %v626 = vor.u32 %v624, %v625
        %vm627 = vcmp.lt.s32.totalorder %v608, 1
        %vm628 = vcmp.lt.s32.totalorder %v608, 2
        %vm629 = vcmp.lt.s32.totalorder %v608, 3
        %vm630 = vcmp.lt.s32.totalorder %v608, 4
        %v631 = vsel %vm627, %v611, %v614
        %v632 = vsel %vm630, %v620, 2102212464
        %v633 = vsel %vm629, %v617, %v632
        %v634 = vsel %vm628, %v631, %v633
        %v635 = vsel %vm627, %v614, %v617
        %v636 = vsel %vm630, %v623, 920167782
        %v637 = vsel %vm629, %v620, %v636
        %v638 = vsel %vm628, %v635, %v637
        %v639 = vsel %vm627, %v617, %v620
        %v640 = vsel %vm630, %v626, 1326507024
        %v641 = vsel %vm629, %v623, %v640
        %v642 = vsel %vm628, %v639, %v641
        %v643 = vshll.u32 %v603, 8
        %v644 = vmul.u32.u64.compose %v643, %v642
        %v645 = vextract.low.u32 %v644
        %v646 = vextract.high.u32 %v644
        %v647 = vmul.u32.u64.compose %v643, %v638
        %v648 = vextract.low.u32 %v647
        %v649 = vextract.high.u32 %v647
        %v650 = vmul.u32 %v643, %v634
        %v651 = vadd.s32 %v646, %v648
        %vm652 = vc.u32 %v646, %v648
        %v653 = vadd.s32 %v649, 1
        %v654 = vsel %vm652, %v653, %v649
        %v655 = vadd.s32 %v650, %v654
        %v656 = vadd.s32 %v655, 536870912
        %v657 = vshrl.u32 %v656, 30
        %v658 = vshll.u32 %v657, 30
        %v659 = vsub.s32 %v655, %v658
        %vm660 = vcmp.lt.s32.totalorder %v659, 0
        %v661 = vsub.s32 0, %v659
        %v662 = vsel %vm660, %v661, %v659
        %v663 = vclz %v662
        %v664 = vsub.s32 %v663, 2
        %vm665 = vcmp.gt.s32.totalorder 0, %v664
        %v666 = vsel %vm665, 0, %v664
        %v667 = vsub.s32 32, %v666
        %v668 = vshll.u32 %v659, %v666
        %v669 = vshrl.u32 %v651, %v667
        %v670 = vor.u32 %v668, %v669
        %v671 = vsub.s32 4294967266, %v666
        %v672 = vadd.s32 %v671, 127
        %v673 = vshll.u32 %v672, 23
        %v674 = vor.u32 4788187, %v673
        %v675 = vand.u32 2147483647, %v674
        %v677 = vcvt.s32.f32 %v670
        %v678 = vmul.f32 %v677, %v675
        %v679 = vxor.u32 %v678, 2147483648
        %v680 = vsel %vm597, %v679, %v678
        %v681 = vsub.s32 4, %v657
        %v682 = vsel %vm597, %v681, %v657
        %v683 = vsel %vm596, %v485, %v680
        %v684 = vsel %vm596, 0, %v682
        %v685 = vcosq.f32.pop %v683
        %v686 = vsinq.f32.pop %v683
        %vm687 = vweird.f32 %v485
        %v688 = vand.u32 %v684, 3
        %vm689 = vcmp.lt.s32.totalorder %v688, 2
        %vm690 = vcmp.eq.s32.totalorder %v688, 0
        %v691 = vxor.u32 %v686, 2147483648
        %v692 = vsel %vm690, %v685, %v691
        %vm693 = vcmp.eq.s32.totalorder %v688, 2
        %v694 = vxor.u32 %v685, 2147483648
        %v695 = vsel %vm693, %v694, %v686
        %v696 = vsel %vm689, %v692, %v695
        %v697 = vsel %vm687, nan, %v696
        %v698 = vand.u32 2147483647, %v486
        %vm699 = vcmp.le.f32.partialorder %v698, 0.7853982
        %vm700 = vcmp.lt.s32.totalorder %v486, 0
        %v701 = vand.u32 %v486, 2139095040
        %v702 = vshrl.u32 %v701, 23
        %v703 = vsub.s32 %v702, 127
        %v704 = vand.u32 2147483647, %v486
        %v705 = vand.u32 %v704, 8388607
        %v706 = vor.u32 %v705, 8388608
        %v707 = vsub.s32 0, %v706
        %v708 = vadd.s32 %v703, 1
        %vm709 = vcmp.gt.s32.totalorder %v708, 0
        %v710 = vsel %vm709, %v708, 0
        %v711 = vshrl.u32 %v710, 5
        %v712 = vand.u32 %v710, 31
        %v713 = vsub.s32 32, %v712
        %v714 = vshrl.u32 683565275, %v713
        %v715 = vshll.u32 683565275, %v712
        %v716 = vshrl.u32 2475754826, %v713
        %v717 = vor.u32 %v715, %v716
        %v718 = vshll.u32 2475754826, %v712
        %v719 = vshrl.u32 2131351028, %v713
        %v720 = vor.u32 %v718, %v719
        %v721 = vshll.u32 2131351028, %v712
        %v722 = vshrl.u32 2102212464, %v713
        %v723 = vor.u32 %v721, %v722
        %v724 = vshll.u32 2102212464, %v712
        %v725 = vshrl.u32 920167782, %v713
        %v726 = vor.u32 %v724, %v725
        %v727 = vshll.u32 920167782, %v712
        %v728 = vshrl.u32 1326507024, %v713
        %v729 = vor.u32 %v727, %v728
        %vm730 = vcmp.lt.s32.totalorder %v711, 1
        %vm731 = vcmp.lt.s32.totalorder %v711, 2
        %vm732 = vcmp.lt.s32.totalorder %v711, 3
        %vm733 = vcmp.lt.s32.totalorder %v711, 4
        %v734 = vsel %vm730, %v714, %v717
        %v735 = vsel %vm733, %v723, 2102212464
        %v736 = vsel %vm732, %v720, %v735
        %v737 = vsel %vm731, %v734, %v736
        %v738 = vsel %vm730, %v717, %v720
        %v739 = vsel %vm733, %v726, 920167782
        %v740 = vsel %vm732, %v723, %v739
        %v741 = vsel %vm731, %v738, %v740
        %v742 = vsel %vm730, %v720, %v723
        %v743 = vsel %vm733, %v729, 1326507024
        %v744 = vsel %vm732, %v726, %v743
        %v745 = vsel %vm731, %v742, %v744
        %v746 = vshll.u32 %v706, 8
        %v747 = vmul.u32.u64.compose %v746, %v745
        %v748 = vextract.low.u32 %v747
        %v749 = vextract.high.u32 %v747
        %v750 = vmul.u32.u64.compose %v746, %v741
        %v751 = vextract.low.u32 %v750
        %v752 = vextract.high.u32 %v750
        %v753 = vmul.u32 %v746, %v737
        %v754 = vadd.s32 %v749, %v751
        %vm755 = vc.u32 %v749, %v751
        %v756 = vadd.s32 %v752, 1
        %v757 = vsel %vm755, %v756, %v752
        %v758 = vadd.s32 %v753, %v757
        %v759 = vadd.s32 %v758, 536870912
        %v760 = vshrl.u32 %v759, 30
        %v761 = vshll.u32 %v760, 30
        %v762 = vsub.s32 %v758, %v761
        %vm763 = vcmp.lt.s32.totalorder %v762, 0
        %v764 = vsub.s32 0, %v762
        %v765 = vsel %vm763, %v764, %v762
        %v766 = vclz %v765
        %v767 = vsub.s32 %v766, 2
        %vm768 = vcmp.gt.s32.totalorder 0, %v767
        %v769 = vsel %vm768, 0, %v767
        %v770 = vsub.s32 32, %v769
        %v771 = vshll.u32 %v762, %v769
        %v772 = vshrl.u32 %v754, %v770
        %v773 = vor.u32 %v771, %v772
        %v774 = vsub.s32 4294967266, %v769
        %v775 = vadd.s32 %v774, 127
        %v776 = vshll.u32 %v775, 23
        %v777 = vor.u32 4788187, %v776
        %v778 = vand.u32 2147483647, %v777
        %v780 = vcvt.s32.f32 %v773
        %v781 = vmul.f32 %v780, %v778
        %v782 = vxor.u32 %v781, 2147483648
        %v783 = vsel %vm700, %v782, %v781
        %v784 = vsub.s32 4, %v760
        %v785 = vsel %vm700, %v784, %v760
        %v786 = vsel %vm699, %v486, %v783
        %v787 = vsel %vm699, 0, %v785
        %v788 = vcosq.f32.pop %v786
        %v789 = vsinq.f32.pop %v786
        %vm790 = vweird.f32 %v486
        %v791 = vand.u32 %v787, 3
        %vm792 = vcmp.lt.s32.totalorder %v791, 2
        %vm793 = vcmp.eq.s32.totalorder %v791, 0
        %v794 = vxor.u32 %v789, 2147483648
        %v795 = vsel %vm793, %v788, %v794
        %vm796 = vcmp.eq.s32.totalorder %v791, 2
        %v797 = vxor.u32 %v788, 2147483648
        %v798 = vsel %vm796, %v797, %v789
        %v799 = vsel %vm792, %v795, %v798
        %v800 = vsel %vm790, nan, %v799
        %v801 = vand.u32 2147483647, %v487
        %vm802 = vcmp.le.f32.partialorder %v801, 0.7853982
        %vm803 = vcmp.lt.s32.totalorder %v487, 0
        %v804 = vand.u32 %v487, 2139095040
        %v805 = vshrl.u32 %v804, 23
        %v806 = vsub.s32 %v805, 127
        %v807 = vand.u32 2147483647, %v487
        %v808 = vand.u32 %v807, 8388607
        %v809 = vor.u32 %v808, 8388608
        %v810 = vsub.s32 0, %v809
        %v811 = vadd.s32 %v806, 1
        %vm812 = vcmp.gt.s32.totalorder %v811, 0
        %v813 = vsel %vm812, %v811, 0
        %v814 = vshrl.u32 %v813, 5
        %v815 = vand.u32 %v813, 31
        %v816 = vsub.s32 32, %v815
        %v817 = vshrl.u32 683565275, %v816
        %v818 = vshll.u32 683565275, %v815
        %v819 = vshrl.u32 2475754826, %v816
        %v820 = vor.u32 %v818, %v819
        %v821 = vshll.u32 2475754826, %v815
        %v822 = vshrl.u32 2131351028, %v816
        %v823 = vor.u32 %v821, %v822
        %v824 = vshll.u32 2131351028, %v815
        %v825 = vshrl.u32 2102212464, %v816
        %v826 = vor.u32 %v824, %v825
        %v827 = vshll.u32 2102212464, %v815
        %v828 = vshrl.u32 920167782, %v816
        %v829 = vor.u32 %v827, %v828
        %v830 = vshll.u32 920167782, %v815
        %v831 = vshrl.u32 1326507024, %v816
        %v832 = vor.u32 %v830, %v831
        %vm833 = vcmp.lt.s32.totalorder %v814, 1
        %vm834 = vcmp.lt.s32.totalorder %v814, 2
        %vm835 = vcmp.lt.s32.totalorder %v814, 3
        %vm836 = vcmp.lt.s32.totalorder %v814, 4
        %v837 = vsel %vm833, %v817, %v820
        %v838 = vsel %vm836, %v826, 2102212464
        %v839 = vsel %vm835, %v823, %v838
        %v840 = vsel %vm834, %v837, %v839
        %v841 = vsel %vm833, %v820, %v823
        %v842 = vsel %vm836, %v829, 920167782
        %v843 = vsel %vm835, %v826, %v842
        %v844 = vsel %vm834, %v841, %v843
        %v845 = vsel %vm833, %v823, %v826
        %v846 = vsel %vm836, %v832, 1326507024
        %v847 = vsel %vm835, %v829, %v846
        %v848 = vsel %vm834, %v845, %v847
        %v849 = vshll.u32 %v809, 8
        %v850 = vmul.u32.u64.compose %v849, %v848
        %v851 = vextract.low.u32 %v850
        %v852 = vextract.high.u32 %v850
        %v853 = vmul.u32.u64.compose %v849, %v844
        %v854 = vextract.low.u32 %v853
        %v855 = vextract.high.u32 %v853
        %v856 = vmul.u32 %v849, %v840
        %v857 = vadd.s32 %v852, %v854
        %vm858 = vc.u32 %v852, %v854
        %v859 = vadd.s32 %v855, 1
        %v860 = vsel %vm858, %v859, %v855
        %v861 = vadd.s32 %v856, %v860
        %v862 = vadd.s32 %v861, 536870912
        %v863 = vshrl.u32 %v862, 30
        %v864 = vshll.u32 %v863, 30
        %v865 = vsub.s32 %v861, %v864
        %vm866 = vcmp.lt.s32.totalorder %v865, 0
        %v867 = vsub.s32 0, %v865
        %v868 = vsel %vm866, %v867, %v865
        %v869 = vclz %v868
        %v870 = vsub.s32 %v869, 2
        %vm871 = vcmp.gt.s32.totalorder 0, %v870
        %v872 = vsel %vm871, 0, %v870
        %v873 = vsub.s32 32, %v872
        %v874 = vshll.u32 %v865, %v872
        %v875 = vshrl.u32 %v857, %v873
        %v876 = vor.u32 %v874, %v875
        %v877 = vsub.s32 4294967266, %v872
        %v878 = vadd.s32 %v877, 127
        %v879 = vshll.u32 %v878, 23
        %v880 = vor.u32 4788187, %v879
        %v881 = vand.u32 2147483647, %v880
        %v883 = vcvt.s32.f32 %v876
        %v884 = vmul.f32 %v883, %v881
        %v885 = vxor.u32 %v884, 2147483648
        %v886 = vsel %vm803, %v885, %v884
        %v887 = vsub.s32 4, %v863
        %v888 = vsel %vm803, %v887, %v863
        %v889 = vsel %vm802, %v487, %v886
        %v890 = vsel %vm802, 0, %v888
        %v891 = vcosq.f32.pop %v889
        %v892 = vsinq.f32.pop %v889
        %vm893 = vweird.f32 %v487
        %v894 = vand.u32 %v890, 3
        %vm895 = vcmp.lt.s32.totalorder %v894, 2
        %vm896 = vcmp.eq.s32.totalorder %v894, 0
        %v897 = vxor.u32 %v892, 2147483648
        %v898 = vsel %vm896, %v891, %v897
        %vm899 = vcmp.eq.s32.totalorder %v894, 2
        %v900 = vxor.u32 %v891, 2147483648
        %v901 = vsel %vm899, %v900, %v892
        %v902 = vsel %vm895, %v898, %v901
        %v903 = vsel %vm893, nan, %v902
        %v904 = vand.u32 2147483647, %v488
        %vm905 = vcmp.le.f32.partialorder %v904, 0.7853982
        %vm906 = vcmp.lt.s32.totalorder %v488, 0
        %v907 = vand.u32 %v488, 2139095040
        %v908 = vshrl.u32 %v907, 23
        %v909 = vsub.s32 %v908, 127
        %v910 = vand.u32 2147483647, %v488
        %v911 = vand.u32 %v910, 8388607
        %v912 = vor.u32 %v911, 8388608
        %v913 = vsub.s32 0, %v912
        %v914 = vadd.s32 %v909, 1
        %vm915 = vcmp.gt.s32.totalorder %v914, 0
        %v916 = vsel %vm915, %v914, 0
        %v917 = vshrl.u32 %v916, 5
        %v918 = vand.u32 %v916, 31
        %v919 = vsub.s32 32, %v918
        %v920 = vshrl.u32 683565275, %v919
        %v921 = vshll.u32 683565275, %v918
        %v922 = vshrl.u32 2475754826, %v919
        %v923 = vor.u32 %v921, %v922
        %v924 = vshll.u32 2475754826, %v918
        %v925 = vshrl.u32 2131351028, %v919
        %v926 = vor.u32 %v924, %v925
        %v927 = vshll.u32 2131351028, %v918
        %v928 = vshrl.u32 2102212464, %v919
        %v929 = vor.u32 %v927, %v928
        %v930 = vshll.u32 2102212464, %v918
        %v931 = vshrl.u32 920167782, %v919
        %v932 = vor.u32 %v930, %v931
        %v933 = vshll.u32 920167782, %v918
        %v934 = vshrl.u32 1326507024, %v919
        %v935 = vor.u32 %v933, %v934
        %vm936 = vcmp.lt.s32.totalorder %v917, 1
        %vm937 = vcmp.lt.s32.totalorder %v917, 2
        %vm938 = vcmp.lt.s32.totalorder %v917, 3
        %vm939 = vcmp.lt.s32.totalorder %v917, 4
        %v940 = vsel %vm936, %v920, %v923
        %v941 = vsel %vm939, %v929, 2102212464
        %v942 = vsel %vm938, %v926, %v941
        %v943 = vsel %vm937, %v940, %v942
        %v944 = vsel %vm936, %v923, %v926
        %v945 = vsel %vm939, %v932, 920167782
        %v946 = vsel %vm938, %v929, %v945
        %v947 = vsel %vm937, %v944, %v946
        %v948 = vsel %vm936, %v926, %v929
        %v949 = vsel %vm939, %v935, 1326507024
        %v950 = vsel %vm938, %v932, %v949
        %v951 = vsel %vm937, %v948, %v950
        %v952 = vshll.u32 %v912, 8
        %v953 = vmul.u32.u64.compose %v952, %v951
        %v954 = vextract.low.u32 %v953
        %v955 = vextract.high.u32 %v953
        %v956 = vmul.u32.u64.compose %v952, %v947
        %v957 = vextract.low.u32 %v956
        %v958 = vextract.high.u32 %v956
        %v959 = vmul.u32 %v952, %v943
        %v960 = vadd.s32 %v955, %v957
        %vm961 = vc.u32 %v955, %v957
        %v962 = vadd.s32 %v958, 1
        %v963 = vsel %vm961, %v962, %v958
        %v964 = vadd.s32 %v959, %v963
        %v965 = vadd.s32 %v964, 536870912
        %v966 = vshrl.u32 %v965, 30
        %v967 = vshll.u32 %v966, 30
        %v968 = vsub.s32 %v964, %v967
        %vm969 = vcmp.lt.s32.totalorder %v968, 0
        %v970 = vsub.s32 0, %v968
        %v971 = vsel %vm969, %v970, %v968
        %v972 = vclz %v971
        %v973 = vsub.s32 %v972, 2
        %vm974 = vcmp.gt.s32.totalorder 0, %v973
        %v975 = vsel %vm974, 0, %v973
        %v976 = vsub.s32 32, %v975
        %v977 = vshll.u32 %v968, %v975
        %v978 = vshrl.u32 %v960, %v976
        %v979 = vor.u32 %v977, %v978
        %v980 = vsub.s32 4294967266, %v975
        %v981 = vadd.s32 %v980, 127
        %v982 = vshll.u32 %v981, 23
        %v983 = vor.u32 4788187, %v982
        %v984 = vand.u32 2147483647, %v983
        %v986 = vcvt.s32.f32 %v979
        %v987 = vmul.f32 %v986, %v984
        %v988 = vxor.u32 %v987, 2147483648
        %v989 = vsel %vm906, %v988, %v987
        %v990 = vsub.s32 4, %v966
        %v991 = vsel %vm906, %v990, %v966
        %v992 = vsel %vm905, %v488, %v989
        %v993 = vsel %vm905, 0, %v991
        %v994 = vcosq.f32.pop %v992
        %v995 = vsinq.f32.pop %v992
        %vm996 = vweird.f32 %v488
        %v997 = vand.u32 %v993, 3
        %vm998 = vcmp.lt.s32.totalorder %v997, 2
        %vm999 = vcmp.eq.s32.totalorder %v997, 0
        %v1000 = vxor.u32 %v995, 2147483648
        %v1001 = vsel %vm999, %v994, %v1000
        %vm1002 = vcmp.eq.s32.totalorder %v997, 2
        %v1003 = vxor.u32 %v994, 2147483648
        %v1004 = vsel %vm1002, %v1003, %v995
        %v1005 = vsel %vm998, %v1001, %v1004
        %v1006 = vsel %vm996, nan, %v1005
        %v1007 = vand.u32 2147483647, %v489
        %vm1008 = vcmp.le.f32.partialorder %v1007, 0.7853982
        %vm1009 = vcmp.lt.s32.totalorder %v489, 0
        %v1010 = vand.u32 %v489, 2139095040
        %v1011 = vshrl.u32 %v1010, 23
        %v1012 = vsub.s32 %v1011, 127
        %v1013 = vand.u32 2147483647, %v489
        %v1014 = vand.u32 %v1013, 8388607
        %v1015 = vor.u32 %v1014, 8388608
        %v1016 = vsub.s32 0, %v1015
        %v1017 = vadd.s32 %v1012, 1
        %vm1018 = vcmp.gt.s32.totalorder %v1017, 0
        %v1019 = vsel %vm1018, %v1017, 0
        %v1020 = vshrl.u32 %v1019, 5
        %v1021 = vand.u32 %v1019, 31
        %v1022 = vsub.s32 32, %v1021
        %v1023 = vshrl.u32 683565275, %v1022
        %v1024 = vshll.u32 683565275, %v1021
        %v1025 = vshrl.u32 2475754826, %v1022
        %v1026 = vor.u32 %v1024, %v1025
        %v1027 = vshll.u32 2475754826, %v1021
        %v1028 = vshrl.u32 2131351028, %v1022
        %v1029 = vor.u32 %v1027, %v1028
        %v1030 = vshll.u32 2131351028, %v1021
        %v1031 = vshrl.u32 2102212464, %v1022
        %v1032 = vor.u32 %v1030, %v1031
        %v1033 = vshll.u32 2102212464, %v1021
        %v1034 = vshrl.u32 920167782, %v1022
        %v1035 = vor.u32 %v1033, %v1034
        %v1036 = vshll.u32 920167782, %v1021
        %v1037 = vshrl.u32 1326507024, %v1022
        %v1038 = vor.u32 %v1036, %v1037
        %vm1039 = vcmp.lt.s32.totalorder %v1020, 1
        %vm1040 = vcmp.lt.s32.totalorder %v1020, 2
        %vm1041 = vcmp.lt.s32.totalorder %v1020, 3
        %vm1042 = vcmp.lt.s32.totalorder %v1020, 4
        %v1043 = vsel %vm1039, %v1023, %v1026
        %v1044 = vsel %vm1042, %v1032, 2102212464
        %v1045 = vsel %vm1041, %v1029, %v1044
        %v1046 = vsel %vm1040, %v1043, %v1045
        %v1047 = vsel %vm1039, %v1026, %v1029
        %v1048 = vsel %vm1042, %v1035, 920167782
        %v1049 = vsel %vm1041, %v1032, %v1048
        %v1050 = vsel %vm1040, %v1047, %v1049
        %v1051 = vsel %vm1039, %v1029, %v1032
        %v1052 = vsel %vm1042, %v1038, 1326507024
        %v1053 = vsel %vm1041, %v1035, %v1052
        %v1054 = vsel %vm1040, %v1051, %v1053
        %v1055 = vshll.u32 %v1015, 8
        %v1056 = vmul.u32.u64.compose %v1055, %v1054
        %v1057 = vextract.low.u32 %v1056
        %v1058 = vextract.high.u32 %v1056
        %v1059 = vmul.u32.u64.compose %v1055, %v1050
        %v1060 = vextract.low.u32 %v1059
        %v1061 = vextract.high.u32 %v1059
        %v1062 = vmul.u32 %v1055, %v1046
        %v1063 = vadd.s32 %v1058, %v1060
        %vm1064 = vc.u32 %v1058, %v1060
        %v1065 = vadd.s32 %v1061, 1
        %v1066 = vsel %vm1064, %v1065, %v1061
        %v1067 = vadd.s32 %v1062, %v1066
        %v1068 = vadd.s32 %v1067, 536870912
        %v1069 = vshrl.u32 %v1068, 30
        %v1070 = vshll.u32 %v1069, 30
        %v1071 = vsub.s32 %v1067, %v1070
        %vm1072 = vcmp.lt.s32.totalorder %v1071, 0
        %v1073 = vsub.s32 0, %v1071
        %v1074 = vsel %vm1072, %v1073, %v1071
        %v1075 = vclz %v1074
        %v1076 = vsub.s32 %v1075, 2
        %vm1077 = vcmp.gt.s32.totalorder 0, %v1076
        %v1078 = vsel %vm1077, 0, %v1076
        %v1079 = vsub.s32 32, %v1078
        %v1080 = vshll.u32 %v1071, %v1078
        %v1081 = vshrl.u32 %v1063, %v1079
        %v1082 = vor.u32 %v1080, %v1081
        %v1083 = vsub.s32 4294967266, %v1078
        %v1084 = vadd.s32 %v1083, 127
        %v1085 = vshll.u32 %v1084, 23
        %v1086 = vor.u32 4788187, %v1085
        %v1087 = vand.u32 2147483647, %v1086
        %v1089 = vcvt.s32.f32 %v1082
        %v1090 = vmul.f32 %v1089, %v1087
        %v1091 = vxor.u32 %v1090, 2147483648
        %v1092 = vsel %vm1009, %v1091, %v1090
        %v1093 = vsub.s32 4, %v1069
        %v1094 = vsel %vm1009, %v1093, %v1069
        %v1095 = vsel %vm1008, %v489, %v1092
        %v1096 = vsel %vm1008, 0, %v1094
        %v1097 = vcosq.f32.pop %v1095
        %v1098 = vsinq.f32.pop %v1095
        %vm1099 = vweird.f32 %v489
        %v1100 = vand.u32 %v1096, 3
        %vm1101 = vcmp.lt.s32.totalorder %v1100, 2
        %vm1102 = vcmp.eq.s32.totalorder %v1100, 0
        %v1103 = vxor.u32 %v1098, 2147483648
        %v1104 = vsel %vm1102, %v1097, %v1103
        %vm1105 = vcmp.eq.s32.totalorder %v1100, 2
        %v1106 = vxor.u32 %v1097, 2147483648
        %v1107 = vsel %vm1105, %v1106, %v1098
        %v1108 = vsel %vm1101, %v1104, %v1107
        %v1109 = vsel %vm1099, nan, %v1108
        %v1110 = vand.u32 2147483647, %v490
        %vm1111 = vcmp.le.f32.partialorder %v1110, 0.7853982
        %vm1112 = vcmp.lt.s32.totalorder %v490, 0
        %v1113 = vand.u32 %v490, 2139095040
        %v1114 = vshrl.u32 %v1113, 23
        %v1115 = vsub.s32 %v1114, 127
        %v1116 = vand.u32 2147483647, %v490
        %v1117 = vand.u32 %v1116, 8388607
        %v1118 = vor.u32 %v1117, 8388608
        %v1119 = vsub.s32 0, %v1118
        %v1120 = vadd.s32 %v1115, 1
        %vm1121 = vcmp.gt.s32.totalorder %v1120, 0
        %v1122 = vsel %vm1121, %v1120, 0
        %v1123 = vshrl.u32 %v1122, 5
        %v1124 = vand.u32 %v1122, 31
        %v1125 = vsub.s32 32, %v1124
        %v1126 = vshrl.u32 683565275, %v1125
        %v1127 = vshll.u32 683565275, %v1124
        %v1128 = vshrl.u32 2475754826, %v1125
        %v1129 = vor.u32 %v1127, %v1128
        %v1130 = vshll.u32 2475754826, %v1124
        %v1131 = vshrl.u32 2131351028, %v1125
        %v1132 = vor.u32 %v1130, %v1131
        %v1133 = vshll.u32 2131351028, %v1124
        %v1134 = vshrl.u32 2102212464, %v1125
        %v1135 = vor.u32 %v1133, %v1134
        %v1136 = vshll.u32 2102212464, %v1124
        %v1137 = vshrl.u32 920167782, %v1125
        %v1138 = vor.u32 %v1136, %v1137
        %v1139 = vshll.u32 920167782, %v1124
        %v1140 = vshrl.u32 1326507024, %v1125
        %v1141 = vor.u32 %v1139, %v1140
        %vm1142 = vcmp.lt.s32.totalorder %v1123, 1
        %vm1143 = vcmp.lt.s32.totalorder %v1123, 2
        %vm1144 = vcmp.lt.s32.totalorder %v1123, 3
        %vm1145 = vcmp.lt.s32.totalorder %v1123, 4
        %v1146 = vsel %vm1142, %v1126, %v1129
        %v1147 = vsel %vm1145, %v1135, 2102212464
        %v1148 = vsel %vm1144, %v1132, %v1147
        %v1149 = vsel %vm1143, %v1146, %v1148
        %v1150 = vsel %vm1142, %v1129, %v1132
        %v1151 = vsel %vm1145, %v1138, 920167782
        %v1152 = vsel %vm1144, %v1135, %v1151
        %v1153 = vsel %vm1143, %v1150, %v1152
        %v1154 = vsel %vm1142, %v1132, %v1135
        %v1155 = vsel %vm1145, %v1141, 1326507024
        %v1156 = vsel %vm1144, %v1138, %v1155
        %v1157 = vsel %vm1143, %v1154, %v1156
        %v1158 = vshll.u32 %v1118, 8
        %v1159 = vmul.u32.u64.compose %v1158, %v1157
        %v1160 = vextract.low.u32 %v1159
        %v1161 = vextract.high.u32 %v1159
        %v1162 = vmul.u32.u64.compose %v1158, %v1153
        %v1163 = vextract.low.u32 %v1162
        %v1164 = vextract.high.u32 %v1162
        %v1165 = vmul.u32 %v1158, %v1149
        %v1166 = vadd.s32 %v1161, %v1163
        %vm1167 = vc.u32 %v1161, %v1163
        %v1168 = vadd.s32 %v1164, 1
        %v1169 = vsel %vm1167, %v1168, %v1164
        %v1170 = vadd.s32 %v1165, %v1169
        %v1171 = vadd.s32 %v1170, 536870912
        %v1172 = vshrl.u32 %v1171, 30
        %v1173 = vshll.u32 %v1172, 30
        %v1174 = vsub.s32 %v1170, %v1173
        %vm1175 = vcmp.lt.s32.totalorder %v1174, 0
        %v1176 = vsub.s32 0, %v1174
        %v1177 = vsel %vm1175, %v1176, %v1174
        %v1178 = vclz %v1177
        %v1179 = vsub.s32 %v1178, 2
        %vm1180 = vcmp.gt.s32.totalorder 0, %v1179
        %v1181 = vsel %vm1180, 0, %v1179
        %v1182 = vsub.s32 32, %v1181
        %v1183 = vshll.u32 %v1174, %v1181
        %v1184 = vshrl.u32 %v1166, %v1182
        %v1185 = vor.u32 %v1183, %v1184
        %v1186 = vsub.s32 4294967266, %v1181
        %v1187 = vadd.s32 %v1186, 127
        %v1188 = vshll.u32 %v1187, 23
        %v1189 = vor.u32 4788187, %v1188
        %v1190 = vand.u32 2147483647, %v1189
        %v1192 = vcvt.s32.f32 %v1185
        %v1193 = vmul.f32 %v1192, %v1190
        %v1194 = vxor.u32 %v1193, 2147483648
        %v1195 = vsel %vm1112, %v1194, %v1193
        %v1196 = vsub.s32 4, %v1172
        %v1197 = vsel %vm1112, %v1196, %v1172
        %v1198 = vsel %vm1111, %v490, %v1195
        %v1199 = vsel %vm1111, 0, %v1197
        %v1200 = vcosq.f32.pop %v1198
        %v1201 = vsinq.f32.pop %v1198
        %vm1202 = vweird.f32 %v490
        %v1203 = vand.u32 %v1199, 3
        %vm1204 = vcmp.lt.s32.totalorder %v1203, 2
        %vm1205 = vcmp.eq.s32.totalorder %v1203, 0
        %v1206 = vxor.u32 %v1201, 2147483648
        %v1207 = vsel %vm1205, %v1200, %v1206
        %vm1208 = vcmp.eq.s32.totalorder %v1203, 2
        %v1209 = vxor.u32 %v1200, 2147483648
        %v1210 = vsel %vm1208, %v1209, %v1201
        %v1211 = vsel %vm1204, %v1207, %v1210
        %v1212 = vsel %vm1202, nan, %v1211
        %v1213 = vand.u32 2147483647, %v491
        %vm1214 = vcmp.le.f32.partialorder %v1213, 0.7853982
        %vm1215 = vcmp.lt.s32.totalorder %v491, 0
        %v1216 = vand.u32 %v491, 2139095040
        %v1217 = vshrl.u32 %v1216, 23
        %v1218 = vsub.s32 %v1217, 127
        %v1219 = vand.u32 2147483647, %v491
        %v1220 = vand.u32 %v1219, 8388607
        %v1221 = vor.u32 %v1220, 8388608
        %v1222 = vsub.s32 0, %v1221
        %v1223 = vadd.s32 %v1218, 1
        %vm1224 = vcmp.gt.s32.totalorder %v1223, 0
        %v1225 = vsel %vm1224, %v1223, 0
        %v1226 = vshrl.u32 %v1225, 5
        %v1227 = vand.u32 %v1225, 31
        %v1228 = vsub.s32 32, %v1227
        %v1229 = vshrl.u32 683565275, %v1228
        %v1230 = vshll.u32 683565275, %v1227
        %v1231 = vshrl.u32 2475754826, %v1228
        %v1232 = vor.u32 %v1230, %v1231
        %v1233 = vshll.u32 2475754826, %v1227
        %v1234 = vshrl.u32 2131351028, %v1228
        %v1235 = vor.u32 %v1233, %v1234
        %v1236 = vshll.u32 2131351028, %v1227
        %v1237 = vshrl.u32 2102212464, %v1228
        %v1238 = vor.u32 %v1236, %v1237
        %v1239 = vshll.u32 2102212464, %v1227
        %v1240 = vshrl.u32 920167782, %v1228
        %v1241 = vor.u32 %v1239, %v1240
        %v1242 = vshll.u32 920167782, %v1227
        %v1243 = vshrl.u32 1326507024, %v1228
        %v1244 = vor.u32 %v1242, %v1243
        %vm1245 = vcmp.lt.s32.totalorder %v1226, 1
        %vm1246 = vcmp.lt.s32.totalorder %v1226, 2
        %vm1247 = vcmp.lt.s32.totalorder %v1226, 3
        %vm1248 = vcmp.lt.s32.totalorder %v1226, 4
        %v1249 = vsel %vm1245, %v1229, %v1232
        %v1250 = vsel %vm1248, %v1238, 2102212464
        %v1251 = vsel %vm1247, %v1235, %v1250
        %v1252 = vsel %vm1246, %v1249, %v1251
        %v1253 = vsel %vm1245, %v1232, %v1235
        %v1254 = vsel %vm1248, %v1241, 920167782
        %v1255 = vsel %vm1247, %v1238, %v1254
        %v1256 = vsel %vm1246, %v1253, %v1255
        %v1257 = vsel %vm1245, %v1235, %v1238
        %v1258 = vsel %vm1248, %v1244, 1326507024
        %v1259 = vsel %vm1247, %v1241, %v1258
        %v1260 = vsel %vm1246, %v1257, %v1259
        %v1261 = vshll.u32 %v1221, 8
        %v1262 = vmul.u32.u64.compose %v1261, %v1260
        %v1263 = vextract.low.u32 %v1262
        %v1264 = vextract.high.u32 %v1262
        %v1265 = vmul.u32.u64.compose %v1261, %v1256
        %v1266 = vextract.low.u32 %v1265
        %v1267 = vextract.high.u32 %v1265
        %v1268 = vmul.u32 %v1261, %v1252
        %v1269 = vadd.s32 %v1264, %v1266
        %vm1270 = vc.u32 %v1264, %v1266
        %v1271 = vadd.s32 %v1267, 1
        %v1272 = vsel %vm1270, %v1271, %v1267
        %v1273 = vadd.s32 %v1268, %v1272
        %v1274 = vadd.s32 %v1273, 536870912
        %v1275 = vshrl.u32 %v1274, 30
        %v1276 = vshll.u32 %v1275, 30
        %v1277 = vsub.s32 %v1273, %v1276
        %vm1278 = vcmp.lt.s32.totalorder %v1277, 0
        %v1279 = vsub.s32 0, %v1277
        %v1280 = vsel %vm1278, %v1279, %v1277
        %v1281 = vclz %v1280
        %v1282 = vsub.s32 %v1281, 2
        %vm1283 = vcmp.gt.s32.totalorder 0, %v1282
        %v1284 = vsel %vm1283, 0, %v1282
        %v1285 = vsub.s32 32, %v1284
        %v1286 = vshll.u32 %v1277, %v1284
        %v1287 = vshrl.u32 %v1269, %v1285
        %v1288 = vor.u32 %v1286, %v1287
        %v1289 = vsub.s32 4294967266, %v1284
        %v1290 = vadd.s32 %v1289, 127
        %v1291 = vshll.u32 %v1290, 23
        %v1292 = vor.u32 4788187, %v1291
        %v1293 = vand.u32 2147483647, %v1292
        %v1295 = vcvt.s32.f32 %v1288
        %v1296 = vmul.f32 %v1295, %v1293
        %v1297 = vxor.u32 %v1296, 2147483648
        %v1298 = vsel %vm1215, %v1297, %v1296
        %v1299 = vsub.s32 4, %v1275
        %v1300 = vsel %vm1215, %v1299, %v1275
        %v1301 = vsel %vm1214, %v491, %v1298
        %v1302 = vsel %vm1214, 0, %v1300
        %v1303 = vcosq.f32.pop %v1301
        %v1304 = vsinq.f32.pop %v1301
        %vm1305 = vweird.f32 %v491
        %v1306 = vand.u32 %v1302, 3
        %vm1307 = vcmp.lt.s32.totalorder %v1306, 2
        %vm1308 = vcmp.eq.s32.totalorder %v1306, 0
        %v1309 = vxor.u32 %v1304, 2147483648
        %v1310 = vsel %vm1308, %v1303, %v1309
        %vm1311 = vcmp.eq.s32.totalorder %v1306, 2
        %v1312 = vxor.u32 %v1303, 2147483648
        %v1313 = vsel %vm1311, %v1312, %v1304
        %v1314 = vsel %vm1307, %v1310, %v1313
        %v1315 = vsel %vm1305, nan, %v1314
        %v1316 = vadd.f32 %v594, 1.0
        %v1317 = vadd.f32 %v697, 1.0
        %v1318 = vadd.f32 %v800, 1.0
        %v1319 = vadd.f32 %v903, 1.0
        %v1320 = vadd.f32 %v1006, 1.0
        %v1321 = vadd.f32 %v1109, 1.0
        %v1322 = vadd.f32 %v1212, 1.0
        %v1323 = vadd.f32 %v1315, 1.0
        %v1324 = vmul.f32 %v1316, 0.5
        %v1325 = vmul.f32 %v1317, 0.5
        %v1326 = vmul.f32 %v1318, 0.5
        %v1327 = vmul.f32 %v1319, 0.5
        %v1328 = vmul.f32 %v1320, 0.5
        %v1329 = vmul.f32 %v1321, 0.5
        %v1330 = vmul.f32 %v1322, 0.5
        %v1331 = vmul.f32 %v1323, 0.5
        %vm1332 = vcmp.lt.f32.partialorder %v434, 5.0
        %vm1333 = vcmp.lt.f32.partialorder %v441, 5.0
        %vm1334 = vcmp.lt.f32.partialorder %v448, 5.0
        %vm1335 = vcmp.lt.f32.partialorder %v455, 5.0
        %vm1336 = vcmp.lt.f32.partialorder %v462, 5.0
        %vm1337 = vcmp.lt.f32.partialorder %v469, 5.0
        %vm1338 = vcmp.lt.f32.partialorder %v476, 5.0
        %vm1339 = vcmp.lt.f32.partialorder %v483, 5.0
        %v1340 = vsel %vm1332, 1.0, 0.0
        %v1341 = vsel %vm1333, 1.0, 0.0
        %v1342 = vsel %vm1334, 1.0, 0.0
        %v1343 = vsel %vm1335, 1.0, 0.0
        %v1344 = vsel %vm1336, 1.0, 0.0
        %v1345 = vsel %vm1337, 1.0, 0.0
        %v1346 = vsel %vm1338, 1.0, 0.0
        %v1347 = vsel %vm1339, 1.0, 0.0
        %v1348 = vmul.f32 %v1324, %v1340
        %v1349 = vmul.f32 %v1325, %v1341
        %v1350 = vmul.f32 %v1326, %v1342
        %v1351 = vmul.f32 %v1327, %v1343
        %v1352 = vmul.f32 %v1328, %v1344
        %v1353 = vmul.f32 %v1329, %v1345
        %v1354 = vmul.f32 %v1330, %v1346
        %v1355 = vmul.f32 %v1331, %v1347
        %v1356 = vlaneseq
        %v1357 = vshrl.u32 %v1356, 7
        %v1358 = vadd.s32 %v1357, 8
        %v1359 = vcvt.s32.f32 %v1357
        %v1360 = vcvt.s32.f32 %v1358
        %v1361 = vmul.f32 %v1359, 0.33333334
        %v1362 = vmul.f32 %v1360, 0.33333334
        %v1363 = vsub.f32 %v434, %v1361
        %v1364 = vsub.f32 %v441, %v1361
        %v1365 = vsub.f32 %v448, %v1361
        %v1366 = vsub.f32 %v455, %v1361
        %v1367 = vsub.f32 %v462, %v1361
        %v1368 = vsub.f32 %v469, %v1361
        %v1369 = vsub.f32 %v476, %v1361
        %v1370 = vsub.f32 %v483, %v1361
        %v1371 = vsub.f32 %v434, %v1362
        %v1372 = vsub.f32 %v441, %v1362
        %v1373 = vsub.f32 %v448, %v1362
        %v1374 = vsub.f32 %v455, %v1362
        %v1375 = vsub.f32 %v462, %v1362
        %v1376 = vsub.f32 %v469, %v1362
        %v1377 = vsub.f32 %v476, %v1362
        %v1378 = vsub.f32 %v483, %v1362
        %v1379 = vmul.f32 %v1363, %v1363
        %v1380 = vmul.f32 %v1364, %v1364
        %v1381 = vmul.f32 %v1365, %v1365
        %v1382 = vmul.f32 %v1366, %v1366
        %v1383 = vmul.f32 %v1367, %v1367
        %v1384 = vmul.f32 %v1368, %v1368
        %v1385 = vmul.f32 %v1369, %v1369
        %v1386 = vmul.f32 %v1370, %v1370
        %v1387 = vmul.f32 %v1371, %v1371
        %v1388 = vmul.f32 %v1372, %v1372
        %v1389 = vmul.f32 %v1373, %v1373
        %v1390 = vmul.f32 %v1374, %v1374
        %v1391 = vmul.f32 %v1375, %v1375
        %v1392 = vmul.f32 %v1376, %v1376
        %v1393 = vmul.f32 %v1377, %v1377
        %v1394 = vmul.f32 %v1378, %v1378
        %v1395 = vmul.f32 %v1379, -4.5
        %v1396 = vmul.f32 %v1380, -4.5
        %v1397 = vmul.f32 %v1381, -4.5
        %v1398 = vmul.f32 %v1382, -4.5
        %v1399 = vmul.f32 %v1383, -4.5
        %v1400 = vmul.f32 %v1384, -4.5
        %v1401 = vmul.f32 %v1385, -4.5
        %v1402 = vmul.f32 %v1386, -4.5
        %v1403 = vmul.f32 %v1387, -4.5
        %v1404 = vmul.f32 %v1388, -4.5
        %v1405 = vmul.f32 %v1389, -4.5
        %v1406 = vmul.f32 %v1390, -4.5
        %v1407 = vmul.f32 %v1391, -4.5
        %v1408 = vmul.f32 %v1392, -4.5
        %v1409 = vmul.f32 %v1393, -4.5
        %v1410 = vmul.f32 %v1394, -4.5
        %v1411 = vmul.f32 %v1395, 1.442695
        %v1412 = vpow.pop %v1411
        %v1413 = vmul.f32 %v1396, 1.442695
        %v1414 = vpow.pop %v1413
        %v1415 = vmul.f32 %v1397, 1.442695
        %v1416 = vpow.pop %v1415
        %v1417 = vmul.f32 %v1398, 1.442695
        %v1418 = vpow.pop %v1417
        %v1419 = vmul.f32 %v1399, 1.442695
        %v1420 = vpow.pop %v1419
        %v1421 = vmul.f32 %v1400, 1.442695
        %v1422 = vpow.pop %v1421
        %v1423 = vmul.f32 %v1401, 1.442695
        %v1424 = vpow.pop %v1423
        %v1425 = vmul.f32 %v1402, 1.442695
        %v1426 = vpow.pop %v1425
        %v1427 = vmul.f32 %v1403, 1.442695
        %v1428 = vpow.pop %v1427
        %v1429 = vmul.f32 %v1404, 1.442695
        %v1430 = vpow.pop %v1429
        %v1431 = vmul.f32 %v1405, 1.442695
        %v1432 = vpow.pop %v1431
        %v1433 = vmul.f32 %v1406, 1.442695
        %v1434 = vpow.pop %v1433
        %v1435 = vmul.f32 %v1407, 1.442695
        %v1436 = vpow.pop %v1435
        %v1437 = vmul.f32 %v1408, 1.442695
        %v1438 = vpow.pop %v1437
        %v1439 = vmul.f32 %v1409, 1.442695
        %v1440 = vpow.pop %v1439
        %v1441 = vmul.f32 %v1410, 1.442695
        %v1442 = vpow.pop %v1441
        %v1443 = vld [vmem:[%s2] sm:$0xff]
        %v1444 = vld [vmem:[%s2 + $0x8] sm:$0xff]
        %v1445 = vld [vmem:[%s2 + $0x10] sm:$0xff]
        %v1446 = vld [vmem:[%s2 + $0x18] sm:$0xff]
        %v1447 = vld [vmem:[%s2 + $0x20] sm:$0xff]
        %v1448 = vld [vmem:[%s2 + $0x28] sm:$0xff]
        %v1449 = vld [vmem:[%s2 + $0x30] sm:$0xff]
        %v1450 = vld [vmem:[%s2 + $0x38] sm:$0xff]
        %v1451 = vld [vmem:[%s2 + $0x40] sm:$0xff]
        %v1452 = vld [vmem:[%s2 + $0x48] sm:$0xff]
        %v1453 = vld [vmem:[%s2 + $0x50] sm:$0xff]
        %v1454 = vld [vmem:[%s2 + $0x58] sm:$0xff]
        %v1455 = vpack.c.bf16 %v1444, %v1443
        %v1456 = vpack.c.bf16 %v1446, %v1445
        %v1457 = vpack.c.bf16 %v1448, %v1447
        %v1458 = vpack.c.bf16 %v1450, %v1449
        %v1459 = vpack.c.bf16 %v1452, %v1451
        %v1460 = vpack.c.bf16 %v1454, %v1453
        %v1461 = vld [vmem:[%s2 + $0x60] sm:$0xff]
        %v1462 = vld [vmem:[%s2 + $0x68] sm:$0xff]
        %v1463 = vld [vmem:[%s2 + $0x70] sm:$0xff]
        %v1464 = vld [vmem:[%s2 + $0x78] sm:$0xff]
        %v1465 = vld [vmem:[%s2 + $0x80] sm:$0xff]
        %v1466 = vld [vmem:[%s2 + $0x88] sm:$0xff]
        %v1467 = vld [vmem:[%s2 + $0x90] sm:$0xff]
        %v1468 = vld [vmem:[%s2 + $0x98] sm:$0xff]
        %v1469 = vld [vmem:[%s2 + $0xa0] sm:$0xff]
        %v1470 = vld [vmem:[%s2 + $0xa8] sm:$0xff]
        %v1471 = vld [vmem:[%s2 + $0xb0] sm:$0xff]
        %v1472 = vld [vmem:[%s2 + $0xb8] sm:$0xff]
        %v1473 = vpack.c.bf16 %v1462, %v1461
        %v1474 = vpack.c.bf16 %v1464, %v1463
        %v1475 = vpack.c.bf16 %v1466, %v1465
        %v1476 = vpack.c.bf16 %v1468, %v1467
        %v1477 = vpack.c.bf16 %v1470, %v1469
        %v1478 = vpack.c.bf16 %v1472, %v1471
        %v1479 = vpack.c.bf16 %v1428, %v1412
        %v1480 = vpack.c.bf16 %v1430, %v1414
        %v1481 = vpack.c.bf16 %v1432, %v1416
        %v1482 = vpack.c.bf16 %v1434, %v1418
        %v1483 = vpack.c.bf16 %v1436, %v1420
        %v1484 = vpack.c.bf16 %v1438, %v1422
        %v1485 = vpack.c.bf16 %v1440, %v1424
        %v1486 = vpack.c.bf16 %v1442, %v1426
        %1488 = vset.pattern.permute.xlu0 16
        %1489 = vperm.xlu0 %1488, %v1443
        %v1490 = vpop.permute.xlu0 %1489
        %1493 = vset.pattern.permute.xlu0 16
        %1494 = vperm.xlu0 %1493, %v1444
        %v1495 = vpop.permute.xlu0 %1494
        %1498 = vset.pattern.permute.xlu0 16
        %1499 = vperm.xlu0 %1498, %v1445
        %v1500 = vpop.permute.xlu0 %1499
        %1503 = vset.pattern.permute.xlu0 16
        %1504 = vperm.xlu0 %1503, %v1446
        %v1505 = vpop.permute.xlu0 %1504
        %1508 = vset.pattern.permute.xlu0 16
        %1509 = vperm.xlu0 %1508, %v1447
        %v1510 = vpop.permute.xlu0 %1509
        %1513 = vset.pattern.permute.xlu0 16
        %1514 = vperm.xlu0 %1513, %v1448
        %v1515 = vpop.permute.xlu0 %1514
        %1518 = vset.pattern.permute.xlu0 16
        %1519 = vperm.xlu0 %1518, %v1449
        %v1520 = vpop.permute.xlu0 %1519
        %1523 = vset.pattern.permute.xlu0 16
        %1524 = vperm.xlu0 %1523, %v1450
        %v1525 = vpop.permute.xlu0 %1524
        %1528 = vset.pattern.permute.xlu0 16
        %1529 = vperm.xlu0 %1528, %v1451
        %v1530 = vpop.permute.xlu0 %1529
        %1533 = vset.pattern.permute.xlu0 16
        %1534 = vperm.xlu0 %1533, %v1452
        %v1535 = vpop.permute.xlu0 %1534
        %1538 = vset.pattern.permute.xlu0 16
        %1539 = vperm.xlu0 %1538, %v1453
        %v1540 = vpop.permute.xlu0 %1539
        %1543 = vset.pattern.permute.xlu0 16
        %1544 = vperm.xlu0 %1543, %v1454
        %v1545 = vpop.permute.xlu0 %1544
        %vm1547 = vcmask 130048
        %v1549 = vsel %vm1547, %v1455, 0
        %v1552 = vsel %vm1547, %v1456, 0
        %v1555 = vsel %vm1547, %v1457, 0
        %v1558 = vsel %vm1547, %v1458, 0
        %v1561 = vsel %vm1547, %v1459, 0
        %v1564 = vsel %vm1547, %v1460, 0
        %1566 = vmatprep.subr.bf16.mxu0 %v1480
        %1567 = vmatpush1.bf16.msra.mxu0 %v1479
        %1568 = vmatprep.subr.bf16.mxu0 0
        %1569 = vmatpush1.bf16.msra.mxu0 0
        %1570 = vmatprep.subr.bf16.mxu0 0
        %1571 = vmatpush1.bf16.msra.mxu0 0
        %1572 = vmatprep.subr.bf16.mxu0 0
        %1573 = vmatpush1.bf16.msra.mxu0 0
        %1574 = vmatprep.subr.bf16.mxu0 0
        %1575 = vmatpush1.bf16.msra.mxu0 0
        %1576 = vmatprep.subr.bf16.mxu0 0
        %1577 = vmatpush1.bf16.msra.mxu0 0
        %1578 = vmatprep.subr.bf16.mxu0 0
        %1579 = vmatpush1.bf16.msra.mxu0 0
        %1580 = vmatprep.subr.bf16.mxu0 0
        %1581 = vmatpush1.bf16.msra.mxu0 0
        %1582 = vmatprep.subr.bf16.mxu0 0
        %1583 = vmatpush1.bf16.msra.mxu0 0
        %1584 = vmatprep.subr.bf16.mxu0 0
        %1585 = vmatpush1.bf16.msra.mxu0 0
        %1586 = vmatprep.subr.bf16.mxu0 0
        %1587 = vmatpush1.bf16.msra.mxu0 0
        %1588 = vmatprep.subr.bf16.mxu0 0
        %1589 = vmatpush1.bf16.msra.mxu0 0
        %1590 = vmatprep.subr.bf16.mxu0 0
        %1591 = vmatpush1.bf16.msra.mxu0 0
        %1592 = vmatprep.subr.bf16.mxu0 0
        %1593 = vmatpush1.bf16.msra.mxu0 0
        %1594 = vmatprep.subr.bf16.mxu0 0
        %1595 = vmatpush1.bf16.msra.mxu0 0
        %1596 = vmatprep.subr.bf16.mxu0 0
        %1597 = vmatpush1.bf16.msra.mxu0 0
        %1598 = vmatprep.mubr.bf16.mxu0 0
        %1599 = vmatmul.mubr.bf16.gmra.mrb[0].mxu0 %v1549
        %v1600 = vpop.f32.mrb[0].mxu0
        %v1601 = vadd.f32 %v1490, %v1600
        %v1602 = vpop.f32.mrb[0].mxu0
        %v1603 = vadd.f32 %v1490, %v1602
        %v1604 = vpop.f32.mrb[0].mxu0
        %v1605 = vadd.f32 %v1495, %v1604
        %v1606 = vpop.f32.mrb[0].mxu0
        %v1607 = vadd.f32 %v1495, %v1606
        %1608 = vmatprep.mubr.bf16.mxu0 0
        %1609 = vmatmul.mubr.bf16.gmra.mrb[0].mxu0 %v1552
        %v1610 = vpop.f32.mrb[0].mxu0
        %v1611 = vadd.f32 %v1500, %v1610
        %v1612 = vpop.f32.mrb[0].mxu0
        %v1613 = vadd.f32 %v1500, %v1612
        %v1614 = vpop.f32.mrb[0].mxu0
        %v1615 = vadd.f32 %v1505, %v1614
        %v1616 = vpop.f32.mrb[0].mxu0
        %v1617 = vadd.f32 %v1505, %v1616
        %1618 = vmatprep.mubr.bf16.mxu0 0
        %1619 = vmatmul.mubr.bf16.gmra.mrb[0].mxu0 %v1555
        %v1620 = vpop.f32.mrb[0].mxu0
        %v1621 = vadd.f32 %v1510, %v1620
        %v1622 = vpop.f32.mrb[0].mxu0
        %v1623 = vadd.f32 %v1510, %v1622
        %v1624 = vpop.f32.mrb[0].mxu0
        %v1625 = vadd.f32 %v1515, %v1624
        %v1626 = vpop.f32.mrb[0].mxu0
        %v1627 = vadd.f32 %v1515, %v1626
        %1628 = vmatprep.mubr.bf16.mxu0 0
        %1629 = vmatmul.mubr.bf16.gmra.mrb[0].mxu0 %v1558
        %v1630 = vpop.f32.mrb[0].mxu0
        %v1631 = vadd.f32 %v1520, %v1630
        %v1632 = vpop.f32.mrb[0].mxu0
        %v1633 = vadd.f32 %v1520, %v1632
        %v1634 = vpop.f32.mrb[0].mxu0
        %v1635 = vadd.f32 %v1525, %v1634
        %v1636 = vpop.f32.mrb[0].mxu0
        %v1637 = vadd.f32 %v1525, %v1636
        %1638 = vmatprep.mubr.bf16.mxu0 0
        %1639 = vmatmul.mubr.bf16.gmra.mrb[0].mxu0 %v1561
        %v1640 = vpop.f32.mrb[0].mxu0
        %v1641 = vadd.f32 %v1530, %v1640
        %v1642 = vpop.f32.mrb[0].mxu0
        %v1643 = vadd.f32 %v1530, %v1642
        %v1644 = vpop.f32.mrb[0].mxu0
        %v1645 = vadd.f32 %v1535, %v1644
        %v1646 = vpop.f32.mrb[0].mxu0
        %v1647 = vadd.f32 %v1535, %v1646
        %1648 = vmatprep.mubr.bf16.mxu0 0
        %1649 = vmatmul.mubr.bf16.gmra.mrb[0].mxu0 %v1564
        %v1650 = vpop.f32.mrb[0].mxu0
        %v1651 = vadd.f32 %v1540, %v1650
        %v1652 = vpop.f32.mrb[0].mxu0
        %v1653 = vadd.f32 %v1540, %v1652
        %v1654 = vpop.f32.mrb[0].mxu0
        %v1655 = vadd.f32 %v1545, %v1654
        %v1656 = vpop.f32.mrb[0].mxu0
        %v1657 = vadd.f32 %v1545, %v1656
        %1658 = vdwg.mxu0
        %1659 = vmatprep.subr.bf16.mxu0 %v1482
        %1660 = vmatpush1.bf16.msra.mxu0 %v1481
        %1661 = vmatprep.subr.bf16.mxu0 0
        %1662 = vmatpush1.bf16.msra.mxu0 0
        %1663 = vmatprep.subr.bf16.mxu0 0
        %1664 = vmatpush1.bf16.msra.mxu0 0
        %1665 = vmatprep.subr.bf16.mxu0 0
        %1666 = vmatpush1.bf16.msra.mxu0 0
        %1667 = vmatprep.subr.bf16.mxu0 0
        %1668 = vmatpush1.bf16.msra.mxu0 0
        %1669 = vmatprep.subr.bf16.mxu0 0
        %1670 = vmatpush1.bf16.msra.mxu0 0
        %1671 = vmatprep.subr.bf16.mxu0 0
        %1672 = vmatpush1.bf16.msra.mxu0 0
        %1673 = vmatprep.subr.bf16.mxu0 0
        %1674 = vmatpush1.bf16.msra.mxu0 0
        %1675 = vmatprep.subr.bf16.mxu0 0
        %1676 = vmatpush1.bf16.msra.mxu0 0
        %1677 = vmatprep.subr.bf16.mxu0 0
        %1678 = vmatpush1.bf16.msra.mxu0 0
        %1679 = vmatprep.subr.bf16.mxu0 0
        %1680 = vmatpush1.bf16.msra.mxu0 0
        %1681 = vmatprep.subr.bf16.mxu0 0
        %1682 = vmatpush1.bf16.msra.mxu0 0
        %1683 = vmatprep.subr.bf16.mxu0 0
        %1684 = vmatpush1.bf16.msra.mxu0 0
        %1685 = vmatprep.subr.bf16.mxu0 0
        %1686 = vmatpush1.bf16.msra.mxu0 0
        %1687 = vmatprep.subr.bf16.mxu0 0
        %1688 = vmatpush1.bf16.msra.mxu0 0
        %1689 = vmatprep.subr.bf16.mxu0 0
        %1690 = vmatpush1.bf16.msra.mxu0 0
        %1691 = vmatprep.mubr.bf16.mxu0 0
        %1692 = vmatmul.mubr.bf16.gmra.mrb[0].mxu0 %v1549
        %v1693 = vpop.f32.mrb[0].mxu0
        %v1694 = vadd.f32 %v1490, %v1693
        %v1695 = vpop.f32.mrb[0].mxu0
        %v1696 = vadd.f32 %v1490, %v1695
        %v1697 = vpop.f32.mrb[0].mxu0
        %v1698 = vadd.f32 %v1495, %v1697
        %v1699 = vpop.f32.mrb[0].mxu0
        %v1700 = vadd.f32 %v1495, %v1699
        %1701 = vmatprep.mubr.bf16.mxu0 0
        %1702 = vmatmul.mubr.bf16.gmra.mrb[0].mxu0 %v1552
        %v1703 = vpop.f32.mrb[0].mxu0
        %v1704 = vadd.f32 %v1500, %v1703
        %v1705 = vpop.f32.mrb[0].mxu0
        %v1706 = vadd.f32 %v1500, %v1705
        %v1707 = vpop.f32.mrb[0].mxu0
        %v1708 = vadd.f32 %v1505, %v1707
        %v1709 = vpop.f32.mrb[0].mxu0
        %v1710 = vadd.f32 %v1505, %v1709
        %1711 = vmatprep.mubr.bf16.mxu0 0
        %1712 = vmatmul.mubr.bf16.gmra.mrb[0].mxu0 %v1555
        %v1713 = vpop.f32.mrb[0].mxu0
        %v1714 = vadd.f32 %v1510, %v1713
        %v1715 = vpop.f32.mrb[0].mxu0
        %v1716 = vadd.f32 %v1510, %v1715
        %v1717 = vpop.f32.mrb[0].mxu0
        %v1718 = vadd.f32 %v1515, %v1717
        %v1719 = vpop.f32.mrb[0].mxu0
        %v1720 = vadd.f32 %v1515, %v1719
        %1721 = vmatprep.mubr.bf16.mxu0 0
        %1722 = vmatmul.mubr.bf16.gmra.mrb[0].mxu0 %v1558
        %v1723 = vpop.f32.mrb[0].mxu0
        %v1724 = vadd.f32 %v1520, %v1723
        %v1725 = vpop.f32.mrb[0].mxu0
        %v1726 = vadd.f32 %v1520, %v1725
        %v1727 = vpop.f32.mrb[0].mxu0
        %v1728 = vadd.f32 %v1525, %v1727
        %v1729 = vpop.f32.mrb[0].mxu0
        %v1730 = vadd.f32 %v1525, %v1729
        %1731 = vmatprep.mubr.bf16.mxu0 0
        %1732 = vmatmul.mubr.bf16.gmra.mrb[0].mxu0 %v1561
        %v1733 = vpop.f32.mrb[0].mxu0
        %v1734 = vadd.f32 %v1530, %v1733
        %v1735 = vpop.f32.mrb[0].mxu0
        %v1736 = vadd.f32 %v1530, %v1735
        %v1737 = vpop.f32.mrb[0].mxu0
        %v1738 = vadd.f32 %v1535, %v1737
        %v1739 = vpop.f32.mrb[0].mxu0
        %v1740 = vadd.f32 %v1535, %v1739
        %1741 = vmatprep.mubr.bf16.mxu0 0
        %1742 = vmatmul.mubr.bf16.gmra.mrb[0].mxu0 %v1564
        %v1743 = vpop.f32.mrb[0].mxu0
        %v1744 = vadd.f32 %v1540, %v1743
        %v1745 = vpop.f32.mrb[0].mxu0
        %v1746 = vadd.f32 %v1540, %v1745
        %v1747 = vpop.f32.mrb[0].mxu0
        %v1748 = vadd.f32 %v1545, %v1747
        %v1749 = vpop.f32.mrb[0].mxu0
        %v1750 = vadd.f32 %v1545, %v1749
        %1751 = vdwg.mxu0
        %1752 = vmatprep.subr.bf16.mxu0 %v1484
        %1753 = vmatpush1.bf16.msra.mxu0 %v1483
        %1754 = vmatprep.subr.bf16.mxu0 0
        %1755 = vmatpush1.bf16.msra.mxu0 0
        %1756 = vmatprep.subr.bf16.mxu0 0
        %1757 = vmatpush1.bf16.msra.mxu0 0
        %1758 = vmatprep.subr.bf16.mxu0 0
        %1759 = vmatpush1.bf16.msra.mxu0 0
        %1760 = vmatprep.subr.bf16.mxu0 0
        %1761 = vmatpush1.bf16.msra.mxu0 0
        %1762 = vmatprep.subr.bf16.mxu0 0
        %1763 = vmatpush1.bf16.msra.mxu0 0
        %1764 = vmatprep.subr.bf16.mxu0 0
        %1765 = vmatpush1.bf16.msra.mxu0 0
        %1766 = vmatprep.subr.bf16.mxu0 0
        %1767 = vmatpush1.bf16.msra.mxu0 0
        %1768 = vmatprep.subr.bf16.mxu0 0
        %1769 = vmatpush1.bf16.msra.mxu0 0
        %1770 = vmatprep.subr.bf16.mxu0 0
        %1771 = vmatpush1.bf16.msra.mxu0 0
        %1772 = vmatprep.subr.bf16.mxu0 0
        %1773 = vmatpush1.bf16.msra.mxu0 0
        %1774 = vmatprep.subr.bf16.mxu0 0
        %1775 = vmatpush1.bf16.msra.mxu0 0
        %1776 = vmatprep.subr.bf16.mxu0 0
        %1777 = vmatpush1.bf16.msra.mxu0 0
        %1778 = vmatprep.subr.bf16.mxu0 0
        %1779 = vmatpush1.bf16.msra.mxu0 0
        %1780 = vmatprep.subr.bf16.mxu0 0
        %1781 = vmatpush1.bf16.msra.mxu0 0
        %1782 = vmatprep.subr.bf16.mxu0 0
        %1783 = vmatpush1.bf16.msra.mxu0 0
        %1784 = vmatprep.mubr.bf16.mxu0 0
        %1785 = vmatmul.mubr.bf16.gmra.mrb[0].mxu0 %v1549
        %v1786 = vpop.f32.mrb[0].mxu0
        %v1787 = vadd.f32 %v1490, %v1786
        %v1788 = vpop.f32.mrb[0].mxu0
        %v1789 = vadd.f32 %v1490, %v1788
        %v1790 = vpop.f32.mrb[0].mxu0
        %v1791 = vadd.f32 %v1495, %v1790
        %v1792 = vpop.f32.mrb[0].mxu0
        %v1793 = vadd.f32 %v1495, %v1792
        %1794 = vmatprep.mubr.bf16.mxu0 0
        %1795 = vmatmul.mubr.bf16.gmra.mrb[0].mxu0 %v1552
        %v1796 = vpop.f32.mrb[0].mxu0
        %v1797 = vadd.f32 %v1500, %v1796
        %v1798 = vpop.f32.mrb[0].mxu0
        %v1799 = vadd.f32 %v1500, %v1798
        %v1800 = vpop.f32.mrb[0].mxu0
        %v1801 = vadd.f32 %v1505, %v1800
        %v1802 = vpop.f32.mrb[0].mxu0
        %v1803 = vadd.f32 %v1505, %v1802
        %1804 = vmatprep.mubr.bf16.mxu0 0
        %1805 = vmatmul.mubr.bf16.gmra.mrb[0].mxu0 %v1555
        %v1806 = vpop.f32.mrb[0].mxu0
        %v1807 = vadd.f32 %v1510, %v1806
        %v1808 = vpop.f32.mrb[0].mxu0
        %v1809 = vadd.f32 %v1510, %v1808
        %v1810 = vpop.f32.mrb[0].mxu0
        %v1811 = vadd.f32 %v1515, %v1810
        %v1812 = vpop.f32.mrb[0].mxu0
        %v1813 = vadd.f32 %v1515, %v1812
        %1814 = vmatprep.mubr.bf16.mxu0 0
        %1815 = vmatmul.mubr.bf16.gmra.mrb[0].mxu0 %v1558
        %v1816 = vpop.f32.mrb[0].mxu0
        %v1817 = vadd.f32 %v1520, %v1816
        %v1818 = vpop.f32.mrb[0].mxu0
        %v1819 = vadd.f32 %v1520, %v1818
        %v1820 = vpop.f32.mrb[0].mxu0
        %v1821 = vadd.f32 %v1525, %v1820
        %v1822 = vpop.f32.mrb[0].mxu0
        %v1823 = vadd.f32 %v1525, %v1822
        %1824 = vmatprep.mubr.bf16.mxu0 0
        %1825 = vmatmul.mubr.bf16.gmra.mrb[0].mxu0 %v1561
        %v1826 = vpop.f32.mrb[0].mxu0
        %v1827 = vadd.f32 %v1530, %v1826
        %v1828 = vpop.f32.mrb[0].mxu0
        %v1829 = vadd.f32 %v1530, %v1828
        %v1830 = vpop.f32.mrb[0].mxu0
        %v1831 = vadd.f32 %v1535, %v1830
        %v1832 = vpop.f32.mrb[0].mxu0
        %v1833 = vadd.f32 %v1535, %v1832
        %1834 = vmatprep.mubr.bf16.mxu0 0
        %1835 = vmatmul.mubr.bf16.gmra.mrb[0].mxu0 %v1564
        %v1836 = vpop.f32.mrb[0].mxu0
        %v1837 = vadd.f32 %v1540, %v1836
        %v1838 = vpop.f32.mrb[0].mxu0
        %v1839 = vadd.f32 %v1540, %v1838
        %v1840 = vpop.f32.mrb[0].mxu0
        %v1841 = vadd.f32 %v1545, %v1840
        %v1842 = vpop.f32.mrb[0].mxu0
        %v1843 = vadd.f32 %v1545, %v1842
        %1844 = vdwg.mxu0
        %1845 = vmatprep.subr.bf16.mxu0 %v1486
        %1846 = vmatpush1.bf16.msra.mxu0 %v1485
        %1847 = vmatprep.subr.bf16.mxu0 0
        %1848 = vmatpush1.bf16.msra.mxu0 0
        %1849 = vmatprep.subr.bf16.mxu0 0
        %1850 = vmatpush1.bf16.msra.mxu0 0
        %1851 = vmatprep.subr.bf16.mxu0 0
        %1852 = vmatpush1.bf16.msra.mxu0 0
        %1853 = vmatprep.subr.bf16.mxu0 0
        %1854 = vmatpush1.bf16.msra.mxu0 0
        %1855 = vmatprep.subr.bf16.mxu0 0
        %1856 = vmatpush1.bf16.msra.mxu0 0
        %1857 = vmatprep.subr.bf16.mxu0 0
        %1858 = vmatpush1.bf16.msra.mxu0 0
        %1859 = vmatprep.subr.bf16.mxu0 0
        %1860 = vmatpush1.bf16.msra.mxu0 0
        %1861 = vmatprep.subr.bf16.mxu0 0
        %1862 = vmatpush1.bf16.msra.mxu0 0
        %1863 = vmatprep.subr.bf16.mxu0 0
        %1864 = vmatpush1.bf16.msra.mxu0 0
        %1865 = vmatprep.subr.bf16.mxu0 0
        %1866 = vmatpush1.bf16.msra.mxu0 0
        %1867 = vmatprep.subr.bf16.mxu0 0
        %1868 = vmatpush1.bf16.msra.mxu0 0
        %1869 = vmatprep.subr.bf16.mxu0 0
        %1870 = vmatpush1.bf16.msra.mxu0 0
        %1871 = vmatprep.subr.bf16.mxu0 0
        %1872 = vmatpush1.bf16.msra.mxu0 0
        %1873 = vmatprep.subr.bf16.mxu0 0
        %1874 = vmatpush1.bf16.msra.mxu0 0
        %1875 = vmatprep.subr.bf16.mxu0 0
        %1876 = vmatpush1.bf16.msra.mxu0 0
        %1877 = vmatprep.mubr.bf16.mxu0 0
        %1878 = vmatmul.mubr.bf16.gmra.mrb[0].mxu0 %v1549
        %v1879 = vpop.f32.mrb[0].mxu0
        %v1880 = vadd.f32 %v1490, %v1879
        %v1881 = vpop.f32.mrb[0].mxu0
        %v1882 = vadd.f32 %v1490, %v1881
        %v1883 = vpop.f32.mrb[0].mxu0
        %v1884 = vadd.f32 %v1495, %v1883
        %v1885 = vpop.f32.mrb[0].mxu0
        %v1886 = vadd.f32 %v1495, %v1885
        %1887 = vmatprep.mubr.bf16.mxu0 0
        %1888 = vmatmul.mubr.bf16.gmra.mrb[0].mxu0 %v1552
        %v1889 = vpop.f32.mrb[0].mxu0
        %v1890 = vadd.f32 %v1500, %v1889
        %v1891 = vpop.f32.mrb[0].mxu0
        %v1892 = vadd.f32 %v1500, %v1891
        %v1893 = vpop.f32.mrb[0].mxu0
        %v1894 = vadd.f32 %v1505, %v1893
        %v1895 = vpop.f32.mrb[0].mxu0
        %v1896 = vadd.f32 %v1505, %v1895
        %1897 = vmatprep.mubr.bf16.mxu0 0
        %1898 = vmatmul.mubr.bf16.gmra.mrb[0].mxu0 %v1555
        %v1899 = vpop.f32.mrb[0].mxu0
        %v1900 = vadd.f32 %v1510, %v1899
        %v1901 = vpop.f32.mrb[0].mxu0
        %v1902 = vadd.f32 %v1510, %v1901
        %v1903 = vpop.f32.mrb[0].mxu0
        %v1904 = vadd.f32 %v1515, %v1903
        %v1905 = vpop.f32.mrb[0].mxu0
        %v1906 = vadd.f32 %v1515, %v1905
        %1907 = vmatprep.mubr.bf16.mxu0 0
        %1908 = vmatmul.mubr.bf16.gmra.mrb[0].mxu0 %v1558
        %v1909 = vpop.f32.mrb[0].mxu0
        %v1910 = vadd.f32 %v1520, %v1909
        %v1911 = vpop.f32.mrb[0].mxu0
        %v1912 = vadd.f32 %v1520, %v1911
        %v1913 = vpop.f32.mrb[0].mxu0
        %v1914 = vadd.f32 %v1525, %v1913
        %v1915 = vpop.f32.mrb[0].mxu0
        %v1916 = vadd.f32 %v1525, %v1915
        %1917 = vmatprep.mubr.bf16.mxu0 0
        %1918 = vmatmul.mubr.bf16.gmra.mrb[0].mxu0 %v1561
        %v1919 = vpop.f32.mrb[0].mxu0
        %v1920 = vadd.f32 %v1530, %v1919
        %v1921 = vpop.f32.mrb[0].mxu0
        %v1922 = vadd.f32 %v1530, %v1921
        %v1923 = vpop.f32.mrb[0].mxu0
        %v1924 = vadd.f32 %v1535, %v1923
        %v1925 = vpop.f32.mrb[0].mxu0
        %v1926 = vadd.f32 %v1535, %v1925
        %1927 = vmatprep.mubr.bf16.mxu0 0
        %1928 = vmatmul.mubr.bf16.gmra.mrb[0].mxu0 %v1564
        %v1929 = vpop.f32.mrb[0].mxu0
        %v1930 = vadd.f32 %v1540, %v1929
        %v1931 = vpop.f32.mrb[0].mxu0
        %v1932 = vadd.f32 %v1540, %v1931
        %v1933 = vpop.f32.mrb[0].mxu0
        %v1934 = vadd.f32 %v1545, %v1933
        %v1935 = vpop.f32.mrb[0].mxu0
        %v1936 = vadd.f32 %v1545, %v1935
        %1937 = vdwg.mxu0
        %vm1938 = vcmp.gt.f32.partialorder %v1601, 20.0
        %vm1939 = vcmp.gt.f32.partialorder %v1603, 20.0
        %vm1940 = vcmp.gt.f32.partialorder %v1694, 20.0
        %vm1941 = vcmp.gt.f32.partialorder %v1696, 20.0
        %vm1942 = vcmp.gt.f32.partialorder %v1787, 20.0
        %vm1943 = vcmp.gt.f32.partialorder %v1789, 20.0
        %vm1944 = vcmp.gt.f32.partialorder %v1880, 20.0
        %vm1945 = vcmp.gt.f32.partialorder %v1882, 20.0
        %vm1946 = vcmp.gt.f32.partialorder %v1605, 20.0
        %vm1947 = vcmp.gt.f32.partialorder %v1607, 20.0
        %vm1948 = vcmp.gt.f32.partialorder %v1698, 20.0
        %vm1949 = vcmp.gt.f32.partialorder %v1700, 20.0
        %vm1950 = vcmp.gt.f32.partialorder %v1791, 20.0
        %vm1951 = vcmp.gt.f32.partialorder %v1793, 20.0
        %vm1952 = vcmp.gt.f32.partialorder %v1884, 20.0
        %vm1953 = vcmp.gt.f32.partialorder %v1886, 20.0
        %vm1954 = vcmp.gt.f32.partialorder %v1611, 20.0
        %vm1955 = vcmp.gt.f32.partialorder %v1613, 20.0
        %vm1956 = vcmp.gt.f32.partialorder %v1704, 20.0
        %vm1957 = vcmp.gt.f32.partialorder %v1706, 20.0
        %vm1958 = vcmp.gt.f32.partialorder %v1797, 20.0
        %vm1959 = vcmp.gt.f32.partialorder %v1799, 20.0
        %vm1960 = vcmp.gt.f32.partialorder %v1890, 20.0
        %vm1961 = vcmp.gt.f32.partialorder %v1892, 20.0
        %vm1962 = vcmp.gt.f32.partialorder %v1615, 20.0
        %vm1963 = vcmp.gt.f32.partialorder %v1617, 20.0
        %vm1964 = vcmp.gt.f32.partialorder %v1708, 20.0
        %vm1965 = vcmp.gt.f32.partialorder %v1710, 20.0
        %vm1966 = vcmp.gt.f32.partialorder %v1801, 20.0
        %vm1967 = vcmp.gt.f32.partialorder %v1803, 20.0
        %vm1968 = vcmp.gt.f32.partialorder %v1894, 20.0
        %vm1969 = vcmp.gt.f32.partialorder %v1896, 20.0
        %vm1970 = vcmp.gt.f32.partialorder %v1621, 20.0
        %vm1971 = vcmp.gt.f32.partialorder %v1623, 20.0
        %vm1972 = vcmp.gt.f32.partialorder %v1714, 20.0
        %vm1973 = vcmp.gt.f32.partialorder %v1716, 20.0
        %vm1974 = vcmp.gt.f32.partialorder %v1807, 20.0
        %vm1975 = vcmp.gt.f32.partialorder %v1809, 20.0
        %vm1976 = vcmp.gt.f32.partialorder %v1900, 20.0
        %vm1977 = vcmp.gt.f32.partialorder %v1902, 20.0
        %vm1978 = vcmp.gt.f32.partialorder %v1625, 20.0
        %vm1979 = vcmp.gt.f32.partialorder %v1627, 20.0
        %vm1980 = vcmp.gt.f32.partialorder %v1718, 20.0
        %vm1981 = vcmp.gt.f32.partialorder %v1720, 20.0
        %vm1982 = vcmp.gt.f32.partialorder %v1811, 20.0
        %vm1983 = vcmp.gt.f32.partialorder %v1813, 20.0
        %vm1984 = vcmp.gt.f32.partialorder %v1904, 20.0
        %vm1985 = vcmp.gt.f32.partialorder %v1906, 20.0
        %vm1986 = vcmp.gt.f32.partialorder %v1631, 20.0
        %vm1987 = vcmp.gt.f32.partialorder %v1633, 20.0
        %vm1988 = vcmp.gt.f32.partialorder %v1724, 20.0
        %vm1989 = vcmp.gt.f32.partialorder %v1726, 20.0
        %vm1990 = vcmp.gt.f32.partialorder %v1817, 20.0
        %vm1991 = vcmp.gt.f32.partialorder %v1819, 20.0
        %vm1992 = vcmp.gt.f32.partialorder %v1910, 20.0
        %vm1993 = vcmp.gt.f32.partialorder %v1912, 20.0
        %vm1994 = vcmp.gt.f32.partialorder %v1635, 20.0
        %vm1995 = vcmp.gt.f32.partialorder %v1637, 20.0
        %vm1996 = vcmp.gt.f32.partialorder %v1728, 20.0
        %vm1997 = vcmp.gt.f32.partialorder %v1730, 20.0
        %vm1998 = vcmp.gt.f32.partialorder %v1821, 20.0
        %vm1999 = vcmp.gt.f32.partialorder %v1823, 20.0
        %vm2000 = vcmp.gt.f32.partialorder %v1914, 20.0
        %vm2001 = vcmp.gt.f32.partialorder %v1916, 20.0
        %vm2002 = vcmp.gt.f32.partialorder %v1641, 20.0
        %vm2003 = vcmp.gt.f32.partialorder %v1643, 20.0
        %vm2004 = vcmp.gt.f32.partialorder %v1734, 20.0
        %vm2005 = vcmp.gt.f32.partialorder %v1736, 20.0
        %vm2006 = vcmp.gt.f32.partialorder %v1827, 20.0
        %vm2007 = vcmp.gt.f32.partialorder %v1829, 20.0
        %vm2008 = vcmp.gt.f32.partialorder %v1920, 20.0
        %vm2009 = vcmp.gt.f32.partialorder %v1922, 20.0
        %vm2010 = vcmp.gt.f32.partialorder %v1645, 20.0
        %vm2011 = vcmp.gt.f32.partialorder %v1647, 20.0
        %vm2012 = vcmp.gt.f32.partialorder %v1738, 20.0
        %vm2013 = vcmp.gt.f32.partialorder %v1740, 20.0
        %vm2014 = vcmp.gt.f32.partialorder %v1831, 20.0
        %vm2015 = vcmp.gt.f32.partialorder %v1833, 20.0
        %vm2016 = vcmp.gt.f32.partialorder %v1924, 20.0
        %vm2017 = vcmp.gt.f32.partialorder %v1926, 20.0
        %vm2018 = vcmp.gt.f32.partialorder %v1651, 20.0
        %vm2019 = vcmp.gt.f32.partialorder %v1653, 20.0
        %vm2020 = vcmp.gt.f32.partialorder %v1744, 20.0
        %vm2021 = vcmp.gt.f32.partialorder %v1746, 20.0
        %vm2022 = vcmp.gt.f32.partialorder %v1837, 20.0
        %vm2023 = vcmp.gt.f32.partialorder %v1839, 20.0
        %vm2024 = vcmp.gt.f32.partialorder %v1930, 20.0
        %vm2025 = vcmp.gt.f32.partialorder %v1932, 20.0
        %vm2026 = vcmp.gt.f32.partialorder %v1655, 20.0
        %vm2027 = vcmp.gt.f32.partialorder %v1657, 20.0
        %vm2028 = vcmp.gt.f32.partialorder %v1748, 20.0
        %vm2029 = vcmp.gt.f32.partialorder %v1750, 20.0
        %vm2030 = vcmp.gt.f32.partialorder %v1841, 20.0
        %vm2031 = vcmp.gt.f32.partialorder %v1843, 20.0
        %vm2032 = vcmp.gt.f32.partialorder %v1934, 20.0
        %vm2033 = vcmp.gt.f32.partialorder %v1936, 20.0
        %v2034 = vmin.f32 %v1601, 20.0
        %v2035 = vmin.f32 %v1603, 20.0
        %v2036 = vmin.f32 %v1694, 20.0
        %v2037 = vmin.f32 %v1696, 20.0
        %v2038 = vmin.f32 %v1787, 20.0
        %v2039 = vmin.f32 %v1789, 20.0
        %v2040 = vmin.f32 %v1880, 20.0
        %v2041 = vmin.f32 %v1882, 20.0
        %v2042 = vmin.f32 %v1605, 20.0
        %v2043 = vmin.f32 %v1607, 20.0
        %v2044 = vmin.f32 %v1698, 20.0
        %v2045 = vmin.f32 %v1700, 20.0
        %v2046 = vmin.f32 %v1791, 20.0
        %v2047 = vmin.f32 %v1793, 20.0
        %v2048 = vmin.f32 %v1884, 20.0
        %v2049 = vmin.f32 %v1886, 20.0
        %v2050 = vmin.f32 %v1611, 20.0
        %v2051 = vmin.f32 %v1613, 20.0
        %v2052 = vmin.f32 %v1704, 20.0
        %v2053 = vmin.f32 %v1706, 20.0
        %v2054 = vmin.f32 %v1797, 20.0
        %v2055 = vmin.f32 %v1799, 20.0
        %v2056 = vmin.f32 %v1890, 20.0
        %v2057 = vmin.f32 %v1892, 20.0
        %v2058 = vmin.f32 %v1615, 20.0
        %v2059 = vmin.f32 %v1617, 20.0
        %v2060 = vmin.f32 %v1708, 20.0
        %v2061 = vmin.f32 %v1710, 20.0
        %v2062 = vmin.f32 %v1801, 20.0
        %v2063 = vmin.f32 %v1803, 20.0
        %v2064 = vmin.f32 %v1894, 20.0
        %v2065 = vmin.f32 %v1896, 20.0
        %v2066 = vmin.f32 %v1621, 20.0
        %v2067 = vmin.f32 %v1623, 20.0
        %v2068 = vmin.f32 %v1714, 20.0
        %v2069 = vmin.f32 %v1716, 20.0
        %v2070 = vmin.f32 %v1807, 20.0
        %v2071 = vmin.f32 %v1809, 20.0
        %v2072 = vmin.f32 %v1900, 20.0
        %v2073 = vmin.f32 %v1902, 20.0
        %v2074 = vmin.f32 %v1625, 20.0
        %v2075 = vmin.f32 %v1627, 20.0
        %v2076 = vmin.f32 %v1718, 20.0
        %v2077 = vmin.f32 %v1720, 20.0
        %v2078 = vmin.f32 %v1811, 20.0
        %v2079 = vmin.f32 %v1813, 20.0
        %v2080 = vmin.f32 %v1904, 20.0
        %v2081 = vmin.f32 %v1906, 20.0
        %v2082 = vmin.f32 %v1631, 20.0
        %v2083 = vmin.f32 %v1633, 20.0
        %v2084 = vmin.f32 %v1724, 20.0
        %v2085 = vmin.f32 %v1726, 20.0
        %v2086 = vmin.f32 %v1817, 20.0
        %v2087 = vmin.f32 %v1819, 20.0
        %v2088 = vmin.f32 %v1910, 20.0
        %v2089 = vmin.f32 %v1912, 20.0
        %v2090 = vmin.f32 %v1635, 20.0
        %v2091 = vmin.f32 %v1637, 20.0
        %v2092 = vmin.f32 %v1728, 20.0
        %v2093 = vmin.f32 %v1730, 20.0
        %v2094 = vmin.f32 %v1821, 20.0
        %v2095 = vmin.f32 %v1823, 20.0
        %v2096 = vmin.f32 %v1914, 20.0
        %v2097 = vmin.f32 %v1916, 20.0
        %v2098 = vmin.f32 %v1641, 20.0
        %v2099 = vmin.f32 %v1643, 20.0
        %v2100 = vmin.f32 %v1734, 20.0
        %v2101 = vmin.f32 %v1736, 20.0
        %v2102 = vmin.f32 %v1827, 20.0
        %v2103 = vmin.f32 %v1829, 20.0
        %v2104 = vmin.f32 %v1920, 20.0
        %v2105 = vmin.f32 %v1922, 20.0
        %v2106 = vmin.f32 %v1645, 20.0
        %v2107 = vmin.f32 %v1647, 20.0
        %v2108 = vmin.f32 %v1738, 20.0
        %v2109 = vmin.f32 %v1740, 20.0
        %v2110 = vmin.f32 %v1831, 20.0
        %v2111 = vmin.f32 %v1833, 20.0
        %v2112 = vmin.f32 %v1924, 20.0
        %v2113 = vmin.f32 %v1926, 20.0
        %v2114 = vmin.f32 %v1651, 20.0
        %v2115 = vmin.f32 %v1653, 20.0
        %v2116 = vmin.f32 %v1744, 20.0
        %v2117 = vmin.f32 %v1746, 20.0
        %v2118 = vmin.f32 %v1837, 20.0
        %v2119 = vmin.f32 %v1839, 20.0
        %v2120 = vmin.f32 %v1930, 20.0
        %v2121 = vmin.f32 %v1932, 20.0
        %v2122 = vmin.f32 %v1655, 20.0
        %v2123 = vmin.f32 %v1657, 20.0
        %v2124 = vmin.f32 %v1748, 20.0
        %v2125 = vmin.f32 %v1750, 20.0
        %v2126 = vmin.f32 %v1841, 20.0
        %v2127 = vmin.f32 %v1843, 20.0
        %v2128 = vmin.f32 %v1934, 20.0
        %v2129 = vmin.f32 %v1936, 20.0
        %v2130 = vmul.f32 %v2034, 1.442695
        %v2131 = vpow.pop %v2130
        %v2132 = vmul.f32 %v2035, 1.442695
        %v2133 = vpow.pop %v2132
        %v2134 = vmul.f32 %v2036, 1.442695
        %v2135 = vpow.pop %v2134
        %v2136 = vmul.f32 %v2037, 1.442695
        %v2137 = vpow.pop %v2136
        %v2138 = vmul.f32 %v2038, 1.442695
        %v2139 = vpow.pop %v2138
        %v2140 = vmul.f32 %v2039, 1.442695
        %v2141 = vpow.pop %v2140
        %v2142 = vmul.f32 %v2040, 1.442695
        %v2143 = vpow.pop %v2142
        %v2144 = vmul.f32 %v2041, 1.442695
        %v2145 = vpow.pop %v2144
        %v2146 = vmul.f32 %v2042, 1.442695
        %v2147 = vpow.pop %v2146
        %v2148 = vmul.f32 %v2043, 1.442695
        %v2149 = vpow.pop %v2148
        %v2150 = vmul.f32 %v2044, 1.442695
        %v2151 = vpow.pop %v2150
        %v2152 = vmul.f32 %v2045, 1.442695
        %v2153 = vpow.pop %v2152
        %v2154 = vmul.f32 %v2046, 1.442695
        %v2155 = vpow.pop %v2154
        %v2156 = vmul.f32 %v2047, 1.442695
        %v2157 = vpow.pop %v2156
        %v2158 = vmul.f32 %v2048, 1.442695
        %v2159 = vpow.pop %v2158
        %v2160 = vmul.f32 %v2049, 1.442695
        %v2161 = vpow.pop %v2160
        %v2162 = vmul.f32 %v2050, 1.442695
        %v2163 = vpow.pop %v2162
        %v2164 = vmul.f32 %v2051, 1.442695
        %v2165 = vpow.pop %v2164
        %v2166 = vmul.f32 %v2052, 1.442695
        %v2167 = vpow.pop %v2166
        %v2168 = vmul.f32 %v2053, 1.442695
        %v2169 = vpow.pop %v2168
        %v2170 = vmul.f32 %v2054, 1.442695
        %v2171 = vpow.pop %v2170
        %v2172 = vmul.f32 %v2055, 1.442695
        %v2173 = vpow.pop %v2172
        %v2174 = vmul.f32 %v2056, 1.442695
        %v2175 = vpow.pop %v2174
        %v2176 = vmul.f32 %v2057, 1.442695
        %v2177 = vpow.pop %v2176
        %v2178 = vmul.f32 %v2058, 1.442695
        %v2179 = vpow.pop %v2178
        %v2180 = vmul.f32 %v2059, 1.442695
        %v2181 = vpow.pop %v2180
        %v2182 = vmul.f32 %v2060, 1.442695
        %v2183 = vpow.pop %v2182
        %v2184 = vmul.f32 %v2061, 1.442695
        %v2185 = vpow.pop %v2184
        %v2186 = vmul.f32 %v2062, 1.442695
        %v2187 = vpow.pop %v2186
        %v2188 = vmul.f32 %v2063, 1.442695
        %v2189 = vpow.pop %v2188
        %v2190 = vmul.f32 %v2064, 1.442695
        %v2191 = vpow.pop %v2190
        %v2192 = vmul.f32 %v2065, 1.442695
        %v2193 = vpow.pop %v2192
        %v2194 = vmul.f32 %v2066, 1.442695
        %v2195 = vpow.pop %v2194
        %v2196 = vmul.f32 %v2067, 1.442695
        %v2197 = vpow.pop %v2196
        %v2198 = vmul.f32 %v2068, 1.442695
        %v2199 = vpow.pop %v2198
        %v2200 = vmul.f32 %v2069, 1.442695
        %v2201 = vpow.pop %v2200
        %v2202 = vmul.f32 %v2070, 1.442695
        %v2203 = vpow.pop %v2202
        %v2204 = vmul.f32 %v2071, 1.442695
        %v2205 = vpow.pop %v2204
        %v2206 = vmul.f32 %v2072, 1.442695
        %v2207 = vpow.pop %v2206
        %v2208 = vmul.f32 %v2073, 1.442695
        %v2209 = vpow.pop %v2208
        %v2210 = vmul.f32 %v2074, 1.442695
        %v2211 = vpow.pop %v2210
        %v2212 = vmul.f32 %v2075, 1.442695
        %v2213 = vpow.pop %v2212
        %v2214 = vmul.f32 %v2076, 1.442695
        %v2215 = vpow.pop %v2214
        %v2216 = vmul.f32 %v2077, 1.442695
        %v2217 = vpow.pop %v2216
        %v2218 = vmul.f32 %v2078, 1.442695
        %v2219 = vpow.pop %v2218
        %v2220 = vmul.f32 %v2079, 1.442695
        %v2221 = vpow.pop %v2220
        %v2222 = vmul.f32 %v2080, 1.442695
        %v2223 = vpow.pop %v2222
        %v2224 = vmul.f32 %v2081, 1.442695
        %v2225 = vpow.pop %v2224
        %v2226 = vmul.f32 %v2082, 1.442695
        %v2227 = vpow.pop %v2226
        %v2228 = vmul.f32 %v2083, 1.442695
        %v2229 = vpow.pop %v2228
        %v2230 = vmul.f32 %v2084, 1.442695
        %v2231 = vpow.pop %v2230
        %v2232 = vmul.f32 %v2085, 1.442695
        %v2233 = vpow.pop %v2232
        %v2234 = vmul.f32 %v2086, 1.442695
        %v2235 = vpow.pop %v2234
        %v2236 = vmul.f32 %v2087, 1.442695
        %v2237 = vpow.pop %v2236
        %v2238 = vmul.f32 %v2088, 1.442695
        %v2239 = vpow.pop %v2238
        %v2240 = vmul.f32 %v2089, 1.442695
        %v2241 = vpow.pop %v2240
        %v2242 = vmul.f32 %v2090, 1.442695
        %v2243 = vpow.pop %v2242
        %v2244 = vmul.f32 %v2091, 1.442695
        %v2245 = vpow.pop %v2244
        %v2246 = vmul.f32 %v2092, 1.442695
        %v2247 = vpow.pop %v2246
        %v2248 = vmul.f32 %v2093, 1.442695
        %v2249 = vpow.pop %v2248
        %v2250 = vmul.f32 %v2094, 1.442695
        %v2251 = vpow.pop %v2250
        %v2252 = vmul.f32 %v2095, 1.442695
        %v2253 = vpow.pop %v2252
        %v2254 = vmul.f32 %v2096, 1.442695
        %v2255 = vpow.pop %v2254
        %v2256 = vmul.f32 %v2097, 1.442695
        %v2257 = vpow.pop %v2256
        %v2258 = vmul.f32 %v2098, 1.442695
        %v2259 = vpow.pop %v2258
        %v2260 = vmul.f32 %v2099, 1.442695
        %v2261 = vpow.pop %v2260
        %v2262 = vmul.f32 %v2100, 1.442695
        %v2263 = vpow.pop %v2262
        %v2264 = vmul.f32 %v2101, 1.442695
        %v2265 = vpow.pop %v2264
        %v2266 = vmul.f32 %v2102, 1.442695
        %v2267 = vpow.pop %v2266
        %v2268 = vmul.f32 %v2103, 1.442695
        %v2269 = vpow.pop %v2268
        %v2270 = vmul.f32 %v2104, 1.442695
        %v2271 = vpow.pop %v2270
        %v2272 = vmul.f32 %v2105, 1.442695
        %v2273 = vpow.pop %v2272
        %v2274 = vmul.f32 %v2106, 1.442695
        %v2275 = vpow.pop %v2274
        %v2276 = vmul.f32 %v2107, 1.442695
        %v2277 = vpow.pop %v2276
        %v2278 = vmul.f32 %v2108, 1.442695
        %v2279 = vpow.pop %v2278
        %v2280 = vmul.f32 %v2109, 1.442695
        %v2281 = vpow.pop %v2280
        %v2282 = vmul.f32 %v2110, 1.442695
        %v2283 = vpow.pop %v2282
        %v2284 = vmul.f32 %v2111, 1.442695
        %v2285 = vpow.pop %v2284
        %v2286 = vmul.f32 %v2112, 1.442695
        %v2287 = vpow.pop %v2286
        %v2288 = vmul.f32 %v2113, 1.442695
        %v2289 = vpow.pop %v2288
        %v2290 = vmul.f32 %v2114, 1.442695
        %v2291 = vpow.pop %v2290
        %v2292 = vmul.f32 %v2115, 1.442695
        %v2293 = vpow.pop %v2292
        %v2294 = vmul.f32 %v2116, 1.442695
        %v2295 = vpow.pop %v2294
        %v2296 = vmul.f32 %v2117, 1.442695
        %v2297 = vpow.pop %v2296
        %v2298 = vmul.f32 %v2118, 1.442695
        %v2299 = vpow.pop %v2298
        %v2300 = vmul.f32 %v2119, 1.442695
        %v2301 = vpow.pop %v2300
        %v2302 = vmul.f32 %v2120, 1.442695
        %v2303 = vpow.pop %v2302
        %v2304 = vmul.f32 %v2121, 1.442695
        %v2305 = vpow.pop %v2304
        %v2306 = vmul.f32 %v2122, 1.442695
        %v2307 = vpow.pop %v2306
        %v2308 = vmul.f32 %v2123, 1.442695
        %v2309 = vpow.pop %v2308
        %v2310 = vmul.f32 %v2124, 1.442695
        %v2311 = vpow.pop %v2310
        %v2312 = vmul.f32 %v2125, 1.442695
        %v2313 = vpow.pop %v2312
        %v2314 = vmul.f32 %v2126, 1.442695
        %v2315 = vpow.pop %v2314
        %v2316 = vmul.f32 %v2127, 1.442695
        %v2317 = vpow.pop %v2316
        %v2318 = vmul.f32 %v2128, 1.442695
        %v2319 = vpow.pop %v2318
        %v2320 = vmul.f32 %v2129, 1.442695
        %v2321 = vpow.pop %v2320
        %v2322 = vadd.f32 %v2131, 1.0
        %v2323 = vlog2.pop %v2322
        %v2324 = vmul.f32 %v2323, 0.6931472
        %v2325 = vmul.f32 -0.5, %v2131
        %v2326 = vadd.f32 %v2325, 1.0
        %v2327 = vmul.f32 %v2326, %v2131
        %v2328 = vand.u32 2147483647, %v2131
        %vm2329 = vcmp.lt.f32.partialorder %v2328, 0.0004427343
        %v2330 = vsel %vm2329, %v2327, %v2324
        %v2331 = vadd.f32 %v2133, 1.0
        %v2332 = vlog2.pop %v2331
        %v2333 = vmul.f32 %v2332, 0.6931472
        %v2334 = vmul.f32 -0.5, %v2133
        %v2335 = vadd.f32 %v2334, 1.0
        %v2336 = vmul.f32 %v2335, %v2133
        %v2337 = vand.u32 2147483647, %v2133
        %vm2338 = vcmp.lt.f32.partialorder %v2337, 0.0004427343
        %v2339 = vsel %vm2338, %v2336, %v2333
        %v2340 = vadd.f32 %v2135, 1.0
        %v2341 = vlog2.pop %v2340
        %v2342 = vmul.f32 %v2341, 0.6931472
        %v2343 = vmul.f32 -0.5, %v2135
        %v2344 = vadd.f32 %v2343, 1.0
        %v2345 = vmul.f32 %v2344, %v2135
        %v2346 = vand.u32 2147483647, %v2135
        %vm2347 = vcmp.lt.f32.partialorder %v2346, 0.0004427343
        %v2348 = vsel %vm2347, %v2345, %v2342
        %v2349 = vadd.f32 %v2137, 1.0
        %v2350 = vlog2.pop %v2349
        %v2351 = vmul.f32 %v2350, 0.6931472
        %v2352 = vmul.f32 -0.5, %v2137
        %v2353 = vadd.f32 %v2352, 1.0
        %v2354 = vmul.f32 %v2353, %v2137
        %v2355 = vand.u32 2147483647, %v2137
        %vm2356 = vcmp.lt.f32.partialorder %v2355, 0.0004427343
        %v2357 = vsel %vm2356, %v2354, %v2351
        %v2358 = vadd.f32 %v2139, 1.0
        %v2359 = vlog2.pop %v2358
        %v2360 = vmul.f32 %v2359, 0.6931472
        %v2361 = vmul.f32 -0.5, %v2139
        %v2362 = vadd.f32 %v2361, 1.0
        %v2363 = vmul.f32 %v2362, %v2139
        %v2364 = vand.u32 2147483647, %v2139
        %vm2365 = vcmp.lt.f32.partialorder %v2364, 0.0004427343
        %v2366 = vsel %vm2365, %v2363, %v2360
        %v2367 = vadd.f32 %v2141, 1.0
        %v2368 = vlog2.pop %v2367
        %v2369 = vmul.f32 %v2368, 0.6931472
        %v2370 = vmul.f32 -0.5, %v2141
        %v2371 = vadd.f32 %v2370, 1.0
        %v2372 = vmul.f32 %v2371, %v2141
        %v2373 = vand.u32 2147483647, %v2141
        %vm2374 = vcmp.lt.f32.partialorder %v2373, 0.0004427343
        %v2375 = vsel %vm2374, %v2372, %v2369
        %v2376 = vadd.f32 %v2143, 1.0
        %v2377 = vlog2.pop %v2376
        %v2378 = vmul.f32 %v2377, 0.6931472
        %v2379 = vmul.f32 -0.5, %v2143
        %v2380 = vadd.f32 %v2379, 1.0
        %v2381 = vmul.f32 %v2380, %v2143
        %v2382 = vand.u32 2147483647, %v2143
        %vm2383 = vcmp.lt.f32.partialorder %v2382, 0.0004427343
        %v2384 = vsel %vm2383, %v2381, %v2378
        %v2385 = vadd.f32 %v2145, 1.0
        %v2386 = vlog2.pop %v2385
        %v2387 = vmul.f32 %v2386, 0.6931472
        %v2388 = vmul.f32 -0.5, %v2145
        %v2389 = vadd.f32 %v2388, 1.0
        %v2390 = vmul.f32 %v2389, %v2145
        %v2391 = vand.u32 2147483647, %v2145
        %vm2392 = vcmp.lt.f32.partialorder %v2391, 0.0004427343
        %v2393 = vsel %vm2392, %v2390, %v2387
        %v2394 = vadd.f32 %v2147, 1.0
        %v2395 = vlog2.pop %v2394
        %v2396 = vmul.f32 %v2395, 0.6931472
        %v2397 = vmul.f32 -0.5, %v2147
        %v2398 = vadd.f32 %v2397, 1.0
        %v2399 = vmul.f32 %v2398, %v2147
        %v2400 = vand.u32 2147483647, %v2147
        %vm2401 = vcmp.lt.f32.partialorder %v2400, 0.0004427343
        %v2402 = vsel %vm2401, %v2399, %v2396
        %v2403 = vadd.f32 %v2149, 1.0
        %v2404 = vlog2.pop %v2403
        %v2405 = vmul.f32 %v2404, 0.6931472
        %v2406 = vmul.f32 -0.5, %v2149
        %v2407 = vadd.f32 %v2406, 1.0
        %v2408 = vmul.f32 %v2407, %v2149
        %v2409 = vand.u32 2147483647, %v2149
        %vm2410 = vcmp.lt.f32.partialorder %v2409, 0.0004427343
        %v2411 = vsel %vm2410, %v2408, %v2405
        %v2412 = vadd.f32 %v2151, 1.0
        %v2413 = vlog2.pop %v2412
        %v2414 = vmul.f32 %v2413, 0.6931472
        %v2415 = vmul.f32 -0.5, %v2151
        %v2416 = vadd.f32 %v2415, 1.0
        %v2417 = vmul.f32 %v2416, %v2151
        %v2418 = vand.u32 2147483647, %v2151
        %vm2419 = vcmp.lt.f32.partialorder %v2418, 0.0004427343
        %v2420 = vsel %vm2419, %v2417, %v2414
        %v2421 = vadd.f32 %v2153, 1.0
        %v2422 = vlog2.pop %v2421
        %v2423 = vmul.f32 %v2422, 0.6931472
        %v2424 = vmul.f32 -0.5, %v2153
        %v2425 = vadd.f32 %v2424, 1.0
        %v2426 = vmul.f32 %v2425, %v2153
        %v2427 = vand.u32 2147483647, %v2153
        %vm2428 = vcmp.lt.f32.partialorder %v2427, 0.0004427343
        %v2429 = vsel %vm2428, %v2426, %v2423
        %v2430 = vadd.f32 %v2155, 1.0
        %v2431 = vlog2.pop %v2430
        %v2432 = vmul.f32 %v2431, 0.6931472
        %v2433 = vmul.f32 -0.5, %v2155
        %v2434 = vadd.f32 %v2433, 1.0
        %v2435 = vmul.f32 %v2434, %v2155
        %v2436 = vand.u32 2147483647, %v2155
        %vm2437 = vcmp.lt.f32.partialorder %v2436, 0.0004427343
        %v2438 = vsel %vm2437, %v2435, %v2432
        %v2439 = vadd.f32 %v2157, 1.0
        %v2440 = vlog2.pop %v2439
        %v2441 = vmul.f32 %v2440, 0.6931472
        %v2442 = vmul.f32 -0.5, %v2157
        %v2443 = vadd.f32 %v2442, 1.0
        %v2444 = vmul.f32 %v2443, %v2157
        %v2445 = vand.u32 2147483647, %v2157
        %vm2446 = vcmp.lt.f32.partialorder %v2445, 0.0004427343
        %v2447 = vsel %vm2446, %v2444, %v2441
        %v2448 = vadd.f32 %v2159, 1.0
        %v2449 = vlog2.pop %v2448
        %v2450 = vmul.f32 %v2449, 0.6931472
        %v2451 = vmul.f32 -0.5, %v2159
        %v2452 = vadd.f32 %v2451, 1.0
        %v2453 = vmul.f32 %v2452, %v2159
        %v2454 = vand.u32 2147483647, %v2159
        %vm2455 = vcmp.lt.f32.partialorder %v2454, 0.0004427343
        %v2456 = vsel %vm2455, %v2453, %v2450
        %v2457 = vadd.f32 %v2161, 1.0
        %v2458 = vlog2.pop %v2457
        %v2459 = vmul.f32 %v2458, 0.6931472
        %v2460 = vmul.f32 -0.5, %v2161
        %v2461 = vadd.f32 %v2460, 1.0
        %v2462 = vmul.f32 %v2461, %v2161
        %v2463 = vand.u32 2147483647, %v2161
        %vm2464 = vcmp.lt.f32.partialorder %v2463, 0.0004427343
        %v2465 = vsel %vm2464, %v2462, %v2459
        %v2466 = vadd.f32 %v2163, 1.0
        %v2467 = vlog2.pop %v2466
        %v2468 = vmul.f32 %v2467, 0.6931472
        %v2469 = vmul.f32 -0.5, %v2163
        %v2470 = vadd.f32 %v2469, 1.0
        %v2471 = vmul.f32 %v2470, %v2163
        %v2472 = vand.u32 2147483647, %v2163
        %vm2473 = vcmp.lt.f32.partialorder %v2472, 0.0004427343
        %v2474 = vsel %vm2473, %v2471, %v2468
        %v2475 = vadd.f32 %v2165, 1.0
        %v2476 = vlog2.pop %v2475
        %v2477 = vmul.f32 %v2476, 0.6931472
        %v2478 = vmul.f32 -0.5, %v2165
        %v2479 = vadd.f32 %v2478, 1.0
        %v2480 = vmul.f32 %v2479, %v2165
        %v2481 = vand.u32 2147483647, %v2165
        %vm2482 = vcmp.lt.f32.partialorder %v2481, 0.0004427343
        %v2483 = vsel %vm2482, %v2480, %v2477
        %v2484 = vadd.f32 %v2167, 1.0
        %v2485 = vlog2.pop %v2484
        %v2486 = vmul.f32 %v2485, 0.6931472
        %v2487 = vmul.f32 -0.5, %v2167
        %v2488 = vadd.f32 %v2487, 1.0
        %v2489 = vmul.f32 %v2488, %v2167
        %v2490 = vand.u32 2147483647, %v2167
        %vm2491 = vcmp.lt.f32.partialorder %v2490, 0.0004427343
        %v2492 = vsel %vm2491, %v2489, %v2486
        %v2493 = vadd.f32 %v2169, 1.0
        %v2494 = vlog2.pop %v2493
        %v2495 = vmul.f32 %v2494, 0.6931472
        %v2496 = vmul.f32 -0.5, %v2169
        %v2497 = vadd.f32 %v2496, 1.0
        %v2498 = vmul.f32 %v2497, %v2169
        %v2499 = vand.u32 2147483647, %v2169
        %vm2500 = vcmp.lt.f32.partialorder %v2499, 0.0004427343
        %v2501 = vsel %vm2500, %v2498, %v2495
        %v2502 = vadd.f32 %v2171, 1.0
        %v2503 = vlog2.pop %v2502
        %v2504 = vmul.f32 %v2503, 0.6931472
        %v2505 = vmul.f32 -0.5, %v2171
        %v2506 = vadd.f32 %v2505, 1.0
        %v2507 = vmul.f32 %v2506, %v2171
        %v2508 = vand.u32 2147483647, %v2171
        %vm2509 = vcmp.lt.f32.partialorder %v2508, 0.0004427343
        %v2510 = vsel %vm2509, %v2507, %v2504
        %v2511 = vadd.f32 %v2173, 1.0
        %v2512 = vlog2.pop %v2511
        %v2513 = vmul.f32 %v2512, 0.6931472
        %v2514 = vmul.f32 -0.5, %v2173
        %v2515 = vadd.f32 %v2514, 1.0
        %v2516 = vmul.f32 %v2515, %v2173
        %v2517 = vand.u32 2147483647, %v2173
        %vm2518 = vcmp.lt.f32.partialorder %v2517, 0.0004427343
        %v2519 = vsel %vm2518, %v2516, %v2513
        %v2520 = vadd.f32 %v2175, 1.0
        %v2521 = vlog2.pop %v2520
        %v2522 = vmul.f32 %v2521, 0.6931472
        %v2523 = vmul.f32 -0.5, %v2175
        %v2524 = vadd.f32 %v2523, 1.0
        %v2525 = vmul.f32 %v2524, %v2175
        %v2526 = vand.u32 2147483647, %v2175
        %vm2527 = vcmp.lt.f32.partialorder %v2526, 0.0004427343
        %v2528 = vsel %vm2527, %v2525, %v2522
        %v2529 = vadd.f32 %v2177, 1.0
        %v2530 = vlog2.pop %v2529
        %v2531 = vmul.f32 %v2530, 0.6931472
        %v2532 = vmul.f32 -0.5, %v2177
        %v2533 = vadd.f32 %v2532, 1.0
        %v2534 = vmul.f32 %v2533, %v2177
        %v2535 = vand.u32 2147483647, %v2177
        %vm2536 = vcmp.lt.f32.partialorder %v2535, 0.0004427343
        %v2537 = vsel %vm2536, %v2534, %v2531
        %v2538 = vadd.f32 %v2179, 1.0
        %v2539 = vlog2.pop %v2538
        %v2540 = vmul.f32 %v2539, 0.6931472
        %v2541 = vmul.f32 -0.5, %v2179
        %v2542 = vadd.f32 %v2541, 1.0
        %v2543 = vmul.f32 %v2542, %v2179
        %v2544 = vand.u32 2147483647, %v2179
        %vm2545 = vcmp.lt.f32.partialorder %v2544, 0.0004427343
        %v2546 = vsel %vm2545, %v2543, %v2540
        %v2547 = vadd.f32 %v2181, 1.0
        %v2548 = vlog2.pop %v2547
        %v2549 = vmul.f32 %v2548, 0.6931472
        %v2550 = vmul.f32 -0.5, %v2181
        %v2551 = vadd.f32 %v2550, 1.0
        %v2552 = vmul.f32 %v2551, %v2181
        %v2553 = vand.u32 2147483647, %v2181
        %vm2554 = vcmp.lt.f32.partialorder %v2553, 0.0004427343
        %v2555 = vsel %vm2554, %v2552, %v2549
        %v2556 = vadd.f32 %v2183, 1.0
        %v2557 = vlog2.pop %v2556
        %v2558 = vmul.f32 %v2557, 0.6931472
        %v2559 = vmul.f32 -0.5, %v2183
        %v2560 = vadd.f32 %v2559, 1.0
        %v2561 = vmul.f32 %v2560, %v2183
        %v2562 = vand.u32 2147483647, %v2183
        %vm2563 = vcmp.lt.f32.partialorder %v2562, 0.0004427343
        %v2564 = vsel %vm2563, %v2561, %v2558
        %v2565 = vadd.f32 %v2185, 1.0
        %v2566 = vlog2.pop %v2565
        %v2567 = vmul.f32 %v2566, 0.6931472
        %v2568 = vmul.f32 -0.5, %v2185
        %v2569 = vadd.f32 %v2568, 1.0
        %v2570 = vmul.f32 %v2569, %v2185
        %v2571 = vand.u32 2147483647, %v2185
        %vm2572 = vcmp.lt.f32.partialorder %v2571, 0.0004427343
        %v2573 = vsel %vm2572, %v2570, %v2567
        %v2574 = vadd.f32 %v2187, 1.0
        %v2575 = vlog2.pop %v2574
        %v2576 = vmul.f32 %v2575, 0.6931472
        %v2577 = vmul.f32 -0.5, %v2187
        %v2578 = vadd.f32 %v2577, 1.0
        %v2579 = vmul.f32 %v2578, %v2187
        %v2580 = vand.u32 2147483647, %v2187
        %vm2581 = vcmp.lt.f32.partialorder %v2580, 0.0004427343
        %v2582 = vsel %vm2581, %v2579, %v2576
        %v2583 = vadd.f32 %v2189, 1.0
        %v2584 = vlog2.pop %v2583
        %v2585 = vmul.f32 %v2584, 0.6931472
        %v2586 = vmul.f32 -0.5, %v2189
        %v2587 = vadd.f32 %v2586, 1.0
        %v2588 = vmul.f32 %v2587, %v2189
        %v2589 = vand.u32 2147483647, %v2189
        %vm2590 = vcmp.lt.f32.partialorder %v2589, 0.0004427343
        %v2591 = vsel %vm2590, %v2588, %v2585
        %v2592 = vadd.f32 %v2191, 1.0
        %v2593 = vlog2.pop %v2592
        %v2594 = vmul.f32 %v2593, 0.6931472
        %v2595 = vmul.f32 -0.5, %v2191
        %v2596 = vadd.f32 %v2595, 1.0
        %v2597 = vmul.f32 %v2596, %v2191
        %v2598 = vand.u32 2147483647, %v2191
        %vm2599 = vcmp.lt.f32.partialorder %v2598, 0.0004427343
        %v2600 = vsel %vm2599, %v2597, %v2594
        %v2601 = vadd.f32 %v2193, 1.0
        %v2602 = vlog2.pop %v2601
        %v2603 = vmul.f32 %v2602, 0.6931472
        %v2604 = vmul.f32 -0.5, %v2193
        %v2605 = vadd.f32 %v2604, 1.0
        %v2606 = vmul.f32 %v2605, %v2193
        %v2607 = vand.u32 2147483647, %v2193
        %vm2608 = vcmp.lt.f32.partialorder %v2607, 0.0004427343
        %v2609 = vsel %vm2608, %v2606, %v2603
        %v2610 = vadd.f32 %v2195, 1.0
        %v2611 = vlog2.pop %v2610
        %v2612 = vmul.f32 %v2611, 0.6931472
        %v2613 = vmul.f32 -0.5, %v2195
        %v2614 = vadd.f32 %v2613, 1.0
        %v2615 = vmul.f32 %v2614, %v2195
        %v2616 = vand.u32 2147483647, %v2195
        %vm2617 = vcmp.lt.f32.partialorder %v2616, 0.0004427343
        %v2618 = vsel %vm2617, %v2615, %v2612
        %v2619 = vadd.f32 %v2197, 1.0
        %v2620 = vlog2.pop %v2619
        %v2621 = vmul.f32 %v2620, 0.6931472
        %v2622 = vmul.f32 -0.5, %v2197
        %v2623 = vadd.f32 %v2622, 1.0
        %v2624 = vmul.f32 %v2623, %v2197
        %v2625 = vand.u32 2147483647, %v2197
        %vm2626 = vcmp.lt.f32.partialorder %v2625, 0.0004427343
        %v2627 = vsel %vm2626, %v2624, %v2621
        %v2628 = vadd.f32 %v2199, 1.0
        %v2629 = vlog2.pop %v2628
        %v2630 = vmul.f32 %v2629, 0.6931472
        %v2631 = vmul.f32 -0.5, %v2199
        %v2632 = vadd.f32 %v2631, 1.0
        %v2633 = vmul.f32 %v2632, %v2199
        %v2634 = vand.u32 2147483647, %v2199
        %vm2635 = vcmp.lt.f32.partialorder %v2634, 0.0004427343
        %v2636 = vsel %vm2635, %v2633, %v2630
        %v2637 = vadd.f32 %v2201, 1.0
        %v2638 = vlog2.pop %v2637
        %v2639 = vmul.f32 %v2638, 0.6931472
        %v2640 = vmul.f32 -0.5, %v2201
        %v2641 = vadd.f32 %v2640, 1.0
        %v2642 = vmul.f32 %v2641, %v2201
        %v2643 = vand.u32 2147483647, %v2201
        %vm2644 = vcmp.lt.f32.partialorder %v2643, 0.0004427343
        %v2645 = vsel %vm2644, %v2642, %v2639
        %v2646 = vadd.f32 %v2203, 1.0
        %v2647 = vlog2.pop %v2646
        %v2648 = vmul.f32 %v2647, 0.6931472
        %v2649 = vmul.f32 -0.5, %v2203
        %v2650 = vadd.f32 %v2649, 1.0
        %v2651 = vmul.f32 %v2650, %v2203
        %v2652 = vand.u32 2147483647, %v2203
        %vm2653 = vcmp.lt.f32.partialorder %v2652, 0.0004427343
        %v2654 = vsel %vm2653, %v2651, %v2648
        %v2655 = vadd.f32 %v2205, 1.0
        %v2656 = vlog2.pop %v2655
        %v2657 = vmul.f32 %v2656, 0.6931472
        %v2658 = vmul.f32 -0.5, %v2205
        %v2659 = vadd.f32 %v2658, 1.0
        %v2660 = vmul.f32 %v2659, %v2205
        %v2661 = vand.u32 2147483647, %v2205
        %vm2662 = vcmp.lt.f32.partialorder %v2661, 0.0004427343
        %v2663 = vsel %vm2662, %v2660, %v2657
        %v2664 = vadd.f32 %v2207, 1.0
        %v2665 = vlog2.pop %v2664
        %v2666 = vmul.f32 %v2665, 0.6931472
        %v2667 = vmul.f32 -0.5, %v2207
        %v2668 = vadd.f32 %v2667, 1.0
        %v2669 = vmul.f32 %v2668, %v2207
        %v2670 = vand.u32 2147483647, %v2207
        %vm2671 = vcmp.lt.f32.partialorder %v2670, 0.0004427343
        %v2672 = vsel %vm2671, %v2669, %v2666
        %v2673 = vadd.f32 %v2209, 1.0
        %v2674 = vlog2.pop %v2673
        %v2675 = vmul.f32 %v2674, 0.6931472
        %v2676 = vmul.f32 -0.5, %v2209
        %v2677 = vadd.f32 %v2676, 1.0
        %v2678 = vmul.f32 %v2677, %v2209
        %v2679 = vand.u32 2147483647, %v2209
        %vm2680 = vcmp.lt.f32.partialorder %v2679, 0.0004427343
        %v2681 = vsel %vm2680, %v2678, %v2675
        %v2682 = vadd.f32 %v2211, 1.0
        %v2683 = vlog2.pop %v2682
        %v2684 = vmul.f32 %v2683, 0.6931472
        %v2685 = vmul.f32 -0.5, %v2211
        %v2686 = vadd.f32 %v2685, 1.0
        %v2687 = vmul.f32 %v2686, %v2211
        %v2688 = vand.u32 2147483647, %v2211
        %vm2689 = vcmp.lt.f32.partialorder %v2688, 0.0004427343
        %v2690 = vsel %vm2689, %v2687, %v2684
        %v2691 = vadd.f32 %v2213, 1.0
        %v2692 = vlog2.pop %v2691
        %v2693 = vmul.f32 %v2692, 0.6931472
        %v2694 = vmul.f32 -0.5, %v2213
        %v2695 = vadd.f32 %v2694, 1.0
        %v2696 = vmul.f32 %v2695, %v2213
        %v2697 = vand.u32 2147483647, %v2213
        %vm2698 = vcmp.lt.f32.partialorder %v2697, 0.0004427343
        %v2699 = vsel %vm2698, %v2696, %v2693
        %v2700 = vadd.f32 %v2215, 1.0
        %v2701 = vlog2.pop %v2700
        %v2702 = vmul.f32 %v2701, 0.6931472
        %v2703 = vmul.f32 -0.5, %v2215
        %v2704 = vadd.f32 %v2703, 1.0
        %v2705 = vmul.f32 %v2704, %v2215
        %v2706 = vand.u32 2147483647, %v2215
        %vm2707 = vcmp.lt.f32.partialorder %v2706, 0.0004427343
        %v2708 = vsel %vm2707, %v2705, %v2702
        %v2709 = vadd.f32 %v2217, 1.0
        %v2710 = vlog2.pop %v2709
        %v2711 = vmul.f32 %v2710, 0.6931472
        %v2712 = vmul.f32 -0.5, %v2217
        %v2713 = vadd.f32 %v2712, 1.0
        %v2714 = vmul.f32 %v2713, %v2217
        %v2715 = vand.u32 2147483647, %v2217
        %vm2716 = vcmp.lt.f32.partialorder %v2715, 0.0004427343
        %v2717 = vsel %vm2716, %v2714, %v2711
        %v2718 = vadd.f32 %v2219, 1.0
        %v2719 = vlog2.pop %v2718
        %v2720 = vmul.f32 %v2719, 0.6931472
        %v2721 = vmul.f32 -0.5, %v2219
        %v2722 = vadd.f32 %v2721, 1.0
        %v2723 = vmul.f32 %v2722, %v2219
        %v2724 = vand.u32 2147483647, %v2219
        %vm2725 = vcmp.lt.f32.partialorder %v2724, 0.0004427343
        %v2726 = vsel %vm2725, %v2723, %v2720
        %v2727 = vadd.f32 %v2221, 1.0
        %v2728 = vlog2.pop %v2727
        %v2729 = vmul.f32 %v2728, 0.6931472
        %v2730 = vmul.f32 -0.5, %v2221
        %v2731 = vadd.f32 %v2730, 1.0
        %v2732 = vmul.f32 %v2731, %v2221
        %v2733 = vand.u32 2147483647, %v2221
        %vm2734 = vcmp.lt.f32.partialorder %v2733, 0.0004427343
        %v2735 = vsel %vm2734, %v2732, %v2729
        %v2736 = vadd.f32 %v2223, 1.0
        %v2737 = vlog2.pop %v2736
        %v2738 = vmul.f32 %v2737, 0.6931472
        %v2739 = vmul.f32 -0.5, %v2223
        %v2740 = vadd.f32 %v2739, 1.0
        %v2741 = vmul.f32 %v2740, %v2223
        %v2742 = vand.u32 2147483647, %v2223
        %vm2743 = vcmp.lt.f32.partialorder %v2742, 0.0004427343
        %v2744 = vsel %vm2743, %v2741, %v2738
        %v2745 = vadd.f32 %v2225, 1.0
        %v2746 = vlog2.pop %v2745
        %v2747 = vmul.f32 %v2746, 0.6931472
        %v2748 = vmul.f32 -0.5, %v2225
        %v2749 = vadd.f32 %v2748, 1.0
        %v2750 = vmul.f32 %v2749, %v2225
        %v2751 = vand.u32 2147483647, %v2225
        %vm2752 = vcmp.lt.f32.partialorder %v2751, 0.0004427343
        %v2753 = vsel %vm2752, %v2750, %v2747
        %v2754 = vadd.f32 %v2227, 1.0
        %v2755 = vlog2.pop %v2754
        %v2756 = vmul.f32 %v2755, 0.6931472
        %v2757 = vmul.f32 -0.5, %v2227
        %v2758 = vadd.f32 %v2757, 1.0
        %v2759 = vmul.f32 %v2758, %v2227
        %v2760 = vand.u32 2147483647, %v2227
        %vm2761 = vcmp.lt.f32.partialorder %v2760, 0.0004427343
        %v2762 = vsel %vm2761, %v2759, %v2756
        %v2763 = vadd.f32 %v2229, 1.0
        %v2764 = vlog2.pop %v2763
        %v2765 = vmul.f32 %v2764, 0.6931472
        %v2766 = vmul.f32 -0.5, %v2229
        %v2767 = vadd.f32 %v2766, 1.0
        %v2768 = vmul.f32 %v2767, %v2229
        %v2769 = vand.u32 2147483647, %v2229
        %vm2770 = vcmp.lt.f32.partialorder %v2769, 0.0004427343
        %v2771 = vsel %vm2770, %v2768, %v2765
        %v2772 = vadd.f32 %v2231, 1.0
        %v2773 = vlog2.pop %v2772
        %v2774 = vmul.f32 %v2773, 0.6931472
        %v2775 = vmul.f32 -0.5, %v2231
        %v2776 = vadd.f32 %v2775, 1.0
        %v2777 = vmul.f32 %v2776, %v2231
        %v2778 = vand.u32 2147483647, %v2231
        %vm2779 = vcmp.lt.f32.partialorder %v2778, 0.0004427343
        %v2780 = vsel %vm2779, %v2777, %v2774
        %v2781 = vadd.f32 %v2233, 1.0
        %v2782 = vlog2.pop %v2781
        %v2783 = vmul.f32 %v2782, 0.6931472
        %v2784 = vmul.f32 -0.5, %v2233
        %v2785 = vadd.f32 %v2784, 1.0
        %v2786 = vmul.f32 %v2785, %v2233
        %v2787 = vand.u32 2147483647, %v2233
        %vm2788 = vcmp.lt.f32.partialorder %v2787, 0.0004427343
        %v2789 = vsel %vm2788, %v2786, %v2783
        %v2790 = vadd.f32 %v2235, 1.0
        %v2791 = vlog2.pop %v2790
        %v2792 = vmul.f32 %v2791, 0.6931472
        %v2793 = vmul.f32 -0.5, %v2235
        %v2794 = vadd.f32 %v2793, 1.0
        %v2795 = vmul.f32 %v2794, %v2235
        %v2796 = vand.u32 2147483647, %v2235
        %vm2797 = vcmp.lt.f32.partialorder %v2796, 0.0004427343
        %v2798 = vsel %vm2797, %v2795, %v2792
        %v2799 = vadd.f32 %v2237, 1.0
        %v2800 = vlog2.pop %v2799
        %v2801 = vmul.f32 %v2800, 0.6931472
        %v2802 = vmul.f32 -0.5, %v2237
        %v2803 = vadd.f32 %v2802, 1.0
        %v2804 = vmul.f32 %v2803, %v2237
        %v2805 = vand.u32 2147483647, %v2237
        %vm2806 = vcmp.lt.f32.partialorder %v2805, 0.0004427343
        %v2807 = vsel %vm2806, %v2804, %v2801
        %v2808 = vadd.f32 %v2239, 1.0
        %v2809 = vlog2.pop %v2808
        %v2810 = vmul.f32 %v2809, 0.6931472
        %v2811 = vmul.f32 -0.5, %v2239
        %v2812 = vadd.f32 %v2811, 1.0
        %v2813 = vmul.f32 %v2812, %v2239
        %v2814 = vand.u32 2147483647, %v2239
        %vm2815 = vcmp.lt.f32.partialorder %v2814, 0.0004427343
        %v2816 = vsel %vm2815, %v2813, %v2810
        %v2817 = vadd.f32 %v2241, 1.0
        %v2818 = vlog2.pop %v2817
        %v2819 = vmul.f32 %v2818, 0.6931472
        %v2820 = vmul.f32 -0.5, %v2241
        %v2821 = vadd.f32 %v2820, 1.0
        %v2822 = vmul.f32 %v2821, %v2241
        %v2823 = vand.u32 2147483647, %v2241
        %vm2824 = vcmp.lt.f32.partialorder %v2823, 0.0004427343
        %v2825 = vsel %vm2824, %v2822, %v2819
        %v2826 = vadd.f32 %v2243, 1.0
        %v2827 = vlog2.pop %v2826
        %v2828 = vmul.f32 %v2827, 0.6931472
        %v2829 = vmul.f32 -0.5, %v2243
        %v2830 = vadd.f32 %v2829, 1.0
        %v2831 = vmul.f32 %v2830, %v2243
        %v2832 = vand.u32 2147483647, %v2243
        %vm2833 = vcmp.lt.f32.partialorder %v2832, 0.0004427343
        %v2834 = vsel %vm2833, %v2831, %v2828
        %v2835 = vadd.f32 %v2245, 1.0
        %v2836 = vlog2.pop %v2835
        %v2837 = vmul.f32 %v2836, 0.6931472
        %v2838 = vmul.f32 -0.5, %v2245
        %v2839 = vadd.f32 %v2838, 1.0
        %v2840 = vmul.f32 %v2839, %v2245
        %v2841 = vand.u32 2147483647, %v2245
        %vm2842 = vcmp.lt.f32.partialorder %v2841, 0.0004427343
        %v2843 = vsel %vm2842, %v2840, %v2837
        %v2844 = vadd.f32 %v2247, 1.0
        %v2845 = vlog2.pop %v2844
        %v2846 = vmul.f32 %v2845, 0.6931472
        %v2847 = vmul.f32 -0.5, %v2247
        %v2848 = vadd.f32 %v2847, 1.0
        %v2849 = vmul.f32 %v2848, %v2247
        %v2850 = vand.u32 2147483647, %v2247
        %vm2851 = vcmp.lt.f32.partialorder %v2850, 0.0004427343
        %v2852 = vsel %vm2851, %v2849, %v2846
        %v2853 = vadd.f32 %v2249, 1.0
        %v2854 = vlog2.pop %v2853
        %v2855 = vmul.f32 %v2854, 0.6931472
        %v2856 = vmul.f32 -0.5, %v2249
        %v2857 = vadd.f32 %v2856, 1.0
        %v2858 = vmul.f32 %v2857, %v2249
        %v2859 = vand.u32 2147483647, %v2249
        %vm2860 = vcmp.lt.f32.partialorder %v2859, 0.0004427343
        %v2861 = vsel %vm2860, %v2858, %v2855
        %v2862 = vadd.f32 %v2251, 1.0
        %v2863 = vlog2.pop %v2862
        %v2864 = vmul.f32 %v2863, 0.6931472
        %v2865 = vmul.f32 -0.5, %v2251
        %v2866 = vadd.f32 %v2865, 1.0
        %v2867 = vmul.f32 %v2866, %v2251
        %v2868 = vand.u32 2147483647, %v2251
        %vm2869 = vcmp.lt.f32.partialorder %v2868, 0.0004427343
        %v2870 = vsel %vm2869, %v2867, %v2864
        %v2871 = vadd.f32 %v2253, 1.0
        %v2872 = vlog2.pop %v2871
        %v2873 = vmul.f32 %v2872, 0.6931472
        %v2874 = vmul.f32 -0.5, %v2253
        %v2875 = vadd.f32 %v2874, 1.0
        %v2876 = vmul.f32 %v2875, %v2253
        %v2877 = vand.u32 2147483647, %v2253
        %vm2878 = vcmp.lt.f32.partialorder %v2877, 0.0004427343
        %v2879 = vsel %vm2878, %v2876, %v2873
        %v2880 = vadd.f32 %v2255, 1.0
        %v2881 = vlog2.pop %v2880
        %v2882 = vmul.f32 %v2881, 0.6931472
        %v2883 = vmul.f32 -0.5, %v2255
        %v2884 = vadd.f32 %v2883, 1.0
        %v2885 = vmul.f32 %v2884, %v2255
        %v2886 = vand.u32 2147483647, %v2255
        %vm2887 = vcmp.lt.f32.partialorder %v2886, 0.0004427343
        %v2888 = vsel %vm2887, %v2885, %v2882
        %v2889 = vadd.f32 %v2257, 1.0
        %v2890 = vlog2.pop %v2889
        %v2891 = vmul.f32 %v2890, 0.6931472
        %v2892 = vmul.f32 -0.5, %v2257
        %v2893 = vadd.f32 %v2892, 1.0
        %v2894 = vmul.f32 %v2893, %v2257
        %v2895 = vand.u32 2147483647, %v2257
        %vm2896 = vcmp.lt.f32.partialorder %v2895, 0.0004427343
        %v2897 = vsel %vm2896, %v2894, %v2891
        %v2898 = vadd.f32 %v2259, 1.0
        %v2899 = vlog2.pop %v2898
        %v2900 = vmul.f32 %v2899, 0.6931472
        %v2901 = vmul.f32 -0.5, %v2259
        %v2902 = vadd.f32 %v2901, 1.0
        %v2903 = vmul.f32 %v2902, %v2259
        %v2904 = vand.u32 2147483647, %v2259
        %vm2905 = vcmp.lt.f32.partialorder %v2904, 0.0004427343
        %v2906 = vsel %vm2905, %v2903, %v2900
        %v2907 = vadd.f32 %v2261, 1.0
        %v2908 = vlog2.pop %v2907
        %v2909 = vmul.f32 %v2908, 0.6931472
        %v2910 = vmul.f32 -0.5, %v2261
        %v2911 = vadd.f32 %v2910, 1.0
        %v2912 = vmul.f32 %v2911, %v2261
        %v2913 = vand.u32 2147483647, %v2261
        %vm2914 = vcmp.lt.f32.partialorder %v2913, 0.0004427343
        %v2915 = vsel %vm2914, %v2912, %v2909
        %v2916 = vadd.f32 %v2263, 1.0
        %v2917 = vlog2.pop %v2916
        %v2918 = vmul.f32 %v2917, 0.6931472
        %v2919 = vmul.f32 -0.5, %v2263
        %v2920 = vadd.f32 %v2919, 1.0
        %v2921 = vmul.f32 %v2920, %v2263
        %v2922 = vand.u32 2147483647, %v2263
        %vm2923 = vcmp.lt.f32.partialorder %v2922, 0.0004427343
        %v2924 = vsel %vm2923, %v2921, %v2918
        %v2925 = vadd.f32 %v2265, 1.0
        %v2926 = vlog2.pop %v2925
        %v2927 = vmul.f32 %v2926, 0.6931472
        %v2928 = vmul.f32 -0.5, %v2265
        %v2929 = vadd.f32 %v2928, 1.0
        %v2930 = vmul.f32 %v2929, %v2265
        %v2931 = vand.u32 2147483647, %v2265
        %vm2932 = vcmp.lt.f32.partialorder %v2931, 0.0004427343
        %v2933 = vsel %vm2932, %v2930, %v2927
        %v2934 = vadd.f32 %v2267, 1.0
        %v2935 = vlog2.pop %v2934
        %v2936 = vmul.f32 %v2935, 0.6931472
        %v2937 = vmul.f32 -0.5, %v2267
        %v2938 = vadd.f32 %v2937, 1.0
        %v2939 = vmul.f32 %v2938, %v2267
        %v2940 = vand.u32 2147483647, %v2267
        %vm2941 = vcmp.lt.f32.partialorder %v2940, 0.0004427343
        %v2942 = vsel %vm2941, %v2939, %v2936
        %v2943 = vadd.f32 %v2269, 1.0
        %v2944 = vlog2.pop %v2943
        %v2945 = vmul.f32 %v2944, 0.6931472
        %v2946 = vmul.f32 -0.5, %v2269
        %v2947 = vadd.f32 %v2946, 1.0
        %v2948 = vmul.f32 %v2947, %v2269
        %v2949 = vand.u32 2147483647, %v2269
        %vm2950 = vcmp.lt.f32.partialorder %v2949, 0.0004427343
        %v2951 = vsel %vm2950, %v2948, %v2945
        %v2952 = vadd.f32 %v2271, 1.0
        %v2953 = vlog2.pop %v2952
        %v2954 = vmul.f32 %v2953, 0.6931472
        %v2955 = vmul.f32 -0.5, %v2271
        %v2956 = vadd.f32 %v2955, 1.0
        %v2957 = vmul.f32 %v2956, %v2271
        %v2958 = vand.u32 2147483647, %v2271
        %vm2959 = vcmp.lt.f32.partialorder %v2958, 0.0004427343
        %v2960 = vsel %vm2959, %v2957, %v2954
        %v2961 = vadd.f32 %v2273, 1.0
        %v2962 = vlog2.pop %v2961
        %v2963 = vmul.f32 %v2962, 0.6931472
        %v2964 = vmul.f32 -0.5, %v2273
        %v2965 = vadd.f32 %v2964, 1.0
        %v2966 = vmul.f32 %v2965, %v2273
        %v2967 = vand.u32 2147483647, %v2273
        %vm2968 = vcmp.lt.f32.partialorder %v2967, 0.0004427343
        %v2969 = vsel %vm2968, %v2966, %v2963
        %v2970 = vadd.f32 %v2275, 1.0
        %v2971 = vlog2.pop %v2970
        %v2972 = vmul.f32 %v2971, 0.6931472
        %v2973 = vmul.f32 -0.5, %v2275
        %v2974 = vadd.f32 %v2973, 1.0
        %v2975 = vmul.f32 %v2974, %v2275
        %v2976 = vand.u32 2147483647, %v2275
        %vm2977 = vcmp.lt.f32.partialorder %v2976, 0.0004427343
        %v2978 = vsel %vm2977, %v2975, %v2972
        %v2979 = vadd.f32 %v2277, 1.0
        %v2980 = vlog2.pop %v2979
        %v2981 = vmul.f32 %v2980, 0.6931472
        %v2982 = vmul.f32 -0.5, %v2277
        %v2983 = vadd.f32 %v2982, 1.0
        %v2984 = vmul.f32 %v2983, %v2277
        %v2985 = vand.u32 2147483647, %v2277
        %vm2986 = vcmp.lt.f32.partialorder %v2985, 0.0004427343
        %v2987 = vsel %vm2986, %v2984, %v2981
        %v2988 = vadd.f32 %v2279, 1.0
        %v2989 = vlog2.pop %v2988
        %v2990 = vmul.f32 %v2989, 0.6931472
        %v2991 = vmul.f32 -0.5, %v2279
        %v2992 = vadd.f32 %v2991, 1.0
        %v2993 = vmul.f32 %v2992, %v2279
        %v2994 = vand.u32 2147483647, %v2279
        %vm2995 = vcmp.lt.f32.partialorder %v2994, 0.0004427343
        %v2996 = vsel %vm2995, %v2993, %v2990
        %v2997 = vadd.f32 %v2281, 1.0
        %v2998 = vlog2.pop %v2997
        %v2999 = vmul.f32 %v2998, 0.6931472
        %v3000 = vmul.f32 -0.5, %v2281
        %v3001 = vadd.f32 %v3000, 1.0
        %v3002 = vmul.f32 %v3001, %v2281
        %v3003 = vand.u32 2147483647, %v2281
        %vm3004 = vcmp.lt.f32.partialorder %v3003, 0.0004427343
        %v3005 = vsel %vm3004, %v3002, %v2999
        %v3006 = vadd.f32 %v2283, 1.0
        %v3007 = vlog2.pop %v3006
        %v3008 = vmul.f32 %v3007, 0.6931472
        %v3009 = vmul.f32 -0.5, %v2283
        %v3010 = vadd.f32 %v3009, 1.0
        %v3011 = vmul.f32 %v3010, %v2283
        %v3012 = vand.u32 2147483647, %v2283
        %vm3013 = vcmp.lt.f32.partialorder %v3012, 0.0004427343
        %v3014 = vsel %vm3013, %v3011, %v3008
        %v3015 = vadd.f32 %v2285, 1.0
        %v3016 = vlog2.pop %v3015
        %v3017 = vmul.f32 %v3016, 0.6931472
        %v3018 = vmul.f32 -0.5, %v2285
        %v3019 = vadd.f32 %v3018, 1.0
        %v3020 = vmul.f32 %v3019, %v2285
        %v3021 = vand.u32 2147483647, %v2285
        %vm3022 = vcmp.lt.f32.partialorder %v3021, 0.0004427343
        %v3023 = vsel %vm3022, %v3020, %v3017
        %v3024 = vadd.f32 %v2287, 1.0
        %v3025 = vlog2.pop %v3024
        %v3026 = vmul.f32 %v3025, 0.6931472
        %v3027 = vmul.f32 -0.5, %v2287
        %v3028 = vadd.f32 %v3027, 1.0
        %v3029 = vmul.f32 %v3028, %v2287
        %v3030 = vand.u32 2147483647, %v2287
        %vm3031 = vcmp.lt.f32.partialorder %v3030, 0.0004427343
        %v3032 = vsel %vm3031, %v3029, %v3026
        %v3033 = vadd.f32 %v2289, 1.0
        %v3034 = vlog2.pop %v3033
        %v3035 = vmul.f32 %v3034, 0.6931472
        %v3036 = vmul.f32 -0.5, %v2289
        %v3037 = vadd.f32 %v3036, 1.0
        %v3038 = vmul.f32 %v3037, %v2289
        %v3039 = vand.u32 2147483647, %v2289
        %vm3040 = vcmp.lt.f32.partialorder %v3039, 0.0004427343
        %v3041 = vsel %vm3040, %v3038, %v3035
        %v3042 = vadd.f32 %v2291, 1.0
        %v3043 = vlog2.pop %v3042
        %v3044 = vmul.f32 %v3043, 0.6931472
        %v3045 = vmul.f32 -0.5, %v2291
        %v3046 = vadd.f32 %v3045, 1.0
        %v3047 = vmul.f32 %v3046, %v2291
        %v3048 = vand.u32 2147483647, %v2291
        %vm3049 = vcmp.lt.f32.partialorder %v3048, 0.0004427343
        %v3050 = vsel %vm3049, %v3047, %v3044
        %v3051 = vadd.f32 %v2293, 1.0
        %v3052 = vlog2.pop %v3051
        %v3053 = vmul.f32 %v3052, 0.6931472
        %v3054 = vmul.f32 -0.5, %v2293
        %v3055 = vadd.f32 %v3054, 1.0
        %v3056 = vmul.f32 %v3055, %v2293
        %v3057 = vand.u32 2147483647, %v2293
        %vm3058 = vcmp.lt.f32.partialorder %v3057, 0.0004427343
        %v3059 = vsel %vm3058, %v3056, %v3053
        %v3060 = vadd.f32 %v2295, 1.0
        %v3061 = vlog2.pop %v3060
        %v3062 = vmul.f32 %v3061, 0.6931472
        %v3063 = vmul.f32 -0.5, %v2295
        %v3064 = vadd.f32 %v3063, 1.0
        %v3065 = vmul.f32 %v3064, %v2295
        %v3066 = vand.u32 2147483647, %v2295
        %vm3067 = vcmp.lt.f32.partialorder %v3066, 0.0004427343
        %v3068 = vsel %vm3067, %v3065, %v3062
        %v3069 = vadd.f32 %v2297, 1.0
        %v3070 = vlog2.pop %v3069
        %v3071 = vmul.f32 %v3070, 0.6931472
        %v3072 = vmul.f32 -0.5, %v2297
        %v3073 = vadd.f32 %v3072, 1.0
        %v3074 = vmul.f32 %v3073, %v2297
        %v3075 = vand.u32 2147483647, %v2297
        %vm3076 = vcmp.lt.f32.partialorder %v3075, 0.0004427343
        %v3077 = vsel %vm3076, %v3074, %v3071
        %v3078 = vadd.f32 %v2299, 1.0
        %v3079 = vlog2.pop %v3078
        %v3080 = vmul.f32 %v3079, 0.6931472
        %v3081 = vmul.f32 -0.5, %v2299
        %v3082 = vadd.f32 %v3081, 1.0
        %v3083 = vmul.f32 %v3082, %v2299
        %v3084 = vand.u32 2147483647, %v2299
        %vm3085 = vcmp.lt.f32.partialorder %v3084, 0.0004427343
        %v3086 = vsel %vm3085, %v3083, %v3080
        %v3087 = vadd.f32 %v2301, 1.0
        %v3088 = vlog2.pop %v3087
        %v3089 = vmul.f32 %v3088, 0.6931472
        %v3090 = vmul.f32 -0.5, %v2301
        %v3091 = vadd.f32 %v3090, 1.0
        %v3092 = vmul.f32 %v3091, %v2301
        %v3093 = vand.u32 2147483647, %v2301
        %vm3094 = vcmp.lt.f32.partialorder %v3093, 0.0004427343
        %v3095 = vsel %vm3094, %v3092, %v3089
        %v3096 = vadd.f32 %v2303, 1.0
        %v3097 = vlog2.pop %v3096
        %v3098 = vmul.f32 %v3097, 0.6931472
        %v3099 = vmul.f32 -0.5, %v2303
        %v3100 = vadd.f32 %v3099, 1.0
        %v3101 = vmul.f32 %v3100, %v2303
        %v3102 = vand.u32 2147483647, %v2303
        %vm3103 = vcmp.lt.f32.partialorder %v3102, 0.0004427343
        %v3104 = vsel %vm3103, %v3101, %v3098
        %v3105 = vadd.f32 %v2305, 1.0
        %v3106 = vlog2.pop %v3105
        %v3107 = vmul.f32 %v3106, 0.6931472
        %v3108 = vmul.f32 -0.5, %v2305
        %v3109 = vadd.f32 %v3108, 1.0
        %v3110 = vmul.f32 %v3109, %v2305
        %v3111 = vand.u32 2147483647, %v2305
        %vm3112 = vcmp.lt.f32.partialorder %v3111, 0.0004427343
        %v3113 = vsel %vm3112, %v3110, %v3107
        %v3114 = vadd.f32 %v2307, 1.0
        %v3115 = vlog2.pop %v3114
        %v3116 = vmul.f32 %v3115, 0.6931472
        %v3117 = vmul.f32 -0.5, %v2307
        %v3118 = vadd.f32 %v3117, 1.0
        %v3119 = vmul.f32 %v3118, %v2307
        %v3120 = vand.u32 2147483647, %v2307
        %vm3121 = vcmp.lt.f32.partialorder %v3120, 0.0004427343
        %v3122 = vsel %vm3121, %v3119, %v3116
        %v3123 = vadd.f32 %v2309, 1.0
        %v3124 = vlog2.pop %v3123
        %v3125 = vmul.f32 %v3124, 0.6931472
        %v3126 = vmul.f32 -0.5, %v2309
        %v3127 = vadd.f32 %v3126, 1.0
        %v3128 = vmul.f32 %v3127, %v2309
        %v3129 = vand.u32 2147483647, %v2309
        %vm3130 = vcmp.lt.f32.partialorder %v3129, 0.0004427343
        %v3131 = vsel %vm3130, %v3128, %v3125
        %v3132 = vadd.f32 %v2311, 1.0
        %v3133 = vlog2.pop %v3132
        %v3134 = vmul.f32 %v3133, 0.6931472
        %v3135 = vmul.f32 -0.5, %v2311
        %v3136 = vadd.f32 %v3135, 1.0
        %v3137 = vmul.f32 %v3136, %v2311
        %v3138 = vand.u32 2147483647, %v2311
        %vm3139 = vcmp.lt.f32.partialorder %v3138, 0.0004427343
        %v3140 = vsel %vm3139, %v3137, %v3134
        %v3141 = vadd.f32 %v2313, 1.0
        %v3142 = vlog2.pop %v3141
        %v3143 = vmul.f32 %v3142, 0.6931472
        %v3144 = vmul.f32 -0.5, %v2313
        %v3145 = vadd.f32 %v3144, 1.0
        %v3146 = vmul.f32 %v3145, %v2313
        %v3147 = vand.u32 2147483647, %v2313
        %vm3148 = vcmp.lt.f32.partialorder %v3147, 0.0004427343
        %v3149 = vsel %vm3148, %v3146, %v3143
        %v3150 = vadd.f32 %v2315, 1.0
        %v3151 = vlog2.pop %v3150
        %v3152 = vmul.f32 %v3151, 0.6931472
        %v3153 = vmul.f32 -0.5, %v2315
        %v3154 = vadd.f32 %v3153, 1.0
        %v3155 = vmul.f32 %v3154, %v2315
        %v3156 = vand.u32 2147483647, %v2315
        %vm3157 = vcmp.lt.f32.partialorder %v3156, 0.0004427343
        %v3158 = vsel %vm3157, %v3155, %v3152
        %v3159 = vadd.f32 %v2317, 1.0
        %v3160 = vlog2.pop %v3159
        %v3161 = vmul.f32 %v3160, 0.6931472
        %v3162 = vmul.f32 -0.5, %v2317
        %v3163 = vadd.f32 %v3162, 1.0
        %v3164 = vmul.f32 %v3163, %v2317
        %v3165 = vand.u32 2147483647, %v2317
        %vm3166 = vcmp.lt.f32.partialorder %v3165, 0.0004427343
        %v3167 = vsel %vm3166, %v3164, %v3161
        %v3168 = vadd.f32 %v2319, 1.0
        %v3169 = vlog2.pop %v3168
        %v3170 = vmul.f32 %v3169, 0.6931472
        %v3171 = vmul.f32 -0.5, %v2319
        %v3172 = vadd.f32 %v3171, 1.0
        %v3173 = vmul.f32 %v3172, %v2319
        %v3174 = vand.u32 2147483647, %v2319
        %vm3175 = vcmp.lt.f32.partialorder %v3174, 0.0004427343
        %v3176 = vsel %vm3175, %v3173, %v3170
        %v3177 = vadd.f32 %v2321, 1.0
        %v3178 = vlog2.pop %v3177
        %v3179 = vmul.f32 %v3178, 0.6931472
        %v3180 = vmul.f32 -0.5, %v2321
        %v3181 = vadd.f32 %v3180, 1.0
        %v3182 = vmul.f32 %v3181, %v2321
        %v3183 = vand.u32 2147483647, %v2321
        %vm3184 = vcmp.lt.f32.partialorder %v3183, 0.0004427343
        %v3185 = vsel %vm3184, %v3182, %v3179
        %v3186 = vsel %vm1938, %v1601, %v2330
        %v3187 = vsel %vm1939, %v1603, %v2339
        %v3188 = vsel %vm1940, %v1694, %v2348
        %v3189 = vsel %vm1941, %v1696, %v2357
        %v3190 = vsel %vm1942, %v1787, %v2366
        %v3191 = vsel %vm1943, %v1789, %v2375
        %v3192 = vsel %vm1944, %v1880, %v2384
        %v3193 = vsel %vm1945, %v1882, %v2393
        %v3194 = vsel %vm1946, %v1605, %v2402
        %v3195 = vsel %vm1947, %v1607, %v2411
        %v3196 = vsel %vm1948, %v1698, %v2420
        %v3197 = vsel %vm1949, %v1700, %v2429
        %v3198 = vsel %vm1950, %v1791, %v2438
        %v3199 = vsel %vm1951, %v1793, %v2447
        %v3200 = vsel %vm1952, %v1884, %v2456
        %v3201 = vsel %vm1953, %v1886, %v2465
        %v3202 = vsel %vm1954, %v1611, %v2474
        %v3203 = vsel %vm1955, %v1613, %v2483
        %v3204 = vsel %vm1956, %v1704, %v2492
        %v3205 = vsel %vm1957, %v1706, %v2501
        %v3206 = vsel %vm1958, %v1797, %v2510
        %v3207 = vsel %vm1959, %v1799, %v2519
        %v3208 = vsel %vm1960, %v1890, %v2528
        %v3209 = vsel %vm1961, %v1892, %v2537
        %v3210 = vsel %vm1962, %v1615, %v2546
        %v3211 = vsel %vm1963, %v1617, %v2555
        %v3212 = vsel %vm1964, %v1708, %v2564
        %v3213 = vsel %vm1965, %v1710, %v2573
        %v3214 = vsel %vm1966, %v1801, %v2582
        %v3215 = vsel %vm1967, %v1803, %v2591
        %v3216 = vsel %vm1968, %v1894, %v2600
        %v3217 = vsel %vm1969, %v1896, %v2609
        %v3218 = vsel %vm1970, %v1621, %v2618
        %v3219 = vsel %vm1971, %v1623, %v2627
        %v3220 = vsel %vm1972, %v1714, %v2636
        %v3221 = vsel %vm1973, %v1716, %v2645
        %v3222 = vsel %vm1974, %v1807, %v2654
        %v3223 = vsel %vm1975, %v1809, %v2663
        %v3224 = vsel %vm1976, %v1900, %v2672
        %v3225 = vsel %vm1977, %v1902, %v2681
        %v3226 = vsel %vm1978, %v1625, %v2690
        %v3227 = vsel %vm1979, %v1627, %v2699
        %v3228 = vsel %vm1980, %v1718, %v2708
        %v3229 = vsel %vm1981, %v1720, %v2717
        %v3230 = vsel %vm1982, %v1811, %v2726
        %v3231 = vsel %vm1983, %v1813, %v2735
        %v3232 = vsel %vm1984, %v1904, %v2744
        %v3233 = vsel %vm1985, %v1906, %v2753
        %v3234 = vsel %vm1986, %v1631, %v2762
        %v3235 = vsel %vm1987, %v1633, %v2771
        %v3236 = vsel %vm1988, %v1724, %v2780
        %v3237 = vsel %vm1989, %v1726, %v2789
        %v3238 = vsel %vm1990, %v1817, %v2798
        %v3239 = vsel %vm1991, %v1819, %v2807
        %v3240 = vsel %vm1992, %v1910, %v2816
        %v3241 = vsel %vm1993, %v1912, %v2825
        %v3242 = vsel %vm1994, %v1635, %v2834
        %v3243 = vsel %vm1995, %v1637, %v2843
        %v3244 = vsel %vm1996, %v1728, %v2852
        %v3245 = vsel %vm1997, %v1730, %v2861
        %v3246 = vsel %vm1998, %v1821, %v2870
        %v3247 = vsel %vm1999, %v1823, %v2879
        %v3248 = vsel %vm2000, %v1914, %v2888
        %v3249 = vsel %vm2001, %v1916, %v2897
        %v3250 = vsel %vm2002, %v1641, %v2906
        %v3251 = vsel %vm2003, %v1643, %v2915
        %v3252 = vsel %vm2004, %v1734, %v2924
        %v3253 = vsel %vm2005, %v1736, %v2933
        %v3254 = vsel %vm2006, %v1827, %v2942
        %v3255 = vsel %vm2007, %v1829, %v2951
        %v3256 = vsel %vm2008, %v1920, %v2960
        %v3257 = vsel %vm2009, %v1922, %v2969
        %v3258 = vsel %vm2010, %v1645, %v2978
        %v3259 = vsel %vm2011, %v1647, %v2987
        %v3260 = vsel %vm2012, %v1738, %v2996
        %v3261 = vsel %vm2013, %v1740, %v3005
        %v3262 = vsel %vm2014, %v1831, %v3014
        %v3263 = vsel %vm2015, %v1833, %v3023
        %v3264 = vsel %vm2016, %v1924, %v3032
        %v3265 = vsel %vm2017, %v1926, %v3041
        %v3266 = vsel %vm2018, %v1651, %v3050
        %v3267 = vsel %vm2019, %v1653, %v3059
        %v3268 = vsel %vm2020, %v1744, %v3068
        %v3269 = vsel %vm2021, %v1746, %v3077
        %v3270 = vsel %vm2022, %v1837, %v3086
        %v3271 = vsel %vm2023, %v1839, %v3095
        %v3272 = vsel %vm2024, %v1930, %v3104
        %v3273 = vsel %vm2025, %v1932, %v3113
        %v3274 = vsel %vm2026, %v1655, %v3122
        %v3275 = vsel %vm2027, %v1657, %v3131
        %v3276 = vsel %vm2028, %v1748, %v3140
        %v3277 = vsel %vm2029, %v1750, %v3149
        %v3278 = vsel %vm2030, %v1841, %v3158
        %v3279 = vsel %vm2031, %v1843, %v3167
        %v3280 = vsel %vm2032, %v1934, %v3176
        %v3281 = vsel %vm2033, %v1936, %v3185
        %v3282 = vsub.f32 %v3186, 0.6931472
        %v3283 = vsub.f32 %v3187, 0.6931472
        %v3284 = vsub.f32 %v3188, 0.6931472
        %v3285 = vsub.f32 %v3189, 0.6931472
        %v3286 = vsub.f32 %v3190, 0.6931472
        %v3287 = vsub.f32 %v3191, 0.6931472
        %v3288 = vsub.f32 %v3192, 0.6931472
        %v3289 = vsub.f32 %v3193, 0.6931472
        %v3290 = vsub.f32 %v3194, 0.6931472
        %v3291 = vsub.f32 %v3195, 0.6931472
        %v3292 = vsub.f32 %v3196, 0.6931472
        %v3293 = vsub.f32 %v3197, 0.6931472
        %v3294 = vsub.f32 %v3198, 0.6931472
        %v3295 = vsub.f32 %v3199, 0.6931472
        %v3296 = vsub.f32 %v3200, 0.6931472
        %v3297 = vsub.f32 %v3201, 0.6931472
        %v3298 = vsub.f32 %v3202, 0.6931472
        %v3299 = vsub.f32 %v3203, 0.6931472
        %v3300 = vsub.f32 %v3204, 0.6931472
        %v3301 = vsub.f32 %v3205, 0.6931472
        %v3302 = vsub.f32 %v3206, 0.6931472
        %v3303 = vsub.f32 %v3207, 0.6931472
        %v3304 = vsub.f32 %v3208, 0.6931472
        %v3305 = vsub.f32 %v3209, 0.6931472
        %v3306 = vsub.f32 %v3210, 0.6931472
        %v3307 = vsub.f32 %v3211, 0.6931472
        %v3308 = vsub.f32 %v3212, 0.6931472
        %v3309 = vsub.f32 %v3213, 0.6931472
        %v3310 = vsub.f32 %v3214, 0.6931472
        %v3311 = vsub.f32 %v3215, 0.6931472
        %v3312 = vsub.f32 %v3216, 0.6931472
        %v3313 = vsub.f32 %v3217, 0.6931472
        %v3314 = vsub.f32 %v3218, 0.6931472
        %v3315 = vsub.f32 %v3219, 0.6931472
        %v3316 = vsub.f32 %v3220, 0.6931472
        %v3317 = vsub.f32 %v3221, 0.6931472
        %v3318 = vsub.f32 %v3222, 0.6931472
        %v3319 = vsub.f32 %v3223, 0.6931472
        %v3320 = vsub.f32 %v3224, 0.6931472
        %v3321 = vsub.f32 %v3225, 0.6931472
        %v3322 = vsub.f32 %v3226, 0.6931472
        %v3323 = vsub.f32 %v3227, 0.6931472
        %v3324 = vsub.f32 %v3228, 0.6931472
        %v3325 = vsub.f32 %v3229, 0.6931472
        %v3326 = vsub.f32 %v3230, 0.6931472
        %v3327 = vsub.f32 %v3231, 0.6931472
        %v3328 = vsub.f32 %v3232, 0.6931472
        %v3329 = vsub.f32 %v3233, 0.6931472
        %v3330 = vsub.f32 %v3234, 0.6931472
        %v3331 = vsub.f32 %v3235, 0.6931472
        %v3332 = vsub.f32 %v3236, 0.6931472
        %v3333 = vsub.f32 %v3237, 0.6931472
        %v3334 = vsub.f32 %v3238, 0.6931472
        %v3335 = vsub.f32 %v3239, 0.6931472
        %v3336 = vsub.f32 %v3240, 0.6931472
        %v3337 = vsub.f32 %v3241, 0.6931472
        %v3338 = vsub.f32 %v3242, 0.6931472
        %v3339 = vsub.f32 %v3243, 0.6931472
        %v3340 = vsub.f32 %v3244, 0.6931472
        %v3341 = vsub.f32 %v3245, 0.6931472
        %v3342 = vsub.f32 %v3246, 0.6931472
        %v3343 = vsub.f32 %v3247, 0.6931472
        %v3344 = vsub.f32 %v3248, 0.6931472
        %v3345 = vsub.f32 %v3249, 0.6931472
        %v3346 = vsub.f32 %v3250, 0.6931472
        %v3347 = vsub.f32 %v3251, 0.6931472
        %v3348 = vsub.f32 %v3252, 0.6931472
        %v3349 = vsub.f32 %v3253, 0.6931472
        %v3350 = vsub.f32 %v3254, 0.6931472
        %v3351 = vsub.f32 %v3255, 0.6931472
        %v3352 = vsub.f32 %v3256, 0.6931472
        %v3353 = vsub.f32 %v3257, 0.6931472
        %v3354 = vsub.f32 %v3258, 0.6931472
        %v3355 = vsub.f32 %v3259, 0.6931472
        %v3356 = vsub.f32 %v3260, 0.6931472
        %v3357 = vsub.f32 %v3261, 0.6931472
        %v3358 = vsub.f32 %v3262, 0.6931472
        %v3359 = vsub.f32 %v3263, 0.6931472
        %v3360 = vsub.f32 %v3264, 0.6931472
        %v3361 = vsub.f32 %v3265, 0.6931472
        %v3362 = vsub.f32 %v3266, 0.6931472
        %v3363 = vsub.f32 %v3267, 0.6931472
        %v3364 = vsub.f32 %v3268, 0.6931472
        %v3365 = vsub.f32 %v3269, 0.6931472
        %v3366 = vsub.f32 %v3270, 0.6931472
        %v3367 = vsub.f32 %v3271, 0.6931472
        %v3368 = vsub.f32 %v3272, 0.6931472
        %v3369 = vsub.f32 %v3273, 0.6931472
        %v3370 = vsub.f32 %v3274, 0.6931472
        %v3371 = vsub.f32 %v3275, 0.6931472
        %v3372 = vsub.f32 %v3276, 0.6931472
        %v3373 = vsub.f32 %v3277, 0.6931472
        %v3374 = vsub.f32 %v3278, 0.6931472
        %v3375 = vsub.f32 %v3279, 0.6931472
        %v3376 = vsub.f32 %v3280, 0.6931472
        %v3377 = vsub.f32 %v3281, 0.6931472
        %v3378 = vpack.c.bf16 %v3290, %v3282
        %v3379 = vpack.c.bf16 %v3291, %v3283
        %v3380 = vpack.c.bf16 %v3292, %v3284
        %v3381 = vpack.c.bf16 %v3293, %v3285
        %v3382 = vpack.c.bf16 %v3294, %v3286
        %v3383 = vpack.c.bf16 %v3295, %v3287
        %v3384 = vpack.c.bf16 %v3296, %v3288
        %v3385 = vpack.c.bf16 %v3297, %v3289
        %v3386 = vpack.c.bf16 %v3306, %v3298
        %v3387 = vpack.c.bf16 %v3307, %v3299
        %v3388 = vpack.c.bf16 %v3308, %v3300
        %v3389 = vpack.c.bf16 %v3309, %v3301
        %v3390 = vpack.c.bf16 %v3310, %v3302
        %v3391 = vpack.c.bf16 %v3311, %v3303
        %v3392 = vpack.c.bf16 %v3312, %v3304
        %v3393 = vpack.c.bf16 %v3313, %v3305
        %v3394 = vpack.c.bf16 %v3322, %v3314
        %v3395 = vpack.c.bf16 %v3323, %v3315
        %v3396 = vpack.c.bf16 %v3324, %v3316
        %v3397 = vpack.c.bf16 %v3325, %v3317
        %v3398 = vpack.c.bf16 %v3326, %v3318
        %v3399 = vpack.c.bf16 %v3327, %v3319
        %v3400 = vpack.c.bf16 %v3328, %v3320
        %v3401 = vpack.c.bf16 %v3329, %v3321
        %v3402 = vpack.c.bf16 %v3338, %v3330
        %v3403 = vpack.c.bf16 %v3339, %v3331
        %v3404 = vpack.c.bf16 %v3340, %v3332
        %v3405 = vpack.c.bf16 %v3341, %v3333
        %v3406 = vpack.c.bf16 %v3342, %v3334
        %v3407 = vpack.c.bf16 %v3343, %v3335
        %v3408 = vpack.c.bf16 %v3344, %v3336
        %v3409 = vpack.c.bf16 %v3345, %v3337
        %v3410 = vpack.c.bf16 %v3354, %v3346
        %v3411 = vpack.c.bf16 %v3355, %v3347
        %v3412 = vpack.c.bf16 %v3356, %v3348
        %v3413 = vpack.c.bf16 %v3357, %v3349
        %v3414 = vpack.c.bf16 %v3358, %v3350
        %v3415 = vpack.c.bf16 %v3359, %v3351
        %v3416 = vpack.c.bf16 %v3360, %v3352
        %v3417 = vpack.c.bf16 %v3361, %v3353
        %v3418 = vpack.c.bf16 %v3370, %v3362
        %v3419 = vpack.c.bf16 %v3371, %v3363
        %v3420 = vpack.c.bf16 %v3372, %v3364
        %v3421 = vpack.c.bf16 %v3373, %v3365
        %v3422 = vpack.c.bf16 %v3374, %v3366
        %v3423 = vpack.c.bf16 %v3375, %v3367
        %v3424 = vpack.c.bf16 %v3376, %v3368
        %v3425 = vpack.c.bf16 %v3377, %v3369
        %3427 = vset.pattern.permute.xlu0 96
        %3428 = vperm.xlu0 %3427, %v1461
        %v3429 = vpop.permute.xlu0 %3428
        %3432 = vset.pattern.permute.xlu0 96
        %3433 = vperm.xlu0 %3432, %v1462
        %v3434 = vpop.permute.xlu0 %3433
        %3437 = vset.pattern.permute.xlu0 96
        %3438 = vperm.xlu0 %3437, %v1463
        %v3439 = vpop.permute.xlu0 %3438
        %3442 = vset.pattern.permute.xlu0 96
        %3443 = vperm.xlu0 %3442, %v1464
        %v3444 = vpop.permute.xlu0 %3443
        %3447 = vset.pattern.permute.xlu0 96
        %3448 = vperm.xlu0 %3447, %v1465
        %v3449 = vpop.permute.xlu0 %3448
        %3452 = vset.pattern.permute.xlu0 96
        %3453 = vperm.xlu0 %3452, %v1466
        %v3454 = vpop.permute.xlu0 %3453
        %3457 = vset.pattern.permute.xlu0 96
        %3458 = vperm.xlu0 %3457, %v1467
        %v3459 = vpop.permute.xlu0 %3458
        %3462 = vset.pattern.permute.xlu0 96
        %3463 = vperm.xlu0 %3462, %v1468
        %v3464 = vpop.permute.xlu0 %3463
        %3467 = vset.pattern.permute.xlu0 96
        %3468 = vperm.xlu0 %3467, %v1469
        %v3469 = vpop.permute.xlu0 %3468
        %3472 = vset.pattern.permute.xlu0 96
        %3473 = vperm.xlu0 %3472, %v1470
        %v3474 = vpop.permute.xlu0 %3473
        %3477 = vset.pattern.permute.xlu0 96
        %3478 = vperm.xlu0 %3477, %v1471
        %v3479 = vpop.permute.xlu0 %3478
        %3482 = vset.pattern.permute.xlu0 96
        %3483 = vperm.xlu0 %3482, %v1472
        %v3484 = vpop.permute.xlu0 %3483
        %vm3486 = vcmask 785408
        %v3488 = vsel %vm3486, %v1473, 0
        %v3491 = vsel %vm3486, %v1474, 0
        %v3494 = vsel %vm3486, %v1475, 0
        %v3497 = vsel %vm3486, %v1476, 0
        %v3500 = vsel %vm3486, %v1477, 0
        %v3503 = vsel %vm3486, %v1478, 0
        %3505 = vmatprep.subr.bf16.mxu0 %v3379
        %3506 = vmatpush1.bf16.msra.mxu0 %v3378
        %3507 = vmatprep.subr.bf16.mxu0 %v3387
        %3508 = vmatpush1.bf16.msra.mxu0 %v3386
        %3509 = vmatprep.subr.bf16.mxu0 %v3395
        %3510 = vmatpush1.bf16.msra.mxu0 %v3394
        %3511 = vmatprep.subr.bf16.mxu0 %v3403
        %3512 = vmatpush1.bf16.msra.mxu0 %v3402
        %3513 = vmatprep.subr.bf16.mxu0 %v3411
        %3514 = vmatpush1.bf16.msra.mxu0 %v3410
        %3515 = vmatprep.subr.bf16.mxu0 %v3419
        %3516 = vmatpush1.bf16.msra.mxu0 %v3418
        %3517 = vmatprep.subr.bf16.mxu0 0
        %3518 = vmatpush1.bf16.msra.mxu0 0
        %3519 = vmatprep.subr.bf16.mxu0 0
        %3520 = vmatpush1.bf16.msra.mxu0 0
        %3521 = vmatprep.subr.bf16.mxu0 0
        %3522 = vmatpush1.bf16.msra.mxu0 0
        %3523 = vmatprep.subr.bf16.mxu0 0
        %3524 = vmatpush1.bf16.msra.mxu0 0
        %3525 = vmatprep.subr.bf16.mxu0 0
        %3526 = vmatpush1.bf16.msra.mxu0 0
        %3527 = vmatprep.subr.bf16.mxu0 0
        %3528 = vmatpush1.bf16.msra.mxu0 0
        %3529 = vmatprep.subr.bf16.mxu0 0
        %3530 = vmatpush1.bf16.msra.mxu0 0
        %3531 = vmatprep.subr.bf16.mxu0 0
        %3532 = vmatpush1.bf16.msra.mxu0 0
        %3533 = vmatprep.subr.bf16.mxu0 0
        %3534 = vmatpush1.bf16.msra.mxu0 0
        %3535 = vmatprep.subr.bf16.mxu0 0
        %3536 = vmatpush1.bf16.msra.mxu0 0
        %3537 = vmatprep.mubr.bf16.mxu0 0
        %3538 = vmatmul.mubr.bf16.gmra.mrb[0].mxu0 %v3488
        %v3539 = vpop.f32.mrb[0].mxu0
        %v3540 = vadd.f32 %v3429, %v3539
        %v3541 = vpop.f32.mrb[0].mxu0
        %v3542 = vadd.f32 %v3429, %v3541
        %v3543 = vpop.f32.mrb[0].mxu0
        %v3544 = vadd.f32 %v3434, %v3543
        %v3545 = vpop.f32.mrb[0].mxu0
        %v3546 = vadd.f32 %v3434, %v3545
        %3547 = vmatprep.mubr.bf16.mxu0 0
        %3548 = vmatmul.mubr.bf16.gmra.mrb[0].mxu0 %v3491
        %v3549 = vpop.f32.mrb[0].mxu0
        %v3550 = vadd.f32 %v3439, %v3549
        %v3551 = vpop.f32.mrb[0].mxu0
        %v3552 = vadd.f32 %v3439, %v3551
        %v3553 = vpop.f32.mrb[0].mxu0
        %v3554 = vadd.f32 %v3444, %v3553
        %v3555 = vpop.f32.mrb[0].mxu0
        %v3556 = vadd.f32 %v3444, %v3555
        %3557 = vmatprep.mubr.bf16.mxu0 0
        %3558 = vmatmul.mubr.bf16.gmra.mrb[0].mxu0 %v3494
        %v3559 = vpop.f32.mrb[0].mxu0
        %v3560 = vadd.f32 %v3449, %v3559
        %v3561 = vpop.f32.mrb[0].mxu0
        %v3562 = vadd.f32 %v3449, %v3561
        %v3563 = vpop.f32.mrb[0].mxu0
        %v3564 = vadd.f32 %v3454, %v3563
        %v3565 = vpop.f32.mrb[0].mxu0
        %v3566 = vadd.f32 %v3454, %v3565
        %3567 = vmatprep.mubr.bf16.mxu0 0
        %3568 = vmatmul.mubr.bf16.gmra.mrb[0].mxu0 %v3497
        %v3569 = vpop.f32.mrb[0].mxu0
        %v3570 = vadd.f32 %v3459, %v3569
        %v3571 = vpop.f32.mrb[0].mxu0
        %v3572 = vadd.f32 %v3459, %v3571
        %v3573 = vpop.f32.mrb[0].mxu0
        %v3574 = vadd.f32 %v3464, %v3573
        %v3575 = vpop.f32.mrb[0].mxu0
        %v3576 = vadd.f32 %v3464, %v3575
        %3577 = vmatprep.mubr.bf16.mxu0 0
        %3578 = vmatmul.mubr.bf16.gmra.mrb[0].mxu0 %v3500
        %v3579 = vpop.f32.mrb[0].mxu0
        %v3580 = vadd.f32 %v3469, %v3579
        %v3581 = vpop.f32.mrb[0].mxu0
        %v3582 = vadd.f32 %v3469, %v3581
        %v3583 = vpop.f32.mrb[0].mxu0
        %v3584 = vadd.f32 %v3474, %v3583
        %v3585 = vpop.f32.mrb[0].mxu0
        %v3586 = vadd.f32 %v3474, %v3585
        %3587 = vmatprep.mubr.bf16.mxu0 0
        %3588 = vmatmul.mubr.bf16.gmra.mrb[0].mxu0 %v3503
        %v3589 = vpop.f32.mrb[0].mxu0
        %v3590 = vadd.f32 %v3479, %v3589
        %v3591 = vpop.f32.mrb[0].mxu0
        %v3592 = vadd.f32 %v3479, %v3591
        %v3593 = vpop.f32.mrb[0].mxu0
        %v3594 = vadd.f32 %v3484, %v3593
        %v3595 = vpop.f32.mrb[0].mxu0
        %v3596 = vadd.f32 %v3484, %v3595
        %3597 = vdwg.mxu0
        %3598 = vmatprep.subr.bf16.mxu0 %v3381
        %3599 = vmatpush1.bf16.msra.mxu0 %v3380
        %3600 = vmatprep.subr.bf16.mxu0 %v3389
        %3601 = vmatpush1.bf16.msra.mxu0 %v3388
        %3602 = vmatprep.subr.bf16.mxu0 %v3397
        %3603 = vmatpush1.bf16.msra.mxu0 %v3396
        %3604 = vmatprep.subr.bf16.mxu0 %v3405
        %3605 = vmatpush1.bf16.msra.mxu0 %v3404
        %3606 = vmatprep.subr.bf16.mxu0 %v3413
        %3607 = vmatpush1.bf16.msra.mxu0 %v3412
        %3608 = vmatprep.subr.bf16.mxu0 %v3421
        %3609 = vmatpush1.bf16.msra.mxu0 %v3420
        %3610 = vmatprep.subr.bf16.mxu0 0
        %3611 = vmatpush1.bf16.msra.mxu0 0
        %3612 = vmatprep.subr.bf16.mxu0 0
        %3613 = vmatpush1.bf16.msra.mxu0 0
        %3614 = vmatprep.subr.bf16.mxu0 0
        %3615 = vmatpush1.bf16.msra.mxu0 0
        %3616 = vmatprep.subr.bf16.mxu0 0
        %3617 = vmatpush1.bf16.msra.mxu0 0
        %3618 = vmatprep.subr.bf16.mxu0 0
        %3619 = vmatpush1.bf16.msra.mxu0 0
        %3620 = vmatprep.subr.bf16.mxu0 0
        %3621 = vmatpush1.bf16.msra.mxu0 0
        %3622 = vmatprep.subr.bf16.mxu0 0
        %3623 = vmatpush1.bf16.msra.mxu0 0
        %3624 = vmatprep.subr.bf16.mxu0 0
        %3625 = vmatpush1.bf16.msra.mxu0 0
        %3626 = vmatprep.subr.bf16.mxu0 0
        %3627 = vmatpush1.bf16.msra.mxu0 0
        %3628 = vmatprep.subr.bf16.mxu0 0
        %3629 = vmatpush1.bf16.msra.mxu0 0
        %3630 = vmatprep.mubr.bf16.mxu0 0
        %3631 = vmatmul.mubr.bf16.gmra.mrb[0].mxu0 %v3488
        %v3632 = vpop.f32.mrb[0].mxu0
        %v3633 = vadd.f32 %v3429, %v3632
        %v3634 = vpop.f32.mrb[0].mxu0
        %v3635 = vadd.f32 %v3429, %v3634
        %v3636 = vpop.f32.mrb[0].mxu0
        %v3637 = vadd.f32 %v3434, %v3636
        %v3638 = vpop.f32.mrb[0].mxu0
        %v3639 = vadd.f32 %v3434, %v3638
        %3640 = vmatprep.mubr.bf16.mxu0 0
        %3641 = vmatmul.mubr.bf16.gmra.mrb[0].mxu0 %v3491
        %v3642 = vpop.f32.mrb[0].mxu0
        %v3643 = vadd.f32 %v3439, %v3642
        %v3644 = vpop.f32.mrb[0].mxu0
        %v3645 = vadd.f32 %v3439, %v3644
        %v3646 = vpop.f32.mrb[0].mxu0
        %v3647 = vadd.f32 %v3444, %v3646
        %v3648 = vpop.f32.mrb[0].mxu0
        %v3649 = vadd.f32 %v3444, %v3648
        %3650 = vmatprep.mubr.bf16.mxu0 0
        %3651 = vmatmul.mubr.bf16.gmra.mrb[0].mxu0 %v3494
        %v3652 = vpop.f32.mrb[0].mxu0
        %v3653 = vadd.f32 %v3449, %v3652
        %v3654 = vpop.f32.mrb[0].mxu0
        %v3655 = vadd.f32 %v3449, %v3654
        %v3656 = vpop.f32.mrb[0].mxu0
        %v3657 = vadd.f32 %v3454, %v3656
        %v3658 = vpop.f32.mrb[0].mxu0
        %v3659 = vadd.f32 %v3454, %v3658
        %3660 = vmatprep.mubr.bf16.mxu0 0
        %3661 = vmatmul.mubr.bf16.gmra.mrb[0].mxu0 %v3497
        %v3662 = vpop.f32.mrb[0].mxu0
        %v3663 = vadd.f32 %v3459, %v3662
        %v3664 = vpop.f32.mrb[0].mxu0
        %v3665 = vadd.f32 %v3459, %v3664
        %v3666 = vpop.f32.mrb[0].mxu0
        %v3667 = vadd.f32 %v3464, %v3666
        %v3668 = vpop.f32.mrb[0].mxu0
        %v3669 = vadd.f32 %v3464, %v3668
        %3670 = vmatprep.mubr.bf16.mxu0 0
        %3671 = vmatmul.mubr.bf16.gmra.mrb[0].mxu0 %v3500
        %v3672 = vpop.f32.mrb[0].mxu0
        %v3673 = vadd.f32 %v3469, %v3672
        %v3674 = vpop.f32.mrb[0].mxu0
        %v3675 = vadd.f32 %v3469, %v3674
        %v3676 = vpop.f32.mrb[0].mxu0
        %v3677 = vadd.f32 %v3474, %v3676
        %v3678 = vpop.f32.mrb[0].mxu0
        %v3679 = vadd.f32 %v3474, %v3678
        %3680 = vmatprep.mubr.bf16.mxu0 0
        %3681 = vmatmul.mubr.bf16.gmra.mrb[0].mxu0 %v3503
        %v3682 = vpop.f32.mrb[0].mxu0
        %v3683 = vadd.f32 %v3479, %v3682
        %v3684 = vpop.f32.mrb[0].mxu0
        %v3685 = vadd.f32 %v3479, %v3684
        %v3686 = vpop.f32.mrb[0].mxu0
        %v3687 = vadd.f32 %v3484, %v3686
        %v3688 = vpop.f32.mrb[0].mxu0
        %v3689 = vadd.f32 %v3484, %v3688
        %3690 = vdwg.mxu0
        %3691 = vmatprep.subr.bf16.mxu0 %v3383
        %3692 = vmatpush1.bf16.msra.mxu0 %v3382
        %3693 = vmatprep.subr.bf16.mxu0 %v3391
        %3694 = vmatpush1.bf16.msra.mxu0 %v3390
        %3695 = vmatprep.subr.bf16.mxu0 %v3399
        %3696 = vmatpush1.bf16.msra.mxu0 %v3398
        %3697 = vmatprep.subr.bf16.mxu0 %v3407
        %3698 = vmatpush1.bf16.msra.mxu0 %v3406
        %3699 = vmatprep.subr.bf16.mxu0 %v3415
        %3700 = vmatpush1.bf16.msra.mxu0 %v3414
        %3701 = vmatprep.subr.bf16.mxu0 %v3423
        %3702 = vmatpush1.bf16.msra.mxu0 %v3422
        %3703 = vmatprep.subr.bf16.mxu0 0
        %3704 = vmatpush1.bf16.msra.mxu0 0
        %3705 = vmatprep.subr.bf16.mxu0 0
        %3706 = vmatpush1.bf16.msra.mxu0 0
        %3707 = vmatprep.subr.bf16.mxu0 0
        %3708 = vmatpush1.bf16.msra.mxu0 0
        %3709 = vmatprep.subr.bf16.mxu0 0
        %3710 = vmatpush1.bf16.msra.mxu0 0
        %3711 = vmatprep.subr.bf16.mxu0 0
        %3712 = vmatpush1.bf16.msra.mxu0 0
        %3713 = vmatprep.subr.bf16.mxu0 0
        %3714 = vmatpush1.bf16.msra.mxu0 0
        %3715 = vmatprep.subr.bf16.mxu0 0
        %3716 = vmatpush1.bf16.msra.mxu0 0
        %3717 = vmatprep.subr.bf16.mxu0 0
        %3718 = vmatpush1.bf16.msra.mxu0 0
        %3719 = vmatprep.subr.bf16.mxu0 0
        %3720 = vmatpush1.bf16.msra.mxu0 0
        %3721 = vmatprep.subr.bf16.mxu0 0
        %3722 = vmatpush1.bf16.msra.mxu0 0
        %3723 = vmatprep.mubr.bf16.mxu0 0
        %3724 = vmatmul.mubr.bf16.gmra.mrb[0].mxu0 %v3488
        %v3725 = vpop.f32.mrb[0].mxu0
        %v3726 = vadd.f32 %v3429, %v3725
        %v3727 = vpop.f32.mrb[0].mxu0
        %v3728 = vadd.f32 %v3429, %v3727
        %v3729 = vpop.f32.mrb[0].mxu0
        %v3730 = vadd.f32 %v3434, %v3729
        %v3731 = vpop.f32.mrb[0].mxu0
        %v3732 = vadd.f32 %v3434, %v3731
        %3733 = vmatprep.mubr.bf16.mxu0 0
        %3734 = vmatmul.mubr.bf16.gmra.mrb[0].mxu0 %v3491
        %v3735 = vpop.f32.mrb[0].mxu0
        %v3736 = vadd.f32 %v3439, %v3735
        %v3737 = vpop.f32.mrb[0].mxu0
        %v3738 = vadd.f32 %v3439, %v3737
        %v3739 = vpop.f32.mrb[0].mxu0
        %v3740 = vadd.f32 %v3444, %v3739
        %v3741 = vpop.f32.mrb[0].mxu0
        %v3742 = vadd.f32 %v3444, %v3741
        %3743 = vmatprep.mubr.bf16.mxu0 0
        %3744 = vmatmul.mubr.bf16.gmra.mrb[0].mxu0 %v3494
        %v3745 = vpop.f32.mrb[0].mxu0
        %v3746 = vadd.f32 %v3449, %v3745
        %v3747 = vpop.f32.mrb[0].mxu0
        %v3748 = vadd.f32 %v3449, %v3747
        %v3749 = vpop.f32.mrb[0].mxu0
        %v3750 = vadd.f32 %v3454, %v3749
        %v3751 = vpop.f32.mrb[0].mxu0
        %v3752 = vadd.f32 %v3454, %v3751
        %3753 = vmatprep.mubr.bf16.mxu0 0
        %3754 = vmatmul.mubr.bf16.gmra.mrb[0].mxu0 %v3497
        %v3755 = vpop.f32.mrb[0].mxu0
        %v3756 = vadd.f32 %v3459, %v3755
        %v3757 = vpop.f32.mrb[0].mxu0
        %v3758 = vadd.f32 %v3459, %v3757
        %v3759 = vpop.f32.mrb[0].mxu0
        %v3760 = vadd.f32 %v3464, %v3759
        %v3761 = vpop.f32.mrb[0].mxu0
        %v3762 = vadd.f32 %v3464, %v3761
        %3763 = vmatprep.mubr.bf16.mxu0 0
        %3764 = vmatmul.mubr.bf16.gmra.mrb[0].mxu0 %v3500
        %v3765 = vpop.f32.mrb[0].mxu0
        %v3766 = vadd.f32 %v3469, %v3765
        %v3767 = vpop.f32.mrb[0].mxu0
        %v3768 = vadd.f32 %v3469, %v3767
        %v3769 = vpop.f32.mrb[0].mxu0
        %v3770 = vadd.f32 %v3474, %v3769
        %v3771 = vpop.f32.mrb[0].mxu0
        %v3772 = vadd.f32 %v3474, %v3771
        %3773 = vmatprep.mubr.bf16.mxu0 0
        %3774 = vmatmul.mubr.bf16.gmra.mrb[0].mxu0 %v3503
        %v3775 = vpop.f32.mrb[0].mxu0
        %v3776 = vadd.f32 %v3479, %v3775
        %v3777 = vpop.f32.mrb[0].mxu0
        %v3778 = vadd.f32 %v3479, %v3777
        %v3779 = vpop.f32.mrb[0].mxu0
        %v3780 = vadd.f32 %v3484, %v3779
        %v3781 = vpop.f32.mrb[0].mxu0
        %v3782 = vadd.f32 %v3484, %v3781
        %3783 = vdwg.mxu0
        %3784 = vmatprep.subr.bf16.mxu0 %v3385
        %3785 = vmatpush1.bf16.msra.mxu0 %v3384
        %3786 = vmatprep.subr.bf16.mxu0 %v3393
        %3787 = vmatpush1.bf16.msra.mxu0 %v3392
        %3788 = vmatprep.subr.bf16.mxu0 %v3401
        %3789 = vmatpush1.bf16.msra.mxu0 %v3400
        %3790 = vmatprep.subr.bf16.mxu0 %v3409
        %3791 = vmatpush1.bf16.msra.mxu0 %v3408
        %3792 = vmatprep.subr.bf16.mxu0 %v3417
        %3793 = vmatpush1.bf16.msra.mxu0 %v3416
        %3794 = vmatprep.subr.bf16.mxu0 %v3425
        %3795 = vmatpush1.bf16.msra.mxu0 %v3424
        %3796 = vmatprep.subr.bf16.mxu0 0
        %3797 = vmatpush1.bf16.msra.mxu0 0
        %3798 = vmatprep.subr.bf16.mxu0 0
        %3799 = vmatpush1.bf16.msra.mxu0 0
        %3800 = vmatprep.subr.bf16.mxu0 0
        %3801 = vmatpush1.bf16.msra.mxu0 0
        %3802 = vmatprep.subr.bf16.mxu0 0
        %3803 = vmatpush1.bf16.msra.mxu0 0
        %3804 = vmatprep.subr.bf16.mxu0 0
        %3805 = vmatpush1.bf16.msra.mxu0 0
        %3806 = vmatprep.subr.bf16.mxu0 0
        %3807 = vmatpush1.bf16.msra.mxu0 0
        %3808 = vmatprep.subr.bf16.mxu0 0
        %3809 = vmatpush1.bf16.msra.mxu0 0
        %3810 = vmatprep.subr.bf16.mxu0 0
        %3811 = vmatpush1.bf16.msra.mxu0 0
        %3812 = vmatprep.subr.bf16.mxu0 0
        %3813 = vmatpush1.bf16.msra.mxu0 0
        %3814 = vmatprep.subr.bf16.mxu0 0
        %3815 = vmatpush1.bf16.msra.mxu0 0
        %3816 = vmatprep.mubr.bf16.mxu0 0
        %3817 = vmatmul.mubr.bf16.gmra.mrb[0].mxu0 %v3488
        %v3818 = vpop.f32.mrb[0].mxu0
        %v3819 = vadd.f32 %v3429, %v3818
        %v3820 = vpop.f32.mrb[0].mxu0
        %v3821 = vadd.f32 %v3429, %v3820
        %v3822 = vpop.f32.mrb[0].mxu0
        %v3823 = vadd.f32 %v3434, %v3822
        %v3824 = vpop.f32.mrb[0].mxu0
        %v3825 = vadd.f32 %v3434, %v3824
        %3826 = vmatprep.mubr.bf16.mxu0 0
        %3827 = vmatmul.mubr.bf16.gmra.mrb[0].mxu0 %v3491
        %v3828 = vpop.f32.mrb[0].mxu0
        %v3829 = vadd.f32 %v3439, %v3828
        %v3830 = vpop.f32.mrb[0].mxu0
        %v3831 = vadd.f32 %v3439, %v3830
        %v3832 = vpop.f32.mrb[0].mxu0
        %v3833 = vadd.f32 %v3444, %v3832
        %v3834 = vpop.f32.mrb[0].mxu0
        %v3835 = vadd.f32 %v3444, %v3834
        %3836 = vmatprep.mubr.bf16.mxu0 0
        %3837 = vmatmul.mubr.bf16.gmra.mrb[0].mxu0 %v3494
        %v3838 = vpop.f32.mrb[0].mxu0
        %v3839 = vadd.f32 %v3449, %v3838
        %v3840 = vpop.f32.mrb[0].mxu0
        %v3841 = vadd.f32 %v3449, %v3840
        %v3842 = vpop.f32.mrb[0].mxu0
        %v3843 = vadd.f32 %v3454, %v3842
        %v3844 = vpop.f32.mrb[0].mxu0
        %v3845 = vadd.f32 %v3454, %v3844
        %3846 = vmatprep.mubr.bf16.mxu0 0
        %3847 = vmatmul.mubr.bf16.gmra.mrb[0].mxu0 %v3497
        %v3848 = vpop.f32.mrb[0].mxu0
        %v3849 = vadd.f32 %v3459, %v3848
        %v3850 = vpop.f32.mrb[0].mxu0
        %v3851 = vadd.f32 %v3459, %v3850
        %v3852 = vpop.f32.mrb[0].mxu0
        %v3853 = vadd.f32 %v3464, %v3852
        %v3854 = vpop.f32.mrb[0].mxu0
        %v3855 = vadd.f32 %v3464, %v3854
        %3856 = vmatprep.mubr.bf16.mxu0 0
        %3857 = vmatmul.mubr.bf16.gmra.mrb[0].mxu0 %v3500
        %v3858 = vpop.f32.mrb[0].mxu0
        %v3859 = vadd.f32 %v3469, %v3858
        %v3860 = vpop.f32.mrb[0].mxu0
        %v3861 = vadd.f32 %v3469, %v3860
        %v3862 = vpop.f32.mrb[0].mxu0
        %v3863 = vadd.f32 %v3474, %v3862
        %v3864 = vpop.f32.mrb[0].mxu0
        %v3865 = vadd.f32 %v3474, %v3864
        %3866 = vmatprep.mubr.bf16.mxu0 0
        %3867 = vmatmul.mubr.bf16.gmra.mrb[0].mxu0 %v3503
        %v3868 = vpop.f32.mrb[0].mxu0
        %v3869 = vadd.f32 %v3479, %v3868
        %v3870 = vpop.f32.mrb[0].mxu0
        %v3871 = vadd.f32 %v3479, %v3870
        %v3872 = vpop.f32.mrb[0].mxu0
        %v3873 = vadd.f32 %v3484, %v3872
        %v3874 = vpop.f32.mrb[0].mxu0
        %v3875 = vadd.f32 %v3484, %v3874
        %3876 = vdwg.mxu0
        %v3877 = vmul.f32 %v3540, %v1348
        %v3878 = vmul.f32 %v3542, %v1349
        %v3879 = vmul.f32 %v3633, %v1350
        %v3880 = vmul.f32 %v3635, %v1351
        %v3881 = vmul.f32 %v3726, %v1352
        %v3882 = vmul.f32 %v3728, %v1353
        %v3883 = vmul.f32 %v3819, %v1354
        %v3884 = vmul.f32 %v3821, %v1355
        %v3885 = vmul.f32 %v3544, %v1348
        %v3886 = vmul.f32 %v3546, %v1349
        %v3887 = vmul.f32 %v3637, %v1350
        %v3888 = vmul.f32 %v3639, %v1351
        %v3889 = vmul.f32 %v3730, %v1352
        %v3890 = vmul.f32 %v3732, %v1353
        %v3891 = vmul.f32 %v3823, %v1354
        %v3892 = vmul.f32 %v3825, %v1355
        %v3893 = vmul.f32 %v3550, %v1348
        %v3894 = vmul.f32 %v3552, %v1349
        %v3895 = vmul.f32 %v3643, %v1350
        %v3896 = vmul.f32 %v3645, %v1351
        %v3897 = vmul.f32 %v3736, %v1352
        %v3898 = vmul.f32 %v3738, %v1353
        %v3899 = vmul.f32 %v3829, %v1354
        %v3900 = vmul.f32 %v3831, %v1355
        %v3901 = vmul.f32 %v3554, %v1348
        %v3902 = vmul.f32 %v3556, %v1349
        %v3903 = vmul.f32 %v3647, %v1350
        %v3904 = vmul.f32 %v3649, %v1351
        %v3905 = vmul.f32 %v3740, %v1352
        %v3906 = vmul.f32 %v3742, %v1353
        %v3907 = vmul.f32 %v3833, %v1354
        %v3908 = vmul.f32 %v3835, %v1355
        %v3909 = vmul.f32 %v3560, %v1348
        %v3910 = vmul.f32 %v3562, %v1349
        %v3911 = vmul.f32 %v3653, %v1350
        %v3912 = vmul.f32 %v3655, %v1351
        %v3913 = vmul.f32 %v3746, %v1352
        %v3914 = vmul.f32 %v3748, %v1353
        %v3915 = vmul.f32 %v3839, %v1354
        %v3916 = vmul.f32 %v3841, %v1355
        %v3917 = vmul.f32 %v3564, %v1348
        %v3918 = vmul.f32 %v3566, %v1349
        %v3919 = vmul.f32 %v3657, %v1350
        %v3920 = vmul.f32 %v3659, %v1351
        %v3921 = vmul.f32 %v3750, %v1352
        %v3922 = vmul.f32 %v3752, %v1353
        %v3923 = vmul.f32 %v3843, %v1354
        %v3924 = vmul.f32 %v3845, %v1355
        %v3925 = vmul.f32 %v3570, %v1348
        %v3926 = vmul.f32 %v3572, %v1349
        %v3927 = vmul.f32 %v3663, %v1350
        %v3928 = vmul.f32 %v3665, %v1351
        %v3929 = vmul.f32 %v3756, %v1352
        %v3930 = vmul.f32 %v3758, %v1353
        %v3931 = vmul.f32 %v3849, %v1354
        %v3932 = vmul.f32 %v3851, %v1355
        %v3933 = vmul.f32 %v3574, %v1348
        %v3934 = vmul.f32 %v3576, %v1349
        %v3935 = vmul.f32 %v3667, %v1350
        %v3936 = vmul.f32 %v3669, %v1351
        %v3937 = vmul.f32 %v3760, %v1352
        %v3938 = vmul.f32 %v3762, %v1353
        %v3939 = vmul.f32 %v3853, %v1354
        %v3940 = vmul.f32 %v3855, %v1355
        %v3941 = vmul.f32 %v3580, %v1348
        %v3942 = vmul.f32 %v3582, %v1349
        %v3943 = vmul.f32 %v3673, %v1350
        %v3944 = vmul.f32 %v3675, %v1351
        %v3945 = vmul.f32 %v3766, %v1352
        %v3946 = vmul.f32 %v3768, %v1353
        %v3947 = vmul.f32 %v3859, %v1354
        %v3948 = vmul.f32 %v3861, %v1355
        %v3949 = vmul.f32 %v3584, %v1348
        %v3950 = vmul.f32 %v3586, %v1349
        %v3951 = vmul.f32 %v3677, %v1350
        %v3952 = vmul.f32 %v3679, %v1351
        %v3953 = vmul.f32 %v3770, %v1352
        %v3954 = vmul.f32 %v3772, %v1353
        %v3955 = vmul.f32 %v3863, %v1354
        %v3956 = vmul.f32 %v3865, %v1355
        %v3957 = vmul.f32 %v3590, %v1348
        %v3958 = vmul.f32 %v3592, %v1349
        %v3959 = vmul.f32 %v3683, %v1350
        %v3960 = vmul.f32 %v3685, %v1351
        %v3961 = vmul.f32 %v3776, %v1352
        %v3962 = vmul.f32 %v3778, %v1353
        %v3963 = vmul.f32 %v3869, %v1354
        %v3964 = vmul.f32 %v3871, %v1355
        %v3965 = vmul.f32 %v3594, %v1348
        %v3966 = vmul.f32 %v3596, %v1349
        %v3967 = vmul.f32 %v3687, %v1350
        %v3968 = vmul.f32 %v3689, %v1351
        %v3969 = vmul.f32 %v3780, %v1352
        %v3970 = vmul.f32 %v3782, %v1353
        %v3971 = vmul.f32 %v3873, %v1354
        %v3972 = vmul.f32 %v3875, %v1355
        %v3973 = vld [vmem:[%s3] sm:$0xff]
        %v3974 = vld [vmem:[%s3 + $0x8] sm:$0xff]
        %v3975 = vld [vmem:[%s3 + $0x10] sm:$0xff]
        %v3976 = vld [vmem:[%s3 + $0x18] sm:$0xff]
        %v3977 = vld [vmem:[%s3 + $0x20] sm:$0xff]
        %v3978 = vld [vmem:[%s3 + $0x28] sm:$0xff]
        %v3979 = vld [vmem:[%s3 + $0x30] sm:$0xff]
        %v3980 = vld [vmem:[%s3 + $0x38] sm:$0xff]
        %v3981 = vld [vmem:[%s3 + $0x40] sm:$0xff]
        %v3982 = vld [vmem:[%s3 + $0x48] sm:$0xff]
        %v3983 = vld [vmem:[%s3 + $0x50] sm:$0xff]
        %v3984 = vld [vmem:[%s3 + $0x58] sm:$0xff]
        %v3985 = vld [vmem:[%s3 + $0x60] sm:$0xff]
        %v3986 = vld [vmem:[%s3 + $0x68] sm:$0xff]
        %v3987 = vld [vmem:[%s3 + $0x70] sm:$0xff]
        %v3988 = vld [vmem:[%s3 + $0x78] sm:$0xff]
        %v3989 = vld [vmem:[%s3 + $0x80] sm:$0xff]
        %v3990 = vld [vmem:[%s3 + $0x88] sm:$0xff]
        %v3991 = vld [vmem:[%s3 + $0x90] sm:$0xff]
        %v3992 = vld [vmem:[%s3 + $0x98] sm:$0xff]
        %v3993 = vld [vmem:[%s3 + $0xa0] sm:$0xff]
        %v3994 = vld [vmem:[%s3 + $0xa8] sm:$0xff]
        %v3995 = vld [vmem:[%s3 + $0xb0] sm:$0xff]
        %v3996 = vld [vmem:[%s3 + $0xb8] sm:$0xff]
        %v3997 = vld [vmem:[%s3 + $0xc0] sm:$0xff]
        %v3998 = vld [vmem:[%s3 + $0xc8] sm:$0xff]
        %v3999 = vld [vmem:[%s3 + $0xd0] sm:$0xff]
        %v4000 = vld [vmem:[%s3 + $0xd8] sm:$0xff]
        %v4001 = vld [vmem:[%s3 + $0xe0] sm:$0xff]
        %v4002 = vld [vmem:[%s3 + $0xe8] sm:$0xff]
        %v4003 = vld [vmem:[%s3 + $0xf0] sm:$0xff]
        %v4004 = vld [vmem:[%s3 + $0xf8] sm:$0xff]
        %v4005 = vld [vmem:[%s3 + $0x100] sm:$0xff]
        %v4006 = vld [vmem:[%s3 + $0x108] sm:$0xff]
        %v4007 = vld [vmem:[%s3 + $0x110] sm:$0xff]
        %v4008 = vld [vmem:[%s3 + $0x118] sm:$0xff]
        %v4009 = vld [vmem:[%s3 + $0x120] sm:$0xff]
        %v4010 = vld [vmem:[%s3 + $0x128] sm:$0xff]
        %v4011 = vld [vmem:[%s3 + $0x130] sm:$0xff]
        %v4012 = vld [vmem:[%s3 + $0x138] sm:$0xff]
        %v4013 = vld [vmem:[%s3 + $0x140] sm:$0xff]
        %v4014 = vld [vmem:[%s3 + $0x148] sm:$0xff]
        %v4015 = vld [vmem:[%s3 + $0x150] sm:$0xff]
        %v4016 = vld [vmem:[%s3 + $0x158] sm:$0xff]
        %v4017 = vld [vmem:[%s3 + $0x160] sm:$0xff]
        %v4018 = vld [vmem:[%s3 + $0x168] sm:$0xff]
        %v4019 = vld [vmem:[%s3 + $0x170] sm:$0xff]
        %v4020 = vld [vmem:[%s3 + $0x178] sm:$0xff]
        %v4021 = vld [vmem:[%s3 + $0x180] sm:$0xff]
        %v4022 = vld [vmem:[%s3 + $0x188] sm:$0xff]
        %v4023 = vld [vmem:[%s3 + $0x190] sm:$0xff]
        %v4024 = vld [vmem:[%s3 + $0x198] sm:$0xff]
        %v4025 = vld [vmem:[%s3 + $0x1a0] sm:$0xff]
        %v4026 = vld [vmem:[%s3 + $0x1a8] sm:$0xff]
        %v4027 = vld [vmem:[%s3 + $0x1b0] sm:$0xff]
        %v4028 = vld [vmem:[%s3 + $0x1b8] sm:$0xff]
        %v4029 = vld [vmem:[%s3 + $0x1c0] sm:$0xff]
        %v4030 = vld [vmem:[%s3 + $0x1c8] sm:$0xff]
        %v4031 = vld [vmem:[%s3 + $0x1d0] sm:$0xff]
        %v4032 = vld [vmem:[%s3 + $0x1d8] sm:$0xff]
        %v4033 = vld [vmem:[%s3 + $0x1e0] sm:$0xff]
        %v4034 = vld [vmem:[%s3 + $0x1e8] sm:$0xff]
        %v4035 = vld [vmem:[%s3 + $0x1f0] sm:$0xff]
        %v4036 = vld [vmem:[%s3 + $0x1f8] sm:$0xff]
        %v4037 = vld [vmem:[%s4] sm:$0xf]
        %v4038 = vld [vmem:[%s4 + $0x4] sm:$0xf]
        %v4039 = vld [vmem:[%s4 + $0x8] sm:$0xf]
        %v4040 = vld [vmem:[%s4 + $0xc] sm:$0xf]
        %v4041 = vld [vmem:[%s4 + $0x10] sm:$0xf]
        %v4042 = vld [vmem:[%s4 + $0x14] sm:$0xf]
        %v4043 = vld [vmem:[%s4 + $0x18] sm:$0xf]
        %v4044 = vld [vmem:[%s4 + $0x1c] sm:$0xf]
        %v4045 = vld [vmem:[%s4 + $0x20] sm:$0xf]
        %v4046 = vld [vmem:[%s4 + $0x24] sm:$0xf]
        %v4047 = vld [vmem:[%s4 + $0x28] sm:$0xf]
        %v4048 = vld [vmem:[%s4 + $0x2c] sm:$0xf]
        %v4049 = vld [vmem:[%s4 + $0x30] sm:$0xf]
        %v4050 = vld [vmem:[%s4 + $0x34] sm:$0xf]
        %v4051 = vld [vmem:[%s4 + $0x38] sm:$0xf]
        %v4052 = vld [vmem:[%s4 + $0x3c] sm:$0xf]
        %v4053 = vld [vmem:[%s4 + $0x40] sm:$0xf]
        %v4054 = vld [vmem:[%s4 + $0x44] sm:$0xf]
        %v4055 = vld [vmem:[%s4 + $0x48] sm:$0xf]
        %v4056 = vld [vmem:[%s4 + $0x4c] sm:$0xf]
        %v4057 = vld [vmem:[%s4 + $0x50] sm:$0xf]
        %v4058 = vld [vmem:[%s4 + $0x54] sm:$0xf]
        %v4059 = vld [vmem:[%s4 + $0x58] sm:$0xf]
        %v4060 = vld [vmem:[%s4 + $0x5c] sm:$0xf]
        %v4061 = vld [vmem:[%s4 + $0x60] sm:$0xf]
        %v4062 = vld [vmem:[%s4 + $0x64] sm:$0xf]
        %v4063 = vld [vmem:[%s4 + $0x68] sm:$0xf]
        %v4064 = vld [vmem:[%s4 + $0x6c] sm:$0xf]
        %v4065 = vld [vmem:[%s4 + $0x70] sm:$0xf]
        %v4066 = vld [vmem:[%s4 + $0x74] sm:$0xf]
        %v4067 = vld [vmem:[%s4 + $0x78] sm:$0xf]
        %v4068 = vld [vmem:[%s4 + $0x7c] sm:$0xf]
        %v4069 = vld [vmem:[%s4 + $0x80] sm:$0xf]
        %v4070 = vld [vmem:[%s4 + $0x84] sm:$0xf]
        %v4071 = vld [vmem:[%s4 + $0x88] sm:$0xf]
        %v4072 = vld [vmem:[%s4 + $0x8c] sm:$0xf]
        %v4073 = vld [vmem:[%s4 + $0x90] sm:$0xf]
        %v4074 = vld [vmem:[%s4 + $0x94] sm:$0xf]
        %v4075 = vld [vmem:[%s4 + $0x98] sm:$0xf]
        %v4076 = vld [vmem:[%s4 + $0x9c] sm:$0xf]
        %v4077 = vld [vmem:[%s4 + $0xa0] sm:$0xf]
        %v4078 = vld [vmem:[%s4 + $0xa4] sm:$0xf]
        %v4079 = vld [vmem:[%s4 + $0xa8] sm:$0xf]
        %v4080 = vld [vmem:[%s4 + $0xac] sm:$0xf]
        %v4081 = vld [vmem:[%s4 + $0xb0] sm:$0xf]
        %v4082 = vld [vmem:[%s4 + $0xb4] sm:$0xf]
        %v4083 = vld [vmem:[%s4 + $0xb8] sm:$0xf]
        %v4084 = vld [vmem:[%s4 + $0xbc] sm:$0xf]
        %v4085 = vld [vmem:[%s4 + $0xc0] sm:$0xf]
        %v4086 = vld [vmem:[%s4 + $0xc4] sm:$0xf]
        %v4087 = vld [vmem:[%s4 + $0xc8] sm:$0xf]
        %v4088 = vld [vmem:[%s4 + $0xcc] sm:$0xf]
        %v4089 = vld [vmem:[%s4 + $0xd0] sm:$0xf]
        %v4090 = vld [vmem:[%s4 + $0xd4] sm:$0xf]
        %v4091 = vld [vmem:[%s4 + $0xd8] sm:$0xf]
        %v4092 = vld [vmem:[%s4 + $0xdc] sm:$0xf]
        %v4093 = vld [vmem:[%s4 + $0xe0] sm:$0xf]
        %v4094 = vld [vmem:[%s4 + $0xe4] sm:$0xf]
        %v4095 = vld [vmem:[%s4 + $0xe8] sm:$0xf]
        %v4096 = vld [vmem:[%s4 + $0xec] sm:$0xf]
        %v4097 = vld [vmem:[%s4 + $0xf0] sm:$0xf]
        %v4098 = vld [vmem:[%s4 + $0xf4] sm:$0xf]
        %v4099 = vld [vmem:[%s4 + $0xf8] sm:$0xf]
        %v4100 = vld [vmem:[%s4 + $0xfc] sm:$0xf]
        %v4101 = vld [vmem:[%s4 + $0x100] sm:$0xf]
        %v4102 = vld [vmem:[%s4 + $0x104] sm:$0xf]
        %v4103 = vld [vmem:[%s4 + $0x108] sm:$0xf]
        %v4104 = vld [vmem:[%s4 + $0x10c] sm:$0xf]
        %v4105 = vld [vmem:[%s4 + $0x110] sm:$0xf]
        %v4106 = vld [vmem:[%s4 + $0x114] sm:$0xf]
        %v4107 = vld [vmem:[%s4 + $0x118] sm:$0xf]
        %v4108 = vld [vmem:[%s4 + $0x11c] sm:$0xf]
        %v4109 = vld [vmem:[%s4 + $0x120] sm:$0xf]
        %v4110 = vld [vmem:[%s4 + $0x124] sm:$0xf]
        %v4111 = vld [vmem:[%s4 + $0x128] sm:$0xf]
        %v4112 = vld [vmem:[%s4 + $0x12c] sm:$0xf]
        %v4113 = vld [vmem:[%s4 + $0x130] sm:$0xf]
        %v4114 = vld [vmem:[%s4 + $0x134] sm:$0xf]
        %v4115 = vld [vmem:[%s4 + $0x138] sm:$0xf]
        %v4116 = vld [vmem:[%s4 + $0x13c] sm:$0xf]
        %v4117 = vld [vmem:[%s4 + $0x140] sm:$0xf]
        %v4118 = vld [vmem:[%s4 + $0x144] sm:$0xf]
        %v4119 = vld [vmem:[%s4 + $0x148] sm:$0xf]
        %v4120 = vld [vmem:[%s4 + $0x14c] sm:$0xf]
        %v4121 = vld [vmem:[%s4 + $0x150] sm:$0xf]
        %v4122 = vld [vmem:[%s4 + $0x154] sm:$0xf]
        %v4123 = vld [vmem:[%s4 + $0x158] sm:$0xf]
        %v4124 = vld [vmem:[%s4 + $0x15c] sm:$0xf]
        %v4125 = vld [vmem:[%s4 + $0x160] sm:$0xf]
        %v4126 = vld [vmem:[%s4 + $0x164] sm:$0xf]
        %v4127 = vld [vmem:[%s4 + $0x168] sm:$0xf]
        %v4128 = vld [vmem:[%s4 + $0x16c] sm:$0xf]
        %v4129 = vld [vmem:[%s4 + $0x170] sm:$0xf]
        %v4130 = vld [vmem:[%s4 + $0x174] sm:$0xf]
        %v4131 = vld [vmem:[%s4 + $0x178] sm:$0xf]
        %v4132 = vld [vmem:[%s4 + $0x17c] sm:$0xf]
        %v4133 = vld [vmem:[%s4 + $0x180] sm:$0xf]
        %v4134 = vld [vmem:[%s4 + $0x184] sm:$0xf]
        %v4135 = vld [vmem:[%s4 + $0x188] sm:$0xf]
        %v4136 = vld [vmem:[%s4 + $0x18c] sm:$0xf]
        %v4137 = vld [vmem:[%s4 + $0x190] sm:$0xf]
        %v4138 = vld [vmem:[%s4 + $0x194] sm:$0xf]
        %v4139 = vld [vmem:[%s4 + $0x198] sm:$0xf]
        %v4140 = vld [vmem:[%s4 + $0x19c] sm:$0xf]
        %v4141 = vld [vmem:[%s4 + $0x1a0] sm:$0xf]
        %v4142 = vld [vmem:[%s4 + $0x1a4] sm:$0xf]
        %v4143 = vld [vmem:[%s4 + $0x1a8] sm:$0xf]
        %v4144 = vld [vmem:[%s4 + $0x1ac] sm:$0xf]
        %v4145 = vld [vmem:[%s4 + $0x1b0] sm:$0xf]
        %v4146 = vld [vmem:[%s4 + $0x1b4] sm:$0xf]
        %v4147 = vld [vmem:[%s4 + $0x1b8] sm:$0xf]
        %v4148 = vld [vmem:[%s4 + $0x1bc] sm:$0xf]
        %v4149 = vld [vmem:[%s4 + $0x1c0] sm:$0xf]
        %v4150 = vld [vmem:[%s4 + $0x1c4] sm:$0xf]
        %v4151 = vld [vmem:[%s4 + $0x1c8] sm:$0xf]
        %v4152 = vld [vmem:[%s4 + $0x1cc] sm:$0xf]
        %v4153 = vld [vmem:[%s4 + $0x1d0] sm:$0xf]
        %v4154 = vld [vmem:[%s4 + $0x1d4] sm:$0xf]
        %v4155 = vld [vmem:[%s4 + $0x1d8] sm:$0xf]
        %v4156 = vld [vmem:[%s4 + $0x1dc] sm:$0xf]
        %v4157 = vld [vmem:[%s4 + $0x1e0] sm:$0xf]
        %v4158 = vld [vmem:[%s4 + $0x1e4] sm:$0xf]
        %v4159 = vld [vmem:[%s4 + $0x1e8] sm:$0xf]
        %v4160 = vld [vmem:[%s4 + $0x1ec] sm:$0xf]
        %v4161 = vld [vmem:[%s4 + $0x1f0] sm:$0xf]
        %v4162 = vld [vmem:[%s4 + $0x1f4] sm:$0xf]
        %v4163 = vld [vmem:[%s4 + $0x1f8] sm:$0xf]
        %v4164 = vld [vmem:[%s4 + $0x1fc] sm:$0xf]
        %v4165 = vld [vmem:[%s2 + $0xc0] sm:$0xff]
        %v4166 = vld [vmem:[%s2 + $0xc8] sm:$0xff]
        %v4167 = vld [vmem:[%s2 + $0xd0] sm:$0xff]
        %v4168 = vld [vmem:[%s2 + $0xd8] sm:$0xff]
        %v4169 = vld [vmem:[%s2 + $0x120] sm:$0xff]
        %v4170 = vld [vmem:[%s2 + $0x128] sm:$0xff]
        %v4171 = vld [vmem:[%s2 + $0x130] sm:$0xff]
        %v4172 = vld [vmem:[%s2 + $0x138] sm:$0xff]
        %v4173 = vld [vmem:[%s2 + $0x180] sm:$0xff]
        %v4174 = vld [vmem:[%s2 + $0x188] sm:$0xff]
        %v4175 = vld [vmem:[%s2 + $0x190] sm:$0xff]
        %v4176 = vld [vmem:[%s2 + $0x198] sm:$0xff]
        %vm4177 = vcmask 261120
        %v4179 = vsel %vm4177, %v4165, 0
        %v4182 = vsel %vm4177, %v4166, 0
        %v4185 = vsel %vm4177, %v4167, 0
        %v4188 = vsel %vm4177, %v4168, 0
        %4190 = vmatprep.subr.mxu0 0.0
        %4191 = vmatpush1.msra.mxu0 %v319
        %4192 = vmatprep.subr.mxu0 0.0
        %4193 = vmatpush1.msra.mxu0 %v320
        %4194 = vmatprep.subr.mxu0 0.0
        %4195 = vmatpush1.msra.mxu0 %v321
        %4196 = vmatprep.subr.mxu0 0.0
        %4197 = vmatpush1.msra.mxu0 %v322
        %4198 = vmatprep.subr.mxu0 0.0
        %4199 = vmatpush1.msra.mxu0 0.0
        %4200 = vmatprep.subr.mxu0 0.0
        %4201 = vmatpush1.msra.mxu0 0.0
        %4202 = vmatprep.subr.mxu0 0.0
        %4203 = vmatpush1.msra.mxu0 0.0
        %4204 = vmatprep.subr.mxu0 0.0
        %4205 = vmatpush1.msra.mxu0 0.0
        %4206 = vmatprep.subr.mxu0 0.0
        %4207 = vmatpush1.msra.mxu0 0.0
        %4208 = vmatprep.subr.mxu0 0.0
        %4209 = vmatpush1.msra.mxu0 0.0
        %4210 = vmatprep.subr.mxu0 0.0
        %4211 = vmatpush1.msra.mxu0 0.0
        %4212 = vmatprep.subr.mxu0 0.0
        %4213 = vmatpush1.msra.mxu0 0.0
        %4214 = vmatprep.subr.mxu0 0.0
        %4215 = vmatpush1.msra.mxu0 0.0
        %4216 = vmatprep.subr.mxu0 0.0
        %4217 = vmatpush1.msra.mxu0 0.0
        %4218 = vmatprep.subr.mxu0 0.0
        %4219 = vmatpush1.msra.mxu0 0.0
        %4220 = vmatprep.subr.mxu0 0.0
        %4221 = vmatpush1.msra.mxu0 0.0
        %4222 = vmatprep.subr.mxu0 0.0
        %4223 = vmatpush1.msra.mxu0 0.0
        %4224 = vmatprep.subr.mxu0 0.0
        %4225 = vmatpush1.msra.mxu0 0.0
        %4226 = vmatprep.subr.mxu0 0.0
        %4227 = vmatpush1.msra.mxu0 0.0
        %4228 = vmatprep.subr.mxu0 0.0
        %4229 = vmatpush1.msra.mxu0 0.0
        %4230 = vmatprep.subr.mxu0 0.0
        %4231 = vmatpush1.msra.mxu0 0.0
        %4232 = vmatprep.subr.mxu0 0.0
        %4233 = vmatpush1.msra.mxu0 0.0
        %4234 = vmatprep.subr.mxu0 0.0
        %4235 = vmatpush1.msra.mxu0 0.0
        %4236 = vmatprep.subr.mxu0 0.0
        %4237 = vmatpush1.msra.mxu0 0.0
        %4238 = vmatprep.subr.mxu0 0.0
        %4239 = vmatpush1.msra.mxu0 0.0
        %4240 = vmatprep.subr.mxu0 0.0
        %4241 = vmatpush1.msra.mxu0 0.0
        %4242 = vmatprep.subr.mxu0 0.0
        %4243 = vmatpush1.msra.mxu0 0.0
        %4244 = vmatprep.subr.mxu0 0.0
        %4245 = vmatpush1.msra.mxu0 0.0
        %4246 = vmatprep.subr.mxu0 0.0
        %4247 = vmatpush1.msra.mxu0 0.0
        %4248 = vmatprep.subr.mxu0 0.0
        %4249 = vmatpush1.msra.mxu0 0.0
        %4250 = vmatprep.subr.mxu0 0.0
        %4251 = vmatpush1.msra.mxu0 0.0
        %4252 = vmatprep.subr.mxu0 0.0
        %4253 = vmatpush1.msra.mxu0 0.0
        %4254 = vmatprep.mubr.f32.mxu0 0.0
        %4255 = vmatmul.mubr.f32.gmra.mrb[0].mxu0 %v4179
        %v4256 = vpop.f32.mrb[0].mxu0
        %v4257 = vadd.f32 0.0, %v4256
        %v4258 = vpop.f32.mrb[0].mxu0
        %4259 = vmatprep.mubr.f32.mxu0 0.0
        %4260 = vmatmul.mubr.f32.gmra.mrb[0].mxu0 %v4182
        %v4261 = vpop.f32.mrb[0].mxu0
        %v4262 = vadd.f32 0.0, %v4261
        %v4263 = vpop.f32.mrb[0].mxu0
        %4264 = vmatprep.mubr.f32.mxu0 0.0
        %4265 = vmatmul.mubr.f32.gmra.mrb[0].mxu0 %v4185
        %v4266 = vpop.f32.mrb[0].mxu0
        %v4267 = vadd.f32 0.0, %v4266
        %v4268 = vpop.f32.mrb[0].mxu0
        %4269 = vmatprep.mubr.f32.mxu0 0.0
        %4270 = vmatmul.mubr.f32.gmra.mrb[0].mxu0 %v4188
        %v4271 = vpop.f32.mrb[0].mxu0
        %v4272 = vadd.f32 0.0, %v4271
        %v4273 = vpop.f32.mrb[0].mxu0
        %4274 = vdwg.mxu0
        %v4275 = vpack.c.bf16 %v4262, %v4257
        %v4276 = vpack.c.bf16 %v4272, %v4267
        %v4341 = vunpack.c.l.b16 %v3973
        %v4342 = vunpack.c.h.b16 %v3973
        %v4343 = vunpack.c.l.b16 %v3974
        %v4344 = vunpack.c.h.b16 %v3974
        %v4345 = vunpack.c.l.b16 %v3975
        %v4346 = vunpack.c.h.b16 %v3975
        %v4347 = vunpack.c.l.b16 %v3976
        %v4348 = vunpack.c.h.b16 %v3976
        %v4349 = vunpack.c.l.b16 %v3977
        %v4350 = vunpack.c.h.b16 %v3977
        %v4351 = vunpack.c.l.b16 %v3978
        %v4352 = vunpack.c.h.b16 %v3978
        %v4353 = vunpack.c.l.b16 %v3979
        %v4354 = vunpack.c.h.b16 %v3979
        %v4355 = vunpack.c.l.b16 %v3980
        %v4356 = vunpack.c.h.b16 %v3980
        %v4357 = vunpack.c.l.b16 %v3981
        %v4358 = vunpack.c.h.b16 %v3981
        %v4359 = vunpack.c.l.b16 %v3982
        %v4360 = vunpack.c.h.b16 %v3982
        %v4361 = vunpack.c.l.b16 %v3983
        %v4362 = vunpack.c.h.b16 %v3983
        %v4363 = vunpack.c.l.b16 %v3984
        %v4364 = vunpack.c.h.b16 %v3984
        %v4365 = vunpack.c.l.b16 %v3985
        %v4366 = vunpack.c.h.b16 %v3985
        %v4367 = vunpack.c.l.b16 %v3986
        %v4368 = vunpack.c.h.b16 %v3986
        %v4369 = vunpack.c.l.b16 %v3987
        %v4370 = vunpack.c.h.b16 %v3987
        %v4371 = vunpack.c.l.b16 %v3988
        %v4372 = vunpack.c.h.b16 %v3988
        %v4373 = vunpack.c.l.b16 %v3989
        %v4374 = vunpack.c.h.b16 %v3989
        %v4375 = vunpack.c.l.b16 %v3990
        %v4376 = vunpack.c.h.b16 %v3990
        %v4377 = vunpack.c.l.b16 %v3991
        %v4378 = vunpack.c.h.b16 %v3991
        %v4379 = vunpack.c.l.b16 %v3992
        %v4380 = vunpack.c.h.b16 %v3992
        %v4381 = vunpack.c.l.b16 %v3993
        %v4382 = vunpack.c.h.b16 %v3993
        %v4383 = vunpack.c.l.b16 %v3994
        %v4384 = vunpack.c.h.b16 %v3994
        %v4385 = vunpack.c.l.b16 %v3995
        %v4386 = vunpack.c.h.b16 %v3995
        %v4387 = vunpack.c.l.b16 %v3996
        %v4388 = vunpack.c.h.b16 %v3996
        %v4389 = vunpack.c.l.b16 %v3997
        %v4390 = vunpack.c.h.b16 %v3997
        %v4391 = vunpack.c.l.b16 %v3998
        %v4392 = vunpack.c.h.b16 %v3998
        %v4393 = vunpack.c.l.b16 %v3999
        %v4394 = vunpack.c.h.b16 %v3999
        %v4395 = vunpack.c.l.b16 %v4000
        %v4396 = vunpack.c.h.b16 %v4000
        %v4397 = vunpack.c.l.b16 %v4001
        %v4398 = vunpack.c.h.b16 %v4001
        %v4399 = vunpack.c.l.b16 %v4002
        %v4400 = vunpack.c.h.b16 %v4002
        %v4401 = vunpack.c.l.b16 %v4003
        %v4402 = vunpack.c.h.b16 %v4003
        %v4403 = vunpack.c.l.b16 %v4004
        %v4404 = vunpack.c.h.b16 %v4004
        %v4405 = vunpack.c.l.b16 %v4005
        %v4406 = vunpack.c.h.b16 %v4005
        %v4407 = vunpack.c.l.b16 %v4006
        %v4408 = vunpack.c.h.b16 %v4006
        %v4409 = vunpack.c.l.b16 %v4007
        %v4410 = vunpack.c.h.b16 %v4007
        %v4411 = vunpack.c.l.b16 %v4008
        %v4412 = vunpack.c.h.b16 %v4008
        %v4413 = vunpack.c.l.b16 %v4009
        %v4414 = vunpack.c.h.b16 %v4009
        %v4415 = vunpack.c.l.b16 %v4010
        %v4416 = vunpack.c.h.b16 %v4010
        %v4417 = vunpack.c.l.b16 %v4011
        %v4418 = vunpack.c.h.b16 %v4011
        %v4419 = vunpack.c.l.b16 %v4012
        %v4420 = vunpack.c.h.b16 %v4012
        %v4421 = vunpack.c.l.b16 %v4013
        %v4422 = vunpack.c.h.b16 %v4013
        %v4423 = vunpack.c.l.b16 %v4014
        %v4424 = vunpack.c.h.b16 %v4014
        %v4425 = vunpack.c.l.b16 %v4015
        %v4426 = vunpack.c.h.b16 %v4015
        %v4427 = vunpack.c.l.b16 %v4016
        %v4428 = vunpack.c.h.b16 %v4016
        %v4429 = vunpack.c.l.b16 %v4017
        %v4430 = vunpack.c.h.b16 %v4017
        %v4431 = vunpack.c.l.b16 %v4018
        %v4432 = vunpack.c.h.b16 %v4018
        %v4433 = vunpack.c.l.b16 %v4019
        %v4434 = vunpack.c.h.b16 %v4019
        %v4435 = vunpack.c.l.b16 %v4020
        %v4436 = vunpack.c.h.b16 %v4020
        %v4437 = vunpack.c.l.b16 %v4021
        %v4438 = vunpack.c.h.b16 %v4021
        %v4439 = vunpack.c.l.b16 %v4022
        %v4440 = vunpack.c.h.b16 %v4022
        %v4441 = vunpack.c.l.b16 %v4023
        %v4442 = vunpack.c.h.b16 %v4023
        %v4443 = vunpack.c.l.b16 %v4024
        %v4444 = vunpack.c.h.b16 %v4024
        %v4445 = vunpack.c.l.b16 %v4025
        %v4446 = vunpack.c.h.b16 %v4025
        %v4447 = vunpack.c.l.b16 %v4026
        %v4448 = vunpack.c.h.b16 %v4026
        %v4449 = vunpack.c.l.b16 %v4027
        %v4450 = vunpack.c.h.b16 %v4027
        %v4451 = vunpack.c.l.b16 %v4028
        %v4452 = vunpack.c.h.b16 %v4028
        %v4453 = vunpack.c.l.b16 %v4029
        %v4454 = vunpack.c.h.b16 %v4029
        %v4455 = vunpack.c.l.b16 %v4030
        %v4456 = vunpack.c.h.b16 %v4030
        %v4457 = vunpack.c.l.b16 %v4031
        %v4458 = vunpack.c.h.b16 %v4031
        %v4459 = vunpack.c.l.b16 %v4032
        %v4460 = vunpack.c.h.b16 %v4032
        %v4461 = vunpack.c.l.b16 %v4033
        %v4462 = vunpack.c.h.b16 %v4033
        %v4463 = vunpack.c.l.b16 %v4034
        %v4464 = vunpack.c.h.b16 %v4034
        %v4465 = vunpack.c.l.b16 %v4035
        %v4466 = vunpack.c.h.b16 %v4035
        %v4467 = vunpack.c.l.b16 %v4036
        %v4468 = vunpack.c.h.b16 %v4036
        %v4469 = vpack.c.b16 %v4349, %v4341
        %v4470 = vpack.c.b16 %v4350, %v4342
        %v4471 = vpack.c.b16 %v4351, %v4343
        %v4472 = vpack.c.b16 %v4352, %v4344
        %v4473 = vpack.c.b16 %v4353, %v4345
        %v4474 = vpack.c.b16 %v4354, %v4346
        %v4475 = vpack.c.b16 %v4355, %v4347
        %v4476 = vpack.c.b16 %v4356, %v4348
        %v4477 = vpack.c.b16 %v4365, %v4357
        %v4478 = vpack.c.b16 %v4366, %v4358
        %v4479 = vpack.c.b16 %v4367, %v4359
        %v4480 = vpack.c.b16 %v4368, %v4360
        %v4481 = vpack.c.b16 %v4369, %v4361
        %v4482 = vpack.c.b16 %v4370, %v4362
        %v4483 = vpack.c.b16 %v4371, %v4363
        %v4484 = vpack.c.b16 %v4372, %v4364
        %v4485 = vpack.c.b16 %v4381, %v4373
        %v4486 = vpack.c.b16 %v4382, %v4374
        %v4487 = vpack.c.b16 %v4383, %v4375
        %v4488 = vpack.c.b16 %v4384, %v4376
        %v4489 = vpack.c.b16 %v4385, %v4377
        %v4490 = vpack.c.b16 %v4386, %v4378
        %v4491 = vpack.c.b16 %v4387, %v4379
        %v4492 = vpack.c.b16 %v4388, %v4380
        %v4493 = vpack.c.b16 %v4397, %v4389
        %v4494 = vpack.c.b16 %v4398, %v4390
        %v4495 = vpack.c.b16 %v4399, %v4391
        %v4496 = vpack.c.b16 %v4400, %v4392
        %v4497 = vpack.c.b16 %v4401, %v4393
        %v4498 = vpack.c.b16 %v4402, %v4394
        %v4499 = vpack.c.b16 %v4403, %v4395
        %v4500 = vpack.c.b16 %v4404, %v4396
        %v4501 = vpack.c.b16 %v4413, %v4405
        %v4502 = vpack.c.b16 %v4414, %v4406
        %v4503 = vpack.c.b16 %v4415, %v4407
        %v4504 = vpack.c.b16 %v4416, %v4408
        %v4505 = vpack.c.b16 %v4417, %v4409
        %v4506 = vpack.c.b16 %v4418, %v4410
        %v4507 = vpack.c.b16 %v4419, %v4411
        %v4508 = vpack.c.b16 %v4420, %v4412
        %v4509 = vpack.c.b16 %v4429, %v4421
        %v4510 = vpack.c.b16 %v4430, %v4422
        %v4511 = vpack.c.b16 %v4431, %v4423
        %v4512 = vpack.c.b16 %v4432, %v4424
        %v4513 = vpack.c.b16 %v4433, %v4425
        %v4514 = vpack.c.b16 %v4434, %v4426
        %v4515 = vpack.c.b16 %v4435, %v4427
        %v4516 = vpack.c.b16 %v4436, %v4428
        %v4517 = vpack.c.b16 %v4445, %v4437
        %v4518 = vpack.c.b16 %v4446, %v4438
        %v4519 = vpack.c.b16 %v4447, %v4439
        %v4520 = vpack.c.b16 %v4448, %v4440
        %v4521 = vpack.c.b16 %v4449, %v4441
        %v4522 = vpack.c.b16 %v4450, %v4442
        %v4523 = vpack.c.b16 %v4451, %v4443
        %v4524 = vpack.c.b16 %v4452, %v4444
        %v4525 = vpack.c.b16 %v4461, %v4453
        %v4526 = vpack.c.b16 %v4462, %v4454
        %v4527 = vpack.c.b16 %v4463, %v4455
        %v4528 = vpack.c.b16 %v4464, %v4456
        %v4529 = vpack.c.b16 %v4465, %v4457
        %v4530 = vpack.c.b16 %v4466, %v4458
        %v4531 = vpack.c.b16 %v4467, %v4459
        %v4532 = vpack.c.b16 %v4468, %v4460
        %4597 = vmatprep.subr.bf16.mxu0 %v4470
        %4598 = vmatpush1.bf16.msra.mxu0 %v4469
        %4599 = vmatprep.subr.bf16.mxu0 %v4478
        %4600 = vmatpush1.bf16.msra.mxu0 %v4477
        %4601 = vmatprep.subr.bf16.mxu0 %v4486
        %4602 = vmatpush1.bf16.msra.mxu0 %v4485
        %4603 = vmatprep.subr.bf16.mxu0 %v4494
        %4604 = vmatpush1.bf16.msra.mxu0 %v4493
        %4605 = vmatprep.subr.bf16.mxu0 %v4502
        %4606 = vmatpush1.bf16.msra.mxu0 %v4501
        %4607 = vmatprep.subr.bf16.mxu0 %v4510
        %4608 = vmatpush1.bf16.msra.mxu0 %v4509
        %4609 = vmatprep.subr.bf16.mxu0 %v4518
        %4610 = vmatpush1.bf16.msra.mxu0 %v4517
        %4611 = vmatprep.subr.bf16.mxu0 %v4526
        %4612 = vmatpush1.bf16.msra.mxu0 %v4525
        %4613 = vmatprep.subr.bf16.mxu0 0
        %4614 = vmatpush1.bf16.msra.mxu0 0
        %4615 = vmatprep.subr.bf16.mxu0 0
        %4616 = vmatpush1.bf16.msra.mxu0 0
        %4617 = vmatprep.subr.bf16.mxu0 0
        %4618 = vmatpush1.bf16.msra.mxu0 0
        %4619 = vmatprep.subr.bf16.mxu0 0
        %4620 = vmatpush1.bf16.msra.mxu0 0
        %4621 = vmatprep.subr.bf16.mxu0 0
        %4622 = vmatpush1.bf16.msra.mxu0 0
        %4623 = vmatprep.subr.bf16.mxu0 0
        %4624 = vmatpush1.bf16.msra.mxu0 0
        %4625 = vmatprep.subr.bf16.mxu0 0
        %4626 = vmatpush1.bf16.msra.mxu0 0
        %4627 = vmatprep.subr.bf16.mxu0 0
        %4628 = vmatpush1.bf16.msra.mxu0 0
        %4629 = vmatprep.mubr.bf16.mxu0 0
        %4630 = vmatmul.mubr.bf16.gmra.mrb[0].mxu0 %v4275
        %v4631 = vpop.f32.mrb[0].mxu0
        %v4632 = vadd.f32 0.0, %v4631
        %v4633 = vpop.f32.mrb[0].mxu0
        %v4634 = vadd.f32 0.0, %v4633
        %v4635 = vpop.f32.mrb[0].mxu0
        %v4636 = vadd.f32 0.0, %v4635
        %v4637 = vpop.f32.mrb[0].mxu0
        %v4638 = vadd.f32 0.0, %v4637
        %4639 = vmatprep.mubr.bf16.mxu0 0
        %4640 = vmatmul.mubr.bf16.gmra.mrb[0].mxu0 %v4276
        %v4641 = vpop.f32.mrb[0].mxu0
        %v4642 = vadd.f32 0.0, %v4641
        %v4643 = vpop.f32.mrb[0].mxu0
        %v4644 = vadd.f32 0.0, %v4643
        %v4645 = vpop.f32.mrb[0].mxu0
        %v4646 = vadd.f32 0.0, %v4645
        %v4647 = vpop.f32.mrb[0].mxu0
        %v4648 = vadd.f32 0.0, %v4647
        %4649 = vdwg.mxu0
        %4650 = vmatprep.subr.bf16.mxu0 %v4472
        %4651 = vmatpush1.bf16.msra.mxu0 %v4471
        %4652 = vmatprep.subr.bf16.mxu0 %v4480
        %4653 = vmatpush1.bf16.msra.mxu0 %v4479
        %4654 = vmatprep.subr.bf16.mxu0 %v4488
        %4655 = vmatpush1.bf16.msra.mxu0 %v4487
        %4656 = vmatprep.subr.bf16.mxu0 %v4496
        %4657 = vmatpush1.bf16.msra.mxu0 %v4495
        %4658 = vmatprep.subr.bf16.mxu0 %v4504
        %4659 = vmatpush1.bf16.msra.mxu0 %v4503
        %4660 = vmatprep.subr.bf16.mxu0 %v4512
        %4661 = vmatpush1.bf16.msra.mxu0 %v4511
        %4662 = vmatprep.subr.bf16.mxu0 %v4520
        %4663 = vmatpush1.bf16.msra.mxu0 %v4519
        %4664 = vmatprep.subr.bf16.mxu0 %v4528
        %4665 = vmatpush1.bf16.msra.mxu0 %v4527
        %4666 = vmatprep.subr.bf16.mxu0 0
        %4667 = vmatpush1.bf16.msra.mxu0 0
        %4668 = vmatprep.subr.bf16.mxu0 0
        %4669 = vmatpush1.bf16.msra.mxu0 0
        %4670 = vmatprep.subr.bf16.mxu0 0
        %4671 = vmatpush1.bf16.msra.mxu0 0
        %4672 = vmatprep.subr.bf16.mxu0 0
        %4673 = vmatpush1.bf16.msra.mxu0 0
        %4674 = vmatprep.subr.bf16.mxu0 0
        %4675 = vmatpush1.bf16.msra.mxu0 0
        %4676 = vmatprep.subr.bf16.mxu0 0
        %4677 = vmatpush1.bf16.msra.mxu0 0
        %4678 = vmatprep.subr.bf16.mxu0 0
        %4679 = vmatpush1.bf16.msra.mxu0 0
        %4680 = vmatprep.subr.bf16.mxu0 0
        %4681 = vmatpush1.bf16.msra.mxu0 0
        %4682 = vmatprep.mubr.bf16.mxu0 0
        %4683 = vmatmul.mubr.bf16.gmra.mrb[0].mxu0 %v4275
        %v4684 = vpop.f32.mrb[0].mxu0
        %v4685 = vadd.f32 0.0, %v4684
        %v4686 = vpop.f32.mrb[0].mxu0
        %v4687 = vadd.f32 0.0, %v4686
        %v4688 = vpop.f32.mrb[0].mxu0
        %v4689 = vadd.f32 0.0, %v4688
        %v4690 = vpop.f32.mrb[0].mxu0
        %v4691 = vadd.f32 0.0, %v4690
        %4692 = vmatprep.mubr.bf16.mxu0 0
        %4693 = vmatmul.mubr.bf16.gmra.mrb[0].mxu0 %v4276
        %v4694 = vpop.f32.mrb[0].mxu0
        %v4695 = vadd.f32 0.0, %v4694
        %v4696 = vpop.f32.mrb[0].mxu0
        %v4697 = vadd.f32 0.0, %v4696
        %v4698 = vpop.f32.mrb[0].mxu0
        %v4699 = vadd.f32 0.0, %v4698
        %v4700 = vpop.f32.mrb[0].mxu0
        %v4701 = vadd.f32 0.0, %v4700
        %4702 = vdwg.mxu0
        %4703 = vmatprep.subr.bf16.mxu0 %v4474
        %4704 = vmatpush1.bf16.msra.mxu0 %v4473
        %4705 = vmatprep.subr.bf16.mxu0 %v4482
        %4706 = vmatpush1.bf16.msra.mxu0 %v4481
        %4707 = vmatprep.subr.bf16.mxu0 %v4490
        %4708 = vmatpush1.bf16.msra.mxu0 %v4489
        %4709 = vmatprep.subr.bf16.mxu0 %v4498
        %4710 = vmatpush1.bf16.msra.mxu0 %v4497
        %4711 = vmatprep.subr.bf16.mxu0 %v4506
        %4712 = vmatpush1.bf16.msra.mxu0 %v4505
        %4713 = vmatprep.subr.bf16.mxu0 %v4514
        %4714 = vmatpush1.bf16.msra.mxu0 %v4513
        %4715 = vmatprep.subr.bf16.mxu0 %v4522
        %4716 = vmatpush1.bf16.msra.mxu0 %v4521
        %4717 = vmatprep.subr.bf16.mxu0 %v4530
        %4718 = vmatpush1.bf16.msra.mxu0 %v4529
        %4719 = vmatprep.subr.bf16.mxu0 0
        %4720 = vmatpush1.bf16.msra.mxu0 0
        %4721 = vmatprep.subr.bf16.mxu0 0
        %4722 = vmatpush1.bf16.msra.mxu0 0
        %4723 = vmatprep.subr.bf16.mxu0 0
        %4724 = vmatpush1.bf16.msra.mxu0 0
        %4725 = vmatprep.subr.bf16.mxu0 0
        %4726 = vmatpush1.bf16.msra.mxu0 0
        %4727 = vmatprep.subr.bf16.mxu0 0
        %4728 = vmatpush1.bf16.msra.mxu0 0
        %4729 = vmatprep.subr.bf16.mxu0 0
        %4730 = vmatpush1.bf16.msra.mxu0 0
        %4731 = vmatprep.subr.bf16.mxu0 0
        %4732 = vmatpush1.bf16.msra.mxu0 0
        %4733 = vmatprep.subr.bf16.mxu0 0
        %4734 = vmatpush1.bf16.msra.mxu0 0
        %4735 = vmatprep.mubr.bf16.mxu0 0
        %4736 = vmatmul.mubr.bf16.gmra.mrb[0].mxu0 %v4275
        %v4737 = vpop.f32.mrb[0].mxu0
        %v4738 = vadd.f32 0.0, %v4737
        %v4739 = vpop.f32.mrb[0].mxu0
        %v4740 = vadd.f32 0.0, %v4739
        %v4741 = vpop.f32.mrb[0].mxu0
        %v4742 = vadd.f32 0.0, %v4741
        %v4743 = vpop.f32.mrb[0].mxu0
        %v4744 = vadd.f32 0.0, %v4743
        %4745 = vmatprep.mubr.bf16.mxu0 0
        %4746 = vmatmul.mubr.bf16.gmra.mrb[0].mxu0 %v4276
        %v4747 = vpop.f32.mrb[0].mxu0
        %v4748 = vadd.f32 0.0, %v4747
        %v4749 = vpop.f32.mrb[0].mxu0
        %v4750 = vadd.f32 0.0, %v4749
        %v4751 = vpop.f32.mrb[0].mxu0
        %v4752 = vadd.f32 0.0, %v4751
        %v4753 = vpop.f32.mrb[0].mxu0
        %v4754 = vadd.f32 0.0, %v4753
        %4755 = vdwg.mxu0
        %4756 = vmatprep.subr.bf16.mxu0 %v4476
        %4757 = vmatpush1.bf16.msra.mxu0 %v4475
        %4758 = vmatprep.subr.bf16.mxu0 %v4484
        %4759 = vmatpush1.bf16.msra.mxu0 %v4483
        %4760 = vmatprep.subr.bf16.mxu0 %v4492
        %4761 = vmatpush1.bf16.msra.mxu0 %v4491
        %4762 = vmatprep.subr.bf16.mxu0 %v4500
        %4763 = vmatpush1.bf16.msra.mxu0 %v4499
        %4764 = vmatprep.subr.bf16.mxu0 %v4508
        %4765 = vmatpush1.bf16.msra.mxu0 %v4507
        %4766 = vmatprep.subr.bf16.mxu0 %v4516
        %4767 = vmatpush1.bf16.msra.mxu0 %v4515
        %4768 = vmatprep.subr.bf16.mxu0 %v4524
        %4769 = vmatpush1.bf16.msra.mxu0 %v4523
        %4770 = vmatprep.subr.bf16.mxu0 %v4532
        %4771 = vmatpush1.bf16.msra.mxu0 %v4531
        %4772 = vmatprep.subr.bf16.mxu0 0
        %4773 = vmatpush1.bf16.msra.mxu0 0
        %4774 = vmatprep.subr.bf16.mxu0 0
        %4775 = vmatpush1.bf16.msra.mxu0 0
        %4776 = vmatprep.subr.bf16.mxu0 0
        %4777 = vmatpush1.bf16.msra.mxu0 0
        %4778 = vmatprep.subr.bf16.mxu0 0
        %4779 = vmatpush1.bf16.msra.mxu0 0
        %4780 = vmatprep.subr.bf16.mxu0 0
        %4781 = vmatpush1.bf16.msra.mxu0 0
        %4782 = vmatprep.subr.bf16.mxu0 0
        %4783 = vmatpush1.bf16.msra.mxu0 0
        %4784 = vmatprep.subr.bf16.mxu0 0
        %4785 = vmatpush1.bf16.msra.mxu0 0
        %4786 = vmatprep.subr.bf16.mxu0 0
        %4787 = vmatpush1.bf16.msra.mxu0 0
        %4788 = vmatprep.mubr.bf16.mxu0 0
        %4789 = vmatmul.mubr.bf16.gmra.mrb[0].mxu0 %v4275
        %v4790 = vpop.f32.mrb[0].mxu0
        %v4791 = vadd.f32 0.0, %v4790
        %v4792 = vpop.f32.mrb[0].mxu0
        %v4793 = vadd.f32 0.0, %v4792
        %v4794 = vpop.f32.mrb[0].mxu0
        %v4795 = vadd.f32 0.0, %v4794
        %v4796 = vpop.f32.mrb[0].mxu0
        %v4797 = vadd.f32 0.0, %v4796
        %4798 = vmatprep.mubr.bf16.mxu0 0
        %4799 = vmatmul.mubr.bf16.gmra.mrb[0].mxu0 %v4276
        %v4800 = vpop.f32.mrb[0].mxu0
        %v4801 = vadd.f32 0.0, %v4800
        %v4802 = vpop.f32.mrb[0].mxu0
        %v4803 = vadd.f32 0.0, %v4802
        %v4804 = vpop.f32.mrb[0].mxu0
        %v4805 = vadd.f32 0.0, %v4804
        %v4806 = vpop.f32.mrb[0].mxu0
        %v4807 = vadd.f32 0.0, %v4806
        %4808 = vdwg.mxu0
        %v4809 = vmul.f32 %v3877, %v4632
        %v4810 = vmul.f32 %v3878, %v4634
        %v4811 = vmul.f32 %v3879, %v4685
        %v4812 = vmul.f32 %v3880, %v4687
        %v4813 = vmul.f32 %v3881, %v4738
        %v4814 = vmul.f32 %v3882, %v4740
        %v4815 = vmul.f32 %v3883, %v4791
        %v4816 = vmul.f32 %v3884, %v4793
        %v4817 = vmul.f32 %v3885, %v4636
        %v4818 = vmul.f32 %v3886, %v4638
        %v4819 = vmul.f32 %v3887, %v4689
        %v4820 = vmul.f32 %v3888, %v4691
        %v4821 = vmul.f32 %v3889, %v4742
        %v4822 = vmul.f32 %v3890, %v4744
        %v4823 = vmul.f32 %v3891, %v4795
        %v4824 = vmul.f32 %v3892, %v4797
        %v4825 = vmul.f32 %v3893, %v4642
        %v4826 = vmul.f32 %v3894, %v4644
        %v4827 = vmul.f32 %v3895, %v4695
        %v4828 = vmul.f32 %v3896, %v4697
        %v4829 = vmul.f32 %v3897, %v4748
        %v4830 = vmul.f32 %v3898, %v4750
        %v4831 = vmul.f32 %v3899, %v4801
        %v4832 = vmul.f32 %v3900, %v4803
        %v4833 = vmul.f32 %v3901, %v4646
        %v4834 = vmul.f32 %v3902, %v4648
        %v4835 = vmul.f32 %v3903, %v4699
        %v4836 = vmul.f32 %v3904, %v4701
        %v4837 = vmul.f32 %v3905, %v4752
        %v4838 = vmul.f32 %v3906, %v4754
        %v4839 = vmul.f32 %v3907, %v4805
        %v4840 = vmul.f32 %v3908, %v4807
        %v4841 = vpack.c.bf16 %v4817, %v4809
        %v4842 = vpack.c.bf16 %v4818, %v4810
        %v4843 = vpack.c.bf16 %v4819, %v4811
        %v4844 = vpack.c.bf16 %v4820, %v4812
        %v4845 = vpack.c.bf16 %v4821, %v4813
        %v4846 = vpack.c.bf16 %v4822, %v4814
        %v4847 = vpack.c.bf16 %v4823, %v4815
        %v4848 = vpack.c.bf16 %v4824, %v4816
        %v4849 = vpack.c.bf16 %v4833, %v4825
        %v4850 = vpack.c.bf16 %v4834, %v4826
        %v4851 = vpack.c.bf16 %v4835, %v4827
        %v4852 = vpack.c.bf16 %v4836, %v4828
        %v4853 = vpack.c.bf16 %v4837, %v4829
        %v4854 = vpack.c.bf16 %v4838, %v4830
        %v4855 = vpack.c.bf16 %v4839, %v4831
        %v4856 = vpack.c.bf16 %v4840, %v4832
        %v4985 = vunpack.c.l.b16 %v4037
        %v4986 = vunpack.c.l.b16 %v4038
        %v4987 = vunpack.c.l.b16 %v4039
        %v4988 = vunpack.c.l.b16 %v4040
        %v4989 = vunpack.c.l.b16 %v4041
        %v4990 = vunpack.c.l.b16 %v4042
        %v4991 = vunpack.c.l.b16 %v4043
        %v4992 = vunpack.c.l.b16 %v4044
        %v4993 = vunpack.c.l.b16 %v4045
        %v4994 = vunpack.c.l.b16 %v4046
        %v4995 = vunpack.c.l.b16 %v4047
        %v4996 = vunpack.c.l.b16 %v4048
        %v4997 = vunpack.c.l.b16 %v4049
        %v4998 = vunpack.c.l.b16 %v4050
        %v4999 = vunpack.c.l.b16 %v4051
        %v5000 = vunpack.c.l.b16 %v4052
        %v5001 = vunpack.c.l.b16 %v4053
        %v5002 = vunpack.c.l.b16 %v4054
        %v5003 = vunpack.c.l.b16 %v4055
        %v5004 = vunpack.c.l.b16 %v4056
        %v5005 = vunpack.c.l.b16 %v4057
        %v5006 = vunpack.c.l.b16 %v4058
        %v5007 = vunpack.c.l.b16 %v4059
        %v5008 = vunpack.c.l.b16 %v4060
        %v5009 = vunpack.c.l.b16 %v4061
        %v5010 = vunpack.c.l.b16 %v4062
        %v5011 = vunpack.c.l.b16 %v4063
        %v5012 = vunpack.c.l.b16 %v4064
        %v5013 = vunpack.c.l.b16 %v4065
        %v5014 = vunpack.c.l.b16 %v4066
        %v5015 = vunpack.c.l.b16 %v4067
        %v5016 = vunpack.c.l.b16 %v4068
        %v5017 = vunpack.c.l.b16 %v4069
        %v5018 = vunpack.c.l.b16 %v4070
        %v5019 = vunpack.c.l.b16 %v4071
        %v5020 = vunpack.c.l.b16 %v4072
        %v5021 = vunpack.c.l.b16 %v4073
        %v5022 = vunpack.c.l.b16 %v4074
        %v5023 = vunpack.c.l.b16 %v4075
        %v5024 = vunpack.c.l.b16 %v4076
        %v5025 = vunpack.c.l.b16 %v4077
        %v5026 = vunpack.c.l.b16 %v4078
        %v5027 = vunpack.c.l.b16 %v4079
        %v5028 = vunpack.c.l.b16 %v4080
        %v5029 = vunpack.c.l.b16 %v4081
        %v5030 = vunpack.c.l.b16 %v4082
        %v5031 = vunpack.c.l.b16 %v4083
        %v5032 = vunpack.c.l.b16 %v4084
        %v5033 = vunpack.c.l.b16 %v4085
        %v5034 = vunpack.c.l.b16 %v4086
        %v5035 = vunpack.c.l.b16 %v4087
        %v5036 = vunpack.c.l.b16 %v4088
        %v5037 = vunpack.c.l.b16 %v4089
        %v5038 = vunpack.c.l.b16 %v4090
        %v5039 = vunpack.c.l.b16 %v4091
        %v5040 = vunpack.c.l.b16 %v4092
        %v5041 = vunpack.c.l.b16 %v4093
        %v5042 = vunpack.c.l.b16 %v4094
        %v5043 = vunpack.c.l.b16 %v4095
        %v5044 = vunpack.c.l.b16 %v4096
        %v5045 = vunpack.c.l.b16 %v4097
        %v5046 = vunpack.c.l.b16 %v4098
        %v5047 = vunpack.c.l.b16 %v4099
        %v5048 = vunpack.c.l.b16 %v4100
        %v5049 = vunpack.c.l.b16 %v4101
        %v5050 = vunpack.c.l.b16 %v4102
        %v5051 = vunpack.c.l.b16 %v4103
        %v5052 = vunpack.c.l.b16 %v4104
        %v5053 = vunpack.c.l.b16 %v4105
        %v5054 = vunpack.c.l.b16 %v4106
        %v5055 = vunpack.c.l.b16 %v4107
        %v5056 = vunpack.c.l.b16 %v4108
        %v5057 = vunpack.c.l.b16 %v4109
        %v5058 = vunpack.c.l.b16 %v4110
        %v5059 = vunpack.c.l.b16 %v4111
        %v5060 = vunpack.c.l.b16 %v4112
        %v5061 = vunpack.c.l.b16 %v4113
        %v5062 = vunpack.c.l.b16 %v4114
        %v5063 = vunpack.c.l.b16 %v4115
        %v5064 = vunpack.c.l.b16 %v4116
        %v5065 = vunpack.c.l.b16 %v4117
        %v5066 = vunpack.c.l.b16 %v4118
        %v5067 = vunpack.c.l.b16 %v4119
        %v5068 = vunpack.c.l.b16 %v4120
        %v5069 = vunpack.c.l.b16 %v4121
        %v5070 = vunpack.c.l.b16 %v4122
        %v5071 = vunpack.c.l.b16 %v4123
        %v5072 = vunpack.c.l.b16 %v4124
        %v5073 = vunpack.c.l.b16 %v4125
        %v5074 = vunpack.c.l.b16 %v4126
        %v5075 = vunpack.c.l.b16 %v4127
        %v5076 = vunpack.c.l.b16 %v4128
        %v5077 = vunpack.c.l.b16 %v4129
        %v5078 = vunpack.c.l.b16 %v4130
        %v5079 = vunpack.c.l.b16 %v4131
        %v5080 = vunpack.c.l.b16 %v4132
        %v5081 = vunpack.c.l.b16 %v4133
        %v5082 = vunpack.c.l.b16 %v4134
        %v5083 = vunpack.c.l.b16 %v4135
        %v5084 = vunpack.c.l.b16 %v4136
        %v5085 = vunpack.c.l.b16 %v4137
        %v5086 = vunpack.c.l.b16 %v4138
        %v5087 = vunpack.c.l.b16 %v4139
        %v5088 = vunpack.c.l.b16 %v4140
        %v5089 = vunpack.c.l.b16 %v4141
        %v5090 = vunpack.c.l.b16 %v4142
        %v5091 = vunpack.c.l.b16 %v4143
        %v5092 = vunpack.c.l.b16 %v4144
        %v5093 = vunpack.c.l.b16 %v4145
        %v5094 = vunpack.c.l.b16 %v4146
        %v5095 = vunpack.c.l.b16 %v4147
        %v5096 = vunpack.c.l.b16 %v4148
        %v5097 = vunpack.c.l.b16 %v4149
        %v5098 = vunpack.c.l.b16 %v4150
        %v5099 = vunpack.c.l.b16 %v4151
        %v5100 = vunpack.c.l.b16 %v4152
        %v5101 = vunpack.c.l.b16 %v4153
        %v5102 = vunpack.c.l.b16 %v4154
        %v5103 = vunpack.c.l.b16 %v4155
        %v5104 = vunpack.c.l.b16 %v4156
        %v5105 = vunpack.c.l.b16 %v4157
        %v5106 = vunpack.c.l.b16 %v4158
        %v5107 = vunpack.c.l.b16 %v4159
        %v5108 = vunpack.c.l.b16 %v4160
        %v5109 = vunpack.c.l.b16 %v4161
        %v5110 = vunpack.c.l.b16 %v4162
        %v5111 = vunpack.c.l.b16 %v4163
        %v5112 = vunpack.c.l.b16 %v4164
        %v5113 = vpack.c.b16 %v4986, %v4985
        %v5114 = vpack.c.b16 %v4988, %v4987
        %v5115 = vpack.c.b16 %v4990, %v4989
        %v5116 = vpack.c.b16 %v4992, %v4991
        %v5117 = vpack.c.b16 %v4994, %v4993
        %v5118 = vpack.c.b16 %v4996, %v4995
        %v5119 = vpack.c.b16 %v4998, %v4997
        %v5120 = vpack.c.b16 %v5000, %v4999
        %v5121 = vpack.c.b16 %v5002, %v5001
        %v5122 = vpack.c.b16 %v5004, %v5003
        %v5123 = vpack.c.b16 %v5006, %v5005
        %v5124 = vpack.c.b16 %v5008, %v5007
        %v5125 = vpack.c.b16 %v5010, %v5009
        %v5126 = vpack.c.b16 %v5012, %v5011
        %v5127 = vpack.c.b16 %v5014, %v5013
        %v5128 = vpack.c.b16 %v5016, %v5015
        %v5129 = vpack.c.b16 %v5018, %v5017
        %v5130 = vpack.c.b16 %v5020, %v5019
        %v5131 = vpack.c.b16 %v5022, %v5021
        %v5132 = vpack.c.b16 %v5024, %v5023
        %v5133 = vpack.c.b16 %v5026, %v5025
        %v5134 = vpack.c.b16 %v5028, %v5027
        %v5135 = vpack.c.b16 %v5030, %v5029
        %v5136 = vpack.c.b16 %v5032, %v5031
        %v5137 = vpack.c.b16 %v5034, %v5033
        %v5138 = vpack.c.b16 %v5036, %v5035
        %v5139 = vpack.c.b16 %v5038, %v5037
        %v5140 = vpack.c.b16 %v5040, %v5039
        %v5141 = vpack.c.b16 %v5042, %v5041
        %v5142 = vpack.c.b16 %v5044, %v5043
        %v5143 = vpack.c.b16 %v5046, %v5045
        %v5144 = vpack.c.b16 %v5048, %v5047
        %v5145 = vpack.c.b16 %v5050, %v5049
        %v5146 = vpack.c.b16 %v5052, %v5051
        %v5147 = vpack.c.b16 %v5054, %v5053
        %v5148 = vpack.c.b16 %v5056, %v5055
        %v5149 = vpack.c.b16 %v5058, %v5057
        %v5150 = vpack.c.b16 %v5060, %v5059
        %v5151 = vpack.c.b16 %v5062, %v5061
        %v5152 = vpack.c.b16 %v5064, %v5063
        %v5153 = vpack.c.b16 %v5066, %v5065
        %v5154 = vpack.c.b16 %v5068, %v5067
        %v5155 = vpack.c.b16 %v5070, %v5069
        %v5156 = vpack.c.b16 %v5072, %v5071
        %v5157 = vpack.c.b16 %v5074, %v5073
        %v5158 = vpack.c.b16 %v5076, %v5075
        %v5159 = vpack.c.b16 %v5078, %v5077
        %v5160 = vpack.c.b16 %v5080, %v5079
        %v5161 = vpack.c.b16 %v5082, %v5081
        %v5162 = vpack.c.b16 %v5084, %v5083
        %v5163 = vpack.c.b16 %v5086, %v5085
        %v5164 = vpack.c.b16 %v5088, %v5087
        %v5165 = vpack.c.b16 %v5090, %v5089
        %v5166 = vpack.c.b16 %v5092, %v5091
        %v5167 = vpack.c.b16 %v5094, %v5093
        %v5168 = vpack.c.b16 %v5096, %v5095
        %v5169 = vpack.c.b16 %v5098, %v5097
        %v5170 = vpack.c.b16 %v5100, %v5099
        %v5171 = vpack.c.b16 %v5102, %v5101
        %v5172 = vpack.c.b16 %v5104, %v5103
        %v5173 = vpack.c.b16 %v5106, %v5105
        %v5174 = vpack.c.b16 %v5108, %v5107
        %v5175 = vpack.c.b16 %v5110, %v5109
        %v5176 = vpack.c.b16 %v5112, %v5111
        %5241 = vmatprep.subr.bf16.mxu0 0
        %5242 = vmatpush1.bf16.msra.mxu0 %v5113
        %5243 = vmatprep.subr.bf16.mxu0 0
        %5244 = vmatpush1.bf16.msra.mxu0 %v5114
        %5245 = vmatprep.subr.bf16.mxu0 0
        %5246 = vmatpush1.bf16.msra.mxu0 %v5115
        %5247 = vmatprep.subr.bf16.mxu0 0
        %5248 = vmatpush1.bf16.msra.mxu0 %v5116
        %5249 = vmatprep.subr.bf16.mxu0 0
        %5250 = vmatpush1.bf16.msra.mxu0 %v5117
        %5251 = vmatprep.subr.bf16.mxu0 0
        %5252 = vmatpush1.bf16.msra.mxu0 %v5118
        %5253 = vmatprep.subr.bf16.mxu0 0
        %5254 = vmatpush1.bf16.msra.mxu0 %v5119
        %5255 = vmatprep.subr.bf16.mxu0 0
        %5256 = vmatpush1.bf16.msra.mxu0 %v5120
        %5257 = vmatprep.subr.bf16.mxu0 0
        %5258 = vmatpush1.bf16.msra.mxu0 %v5121
        %5259 = vmatprep.subr.bf16.mxu0 0
        %5260 = vmatpush1.bf16.msra.mxu0 %v5122
        %5261 = vmatprep.subr.bf16.mxu0 0
        %5262 = vmatpush1.bf16.msra.mxu0 %v5123
        %5263 = vmatprep.subr.bf16.mxu0 0
        %5264 = vmatpush1.bf16.msra.mxu0 %v5124
        %5265 = vmatprep.subr.bf16.mxu0 0
        %5266 = vmatpush1.bf16.msra.mxu0 %v5125
        %5267 = vmatprep.subr.bf16.mxu0 0
        %5268 = vmatpush1.bf16.msra.mxu0 %v5126
        %5269 = vmatprep.subr.bf16.mxu0 0
        %5270 = vmatpush1.bf16.msra.mxu0 %v5127
        %5271 = vmatprep.subr.bf16.mxu0 0
        %5272 = vmatpush1.bf16.msra.mxu0 %v5128
        %5273 = vmatprep.mubr.bf16.mxu0 %v4842
        %5274 = vmatmul.mubr.bf16.gmra.mrb[0].mxu0 %v4841
        %v5275 = vpop.f32.mrb[0].mxu0
        %v5276 = vadd.f32 0.0, %v5275
        %v5277 = vpop.f32.mrb[0].mxu0
        %v5278 = vpop.f32.mrb[0].mxu0
        %v5279 = vadd.f32 0.0, %v5278
        %v5280 = vpop.f32.mrb[0].mxu0
        %5281 = vmatprep.mubr.bf16.mxu0 %v4850
        %5282 = vmatmul.mubr.bf16.gmra.mrb[0].mxu0 %v4849
        %v5283 = vpop.f32.mrb[0].mxu0
        %v5284 = vadd.f32 0.0, %v5283
        %v5285 = vpop.f32.mrb[0].mxu0
        %v5286 = vpop.f32.mrb[0].mxu0
        %v5287 = vadd.f32 0.0, %v5286
        %v5288 = vpop.f32.mrb[0].mxu0
        %5289 = vdwg.mxu0
        %5290 = vmatprep.subr.bf16.mxu0 0
        %5291 = vmatpush1.bf16.msra.mxu0 %v5129
        %5292 = vmatprep.subr.bf16.mxu0 0
        %5293 = vmatpush1.bf16.msra.mxu0 %v5130
        %5294 = vmatprep.subr.bf16.mxu0 0
        %5295 = vmatpush1.bf16.msra.mxu0 %v5131
        %5296 = vmatprep.subr.bf16.mxu0 0
        %5297 = vmatpush1.bf16.msra.mxu0 %v5132
        %5298 = vmatprep.subr.bf16.mxu0 0
        %5299 = vmatpush1.bf16.msra.mxu0 %v5133
        %5300 = vmatprep.subr.bf16.mxu0 0
        %5301 = vmatpush1.bf16.msra.mxu0 %v5134
        %5302 = vmatprep.subr.bf16.mxu0 0
        %5303 = vmatpush1.bf16.msra.mxu0 %v5135
        %5304 = vmatprep.subr.bf16.mxu0 0
        %5305 = vmatpush1.bf16.msra.mxu0 %v5136
        %5306 = vmatprep.subr.bf16.mxu0 0
        %5307 = vmatpush1.bf16.msra.mxu0 %v5137
        %5308 = vmatprep.subr.bf16.mxu0 0
        %5309 = vmatpush1.bf16.msra.mxu0 %v5138
        %5310 = vmatprep.subr.bf16.mxu0 0
        %5311 = vmatpush1.bf16.msra.mxu0 %v5139
        %5312 = vmatprep.subr.bf16.mxu0 0
        %5313 = vmatpush1.bf16.msra.mxu0 %v5140
        %5314 = vmatprep.subr.bf16.mxu0 0
        %5315 = vmatpush1.bf16.msra.mxu0 %v5141
        %5316 = vmatprep.subr.bf16.mxu0 0
        %5317 = vmatpush1.bf16.msra.mxu0 %v5142
        %5318 = vmatprep.subr.bf16.mxu0 0
        %5319 = vmatpush1.bf16.msra.mxu0 %v5143
        %5320 = vmatprep.subr.bf16.mxu0 0
        %5321 = vmatpush1.bf16.msra.mxu0 %v5144
        %5322 = vmatprep.mubr.bf16.mxu0 %v4844
        %5323 = vmatmul.mubr.bf16.gmra.mrb[0].mxu0 %v4843
        %v5324 = vpop.f32.mrb[0].mxu0
        %v5325 = vadd.f32 %v5276, %v5324
        %v5326 = vpop.f32.mrb[0].mxu0
        %v5327 = vpop.f32.mrb[0].mxu0
        %v5328 = vadd.f32 %v5279, %v5327
        %v5329 = vpop.f32.mrb[0].mxu0
        %5330 = vmatprep.mubr.bf16.mxu0 %v4852
        %5331 = vmatmul.mubr.bf16.gmra.mrb[0].mxu0 %v4851
        %v5332 = vpop.f32.mrb[0].mxu0
        %v5333 = vadd.f32 %v5284, %v5332
        %v5334 = vpop.f32.mrb[0].mxu0
        %v5335 = vpop.f32.mrb[0].mxu0
        %v5336 = vadd.f32 %v5287, %v5335
        %v5337 = vpop.f32.mrb[0].mxu0
        %5338 = vdwg.mxu0
        %5339 = vmatprep.subr.bf16.mxu0 0
        %5340 = vmatpush1.bf16.msra.mxu0 %v5145
        %5341 = vmatprep.subr.bf16.mxu0 0
        %5342 = vmatpush1.bf16.msra.mxu0 %v5146
        %5343 = vmatprep.subr.bf16.mxu0 0
        %5344 = vmatpush1.bf16.msra.mxu0 %v5147
        %5345 = vmatprep.subr.bf16.mxu0 0
        %5346 = vmatpush1.bf16.msra.mxu0 %v5148
        %5347 = vmatprep.subr.bf16.mxu0 0
        %5348 = vmatpush1.bf16.msra.mxu0 %v5149
        %5349 = vmatprep.subr.bf16.mxu0 0
        %5350 = vmatpush1.bf16.msra.mxu0 %v5150
        %5351 = vmatprep.subr.bf16.mxu0 0
        %5352 = vmatpush1.bf16.msra.mxu0 %v5151
        %5353 = vmatprep.subr.bf16.mxu0 0
        %5354 = vmatpush1.bf16.msra.mxu0 %v5152
        %5355 = vmatprep.subr.bf16.mxu0 0
        %5356 = vmatpush1.bf16.msra.mxu0 %v5153
        %5357 = vmatprep.subr.bf16.mxu0 0
        %5358 = vmatpush1.bf16.msra.mxu0 %v5154
        %5359 = vmatprep.subr.bf16.mxu0 0
        %5360 = vmatpush1.bf16.msra.mxu0 %v5155
        %5361 = vmatprep.subr.bf16.mxu0 0
        %5362 = vmatpush1.bf16.msra.mxu0 %v5156
        %5363 = vmatprep.subr.bf16.mxu0 0
        %5364 = vmatpush1.bf16.msra.mxu0 %v5157
        %5365 = vmatprep.subr.bf16.mxu0 0
        %5366 = vmatpush1.bf16.msra.mxu0 %v5158
        %5367 = vmatprep.subr.bf16.mxu0 0
        %5368 = vmatpush1.bf16.msra.mxu0 %v5159
        %5369 = vmatprep.subr.bf16.mxu0 0
        %5370 = vmatpush1.bf16.msra.mxu0 %v5160
        %5371 = vmatprep.mubr.bf16.mxu0 %v4846
        %5372 = vmatmul.mubr.bf16.gmra.mrb[0].mxu0 %v4845
        %v5373 = vpop.f32.mrb[0].mxu0
        %v5374 = vadd.f32 %v5325, %v5373
        %v5375 = vpop.f32.mrb[0].mxu0
        %v5376 = vpop.f32.mrb[0].mxu0
        %v5377 = vadd.f32 %v5328, %v5376
        %v5378 = vpop.f32.mrb[0].mxu0
        %5379 = vmatprep.mubr.bf16.mxu0 %v4854
        %5380 = vmatmul.mubr.bf16.gmra.mrb[0].mxu0 %v4853
        %v5381 = vpop.f32.mrb[0].mxu0
        %v5382 = vadd.f32 %v5333, %v5381
        %v5383 = vpop.f32.mrb[0].mxu0
        %v5384 = vpop.f32.mrb[0].mxu0
        %v5385 = vadd.f32 %v5336, %v5384
        %v5386 = vpop.f32.mrb[0].mxu0
        %5387 = vdwg.mxu0
        %5388 = vmatprep.subr.bf16.mxu0 0
        %5389 = vmatpush1.bf16.msra.mxu0 %v5161
        %5390 = vmatprep.subr.bf16.mxu0 0
        %5391 = vmatpush1.bf16.msra.mxu0 %v5162
        %5392 = vmatprep.subr.bf16.mxu0 0
        %5393 = vmatpush1.bf16.msra.mxu0 %v5163
        %5394 = vmatprep.subr.bf16.mxu0 0
        %5395 = vmatpush1.bf16.msra.mxu0 %v5164
        %5396 = vmatprep.subr.bf16.mxu0 0
        %5397 = vmatpush1.bf16.msra.mxu0 %v5165
        %5398 = vmatprep.subr.bf16.mxu0 0
        %5399 = vmatpush1.bf16.msra.mxu0 %v5166
        %5400 = vmatprep.subr.bf16.mxu0 0
        %5401 = vmatpush1.bf16.msra.mxu0 %v5167
        %5402 = vmatprep.subr.bf16.mxu0 0
        %5403 = vmatpush1.bf16.msra.mxu0 %v5168
        %5404 = vmatprep.subr.bf16.mxu0 0
        %5405 = vmatpush1.bf16.msra.mxu0 %v5169
        %5406 = vmatprep.subr.bf16.mxu0 0
        %5407 = vmatpush1.bf16.msra.mxu0 %v5170
        %5408 = vmatprep.subr.bf16.mxu0 0
        %5409 = vmatpush1.bf16.msra.mxu0 %v5171
        %5410 = vmatprep.subr.bf16.mxu0 0
        %5411 = vmatpush1.bf16.msra.mxu0 %v5172
        %5412 = vmatprep.subr.bf16.mxu0 0
        %5413 = vmatpush1.bf16.msra.mxu0 %v5173
        %5414 = vmatprep.subr.bf16.mxu0 0
        %5415 = vmatpush1.bf16.msra.mxu0 %v5174
        %5416 = vmatprep.subr.bf16.mxu0 0
        %5417 = vmatpush1.bf16.msra.mxu0 %v5175
        %5418 = vmatprep.subr.bf16.mxu0 0
        %5419 = vmatpush1.bf16.msra.mxu0 %v5176
        %5420 = vmatprep.mubr.bf16.mxu0 %v4848
        %5421 = vmatmul.mubr.bf16.gmra.mrb[0].mxu0 %v4847
        %v5422 = vpop.f32.mrb[0].mxu0
        %v5423 = vadd.f32 %v5374, %v5422
        %v5424 = vpop.f32.mrb[0].mxu0
        %v5425 = vpop.f32.mrb[0].mxu0
        %v5426 = vadd.f32 %v5377, %v5425
        %v5427 = vpop.f32.mrb[0].mxu0
        %5428 = vmatprep.mubr.bf16.mxu0 %v4856
        %5429 = vmatmul.mubr.bf16.gmra.mrb[0].mxu0 %v4855
        %v5430 = vpop.f32.mrb[0].mxu0
        %v5431 = vadd.f32 %v5382, %v5430
        %v5432 = vpop.f32.mrb[0].mxu0
        %v5433 = vpop.f32.mrb[0].mxu0
        %v5434 = vadd.f32 %v5385, %v5433
        %v5435 = vpop.f32.mrb[0].mxu0
        %5436 = vdwg.mxu0
        %5438 = vset.pattern.permute.xlu0 32
        %5439 = vperm.xlu0 %5438, %v4169
        %v5440 = vpop.permute.xlu0 %5439
        %5443 = vset.pattern.permute.xlu0 32
        %5444 = vperm.xlu0 %5443, %v4170
        %v5445 = vpop.permute.xlu0 %5444
        %5448 = vset.pattern.permute.xlu0 32
        %5449 = vperm.xlu0 %5448, %v4171
        %v5450 = vpop.permute.xlu0 %5449
        %5453 = vset.pattern.permute.xlu0 32
        %5454 = vperm.xlu0 %5453, %v4172
        %v5455 = vpop.permute.xlu0 %5454
        %v5457 = vsel %vm4177, %v4169, 0
        %v5459 = vsel %vm4177, %v4170, 0
        %v5461 = vsel %vm4177, %v4171, 0
        %v5463 = vsel %vm4177, %v4172, 0
        %5465 = vmatprep.subr.mxu0 0.0
        %5466 = vmatpush1.msra.mxu0 %v5423
        %5467 = vmatprep.subr.mxu0 0.0
        %5468 = vmatpush1.msra.mxu0 %v5426
        %5469 = vmatprep.subr.mxu0 0.0
        %5470 = vmatpush1.msra.mxu0 %v5431
        %5471 = vmatprep.subr.mxu0 0.0
        %5472 = vmatpush1.msra.mxu0 %v5434
        %5473 = vmatprep.subr.mxu0 0.0
        %5474 = vmatpush1.msra.mxu0 0.0
        %5475 = vmatprep.subr.mxu0 0.0
        %5476 = vmatpush1.msra.mxu0 0.0
        %5477 = vmatprep.subr.mxu0 0.0
        %5478 = vmatpush1.msra.mxu0 0.0
        %5479 = vmatprep.subr.mxu0 0.0
        %5480 = vmatpush1.msra.mxu0 0.0
        %5481 = vmatprep.subr.mxu0 0.0
        %5482 = vmatpush1.msra.mxu0 0.0
        %5483 = vmatprep.subr.mxu0 0.0
        %5484 = vmatpush1.msra.mxu0 0.0
        %5485 = vmatprep.subr.mxu0 0.0
        %5486 = vmatpush1.msra.mxu0 0.0
        %5487 = vmatprep.subr.mxu0 0.0
        %5488 = vmatpush1.msra.mxu0 0.0
        %5489 = vmatprep.subr.mxu0 0.0
        %5490 = vmatpush1.msra.mxu0 0.0
        %5491 = vmatprep.subr.mxu0 0.0
        %5492 = vmatpush1.msra.mxu0 0.0
        %5493 = vmatprep.subr.mxu0 0.0
        %5494 = vmatpush1.msra.mxu0 0.0
        %5495 = vmatprep.subr.mxu0 0.0
        %5496 = vmatpush1.msra.mxu0 0.0
        %5497 = vmatprep.subr.mxu0 0.0
        %5498 = vmatpush1.msra.mxu0 0.0
        %5499 = vmatprep.subr.mxu0 0.0
        %5500 = vmatpush1.msra.mxu0 0.0
        %5501 = vmatprep.subr.mxu0 0.0
        %5502 = vmatpush1.msra.mxu0 0.0
        %5503 = vmatprep.subr.mxu0 0.0
        %5504 = vmatpush1.msra.mxu0 0.0
        %5505 = vmatprep.subr.mxu0 0.0
        %5506 = vmatpush1.msra.mxu0 0.0
        %5507 = vmatprep.subr.mxu0 0.0
        %5508 = vmatpush1.msra.mxu0 0.0
        %5509 = vmatprep.subr.mxu0 0.0
        %5510 = vmatpush1.msra.mxu0 0.0
        %5511 = vmatprep.subr.mxu0 0.0
        %5512 = vmatpush1.msra.mxu0 0.0
        %5513 = vmatprep.subr.mxu0 0.0
        %5514 = vmatpush1.msra.mxu0 0.0
        %5515 = vmatprep.subr.mxu0 0.0
        %5516 = vmatpush1.msra.mxu0 0.0
        %5517 = vmatprep.subr.mxu0 0.0
        %5518 = vmatpush1.msra.mxu0 0.0
        %5519 = vmatprep.subr.mxu0 0.0
        %5520 = vmatpush1.msra.mxu0 0.0
        %5521 = vmatprep.subr.mxu0 0.0
        %5522 = vmatpush1.msra.mxu0 0.0
        %5523 = vmatprep.subr.mxu0 0.0
        %5524 = vmatpush1.msra.mxu0 0.0
        %5525 = vmatprep.subr.mxu0 0.0
        %5526 = vmatpush1.msra.mxu0 0.0
        %5527 = vmatprep.subr.mxu0 0.0
        %5528 = vmatpush1.msra.mxu0 0.0
        %5529 = vmatprep.mubr.f32.mxu0 0.0
        %5530 = vmatmul.mubr.f32.gmra.mrb[0].mxu0 %v5457
        %v5531 = vpop.f32.mrb[0].mxu0
        %v5532 = vadd.f32 %v5440, %v5531
        %v5533 = vpop.f32.mrb[0].mxu0
        %5534 = vmatprep.mubr.f32.mxu0 0.0
        %5535 = vmatmul.mubr.f32.gmra.mrb[0].mxu0 %v5459
        %v5536 = vpop.f32.mrb[0].mxu0
        %v5537 = vadd.f32 %v5445, %v5536
        %v5538 = vpop.f32.mrb[0].mxu0
        %5539 = vmatprep.mubr.f32.mxu0 0.0
        %5540 = vmatmul.mubr.f32.gmra.mrb[0].mxu0 %v5461
        %v5541 = vpop.f32.mrb[0].mxu0
        %v5542 = vadd.f32 %v5450, %v5541
        %v5543 = vpop.f32.mrb[0].mxu0
        %5544 = vmatprep.mubr.f32.mxu0 0.0
        %5545 = vmatmul.mubr.f32.gmra.mrb[0].mxu0 %v5463
        %v5546 = vpop.f32.mrb[0].mxu0
        %v5547 = vadd.f32 %v5455, %v5546
        %v5548 = vpop.f32.mrb[0].mxu0
        %5549 = vdwg.mxu0
        %vm5550 = vcmp.gt.f32.partialorder %v5532, 20.0
        %vm5551 = vcmp.gt.f32.partialorder %v5537, 20.0
        %vm5552 = vcmp.gt.f32.partialorder %v5542, 20.0
        %vm5553 = vcmp.gt.f32.partialorder %v5547, 20.0
        %v5554 = vmin.f32 %v5532, 20.0
        %v5555 = vmin.f32 %v5537, 20.0
        %v5556 = vmin.f32 %v5542, 20.0
        %v5557 = vmin.f32 %v5547, 20.0
        %v5558 = vmul.f32 %v5554, 1.442695
        %v5559 = vpow.pop %v5558
        %v5560 = vmul.f32 %v5555, 1.442695
        %v5561 = vpow.pop %v5560
        %v5562 = vmul.f32 %v5556, 1.442695
        %v5563 = vpow.pop %v5562
        %v5564 = vmul.f32 %v5557, 1.442695
        %v5565 = vpow.pop %v5564
        %v5566 = vadd.f32 %v5559, 1.0
        %v5567 = vlog2.pop %v5566
        %v5568 = vmul.f32 %v5567, 0.6931472
        %v5569 = vmul.f32 -0.5, %v5559
        %v5570 = vadd.f32 %v5569, 1.0
        %v5571 = vmul.f32 %v5570, %v5559
        %v5572 = vand.u32 2147483647, %v5559
        %vm5573 = vcmp.lt.f32.partialorder %v5572, 0.0004427343
        %v5574 = vsel %vm5573, %v5571, %v5568
        %v5575 = vadd.f32 %v5561, 1.0
        %v5576 = vlog2.pop %v5575
        %v5577 = vmul.f32 %v5576, 0.6931472
        %v5578 = vmul.f32 -0.5, %v5561
        %v5579 = vadd.f32 %v5578, 1.0
        %v5580 = vmul.f32 %v5579, %v5561
        %v5581 = vand.u32 2147483647, %v5561
        %vm5582 = vcmp.lt.f32.partialorder %v5581, 0.0004427343
        %v5583 = vsel %vm5582, %v5580, %v5577
        %v5584 = vadd.f32 %v5563, 1.0
        %v5585 = vlog2.pop %v5584
        %v5586 = vmul.f32 %v5585, 0.6931472
        %v5587 = vmul.f32 -0.5, %v5563
        %v5588 = vadd.f32 %v5587, 1.0
        %v5589 = vmul.f32 %v5588, %v5563
        %v5590 = vand.u32 2147483647, %v5563
        %vm5591 = vcmp.lt.f32.partialorder %v5590, 0.0004427343
        %v5592 = vsel %vm5591, %v5589, %v5586
        %v5593 = vadd.f32 %v5565, 1.0
        %v5594 = vlog2.pop %v5593
        %v5595 = vmul.f32 %v5594, 0.6931472
        %v5596 = vmul.f32 -0.5, %v5565
        %v5597 = vadd.f32 %v5596, 1.0
        %v5598 = vmul.f32 %v5597, %v5565
        %v5599 = vand.u32 2147483647, %v5565
        %vm5600 = vcmp.lt.f32.partialorder %v5599, 0.0004427343
        %v5601 = vsel %vm5600, %v5598, %v5595
        %v5602 = vsel %vm5550, %v5532, %v5574
        %v5603 = vsel %vm5551, %v5537, %v5583
        %v5604 = vsel %vm5552, %v5542, %v5592
        %v5605 = vsel %vm5553, %v5547, %v5601
        %v5606 = vsub.f32 %v5602, 0.6931472
        %v5607 = vsub.f32 %v5603, 0.6931472
        %v5608 = vsub.f32 %v5604, 0.6931472
        %v5609 = vsub.f32 %v5605, 0.6931472
        %5611 = vset.pattern.permute.xlu0 32
        %5612 = vperm.xlu0 %5611, %v4173
        %v5613 = vpop.permute.xlu0 %5612
        %5616 = vset.pattern.permute.xlu0 32
        %5617 = vperm.xlu0 %5616, %v4174
        %v5618 = vpop.permute.xlu0 %5617
        %5621 = vset.pattern.permute.xlu0 32
        %5622 = vperm.xlu0 %5621, %v4175
        %v5623 = vpop.permute.xlu0 %5622
        %5626 = vset.pattern.permute.xlu0 32
        %5627 = vperm.xlu0 %5626, %v4176
        %v5628 = vpop.permute.xlu0 %5627
        %v5630 = vsel %vm4177, %v4173, 0
        %v5632 = vsel %vm4177, %v4174, 0
        %v5634 = vsel %vm4177, %v4175, 0
        %v5636 = vsel %vm4177, %v4176, 0
        %5638 = vmatprep.subr.mxu0 0.0
        %5639 = vmatpush1.msra.mxu0 %v5606
        %5640 = vmatprep.subr.mxu0 0.0
        %5641 = vmatpush1.msra.mxu0 %v5607
        %5642 = vmatprep.subr.mxu0 0.0
        %5643 = vmatpush1.msra.mxu0 %v5608
        %5644 = vmatprep.subr.mxu0 0.0
        %5645 = vmatpush1.msra.mxu0 %v5609
        %5646 = vmatprep.subr.mxu0 0.0
        %5647 = vmatpush1.msra.mxu0 0.0
        %5648 = vmatprep.subr.mxu0 0.0
        %5649 = vmatpush1.msra.mxu0 0.0
        %5650 = vmatprep.subr.mxu0 0.0
        %5651 = vmatpush1.msra.mxu0 0.0
        %5652 = vmatprep.subr.mxu0 0.0
        %5653 = vmatpush1.msra.mxu0 0.0
        %5654 = vmatprep.subr.mxu0 0.0
        %5655 = vmatpush1.msra.mxu0 0.0
        %5656 = vmatprep.subr.mxu0 0.0
        %5657 = vmatpush1.msra.mxu0 0.0
        %5658 = vmatprep.subr.mxu0 0.0
        %5659 = vmatpush1.msra.mxu0 0.0
        %5660 = vmatprep.subr.mxu0 0.0
        %5661 = vmatpush1.msra.mxu0 0.0
        %5662 = vmatprep.subr.mxu0 0.0
        %5663 = vmatpush1.msra.mxu0 0.0
        %5664 = vmatprep.subr.mxu0 0.0
        %5665 = vmatpush1.msra.mxu0 0.0
        %5666 = vmatprep.subr.mxu0 0.0
        %5667 = vmatpush1.msra.mxu0 0.0
        %5668 = vmatprep.subr.mxu0 0.0
        %5669 = vmatpush1.msra.mxu0 0.0
        %5670 = vmatprep.subr.mxu0 0.0
        %5671 = vmatpush1.msra.mxu0 0.0
        %5672 = vmatprep.subr.mxu0 0.0
        %5673 = vmatpush1.msra.mxu0 0.0
        %5674 = vmatprep.subr.mxu0 0.0
        %5675 = vmatpush1.msra.mxu0 0.0
        %5676 = vmatprep.subr.mxu0 0.0
        %5677 = vmatpush1.msra.mxu0 0.0
        %5678 = vmatprep.subr.mxu0 0.0
        %5679 = vmatpush1.msra.mxu0 0.0
        %5680 = vmatprep.subr.mxu0 0.0
        %5681 = vmatpush1.msra.mxu0 0.0
        %5682 = vmatprep.subr.mxu0 0.0
        %5683 = vmatpush1.msra.mxu0 0.0
        %5684 = vmatprep.subr.mxu0 0.0
        %5685 = vmatpush1.msra.mxu0 0.0
        %5686 = vmatprep.subr.mxu0 0.0
        %5687 = vmatpush1.msra.mxu0 0.0
        %5688 = vmatprep.subr.mxu0 0.0
        %5689 = vmatpush1.msra.mxu0 0.0
        %5690 = vmatprep.subr.mxu0 0.0
        %5691 = vmatpush1.msra.mxu0 0.0
        %5692 = vmatprep.subr.mxu0 0.0
        %5693 = vmatpush1.msra.mxu0 0.0
        %5694 = vmatprep.subr.mxu0 0.0
        %5695 = vmatpush1.msra.mxu0 0.0
        %5696 = vmatprep.subr.mxu0 0.0
        %5697 = vmatpush1.msra.mxu0 0.0
        %5698 = vmatprep.subr.mxu0 0.0
        %5699 = vmatpush1.msra.mxu0 0.0
        %5700 = vmatprep.subr.mxu0 0.0
        %5701 = vmatpush1.msra.mxu0 0.0
        %5702 = vmatprep.mubr.f32.mxu0 0.0
        %5703 = vmatmul.mubr.f32.gmra.mrb[0].mxu0 %v5630
        %v5704 = vpop.f32.mrb[0].mxu0
        %v5705 = vadd.f32 %v5613, %v5704
        %v5706 = vpop.f32.mrb[0].mxu0
        %5707 = vmatprep.mubr.f32.mxu0 0.0
        %5708 = vmatmul.mubr.f32.gmra.mrb[0].mxu0 %v5632
        %v5709 = vpop.f32.mrb[0].mxu0
        %v5710 = vadd.f32 %v5618, %v5709
        %v5711 = vpop.f32.mrb[0].mxu0
        %5712 = vmatprep.mubr.f32.mxu0 0.0
        %5713 = vmatmul.mubr.f32.gmra.mrb[0].mxu0 %v5634
        %v5714 = vpop.f32.mrb[0].mxu0
        %v5715 = vadd.f32 %v5623, %v5714
        %v5716 = vpop.f32.mrb[0].mxu0
        %5717 = vmatprep.mubr.f32.mxu0 0.0
        %5718 = vmatmul.mubr.f32.gmra.mrb[0].mxu0 %v5636
        %v5719 = vpop.f32.mrb[0].mxu0
        %v5720 = vadd.f32 %v5628, %v5719
        %v5721 = vpop.f32.mrb[0].mxu0
        %5722 = vdwg.mxu0
        %v5723 = vadd.f32 %v319, %v5705
        %v5724 = vadd.f32 %v320, %v5710
        %v5725 = vadd.f32 %v321, %v5715
        %v5726 = vadd.f32 %v322, %v5720
        %v5727 = vld [vmem:[%s2 + $0xe0] sm:$0xff]
        %v5728 = vld [vmem:[%s2 + $0xe8] sm:$0xff]
        %v5729 = vld [vmem:[%s2 + $0xf0] sm:$0xff]
        %v5730 = vld [vmem:[%s2 + $0xf8] sm:$0xff]
        %v5731 = vld [vmem:[%s2 + $0x140] sm:$0xff]
        %v5732 = vld [vmem:[%s2 + $0x148] sm:$0xff]
        %v5733 = vld [vmem:[%s2 + $0x150] sm:$0xff]
        %v5734 = vld [vmem:[%s2 + $0x158] sm:$0xff]
        %v5735 = vld [vmem:[%s2 + $0x1a0] sm:$0xff]
        %v5736 = vld [vmem:[%s2 + $0x1a8] sm:$0xff]
        %v5737 = vld [vmem:[%s2 + $0x1b0] sm:$0xff]
        %v5738 = vld [vmem:[%s2 + $0x1b8] sm:$0xff]
        %v5740 = vsel %vm4177, %v5727, 0
        %v5743 = vsel %vm4177, %v5728, 0
        %v5746 = vsel %vm4177, %v5729, 0
        %v5749 = vsel %vm4177, %v5730, 0
        %5751 = vmatprep.subr.mxu0 0.0
        %5752 = vmatpush1.msra.mxu0 %v5723
        %5753 = vmatprep.subr.mxu0 0.0
        %5754 = vmatpush1.msra.mxu0 %v5724
        %5755 = vmatprep.subr.mxu0 0.0
        %5756 = vmatpush1.msra.mxu0 %v5725
        %5757 = vmatprep.subr.mxu0 0.0
        %5758 = vmatpush1.msra.mxu0 %v5726
        %5759 = vmatprep.subr.mxu0 0.0
        %5760 = vmatpush1.msra.mxu0 0.0
        %5761 = vmatprep.subr.mxu0 0.0
        %5762 = vmatpush1.msra.mxu0 0.0
        %5763 = vmatprep.subr.mxu0 0.0
        %5764 = vmatpush1.msra.mxu0 0.0
        %5765 = vmatprep.subr.mxu0 0.0
        %5766 = vmatpush1.msra.mxu0 0.0
        %5767 = vmatprep.subr.mxu0 0.0
        %5768 = vmatpush1.msra.mxu0 0.0
        %5769 = vmatprep.subr.mxu0 0.0
        %5770 = vmatpush1.msra.mxu0 0.0
        %5771 = vmatprep.subr.mxu0 0.0
        %5772 = vmatpush1.msra.mxu0 0.0
        %5773 = vmatprep.subr.mxu0 0.0
        %5774 = vmatpush1.msra.mxu0 0.0
        %5775 = vmatprep.subr.mxu0 0.0
        %5776 = vmatpush1.msra.mxu0 0.0
        %5777 = vmatprep.subr.mxu0 0.0
        %5778 = vmatpush1.msra.mxu0 0.0
        %5779 = vmatprep.subr.mxu0 0.0
        %5780 = vmatpush1.msra.mxu0 0.0
        %5781 = vmatprep.subr.mxu0 0.0
        %5782 = vmatpush1.msra.mxu0 0.0
        %5783 = vmatprep.subr.mxu0 0.0
        %5784 = vmatpush1.msra.mxu0 0.0
        %5785 = vmatprep.subr.mxu0 0.0
        %5786 = vmatpush1.msra.mxu0 0.0
        %5787 = vmatprep.subr.mxu0 0.0
        %5788 = vmatpush1.msra.mxu0 0.0
        %5789 = vmatprep.subr.mxu0 0.0
        %5790 = vmatpush1.msra.mxu0 0.0
        %5791 = vmatprep.subr.mxu0 0.0
        %5792 = vmatpush1.msra.mxu0 0.0
        %5793 = vmatprep.subr.mxu0 0.0
        %5794 = vmatpush1.msra.mxu0 0.0
        %5795 = vmatprep.subr.mxu0 0.0
        %5796 = vmatpush1.msra.mxu0 0.0
        %5797 = vmatprep.subr.mxu0 0.0
        %5798 = vmatpush1.msra.mxu0 0.0
        %5799 = vmatprep.subr.mxu0 0.0
        %5800 = vmatpush1.msra.mxu0 0.0
        %5801 = vmatprep.subr.mxu0 0.0
        %5802 = vmatpush1.msra.mxu0 0.0
        %5803 = vmatprep.subr.mxu0 0.0
        %5804 = vmatpush1.msra.mxu0 0.0
        %5805 = vmatprep.subr.mxu0 0.0
        %5806 = vmatpush1.msra.mxu0 0.0
        %5807 = vmatprep.subr.mxu0 0.0
        %5808 = vmatpush1.msra.mxu0 0.0
        %5809 = vmatprep.subr.mxu0 0.0
        %5810 = vmatpush1.msra.mxu0 0.0
        %5811 = vmatprep.subr.mxu0 0.0
        %5812 = vmatpush1.msra.mxu0 0.0
        %5813 = vmatprep.subr.mxu0 0.0
        %5814 = vmatpush1.msra.mxu0 0.0
        %5815 = vmatprep.mubr.f32.mxu0 0.0
        %5816 = vmatmul.mubr.f32.gmra.mrb[0].mxu0 %v5740
        %v5817 = vpop.f32.mrb[0].mxu0
        %v5818 = vadd.f32 0.0, %v5817
        %v5819 = vpop.f32.mrb[0].mxu0
        %5820 = vmatprep.mubr.f32.mxu0 0.0
        %5821 = vmatmul.mubr.f32.gmra.mrb[0].mxu0 %v5743
        %v5822 = vpop.f32.mrb[0].mxu0
        %v5823 = vadd.f32 0.0, %v5822
        %v5824 = vpop.f32.mrb[0].mxu0
        %5825 = vmatprep.mubr.f32.mxu0 0.0
        %5826 = vmatmul.mubr.f32.gmra.mrb[0].mxu0 %v5746
        %v5827 = vpop.f32.mrb[0].mxu0
        %v5828 = vadd.f32 0.0, %v5827
        %v5829 = vpop.f32.mrb[0].mxu0
        %5830 = vmatprep.mubr.f32.mxu0 0.0
        %5831 = vmatmul.mubr.f32.gmra.mrb[0].mxu0 %v5749
        %v5832 = vpop.f32.mrb[0].mxu0
        %v5833 = vadd.f32 0.0, %v5832
        %v5834 = vpop.f32.mrb[0].mxu0
        %5835 = vdwg.mxu0
        %v5836 = vpack.c.bf16 %v5823, %v5818
        %v5837 = vpack.c.bf16 %v5833, %v5828
        %5838 = vmatprep.subr.bf16.mxu0 %v4470
        %5839 = vmatpush1.bf16.msra.mxu0 %v4469
        %5840 = vmatprep.subr.bf16.mxu0 %v4478
        %5841 = vmatpush1.bf16.msra.mxu0 %v4477
        %5842 = vmatprep.subr.bf16.mxu0 %v4486
        %5843 = vmatpush1.bf16.msra.mxu0 %v4485
        %5844 = vmatprep.subr.bf16.mxu0 %v4494
        %5845 = vmatpush1.bf16.msra.mxu0 %v4493
        %5846 = vmatprep.subr.bf16.mxu0 %v4502
        %5847 = vmatpush1.bf16.msra.mxu0 %v4501
        %5848 = vmatprep.subr.bf16.mxu0 %v4510
        %5849 = vmatpush1.bf16.msra.mxu0 %v4509
        %5850 = vmatprep.subr.bf16.mxu0 %v4518
        %5851 = vmatpush1.bf16.msra.mxu0 %v4517
        %5852 = vmatprep.subr.bf16.mxu0 %v4526
        %5853 = vmatpush1.bf16.msra.mxu0 %v4525
        %5854 = vmatprep.subr.bf16.mxu0 0
        %5855 = vmatpush1.bf16.msra.mxu0 0
        %5856 = vmatprep.subr.bf16.mxu0 0
        %5857 = vmatpush1.bf16.msra.mxu0 0
        %5858 = vmatprep.subr.bf16.mxu0 0
        %5859 = vmatpush1.bf16.msra.mxu0 0
        %5860 = vmatprep.subr.bf16.mxu0 0
        %5861 = vmatpush1.bf16.msra.mxu0 0
        %5862 = vmatprep.subr.bf16.mxu0 0
        %5863 = vmatpush1.bf16.msra.mxu0 0
        %5864 = vmatprep.subr.bf16.mxu0 0
        %5865 = vmatpush1.bf16.msra.mxu0 0
        %5866 = vmatprep.subr.bf16.mxu0 0
        %5867 = vmatpush1.bf16.msra.mxu0 0
        %5868 = vmatprep.subr.bf16.mxu0 0
        %5869 = vmatpush1.bf16.msra.mxu0 0
        %5870 = vmatprep.mubr.bf16.mxu0 0
        %5871 = vmatmul.mubr.bf16.gmra.mrb[0].mxu0 %v5836
        %v5872 = vpop.f32.mrb[0].mxu0
        %v5873 = vadd.f32 0.0, %v5872
        %v5874 = vpop.f32.mrb[0].mxu0
        %v5875 = vadd.f32 0.0, %v5874
        %v5876 = vpop.f32.mrb[0].mxu0
        %v5877 = vadd.f32 0.0, %v5876
        %v5878 = vpop.f32.mrb[0].mxu0
        %v5879 = vadd.f32 0.0, %v5878
        %5880 = vmatprep.mubr.bf16.mxu0 0
        %5881 = vmatmul.mubr.bf16.gmra.mrb[0].mxu0 %v5837
        %v5882 = vpop.f32.mrb[0].mxu0
        %v5883 = vadd.f32 0.0, %v5882
        %v5884 = vpop.f32.mrb[0].mxu0
        %v5885 = vadd.f32 0.0, %v5884
        %v5886 = vpop.f32.mrb[0].mxu0
        %v5887 = vadd.f32 0.0, %v5886
        %v5888 = vpop.f32.mrb[0].mxu0
        %v5889 = vadd.f32 0.0, %v5888
        %5890 = vdwg.mxu0
        %5891 = vmatprep.subr.bf16.mxu0 %v4472
        %5892 = vmatpush1.bf16.msra.mxu0 %v4471
        %5893 = vmatprep.subr.bf16.mxu0 %v4480
        %5894 = vmatpush1.bf16.msra.mxu0 %v4479
        %5895 = vmatprep.subr.bf16.mxu0 %v4488
        %5896 = vmatpush1.bf16.msra.mxu0 %v4487
        %5897 = vmatprep.subr.bf16.mxu0 %v4496
        %5898 = vmatpush1.bf16.msra.mxu0 %v4495
        %5899 = vmatprep.subr.bf16.mxu0 %v4504
        %5900 = vmatpush1.bf16.msra.mxu0 %v4503
        %5901 = vmatprep.subr.bf16.mxu0 %v4512
        %5902 = vmatpush1.bf16.msra.mxu0 %v4511
        %5903 = vmatprep.subr.bf16.mxu0 %v4520
        %5904 = vmatpush1.bf16.msra.mxu0 %v4519
        %5905 = vmatprep.subr.bf16.mxu0 %v4528
        %5906 = vmatpush1.bf16.msra.mxu0 %v4527
        %5907 = vmatprep.subr.bf16.mxu0 0
        %5908 = vmatpush1.bf16.msra.mxu0 0
        %5909 = vmatprep.subr.bf16.mxu0 0
        %5910 = vmatpush1.bf16.msra.mxu0 0
        %5911 = vmatprep.subr.bf16.mxu0 0
        %5912 = vmatpush1.bf16.msra.mxu0 0
        %5913 = vmatprep.subr.bf16.mxu0 0
        %5914 = vmatpush1.bf16.msra.mxu0 0
        %5915 = vmatprep.subr.bf16.mxu0 0
        %5916 = vmatpush1.bf16.msra.mxu0 0
        %5917 = vmatprep.subr.bf16.mxu0 0
        %5918 = vmatpush1.bf16.msra.mxu0 0
        %5919 = vmatprep.subr.bf16.mxu0 0
        %5920 = vmatpush1.bf16.msra.mxu0 0
        %5921 = vmatprep.subr.bf16.mxu0 0
        %5922 = vmatpush1.bf16.msra.mxu0 0
        %5923 = vmatprep.mubr.bf16.mxu0 0
        %5924 = vmatmul.mubr.bf16.gmra.mrb[0].mxu0 %v5836
        %v5925 = vpop.f32.mrb[0].mxu0
        %v5926 = vadd.f32 0.0, %v5925
        %v5927 = vpop.f32.mrb[0].mxu0
        %v5928 = vadd.f32 0.0, %v5927
        %v5929 = vpop.f32.mrb[0].mxu0
        %v5930 = vadd.f32 0.0, %v5929
        %v5931 = vpop.f32.mrb[0].mxu0
        %v5932 = vadd.f32 0.0, %v5931
        %5933 = vmatprep.mubr.bf16.mxu0 0
        %5934 = vmatmul.mubr.bf16.gmra.mrb[0].mxu0 %v5837
        %v5935 = vpop.f32.mrb[0].mxu0
        %v5936 = vadd.f32 0.0, %v5935
        %v5937 = vpop.f32.mrb[0].mxu0
        %v5938 = vadd.f32 0.0, %v5937
        %v5939 = vpop.f32.mrb[0].mxu0
        %v5940 = vadd.f32 0.0, %v5939
        %v5941 = vpop.f32.mrb[0].mxu0
        %v5942 = vadd.f32 0.0, %v5941
        %5943 = vdwg.mxu0
        %5944 = vmatprep.subr.bf16.mxu0 %v4474
        %5945 = vmatpush1.bf16.msra.mxu0 %v4473
        %5946 = vmatprep.subr.bf16.mxu0 %v4482
        %5947 = vmatpush1.bf16.msra.mxu0 %v4481
        %5948 = vmatprep.subr.bf16.mxu0 %v4490
        %5949 = vmatpush1.bf16.msra.mxu0 %v4489
        %5950 = vmatprep.subr.bf16.mxu0 %v4498
        %5951 = vmatpush1.bf16.msra.mxu0 %v4497
        %5952 = vmatprep.subr.bf16.mxu0 %v4506
        %5953 = vmatpush1.bf16.msra.mxu0 %v4505
        %5954 = vmatprep.subr.bf16.mxu0 %v4514
        %5955 = vmatpush1.bf16.msra.mxu0 %v4513
        %5956 = vmatprep.subr.bf16.mxu0 %v4522
        %5957 = vmatpush1.bf16.msra.mxu0 %v4521
        %5958 = vmatprep.subr.bf16.mxu0 %v4530
        %5959 = vmatpush1.bf16.msra.mxu0 %v4529
        %5960 = vmatprep.subr.bf16.mxu0 0
        %5961 = vmatpush1.bf16.msra.mxu0 0
        %5962 = vmatprep.subr.bf16.mxu0 0
        %5963 = vmatpush1.bf16.msra.mxu0 0
        %5964 = vmatprep.subr.bf16.mxu0 0
        %5965 = vmatpush1.bf16.msra.mxu0 0
        %5966 = vmatprep.subr.bf16.mxu0 0
        %5967 = vmatpush1.bf16.msra.mxu0 0
        %5968 = vmatprep.subr.bf16.mxu0 0
        %5969 = vmatpush1.bf16.msra.mxu0 0
        %5970 = vmatprep.subr.bf16.mxu0 0
        %5971 = vmatpush1.bf16.msra.mxu0 0
        %5972 = vmatprep.subr.bf16.mxu0 0
        %5973 = vmatpush1.bf16.msra.mxu0 0
        %5974 = vmatprep.subr.bf16.mxu0 0
        %5975 = vmatpush1.bf16.msra.mxu0 0
        %5976 = vmatprep.mubr.bf16.mxu0 0
        %5977 = vmatmul.mubr.bf16.gmra.mrb[0].mxu0 %v5836
        %v5978 = vpop.f32.mrb[0].mxu0
        %v5979 = vadd.f32 0.0, %v5978
        %v5980 = vpop.f32.mrb[0].mxu0
        %v5981 = vadd.f32 0.0, %v5980
        %v5982 = vpop.f32.mrb[0].mxu0
        %v5983 = vadd.f32 0.0, %v5982
        %v5984 = vpop.f32.mrb[0].mxu0
        %v5985 = vadd.f32 0.0, %v5984
        %5986 = vmatprep.mubr.bf16.mxu0 0
        %5987 = vmatmul.mubr.bf16.gmra.mrb[0].mxu0 %v5837
        %v5988 = vpop.f32.mrb[0].mxu0
        %v5989 = vadd.f32 0.0, %v5988
        %v5990 = vpop.f32.mrb[0].mxu0
        %v5991 = vadd.f32 0.0, %v5990
        %v5992 = vpop.f32.mrb[0].mxu0
        %v5993 = vadd.f32 0.0, %v5992
        %v5994 = vpop.f32.mrb[0].mxu0
        %v5995 = vadd.f32 0.0, %v5994
        %5996 = vdwg.mxu0
        %5997 = vmatprep.subr.bf16.mxu0 %v4476
        %5998 = vmatpush1.bf16.msra.mxu0 %v4475
        %5999 = vmatprep.subr.bf16.mxu0 %v4484
        %6000 = vmatpush1.bf16.msra.mxu0 %v4483
        %6001 = vmatprep.subr.bf16.mxu0 %v4492
        %6002 = vmatpush1.bf16.msra.mxu0 %v4491
        %6003 = vmatprep.subr.bf16.mxu0 %v4500
        %6004 = vmatpush1.bf16.msra.mxu0 %v4499
        %6005 = vmatprep.subr.bf16.mxu0 %v4508
        %6006 = vmatpush1.bf16.msra.mxu0 %v4507
        %6007 = vmatprep.subr.bf16.mxu0 %v4516
        %6008 = vmatpush1.bf16.msra.mxu0 %v4515
        %6009 = vmatprep.subr.bf16.mxu0 %v4524
        %6010 = vmatpush1.bf16.msra.mxu0 %v4523
        %6011 = vmatprep.subr.bf16.mxu0 %v4532
        %6012 = vmatpush1.bf16.msra.mxu0 %v4531
        %6013 = vmatprep.subr.bf16.mxu0 0
        %6014 = vmatpush1.bf16.msra.mxu0 0
        %6015 = vmatprep.subr.bf16.mxu0 0
        %6016 = vmatpush1.bf16.msra.mxu0 0
        %6017 = vmatprep.subr.bf16.mxu0 0
        %6018 = vmatpush1.bf16.msra.mxu0 0
        %6019 = vmatprep.subr.bf16.mxu0 0
        %6020 = vmatpush1.bf16.msra.mxu0 0
        %6021 = vmatprep.subr.bf16.mxu0 0
        %6022 = vmatpush1.bf16.msra.mxu0 0
        %6023 = vmatprep.subr.bf16.mxu0 0
        %6024 = vmatpush1.bf16.msra.mxu0 0
        %6025 = vmatprep.subr.bf16.mxu0 0
        %6026 = vmatpush1.bf16.msra.mxu0 0
        %6027 = vmatprep.subr.bf16.mxu0 0
        %6028 = vmatpush1.bf16.msra.mxu0 0
        %6029 = vmatprep.mubr.bf16.mxu0 0
        %6030 = vmatmul.mubr.bf16.gmra.mrb[0].mxu0 %v5836
        %v6031 = vpop.f32.mrb[0].mxu0
        %v6032 = vadd.f32 0.0, %v6031
        %v6033 = vpop.f32.mrb[0].mxu0
        %v6034 = vadd.f32 0.0, %v6033
        %v6035 = vpop.f32.mrb[0].mxu0
        %v6036 = vadd.f32 0.0, %v6035
        %v6037 = vpop.f32.mrb[0].mxu0
        %v6038 = vadd.f32 0.0, %v6037
        %6039 = vmatprep.mubr.bf16.mxu0 0
        %6040 = vmatmul.mubr.bf16.gmra.mrb[0].mxu0 %v5837
        %v6041 = vpop.f32.mrb[0].mxu0
        %v6042 = vadd.f32 0.0, %v6041
        %v6043 = vpop.f32.mrb[0].mxu0
        %v6044 = vadd.f32 0.0, %v6043
        %v6045 = vpop.f32.mrb[0].mxu0
        %v6046 = vadd.f32 0.0, %v6045
        %v6047 = vpop.f32.mrb[0].mxu0
        %v6048 = vadd.f32 0.0, %v6047
        %6049 = vdwg.mxu0
        %v6050 = vmul.f32 %v3909, %v5873
        %v6051 = vmul.f32 %v3910, %v5875
        %v6052 = vmul.f32 %v3911, %v5926
        %v6053 = vmul.f32 %v3912, %v5928
        %v6054 = vmul.f32 %v3913, %v5979
        %v6055 = vmul.f32 %v3914, %v5981
        %v6056 = vmul.f32 %v3915, %v6032
        %v6057 = vmul.f32 %v3916, %v6034
        %v6058 = vmul.f32 %v3917, %v5877
        %v6059 = vmul.f32 %v3918, %v5879
        %v6060 = vmul.f32 %v3919, %v5930
        %v6061 = vmul.f32 %v3920, %v5932
        %v6062 = vmul.f32 %v3921, %v5983
        %v6063 = vmul.f32 %v3922, %v5985
        %v6064 = vmul.f32 %v3923, %v6036
        %v6065 = vmul.f32 %v3924, %v6038
        %v6066 = vmul.f32 %v3925, %v5883
        %v6067 = vmul.f32 %v3926, %v5885
        %v6068 = vmul.f32 %v3927, %v5936
        %v6069 = vmul.f32 %v3928, %v5938
        %v6070 = vmul.f32 %v3929, %v5989
        %v6071 = vmul.f32 %v3930, %v5991
        %v6072 = vmul.f32 %v3931, %v6042
        %v6073 = vmul.f32 %v3932, %v6044
        %v6074 = vmul.f32 %v3933, %v5887
        %v6075 = vmul.f32 %v3934, %v5889
        %v6076 = vmul.f32 %v3935, %v5940
        %v6077 = vmul.f32 %v3936, %v5942
        %v6078 = vmul.f32 %v3937, %v5993
        %v6079 = vmul.f32 %v3938, %v5995
        %v6080 = vmul.f32 %v3939, %v6046
        %v6081 = vmul.f32 %v3940, %v6048
        %v6082 = vpack.c.bf16 %v6058, %v6050
        %v6083 = vpack.c.bf16 %v6059, %v6051
        %v6084 = vpack.c.bf16 %v6060, %v6052
        %v6085 = vpack.c.bf16 %v6061, %v6053
        %v6086 = vpack.c.bf16 %v6062, %v6054
        %v6087 = vpack.c.bf16 %v6063, %v6055
        %v6088 = vpack.c.bf16 %v6064, %v6056
        %v6089 = vpack.c.bf16 %v6065, %v6057
        %v6090 = vpack.c.bf16 %v6074, %v6066
        %v6091 = vpack.c.bf16 %v6075, %v6067
        %v6092 = vpack.c.bf16 %v6076, %v6068
        %v6093 = vpack.c.bf16 %v6077, %v6069
        %v6094 = vpack.c.bf16 %v6078, %v6070
        %v6095 = vpack.c.bf16 %v6079, %v6071
        %v6096 = vpack.c.bf16 %v6080, %v6072
        %v6097 = vpack.c.bf16 %v6081, %v6073
        %6098 = vmatprep.subr.bf16.mxu0 0
        %6099 = vmatpush1.bf16.msra.mxu0 %v5113
        %6100 = vmatprep.subr.bf16.mxu0 0
        %6101 = vmatpush1.bf16.msra.mxu0 %v5114
        %6102 = vmatprep.subr.bf16.mxu0 0
        %6103 = vmatpush1.bf16.msra.mxu0 %v5115
        %6104 = vmatprep.subr.bf16.mxu0 0
        %6105 = vmatpush1.bf16.msra.mxu0 %v5116
        %6106 = vmatprep.subr.bf16.mxu0 0
        %6107 = vmatpush1.bf16.msra.mxu0 %v5117
        %6108 = vmatprep.subr.bf16.mxu0 0
        %6109 = vmatpush1.bf16.msra.mxu0 %v5118
        %6110 = vmatprep.subr.bf16.mxu0 0
        %6111 = vmatpush1.bf16.msra.mxu0 %v5119
        %6112 = vmatprep.subr.bf16.mxu0 0
        %6113 = vmatpush1.bf16.msra.mxu0 %v5120
        %6114 = vmatprep.subr.bf16.mxu0 0
        %6115 = vmatpush1.bf16.msra.mxu0 %v5121
        %6116 = vmatprep.subr.bf16.mxu0 0
        %6117 = vmatpush1.bf16.msra.mxu0 %v5122
        %6118 = vmatprep.subr.bf16.mxu0 0
        %6119 = vmatpush1.bf16.msra.mxu0 %v5123
        %6120 = vmatprep.subr.bf16.mxu0 0
        %6121 = vmatpush1.bf16.msra.mxu0 %v5124
        %6122 = vmatprep.subr.bf16.mxu0 0
        %6123 = vmatpush1.bf16.msra.mxu0 %v5125
        %6124 = vmatprep.subr.bf16.mxu0 0
        %6125 = vmatpush1.bf16.msra.mxu0 %v5126
        %6126 = vmatprep.subr.bf16.mxu0 0
        %6127 = vmatpush1.bf16.msra.mxu0 %v5127
        %6128 = vmatprep.subr.bf16.mxu0 0
        %6129 = vmatpush1.bf16.msra.mxu0 %v5128
        %6130 = vmatprep.mubr.bf16.mxu0 %v6083
        %6131 = vmatmul.mubr.bf16.gmra.mrb[0].mxu0 %v6082
        %v6132 = vpop.f32.mrb[0].mxu0
        %v6133 = vadd.f32 0.0, %v6132
        %v6134 = vpop.f32.mrb[0].mxu0
        %v6135 = vpop.f32.mrb[0].mxu0
        %v6136 = vadd.f32 0.0, %v6135
        %v6137 = vpop.f32.mrb[0].mxu0
        %6138 = vmatprep.mubr.bf16.mxu0 %v6091
        %6139 = vmatmul.mubr.bf16.gmra.mrb[0].mxu0 %v6090
        %v6140 = vpop.f32.mrb[0].mxu0
        %v6141 = vadd.f32 0.0, %v6140
        %v6142 = vpop.f32.mrb[0].mxu0
        %v6143 = vpop.f32.mrb[0].mxu0
        %v6144 = vadd.f32 0.0, %v6143
        %v6145 = vpop.f32.mrb[0].mxu0
        %6146 = vdwg.mxu0
        %6147 = vmatprep.subr.bf16.mxu0 0
        %6148 = vmatpush1.bf16.msra.mxu0 %v5129
        %6149 = vmatprep.subr.bf16.mxu0 0
        %6150 = vmatpush1.bf16.msra.mxu0 %v5130
        %6151 = vmatprep.subr.bf16.mxu0 0
        %6152 = vmatpush1.bf16.msra.mxu0 %v5131
        %6153 = vmatprep.subr.bf16.mxu0 0
        %6154 = vmatpush1.bf16.msra.mxu0 %v5132
        %6155 = vmatprep.subr.bf16.mxu0 0
        %6156 = vmatpush1.bf16.msra.mxu0 %v5133
        %6157 = vmatprep.subr.bf16.mxu0 0
        %6158 = vmatpush1.bf16.msra.mxu0 %v5134
        %6159 = vmatprep.subr.bf16.mxu0 0
        %6160 = vmatpush1.bf16.msra.mxu0 %v5135
        %6161 = vmatprep.subr.bf16.mxu0 0
        %6162 = vmatpush1.bf16.msra.mxu0 %v5136
        %6163 = vmatprep.subr.bf16.mxu0 0
        %6164 = vmatpush1.bf16.msra.mxu0 %v5137
        %6165 = vmatprep.subr.bf16.mxu0 0
        %6166 = vmatpush1.bf16.msra.mxu0 %v5138
        %6167 = vmatprep.subr.bf16.mxu0 0
        %6168 = vmatpush1.bf16.msra.mxu0 %v5139
        %6169 = vmatprep.subr.bf16.mxu0 0
        %6170 = vmatpush1.bf16.msra.mxu0 %v5140
        %6171 = vmatprep.subr.bf16.mxu0 0
        %6172 = vmatpush1.bf16.msra.mxu0 %v5141
        %6173 = vmatprep.subr.bf16.mxu0 0
        %6174 = vmatpush1.bf16.msra.mxu0 %v5142
        %6175 = vmatprep.subr.bf16.mxu0 0
        %6176 = vmatpush1.bf16.msra.mxu0 %v5143
        %6177 = vmatprep.subr.bf16.mxu0 0
        %6178 = vmatpush1.bf16.msra.mxu0 %v5144
        %6179 = vmatprep.mubr.bf16.mxu0 %v6085
        %6180 = vmatmul.mubr.bf16.gmra.mrb[0].mxu0 %v6084
        %v6181 = vpop.f32.mrb[0].mxu0
        %v6182 = vadd.f32 %v6133, %v6181
        %v6183 = vpop.f32.mrb[0].mxu0
        %v6184 = vpop.f32.mrb[0].mxu0
        %v6185 = vadd.f32 %v6136, %v6184
        %v6186 = vpop.f32.mrb[0].mxu0
        %6187 = vmatprep.mubr.bf16.mxu0 %v6093
        %6188 = vmatmul.mubr.bf16.gmra.mrb[0].mxu0 %v6092
        %v6189 = vpop.f32.mrb[0].mxu0
        %v6190 = vadd.f32 %v6141, %v6189
        %v6191 = vpop.f32.mrb[0].mxu0
        %v6192 = vpop.f32.mrb[0].mxu0
        %v6193 = vadd.f32 %v6144, %v6192
        %v6194 = vpop.f32.mrb[0].mxu0
        %6195 = vdwg.mxu0
        %6196 = vmatprep.subr.bf16.mxu0 0
        %6197 = vmatpush1.bf16.msra.mxu0 %v5145
        %6198 = vmatprep.subr.bf16.mxu0 0
        %6199 = vmatpush1.bf16.msra.mxu0 %v5146
        %6200 = vmatprep.subr.bf16.mxu0 0
        %6201 = vmatpush1.bf16.msra.mxu0 %v5147
        %6202 = vmatprep.subr.bf16.mxu0 0
        %6203 = vmatpush1.bf16.msra.mxu0 %v5148
        %6204 = vmatprep.subr.bf16.mxu0 0
        %6205 = vmatpush1.bf16.msra.mxu0 %v5149
        %6206 = vmatprep.subr.bf16.mxu0 0
        %6207 = vmatpush1.bf16.msra.mxu0 %v5150
        %6208 = vmatprep.subr.bf16.mxu0 0
        %6209 = vmatpush1.bf16.msra.mxu0 %v5151
        %6210 = vmatprep.subr.bf16.mxu0 0
        %6211 = vmatpush1.bf16.msra.mxu0 %v5152
        %6212 = vmatprep.subr.bf16.mxu0 0
        %6213 = vmatpush1.bf16.msra.mxu0 %v5153
        %6214 = vmatprep.subr.bf16.mxu0 0
        %6215 = vmatpush1.bf16.msra.mxu0 %v5154
        %6216 = vmatprep.subr.bf16.mxu0 0
        %6217 = vmatpush1.bf16.msra.mxu0 %v5155
        %6218 = vmatprep.subr.bf16.mxu0 0
        %6219 = vmatpush1.bf16.msra.mxu0 %v5156
        %6220 = vmatprep.subr.bf16.mxu0 0
        %6221 = vmatpush1.bf16.msra.mxu0 %v5157
        %6222 = vmatprep.subr.bf16.mxu0 0
        %6223 = vmatpush1.bf16.msra.mxu0 %v5158
        %6224 = vmatprep.subr.bf16.mxu0 0
        %6225 = vmatpush1.bf16.msra.mxu0 %v5159
        %6226 = vmatprep.subr.bf16.mxu0 0
        %6227 = vmatpush1.bf16.msra.mxu0 %v5160
        %6228 = vmatprep.mubr.bf16.mxu0 %v6087
        %6229 = vmatmul.mubr.bf16.gmra.mrb[0].mxu0 %v6086
        %v6230 = vpop.f32.mrb[0].mxu0
        %v6231 = vadd.f32 %v6182, %v6230
        %v6232 = vpop.f32.mrb[0].mxu0
        %v6233 = vpop.f32.mrb[0].mxu0
        %v6234 = vadd.f32 %v6185, %v6233
        %v6235 = vpop.f32.mrb[0].mxu0
        %6236 = vmatprep.mubr.bf16.mxu0 %v6095
        %6237 = vmatmul.mubr.bf16.gmra.mrb[0].mxu0 %v6094
        %v6238 = vpop.f32.mrb[0].mxu0
        %v6239 = vadd.f32 %v6190, %v6238
        %v6240 = vpop.f32.mrb[0].mxu0
        %v6241 = vpop.f32.mrb[0].mxu0
        %v6242 = vadd.f32 %v6193, %v6241
        %v6243 = vpop.f32.mrb[0].mxu0
        %6244 = vdwg.mxu0
        %6245 = vmatprep.subr.bf16.mxu0 0
        %6246 = vmatpush1.bf16.msra.mxu0 %v5161
        %6247 = vmatprep.subr.bf16.mxu0 0
        %6248 = vmatpush1.bf16.msra.mxu0 %v5162
        %6249 = vmatprep.subr.bf16.mxu0 0
        %6250 = vmatpush1.bf16.msra.mxu0 %v5163
        %6251 = vmatprep.subr.bf16.mxu0 0
        %6252 = vmatpush1.bf16.msra.mxu0 %v5164
        %6253 = vmatprep.subr.bf16.mxu0 0
        %6254 = vmatpush1.bf16.msra.mxu0 %v5165
        %6255 = vmatprep.subr.bf16.mxu0 0
        %6256 = vmatpush1.bf16.msra.mxu0 %v5166
        %6257 = vmatprep.subr.bf16.mxu0 0
        %6258 = vmatpush1.bf16.msra.mxu0 %v5167
        %6259 = vmatprep.subr.bf16.mxu0 0
        %6260 = vmatpush1.bf16.msra.mxu0 %v5168
        %6261 = vmatprep.subr.bf16.mxu0 0
        %6262 = vmatpush1.bf16.msra.mxu0 %v5169
        %6263 = vmatprep.subr.bf16.mxu0 0
        %6264 = vmatpush1.bf16.msra.mxu0 %v5170
        %6265 = vmatprep.subr.bf16.mxu0 0
        %6266 = vmatpush1.bf16.msra.mxu0 %v5171
        %6267 = vmatprep.subr.bf16.mxu0 0
        %6268 = vmatpush1.bf16.msra.mxu0 %v5172
        %6269 = vmatprep.subr.bf16.mxu0 0
        %6270 = vmatpush1.bf16.msra.mxu0 %v5173
        %6271 = vmatprep.subr.bf16.mxu0 0
        %6272 = vmatpush1.bf16.msra.mxu0 %v5174
        %6273 = vmatprep.subr.bf16.mxu0 0
        %6274 = vmatpush1.bf16.msra.mxu0 %v5175
        %6275 = vmatprep.subr.bf16.mxu0 0
        %6276 = vmatpush1.bf16.msra.mxu0 %v5176
        %6277 = vmatprep.mubr.bf16.mxu0 %v6089
        %6278 = vmatmul.mubr.bf16.gmra.mrb[0].mxu0 %v6088
        %v6279 = vpop.f32.mrb[0].mxu0
        %v6280 = vadd.f32 %v6231, %v6279
        %v6281 = vpop.f32.mrb[0].mxu0
        %v6282 = vpop.f32.mrb[0].mxu0
        %v6283 = vadd.f32 %v6234, %v6282
        %v6284 = vpop.f32.mrb[0].mxu0
        %6285 = vmatprep.mubr.bf16.mxu0 %v6097
        %6286 = vmatmul.mubr.bf16.gmra.mrb[0].mxu0 %v6096
        %v6287 = vpop.f32.mrb[0].mxu0
        %v6288 = vadd.f32 %v6239, %v6287
        %v6289 = vpop.f32.mrb[0].mxu0
        %v6290 = vpop.f32.mrb[0].mxu0
        %v6291 = vadd.f32 %v6242, %v6290
        %v6292 = vpop.f32.mrb[0].mxu0
        %6293 = vdwg.mxu0
        %6295 = vset.pattern.permute.xlu0 32
        %6296 = vperm.xlu0 %6295, %v5731
        %v6297 = vpop.permute.xlu0 %6296
        %6300 = vset.pattern.permute.xlu0 32
        %6301 = vperm.xlu0 %6300, %v5732
        %v6302 = vpop.permute.xlu0 %6301
        %6305 = vset.pattern.permute.xlu0 32
        %6306 = vperm.xlu0 %6305, %v5733
        %v6307 = vpop.permute.xlu0 %6306
        %6310 = vset.pattern.permute.xlu0 32
        %6311 = vperm.xlu0 %6310, %v5734
        %v6312 = vpop.permute.xlu0 %6311
        %v6314 = vsel %vm4177, %v5731, 0
        %v6316 = vsel %vm4177, %v5732, 0
        %v6318 = vsel %vm4177, %v5733, 0
        %v6320 = vsel %vm4177, %v5734, 0
        %6322 = vmatprep.subr.mxu0 0.0
        %6323 = vmatpush1.msra.mxu0 %v6280
        %6324 = vmatprep.subr.mxu0 0.0
        %6325 = vmatpush1.msra.mxu0 %v6283
        %6326 = vmatprep.subr.mxu0 0.0
        %6327 = vmatpush1.msra.mxu0 %v6288
        %6328 = vmatprep.subr.mxu0 0.0
        %6329 = vmatpush1.msra.mxu0 %v6291
        %6330 = vmatprep.subr.mxu0 0.0
        %6331 = vmatpush1.msra.mxu0 0.0
        %6332 = vmatprep.subr.mxu0 0.0
        %6333 = vmatpush1.msra.mxu0 0.0
        %6334 = vmatprep.subr.mxu0 0.0
        %6335 = vmatpush1.msra.mxu0 0.0
        %6336 = vmatprep.subr.mxu0 0.0
        %6337 = vmatpush1.msra.mxu0 0.0
        %6338 = vmatprep.subr.mxu0 0.0
        %6339 = vmatpush1.msra.mxu0 0.0
        %6340 = vmatprep.subr.mxu0 0.0
        %6341 = vmatpush1.msra.mxu0 0.0
        %6342 = vmatprep.subr.mxu0 0.0
        %6343 = vmatpush1.msra.mxu0 0.0
        %6344 = vmatprep.subr.mxu0 0.0
        %6345 = vmatpush1.msra.mxu0 0.0
        %6346 = vmatprep.subr.mxu0 0.0
        %6347 = vmatpush1.msra.mxu0 0.0
        %6348 = vmatprep.subr.mxu0 0.0
        %6349 = vmatpush1.msra.mxu0 0.0
        %6350 = vmatprep.subr.mxu0 0.0
        %6351 = vmatpush1.msra.mxu0 0.0
        %6352 = vmatprep.subr.mxu0 0.0
        %6353 = vmatpush1.msra.mxu0 0.0
        %6354 = vmatprep.subr.mxu0 0.0
        %6355 = vmatpush1.msra.mxu0 0.0
        %6356 = vmatprep.subr.mxu0 0.0
        %6357 = vmatpush1.msra.mxu0 0.0
        %6358 = vmatprep.subr.mxu0 0.0
        %6359 = vmatpush1.msra.mxu0 0.0
        %6360 = vmatprep.subr.mxu0 0.0
        %6361 = vmatpush1.msra.mxu0 0.0
        %6362 = vmatprep.subr.mxu0 0.0
        %6363 = vmatpush1.msra.mxu0 0.0
        %6364 = vmatprep.subr.mxu0 0.0
        %6365 = vmatpush1.msra.mxu0 0.0
        %6366 = vmatprep.subr.mxu0 0.0
        %6367 = vmatpush1.msra.mxu0 0.0
        %6368 = vmatprep.subr.mxu0 0.0
        %6369 = vmatpush1.msra.mxu0 0.0
        %6370 = vmatprep.subr.mxu0 0.0
        %6371 = vmatpush1.msra.mxu0 0.0
        %6372 = vmatprep.subr.mxu0 0.0
        %6373 = vmatpush1.msra.mxu0 0.0
        %6374 = vmatprep.subr.mxu0 0.0
        %6375 = vmatpush1.msra.mxu0 0.0
        %6376 = vmatprep.subr.mxu0 0.0
        %6377 = vmatpush1.msra.mxu0 0.0
        %6378 = vmatprep.subr.mxu0 0.0
        %6379 = vmatpush1.msra.mxu0 0.0
        %6380 = vmatprep.subr.mxu0 0.0
        %6381 = vmatpush1.msra.mxu0 0.0
        %6382 = vmatprep.subr.mxu0 0.0
        %6383 = vmatpush1.msra.mxu0 0.0
        %6384 = vmatprep.subr.mxu0 0.0
        %6385 = vmatpush1.msra.mxu0 0.0
        %6386 = vmatprep.mubr.f32.mxu0 0.0
        %6387 = vmatmul.mubr.f32.gmra.mrb[0].mxu0 %v6314
        %v6388 = vpop.f32.mrb[0].mxu0
        %v6389 = vadd.f32 %v6297, %v6388
        %v6390 = vpop.f32.mrb[0].mxu0
        %6391 = vmatprep.mubr.f32.mxu0 0.0
        %6392 = vmatmul.mubr.f32.gmra.mrb[0].mxu0 %v6316
        %v6393 = vpop.f32.mrb[0].mxu0
        %v6394 = vadd.f32 %v6302, %v6393
        %v6395 = vpop.f32.mrb[0].mxu0
        %6396 = vmatprep.mubr.f32.mxu0 0.0
        %6397 = vmatmul.mubr.f32.gmra.mrb[0].mxu0 %v6318
        %v6398 = vpop.f32.mrb[0].mxu0
        %v6399 = vadd.f32 %v6307, %v6398
        %v6400 = vpop.f32.mrb[0].mxu0
        %6401 = vmatprep.mubr.f32.mxu0 0.0
        %6402 = vmatmul.mubr.f32.gmra.mrb[0].mxu0 %v6320
        %v6403 = vpop.f32.mrb[0].mxu0
        %v6404 = vadd.f32 %v6312, %v6403
        %v6405 = vpop.f32.mrb[0].mxu0
        %6406 = vdwg.mxu0
        %vm6407 = vcmp.gt.f32.partialorder %v6389, 20.0
        %vm6408 = vcmp.gt.f32.partialorder %v6394, 20.0
        %vm6409 = vcmp.gt.f32.partialorder %v6399, 20.0
        %vm6410 = vcmp.gt.f32.partialorder %v6404, 20.0
        %v6411 = vmin.f32 %v6389, 20.0
        %v6412 = vmin.f32 %v6394, 20.0
        %v6413 = vmin.f32 %v6399, 20.0
        %v6414 = vmin.f32 %v6404, 20.0
        %v6415 = vmul.f32 %v6411, 1.442695
        %v6416 = vpow.pop %v6415
        %v6417 = vmul.f32 %v6412, 1.442695
        %v6418 = vpow.pop %v6417
        %v6419 = vmul.f32 %v6413, 1.442695
        %v6420 = vpow.pop %v6419
        %v6421 = vmul.f32 %v6414, 1.442695
        %v6422 = vpow.pop %v6421
        %v6423 = vadd.f32 %v6416, 1.0
        %v6424 = vlog2.pop %v6423
        %v6425 = vmul.f32 %v6424, 0.6931472
        %v6426 = vmul.f32 -0.5, %v6416
        %v6427 = vadd.f32 %v6426, 1.0
        %v6428 = vmul.f32 %v6427, %v6416
        %v6429 = vand.u32 2147483647, %v6416
        %vm6430 = vcmp.lt.f32.partialorder %v6429, 0.0004427343
        %v6431 = vsel %vm6430, %v6428, %v6425
        %v6432 = vadd.f32 %v6418, 1.0
        %v6433 = vlog2.pop %v6432
        %v6434 = vmul.f32 %v6433, 0.6931472
        %v6435 = vmul.f32 -0.5, %v6418
        %v6436 = vadd.f32 %v6435, 1.0
        %v6437 = vmul.f32 %v6436, %v6418
        %v6438 = vand.u32 2147483647, %v6418
        %vm6439 = vcmp.lt.f32.partialorder %v6438, 0.0004427343
        %v6440 = vsel %vm6439, %v6437, %v6434
        %v6441 = vadd.f32 %v6420, 1.0
        %v6442 = vlog2.pop %v6441
        %v6443 = vmul.f32 %v6442, 0.6931472
        %v6444 = vmul.f32 -0.5, %v6420
        %v6445 = vadd.f32 %v6444, 1.0
        %v6446 = vmul.f32 %v6445, %v6420
        %v6447 = vand.u32 2147483647, %v6420
        %vm6448 = vcmp.lt.f32.partialorder %v6447, 0.0004427343
        %v6449 = vsel %vm6448, %v6446, %v6443
        %v6450 = vadd.f32 %v6422, 1.0
        %v6451 = vlog2.pop %v6450
        %v6452 = vmul.f32 %v6451, 0.6931472
        %v6453 = vmul.f32 -0.5, %v6422
        %v6454 = vadd.f32 %v6453, 1.0
        %v6455 = vmul.f32 %v6454, %v6422
        %v6456 = vand.u32 2147483647, %v6422
        %vm6457 = vcmp.lt.f32.partialorder %v6456, 0.0004427343
        %v6458 = vsel %vm6457, %v6455, %v6452
        %v6459 = vsel %vm6407, %v6389, %v6431
        %v6460 = vsel %vm6408, %v6394, %v6440
        %v6461 = vsel %vm6409, %v6399, %v6449
        %v6462 = vsel %vm6410, %v6404, %v6458
        %v6463 = vsub.f32 %v6459, 0.6931472
        %v6464 = vsub.f32 %v6460, 0.6931472
        %v6465 = vsub.f32 %v6461, 0.6931472
        %v6466 = vsub.f32 %v6462, 0.6931472
        %6468 = vset.pattern.permute.xlu0 32
        %6469 = vperm.xlu0 %6468, %v5735
        %v6470 = vpop.permute.xlu0 %6469
        %6473 = vset.pattern.permute.xlu0 32
        %6474 = vperm.xlu0 %6473, %v5736
        %v6475 = vpop.permute.xlu0 %6474
        %6478 = vset.pattern.permute.xlu0 32
        %6479 = vperm.xlu0 %6478, %v5737
        %v6480 = vpop.permute.xlu0 %6479
        %6483 = vset.pattern.permute.xlu0 32
        %6484 = vperm.xlu0 %6483, %v5738
        %v6485 = vpop.permute.xlu0 %6484
        %v6487 = vsel %vm4177, %v5735, 0
        %v6489 = vsel %vm4177, %v5736, 0
        %v6491 = vsel %vm4177, %v5737, 0
        %v6493 = vsel %vm4177, %v5738, 0
        %6495 = vmatprep.subr.mxu0 0.0
        %6496 = vmatpush1.msra.mxu0 %v6463
        %6497 = vmatprep.subr.mxu0 0.0
        %6498 = vmatpush1.msra.mxu0 %v6464
        %6499 = vmatprep.subr.mxu0 0.0
        %6500 = vmatpush1.msra.mxu0 %v6465
        %6501 = vmatprep.subr.mxu0 0.0
        %6502 = vmatpush1.msra.mxu0 %v6466
        %6503 = vmatprep.subr.mxu0 0.0
        %6504 = vmatpush1.msra.mxu0 0.0
        %6505 = vmatprep.subr.mxu0 0.0
        %6506 = vmatpush1.msra.mxu0 0.0
        %6507 = vmatprep.subr.mxu0 0.0
        %6508 = vmatpush1.msra.mxu0 0.0
        %6509 = vmatprep.subr.mxu0 0.0
        %6510 = vmatpush1.msra.mxu0 0.0
        %6511 = vmatprep.subr.mxu0 0.0
        %6512 = vmatpush1.msra.mxu0 0.0
        %6513 = vmatprep.subr.mxu0 0.0
        %6514 = vmatpush1.msra.mxu0 0.0
        %6515 = vmatprep.subr.mxu0 0.0
        %6516 = vmatpush1.msra.mxu0 0.0
        %6517 = vmatprep.subr.mxu0 0.0
        %6518 = vmatpush1.msra.mxu0 0.0
        %6519 = vmatprep.subr.mxu0 0.0
        %6520 = vmatpush1.msra.mxu0 0.0
        %6521 = vmatprep.subr.mxu0 0.0
        %6522 = vmatpush1.msra.mxu0 0.0
        %6523 = vmatprep.subr.mxu0 0.0
        %6524 = vmatpush1.msra.mxu0 0.0
        %6525 = vmatprep.subr.mxu0 0.0
        %6526 = vmatpush1.msra.mxu0 0.0
        %6527 = vmatprep.subr.mxu0 0.0
        %6528 = vmatpush1.msra.mxu0 0.0
        %6529 = vmatprep.subr.mxu0 0.0
        %6530 = vmatpush1.msra.mxu0 0.0
        %6531 = vmatprep.subr.mxu0 0.0
        %6532 = vmatpush1.msra.mxu0 0.0
        %6533 = vmatprep.subr.mxu0 0.0
        %6534 = vmatpush1.msra.mxu0 0.0
        %6535 = vmatprep.subr.mxu0 0.0
        %6536 = vmatpush1.msra.mxu0 0.0
        %6537 = vmatprep.subr.mxu0 0.0
        %6538 = vmatpush1.msra.mxu0 0.0
        %6539 = vmatprep.subr.mxu0 0.0
        %6540 = vmatpush1.msra.mxu0 0.0
        %6541 = vmatprep.subr.mxu0 0.0
        %6542 = vmatpush1.msra.mxu0 0.0
        %6543 = vmatprep.subr.mxu0 0.0
        %6544 = vmatpush1.msra.mxu0 0.0
        %6545 = vmatprep.subr.mxu0 0.0
        %6546 = vmatpush1.msra.mxu0 0.0
        %6547 = vmatprep.subr.mxu0 0.0
        %6548 = vmatpush1.msra.mxu0 0.0
        %6549 = vmatprep.subr.mxu0 0.0
        %6550 = vmatpush1.msra.mxu0 0.0
        %6551 = vmatprep.subr.mxu0 0.0
        %6552 = vmatpush1.msra.mxu0 0.0
        %6553 = vmatprep.subr.mxu0 0.0
        %6554 = vmatpush1.msra.mxu0 0.0
        %6555 = vmatprep.subr.mxu0 0.0
        %6556 = vmatpush1.msra.mxu0 0.0
        %6557 = vmatprep.subr.mxu0 0.0
        %6558 = vmatpush1.msra.mxu0 0.0
        %6559 = vmatprep.mubr.f32.mxu0 0.0
        %6560 = vmatmul.mubr.f32.gmra.mrb[0].mxu0 %v6487
        %v6561 = vpop.f32.mrb[0].mxu0
        %v6562 = vadd.f32 %v6470, %v6561
        %v6563 = vpop.f32.mrb[0].mxu0
        %6564 = vmatprep.mubr.f32.mxu0 0.0
        %6565 = vmatmul.mubr.f32.gmra.mrb[0].mxu0 %v6489
        %v6566 = vpop.f32.mrb[0].mxu0
        %v6567 = vadd.f32 %v6475, %v6566
        %v6568 = vpop.f32.mrb[0].mxu0
        %6569 = vmatprep.mubr.f32.mxu0 0.0
        %6570 = vmatmul.mubr.f32.gmra.mrb[0].mxu0 %v6491
        %v6571 = vpop.f32.mrb[0].mxu0
        %v6572 = vadd.f32 %v6480, %v6571
        %v6573 = vpop.f32.mrb[0].mxu0
        %6574 = vmatprep.mubr.f32.mxu0 0.0
        %6575 = vmatmul.mubr.f32.gmra.mrb[0].mxu0 %v6493
        %v6576 = vpop.f32.mrb[0].mxu0
        %v6577 = vadd.f32 %v6485, %v6576
        %v6578 = vpop.f32.mrb[0].mxu0
        %6579 = vdwg.mxu0
        %v6580 = vadd.f32 %v5723, %v6562
        %v6581 = vadd.f32 %v5724, %v6567
        %v6582 = vadd.f32 %v5725, %v6572
        %v6583 = vadd.f32 %v5726, %v6577
        %v6584 = vld [vmem:[%s2 + $0x100] sm:$0xff]
        %v6585 = vld [vmem:[%s2 + $0x108] sm:$0xff]
        %v6586 = vld [vmem:[%s2 + $0x110] sm:$0xff]
        %v6587 = vld [vmem:[%s2 + $0x118] sm:$0xff]
        %v6588 = vld [vmem:[%s2 + $0x160] sm:$0xff]
        %v6589 = vld [vmem:[%s2 + $0x168] sm:$0xff]
        %v6590 = vld [vmem:[%s2 + $0x170] sm:$0xff]
        %v6591 = vld [vmem:[%s2 + $0x178] sm:$0xff]
        %v6592 = vld [vmem:[%s2 + $0x1c0] sm:$0xff]
        %v6593 = vld [vmem:[%s2 + $0x1c8] sm:$0xff]
        %v6594 = vld [vmem:[%s2 + $0x1d0] sm:$0xff]
        %v6595 = vld [vmem:[%s2 + $0x1d8] sm:$0xff]
        %v6597 = vsel %vm4177, %v6584, 0
        %v6600 = vsel %vm4177, %v6585, 0
        %v6603 = vsel %vm4177, %v6586, 0
        %v6606 = vsel %vm4177, %v6587, 0
        %6608 = vmatprep.subr.mxu0 0.0
        %6609 = vmatpush1.msra.mxu0 %v6580
        %6610 = vmatprep.subr.mxu0 0.0
        %6611 = vmatpush1.msra.mxu0 %v6581
        %6612 = vmatprep.subr.mxu0 0.0
        %6613 = vmatpush1.msra.mxu0 %v6582
        %6614 = vmatprep.subr.mxu0 0.0
        %6615 = vmatpush1.msra.mxu0 %v6583
        %6616 = vmatprep.subr.mxu0 0.0
        %6617 = vmatpush1.msra.mxu0 0.0
        %6618 = vmatprep.subr.mxu0 0.0
        %6619 = vmatpush1.msra.mxu0 0.0
        %6620 = vmatprep.subr.mxu0 0.0
        %6621 = vmatpush1.msra.mxu0 0.0
        %6622 = vmatprep.subr.mxu0 0.0
        %6623 = vmatpush1.msra.mxu0 0.0
        %6624 = vmatprep.subr.mxu0 0.0
        %6625 = vmatpush1.msra.mxu0 0.0
        %6626 = vmatprep.subr.mxu0 0.0
        %6627 = vmatpush1.msra.mxu0 0.0
        %6628 = vmatprep.subr.mxu0 0.0
        %6629 = vmatpush1.msra.mxu0 0.0
        %6630 = vmatprep.subr.mxu0 0.0
        %6631 = vmatpush1.msra.mxu0 0.0
        %6632 = vmatprep.subr.mxu0 0.0
        %6633 = vmatpush1.msra.mxu0 0.0
        %6634 = vmatprep.subr.mxu0 0.0
        %6635 = vmatpush1.msra.mxu0 0.0
        %6636 = vmatprep.subr.mxu0 0.0
        %6637 = vmatpush1.msra.mxu0 0.0
        %6638 = vmatprep.subr.mxu0 0.0
        %6639 = vmatpush1.msra.mxu0 0.0
        %6640 = vmatprep.subr.mxu0 0.0
        %6641 = vmatpush1.msra.mxu0 0.0
        %6642 = vmatprep.subr.mxu0 0.0
        %6643 = vmatpush1.msra.mxu0 0.0
        %6644 = vmatprep.subr.mxu0 0.0
        %6645 = vmatpush1.msra.mxu0 0.0
        %6646 = vmatprep.subr.mxu0 0.0
        %6647 = vmatpush1.msra.mxu0 0.0
        %6648 = vmatprep.subr.mxu0 0.0
        %6649 = vmatpush1.msra.mxu0 0.0
        %6650 = vmatprep.subr.mxu0 0.0
        %6651 = vmatpush1.msra.mxu0 0.0
        %6652 = vmatprep.subr.mxu0 0.0
        %6653 = vmatpush1.msra.mxu0 0.0
        %6654 = vmatprep.subr.mxu0 0.0
        %6655 = vmatpush1.msra.mxu0 0.0
        %6656 = vmatprep.subr.mxu0 0.0
        %6657 = vmatpush1.msra.mxu0 0.0
        %6658 = vmatprep.subr.mxu0 0.0
        %6659 = vmatpush1.msra.mxu0 0.0
        %6660 = vmatprep.subr.mxu0 0.0
        %6661 = vmatpush1.msra.mxu0 0.0
        %6662 = vmatprep.subr.mxu0 0.0
        %6663 = vmatpush1.msra.mxu0 0.0
        %6664 = vmatprep.subr.mxu0 0.0
        %6665 = vmatpush1.msra.mxu0 0.0
        %6666 = vmatprep.subr.mxu0 0.0
        %6667 = vmatpush1.msra.mxu0 0.0
        %6668 = vmatprep.subr.mxu0 0.0
        %6669 = vmatpush1.msra.mxu0 0.0
        %6670 = vmatprep.subr.mxu0 0.0
        %6671 = vmatpush1.msra.mxu0 0.0
        %6672 = vmatprep.mubr.f32.mxu0 0.0
        %6673 = vmatmul.mubr.f32.gmra.mrb[0].mxu0 %v6597
        %v6674 = vpop.f32.mrb[0].mxu0
        %v6675 = vadd.f32 0.0, %v6674
        %v6676 = vpop.f32.mrb[0].mxu0
        %6677 = vmatprep.mubr.f32.mxu0 0.0
        %6678 = vmatmul.mubr.f32.gmra.mrb[0].mxu0 %v6600
        %v6679 = vpop.f32.mrb[0].mxu0
        %v6680 = vadd.f32 0.0, %v6679
        %v6681 = vpop.f32.mrb[0].mxu0
        %6682 = vmatprep.mubr.f32.mxu0 0.0
        %6683 = vmatmul.mubr.f32.gmra.mrb[0].mxu0 %v6603
        %v6684 = vpop.f32.mrb[0].mxu0
        %v6685 = vadd.f32 0.0, %v6684
        %v6686 = vpop.f32.mrb[0].mxu0
        %6687 = vmatprep.mubr.f32.mxu0 0.0
        %6688 = vmatmul.mubr.f32.gmra.mrb[0].mxu0 %v6606
        %v6689 = vpop.f32.mrb[0].mxu0
        %v6690 = vadd.f32 0.0, %v6689
        %v6691 = vpop.f32.mrb[0].mxu0
        %6692 = vdwg.mxu0
        %v6693 = vpack.c.bf16 %v6680, %v6675
        %v6694 = vpack.c.bf16 %v6690, %v6685
        %6695 = vmatprep.subr.bf16.mxu0 %v4470
        %6696 = vmatpush1.bf16.msra.mxu0 %v4469
        %6697 = vmatprep.subr.bf16.mxu0 %v4478
        %6698 = vmatpush1.bf16.msra.mxu0 %v4477
        %6699 = vmatprep.subr.bf16.mxu0 %v4486
        %6700 = vmatpush1.bf16.msra.mxu0 %v4485
        %6701 = vmatprep.subr.bf16.mxu0 %v4494
        %6702 = vmatpush1.bf16.msra.mxu0 %v4493
        %6703 = vmatprep.subr.bf16.mxu0 %v4502
        %6704 = vmatpush1.bf16.msra.mxu0 %v4501
        %6705 = vmatprep.subr.bf16.mxu0 %v4510
        %6706 = vmatpush1.bf16.msra.mxu0 %v4509
        %6707 = vmatprep.subr.bf16.mxu0 %v4518
        %6708 = vmatpush1.bf16.msra.mxu0 %v4517
        %6709 = vmatprep.subr.bf16.mxu0 %v4526
        %6710 = vmatpush1.bf16.msra.mxu0 %v4525
        %6711 = vmatprep.subr.bf16.mxu0 0
        %6712 = vmatpush1.bf16.msra.mxu0 0
        %6713 = vmatprep.subr.bf16.mxu0 0
        %6714 = vmatpush1.bf16.msra.mxu0 0
        %6715 = vmatprep.subr.bf16.mxu0 0
        %6716 = vmatpush1.bf16.msra.mxu0 0
        %6717 = vmatprep.subr.bf16.mxu0 0
        %6718 = vmatpush1.bf16.msra.mxu0 0
        %6719 = vmatprep.subr.bf16.mxu0 0
        %6720 = vmatpush1.bf16.msra.mxu0 0
        %6721 = vmatprep.subr.bf16.mxu0 0
        %6722 = vmatpush1.bf16.msra.mxu0 0
        %6723 = vmatprep.subr.bf16.mxu0 0
        %6724 = vmatpush1.bf16.msra.mxu0 0
        %6725 = vmatprep.subr.bf16.mxu0 0
        %6726 = vmatpush1.bf16.msra.mxu0 0
        %6727 = vmatprep.mubr.bf16.mxu0 0
        %6728 = vmatmul.mubr.bf16.gmra.mrb[0].mxu0 %v6693
        %v6729 = vpop.f32.mrb[0].mxu0
        %v6730 = vadd.f32 0.0, %v6729
        %v6731 = vpop.f32.mrb[0].mxu0
        %v6732 = vadd.f32 0.0, %v6731
        %v6733 = vpop.f32.mrb[0].mxu0
        %v6734 = vadd.f32 0.0, %v6733
        %v6735 = vpop.f32.mrb[0].mxu0
        %v6736 = vadd.f32 0.0, %v6735
        %6737 = vmatprep.mubr.bf16.mxu0 0
        %6738 = vmatmul.mubr.bf16.gmra.mrb[0].mxu0 %v6694
        %v6739 = vpop.f32.mrb[0].mxu0
        %v6740 = vadd.f32 0.0, %v6739
        %v6741 = vpop.f32.mrb[0].mxu0
        %v6742 = vadd.f32 0.0, %v6741
        %v6743 = vpop.f32.mrb[0].mxu0
        %v6744 = vadd.f32 0.0, %v6743
        %v6745 = vpop.f32.mrb[0].mxu0
        %v6746 = vadd.f32 0.0, %v6745
        %6747 = vdwg.mxu0
        %6748 = vmatprep.subr.bf16.mxu0 %v4472
        %6749 = vmatpush1.bf16.msra.mxu0 %v4471
        %6750 = vmatprep.subr.bf16.mxu0 %v4480
        %6751 = vmatpush1.bf16.msra.mxu0 %v4479
        %6752 = vmatprep.subr.bf16.mxu0 %v4488
        %6753 = vmatpush1.bf16.msra.mxu0 %v4487
        %6754 = vmatprep.subr.bf16.mxu0 %v4496
        %6755 = vmatpush1.bf16.msra.mxu0 %v4495
        %6756 = vmatprep.subr.bf16.mxu0 %v4504
        %6757 = vmatpush1.bf16.msra.mxu0 %v4503
        %6758 = vmatprep.subr.bf16.mxu0 %v4512
        %6759 = vmatpush1.bf16.msra.mxu0 %v4511
        %6760 = vmatprep.subr.bf16.mxu0 %v4520
        %6761 = vmatpush1.bf16.msra.mxu0 %v4519
        %6762 = vmatprep.subr.bf16.mxu0 %v4528
        %6763 = vmatpush1.bf16.msra.mxu0 %v4527
        %6764 = vmatprep.subr.bf16.mxu0 0
        %6765 = vmatpush1.bf16.msra.mxu0 0
        %6766 = vmatprep.subr.bf16.mxu0 0
        %6767 = vmatpush1.bf16.msra.mxu0 0
        %6768 = vmatprep.subr.bf16.mxu0 0
        %6769 = vmatpush1.bf16.msra.mxu0 0
        %6770 = vmatprep.subr.bf16.mxu0 0
        %6771 = vmatpush1.bf16.msra.mxu0 0
        %6772 = vmatprep.subr.bf16.mxu0 0
        %6773 = vmatpush1.bf16.msra.mxu0 0
        %6774 = vmatprep.subr.bf16.mxu0 0
        %6775 = vmatpush1.bf16.msra.mxu0 0
        %6776 = vmatprep.subr.bf16.mxu0 0
        %6777 = vmatpush1.bf16.msra.mxu0 0
        %6778 = vmatprep.subr.bf16.mxu0 0
        %6779 = vmatpush1.bf16.msra.mxu0 0
        %6780 = vmatprep.mubr.bf16.mxu0 0
        %6781 = vmatmul.mubr.bf16.gmra.mrb[0].mxu0 %v6693
        %v6782 = vpop.f32.mrb[0].mxu0
        %v6783 = vadd.f32 0.0, %v6782
        %v6784 = vpop.f32.mrb[0].mxu0
        %v6785 = vadd.f32 0.0, %v6784
        %v6786 = vpop.f32.mrb[0].mxu0
        %v6787 = vadd.f32 0.0, %v6786
        %v6788 = vpop.f32.mrb[0].mxu0
        %v6789 = vadd.f32 0.0, %v6788
        %6790 = vmatprep.mubr.bf16.mxu0 0
        %6791 = vmatmul.mubr.bf16.gmra.mrb[0].mxu0 %v6694
        %v6792 = vpop.f32.mrb[0].mxu0
        %v6793 = vadd.f32 0.0, %v6792
        %v6794 = vpop.f32.mrb[0].mxu0
        %v6795 = vadd.f32 0.0, %v6794
        %v6796 = vpop.f32.mrb[0].mxu0
        %v6797 = vadd.f32 0.0, %v6796
        %v6798 = vpop.f32.mrb[0].mxu0
        %v6799 = vadd.f32 0.0, %v6798
        %6800 = vdwg.mxu0
        %6801 = vmatprep.subr.bf16.mxu0 %v4474
        %6802 = vmatpush1.bf16.msra.mxu0 %v4473
        %6803 = vmatprep.subr.bf16.mxu0 %v4482
        %6804 = vmatpush1.bf16.msra.mxu0 %v4481
        %6805 = vmatprep.subr.bf16.mxu0 %v4490
        %6806 = vmatpush1.bf16.msra.mxu0 %v4489
        %6807 = vmatprep.subr.bf16.mxu0 %v4498
        %6808 = vmatpush1.bf16.msra.mxu0 %v4497
        %6809 = vmatprep.subr.bf16.mxu0 %v4506
        %6810 = vmatpush1.bf16.msra.mxu0 %v4505
        %6811 = vmatprep.subr.bf16.mxu0 %v4514
        %6812 = vmatpush1.bf16.msra.mxu0 %v4513
        %6813 = vmatprep.subr.bf16.mxu0 %v4522
        %6814 = vmatpush1.bf16.msra.mxu0 %v4521
        %6815 = vmatprep.subr.bf16.mxu0 %v4530
        %6816 = vmatpush1.bf16.msra.mxu0 %v4529
        %6817 = vmatprep.subr.bf16.mxu0 0
        %6818 = vmatpush1.bf16.msra.mxu0 0
        %6819 = vmatprep.subr.bf16.mxu0 0
        %6820 = vmatpush1.bf16.msra.mxu0 0
        %6821 = vmatprep.subr.bf16.mxu0 0
        %6822 = vmatpush1.bf16.msra.mxu0 0
        %6823 = vmatprep.subr.bf16.mxu0 0
        %6824 = vmatpush1.bf16.msra.mxu0 0
        %6825 = vmatprep.subr.bf16.mxu0 0
        %6826 = vmatpush1.bf16.msra.mxu0 0
        %6827 = vmatprep.subr.bf16.mxu0 0
        %6828 = vmatpush1.bf16.msra.mxu0 0
        %6829 = vmatprep.subr.bf16.mxu0 0
        %6830 = vmatpush1.bf16.msra.mxu0 0
        %6831 = vmatprep.subr.bf16.mxu0 0
        %6832 = vmatpush1.bf16.msra.mxu0 0
        %6833 = vmatprep.mubr.bf16.mxu0 0
        %6834 = vmatmul.mubr.bf16.gmra.mrb[0].mxu0 %v6693
        %v6835 = vpop.f32.mrb[0].mxu0
        %v6836 = vadd.f32 0.0, %v6835
        %v6837 = vpop.f32.mrb[0].mxu0
        %v6838 = vadd.f32 0.0, %v6837
        %v6839 = vpop.f32.mrb[0].mxu0
        %v6840 = vadd.f32 0.0, %v6839
        %v6841 = vpop.f32.mrb[0].mxu0
        %v6842 = vadd.f32 0.0, %v6841
        %6843 = vmatprep.mubr.bf16.mxu0 0
        %6844 = vmatmul.mubr.bf16.gmra.mrb[0].mxu0 %v6694
        %v6845 = vpop.f32.mrb[0].mxu0
        %v6846 = vadd.f32 0.0, %v6845
        %v6847 = vpop.f32.mrb[0].mxu0
        %v6848 = vadd.f32 0.0, %v6847
        %v6849 = vpop.f32.mrb[0].mxu0
        %v6850 = vadd.f32 0.0, %v6849
        %v6851 = vpop.f32.mrb[0].mxu0
        %v6852 = vadd.f32 0.0, %v6851
        %6853 = vdwg.mxu0
        %6854 = vmatprep.subr.bf16.mxu0 %v4476
        %6855 = vmatpush1.bf16.msra.mxu0 %v4475
        %6856 = vmatprep.subr.bf16.mxu0 %v4484
        %6857 = vmatpush1.bf16.msra.mxu0 %v4483
        %6858 = vmatprep.subr.bf16.mxu0 %v4492
        %6859 = vmatpush1.bf16.msra.mxu0 %v4491
        %6860 = vmatprep.subr.bf16.mxu0 %v4500
        %6861 = vmatpush1.bf16.msra.mxu0 %v4499
        %6862 = vmatprep.subr.bf16.mxu0 %v4508
        %6863 = vmatpush1.bf16.msra.mxu0 %v4507
        %6864 = vmatprep.subr.bf16.mxu0 %v4516
        %6865 = vmatpush1.bf16.msra.mxu0 %v4515
        %6866 = vmatprep.subr.bf16.mxu0 %v4524
        %6867 = vmatpush1.bf16.msra.mxu0 %v4523
        %6868 = vmatprep.subr.bf16.mxu0 %v4532
        %6869 = vmatpush1.bf16.msra.mxu0 %v4531
        %6870 = vmatprep.subr.bf16.mxu0 0
        %6871 = vmatpush1.bf16.msra.mxu0 0
        %6872 = vmatprep.subr.bf16.mxu0 0
        %6873 = vmatpush1.bf16.msra.mxu0 0
        %6874 = vmatprep.subr.bf16.mxu0 0
        %6875 = vmatpush1.bf16.msra.mxu0 0
        %6876 = vmatprep.subr.bf16.mxu0 0
        %6877 = vmatpush1.bf16.msra.mxu0 0
        %6878 = vmatprep.subr.bf16.mxu0 0
        %6879 = vmatpush1.bf16.msra.mxu0 0
        %6880 = vmatprep.subr.bf16.mxu0 0
        %6881 = vmatpush1.bf16.msra.mxu0 0
        %6882 = vmatprep.subr.bf16.mxu0 0
        %6883 = vmatpush1.bf16.msra.mxu0 0
        %6884 = vmatprep.subr.bf16.mxu0 0
        %6885 = vmatpush1.bf16.msra.mxu0 0
        %6886 = vmatprep.mubr.bf16.mxu0 0
        %6887 = vmatmul.mubr.bf16.gmra.mrb[0].mxu0 %v6693
        %v6888 = vpop.f32.mrb[0].mxu0
        %v6889 = vadd.f32 0.0, %v6888
        %v6890 = vpop.f32.mrb[0].mxu0
        %v6891 = vadd.f32 0.0, %v6890
        %v6892 = vpop.f32.mrb[0].mxu0
        %v6893 = vadd.f32 0.0, %v6892
        %v6894 = vpop.f32.mrb[0].mxu0
        %v6895 = vadd.f32 0.0, %v6894
        %6896 = vmatprep.mubr.bf16.mxu0 0
        %6897 = vmatmul.mubr.bf16.gmra.mrb[0].mxu0 %v6694
        %v6898 = vpop.f32.mrb[0].mxu0
        %v6899 = vadd.f32 0.0, %v6898
        %v6900 = vpop.f32.mrb[0].mxu0
        %v6901 = vadd.f32 0.0, %v6900
        %v6902 = vpop.f32.mrb[0].mxu0
        %v6903 = vadd.f32 0.0, %v6902
        %v6904 = vpop.f32.mrb[0].mxu0
        %v6905 = vadd.f32 0.0, %v6904
        %6906 = vdwg.mxu0
        %v6907 = vmul.f32 %v3941, %v6730
        %v6908 = vmul.f32 %v3942, %v6732
        %v6909 = vmul.f32 %v3943, %v6783
        %v6910 = vmul.f32 %v3944, %v6785
        %v6911 = vmul.f32 %v3945, %v6836
        %v6912 = vmul.f32 %v3946, %v6838
        %v6913 = vmul.f32 %v3947, %v6889
        %v6914 = vmul.f32 %v3948, %v6891
        %v6915 = vmul.f32 %v3949, %v6734
        %v6916 = vmul.f32 %v3950, %v6736
        %v6917 = vmul.f32 %v3951, %v6787
        %v6918 = vmul.f32 %v3952, %v6789
        %v6919 = vmul.f32 %v3953, %v6840
        %v6920 = vmul.f32 %v3954, %v6842
        %v6921 = vmul.f32 %v3955, %v6893
        %v6922 = vmul.f32 %v3956, %v6895
        %v6923 = vmul.f32 %v3957, %v6740
        %v6924 = vmul.f32 %v3958, %v6742
        %v6925 = vmul.f32 %v3959, %v6793
        %v6926 = vmul.f32 %v3960, %v6795
        %v6927 = vmul.f32 %v3961, %v6846
        %v6928 = vmul.f32 %v3962, %v6848
        %v6929 = vmul.f32 %v3963, %v6899
        %v6930 = vmul.f32 %v3964, %v6901
        %v6931 = vmul.f32 %v3965, %v6744
        %v6932 = vmul.f32 %v3966, %v6746
        %v6933 = vmul.f32 %v3967, %v6797
        %v6934 = vmul.f32 %v3968, %v6799
        %v6935 = vmul.f32 %v3969, %v6850
        %v6936 = vmul.f32 %v3970, %v6852
        %v6937 = vmul.f32 %v3971, %v6903
        %v6938 = vmul.f32 %v3972, %v6905
        %v6939 = vpack.c.bf16 %v6915, %v6907
        %v6940 = vpack.c.bf16 %v6916, %v6908
        %v6941 = vpack.c.bf16 %v6917, %v6909
        %v6942 = vpack.c.bf16 %v6918, %v6910
        %v6943 = vpack.c.bf16 %v6919, %v6911
        %v6944 = vpack.c.bf16 %v6920, %v6912
        %v6945 = vpack.c.bf16 %v6921, %v6913
        %v6946 = vpack.c.bf16 %v6922, %v6914
        %v6947 = vpack.c.bf16 %v6931, %v6923
        %v6948 = vpack.c.bf16 %v6932, %v6924
        %v6949 = vpack.c.bf16 %v6933, %v6925
        %v6950 = vpack.c.bf16 %v6934, %v6926
        %v6951 = vpack.c.bf16 %v6935, %v6927
        %v6952 = vpack.c.bf16 %v6936, %v6928
        %v6953 = vpack.c.bf16 %v6937, %v6929
        %v6954 = vpack.c.bf16 %v6938, %v6930
        %6955 = vmatprep.subr.bf16.mxu0 0
        %6956 = vmatpush1.bf16.msra.mxu0 %v5113
        %6957 = vmatprep.subr.bf16.mxu0 0
        %6958 = vmatpush1.bf16.msra.mxu0 %v5114
        %6959 = vmatprep.subr.bf16.mxu0 0
        %6960 = vmatpush1.bf16.msra.mxu0 %v5115
        %6961 = vmatprep.subr.bf16.mxu0 0
        %6962 = vmatpush1.bf16.msra.mxu0 %v5116
        %6963 = vmatprep.subr.bf16.mxu0 0
        %6964 = vmatpush1.bf16.msra.mxu0 %v5117
        %6965 = vmatprep.subr.bf16.mxu0 0
        %6966 = vmatpush1.bf16.msra.mxu0 %v5118
        %6967 = vmatprep.subr.bf16.mxu0 0
        %6968 = vmatpush1.bf16.msra.mxu0 %v5119
        %6969 = vmatprep.subr.bf16.mxu0 0
        %6970 = vmatpush1.bf16.msra.mxu0 %v5120
        %6971 = vmatprep.subr.bf16.mxu0 0
        %6972 = vmatpush1.bf16.msra.mxu0 %v5121
        %6973 = vmatprep.subr.bf16.mxu0 0
        %6974 = vmatpush1.bf16.msra.mxu0 %v5122
        %6975 = vmatprep.subr.bf16.mxu0 0
        %6976 = vmatpush1.bf16.msra.mxu0 %v5123
        %6977 = vmatprep.subr.bf16.mxu0 0
        %6978 = vmatpush1.bf16.msra.mxu0 %v5124
        %6979 = vmatprep.subr.bf16.mxu0 0
        %6980 = vmatpush1.bf16.msra.mxu0 %v5125
        %6981 = vmatprep.subr.bf16.mxu0 0
        %6982 = vmatpush1.bf16.msra.mxu0 %v5126
        %6983 = vmatprep.subr.bf16.mxu0 0
        %6984 = vmatpush1.bf16.msra.mxu0 %v5127
        %6985 = vmatprep.subr.bf16.mxu0 0
        %6986 = vmatpush1.bf16.msra.mxu0 %v5128
        %6987 = vmatprep.mubr.bf16.mxu0 %v6940
        %6988 = vmatmul.mubr.bf16.gmra.mrb[0].mxu0 %v6939
        %v6989 = vpop.f32.mrb[0].mxu0
        %v6990 = vadd.f32 0.0, %v6989
        %v6991 = vpop.f32.mrb[0].mxu0
        %v6992 = vpop.f32.mrb[0].mxu0
        %v6993 = vadd.f32 0.0, %v6992
        %v6994 = vpop.f32.mrb[0].mxu0
        %6995 = vmatprep.mubr.bf16.mxu0 %v6948
        %6996 = vmatmul.mubr.bf16.gmra.mrb[0].mxu0 %v6947
        %v6997 = vpop.f32.mrb[0].mxu0
        %v6998 = vadd.f32 0.0, %v6997
        %v6999 = vpop.f32.mrb[0].mxu0
        %v7000 = vpop.f32.mrb[0].mxu0
        %v7001 = vadd.f32 0.0, %v7000
        %v7002 = vpop.f32.mrb[0].mxu0
        %7003 = vdwg.mxu0
        %7004 = vmatprep.subr.bf16.mxu0 0
        %7005 = vmatpush1.bf16.msra.mxu0 %v5129
        %7006 = vmatprep.subr.bf16.mxu0 0
        %7007 = vmatpush1.bf16.msra.mxu0 %v5130
        %7008 = vmatprep.subr.bf16.mxu0 0
        %7009 = vmatpush1.bf16.msra.mxu0 %v5131
        %7010 = vmatprep.subr.bf16.mxu0 0
        %7011 = vmatpush1.bf16.msra.mxu0 %v5132
        %7012 = vmatprep.subr.bf16.mxu0 0
        %7013 = vmatpush1.bf16.msra.mxu0 %v5133
        %7014 = vmatprep.subr.bf16.mxu0 0
        %7015 = vmatpush1.bf16.msra.mxu0 %v5134
        %7016 = vmatprep.subr.bf16.mxu0 0
        %7017 = vmatpush1.bf16.msra.mxu0 %v5135
        %7018 = vmatprep.subr.bf16.mxu0 0
        %7019 = vmatpush1.bf16.msra.mxu0 %v5136
        %7020 = vmatprep.subr.bf16.mxu0 0
        %7021 = vmatpush1.bf16.msra.mxu0 %v5137
        %7022 = vmatprep.subr.bf16.mxu0 0
        %7023 = vmatpush1.bf16.msra.mxu0 %v5138
        %7024 = vmatprep.subr.bf16.mxu0 0
        %7025 = vmatpush1.bf16.msra.mxu0 %v5139
        %7026 = vmatprep.subr.bf16.mxu0 0
        %7027 = vmatpush1.bf16.msra.mxu0 %v5140
        %7028 = vmatprep.subr.bf16.mxu0 0
        %7029 = vmatpush1.bf16.msra.mxu0 %v5141
        %7030 = vmatprep.subr.bf16.mxu0 0
        %7031 = vmatpush1.bf16.msra.mxu0 %v5142
        %7032 = vmatprep.subr.bf16.mxu0 0
        %7033 = vmatpush1.bf16.msra.mxu0 %v5143
        %7034 = vmatprep.subr.bf16.mxu0 0
        %7035 = vmatpush1.bf16.msra.mxu0 %v5144
        %7036 = vmatprep.mubr.bf16.mxu0 %v6942
        %7037 = vmatmul.mubr.bf16.gmra.mrb[0].mxu0 %v6941
        %v7038 = vpop.f32.mrb[0].mxu0
        %v7039 = vadd.f32 %v6990, %v7038
        %v7040 = vpop.f32.mrb[0].mxu0
        %v7041 = vpop.f32.mrb[0].mxu0
        %v7042 = vadd.f32 %v6993, %v7041
        %v7043 = vpop.f32.mrb[0].mxu0
        %7044 = vmatprep.mubr.bf16.mxu0 %v6950
        %7045 = vmatmul.mubr.bf16.gmra.mrb[0].mxu0 %v6949
        %v7046 = vpop.f32.mrb[0].mxu0
        %v7047 = vadd.f32 %v6998, %v7046
        %v7048 = vpop.f32.mrb[0].mxu0
        %v7049 = vpop.f32.mrb[0].mxu0
        %v7050 = vadd.f32 %v7001, %v7049
        %v7051 = vpop.f32.mrb[0].mxu0
        %7052 = vdwg.mxu0
        %7053 = vmatprep.subr.bf16.mxu0 0
        %7054 = vmatpush1.bf16.msra.mxu0 %v5145
        %7055 = vmatprep.subr.bf16.mxu0 0
        %7056 = vmatpush1.bf16.msra.mxu0 %v5146
        %7057 = vmatprep.subr.bf16.mxu0 0
        %7058 = vmatpush1.bf16.msra.mxu0 %v5147
        %7059 = vmatprep.subr.bf16.mxu0 0
        %7060 = vmatpush1.bf16.msra.mxu0 %v5148
        %7061 = vmatprep.subr.bf16.mxu0 0
        %7062 = vmatpush1.bf16.msra.mxu0 %v5149
        %7063 = vmatprep.subr.bf16.mxu0 0
        %7064 = vmatpush1.bf16.msra.mxu0 %v5150
        %7065 = vmatprep.subr.bf16.mxu0 0
        %7066 = vmatpush1.bf16.msra.mxu0 %v5151
        %7067 = vmatprep.subr.bf16.mxu0 0
        %7068 = vmatpush1.bf16.msra.mxu0 %v5152
        %7069 = vmatprep.subr.bf16.mxu0 0
        %7070 = vmatpush1.bf16.msra.mxu0 %v5153
        %7071 = vmatprep.subr.bf16.mxu0 0
        %7072 = vmatpush1.bf16.msra.mxu0 %v5154
        %7073 = vmatprep.subr.bf16.mxu0 0
        %7074 = vmatpush1.bf16.msra.mxu0 %v5155
        %7075 = vmatprep.subr.bf16.mxu0 0
        %7076 = vmatpush1.bf16.msra.mxu0 %v5156
        %7077 = vmatprep.subr.bf16.mxu0 0
        %7078 = vmatpush1.bf16.msra.mxu0 %v5157
        %7079 = vmatprep.subr.bf16.mxu0 0
        %7080 = vmatpush1.bf16.msra.mxu0 %v5158
        %7081 = vmatprep.subr.bf16.mxu0 0
        %7082 = vmatpush1.bf16.msra.mxu0 %v5159
        %7083 = vmatprep.subr.bf16.mxu0 0
        %7084 = vmatpush1.bf16.msra.mxu0 %v5160
        %7085 = vmatprep.mubr.bf16.mxu0 %v6944
        %7086 = vmatmul.mubr.bf16.gmra.mrb[0].mxu0 %v6943
        %v7087 = vpop.f32.mrb[0].mxu0
        %v7088 = vadd.f32 %v7039, %v7087
        %v7089 = vpop.f32.mrb[0].mxu0
        %v7090 = vpop.f32.mrb[0].mxu0
        %v7091 = vadd.f32 %v7042, %v7090
        %v7092 = vpop.f32.mrb[0].mxu0
        %7093 = vmatprep.mubr.bf16.mxu0 %v6952
        %7094 = vmatmul.mubr.bf16.gmra.mrb[0].mxu0 %v6951
        %v7095 = vpop.f32.mrb[0].mxu0
        %v7096 = vadd.f32 %v7047, %v7095
        %v7097 = vpop.f32.mrb[0].mxu0
        %v7098 = vpop.f32.mrb[0].mxu0
        %v7099 = vadd.f32 %v7050, %v7098
        %v7100 = vpop.f32.mrb[0].mxu0
        %7101 = vdwg.mxu0
        %7102 = vmatprep.subr.bf16.mxu0 0
        %7103 = vmatpush1.bf16.msra.mxu0 %v5161
        %7104 = vmatprep.subr.bf16.mxu0 0
        %7105 = vmatpush1.bf16.msra.mxu0 %v5162
        %7106 = vmatprep.subr.bf16.mxu0 0
        %7107 = vmatpush1.bf16.msra.mxu0 %v5163
        %7108 = vmatprep.subr.bf16.mxu0 0
        %7109 = vmatpush1.bf16.msra.mxu0 %v5164
        %7110 = vmatprep.subr.bf16.mxu0 0
        %7111 = vmatpush1.bf16.msra.mxu0 %v5165
        %7112 = vmatprep.subr.bf16.mxu0 0
        %7113 = vmatpush1.bf16.msra.mxu0 %v5166
        %7114 = vmatprep.subr.bf16.mxu0 0
        %7115 = vmatpush1.bf16.msra.mxu0 %v5167
        %7116 = vmatprep.subr.bf16.mxu0 0
        %7117 = vmatpush1.bf16.msra.mxu0 %v5168
        %7118 = vmatprep.subr.bf16.mxu0 0
        %7119 = vmatpush1.bf16.msra.mxu0 %v5169
        %7120 = vmatprep.subr.bf16.mxu0 0
        %7121 = vmatpush1.bf16.msra.mxu0 %v5170
        %7122 = vmatprep.subr.bf16.mxu0 0
        %7123 = vmatpush1.bf16.msra.mxu0 %v5171
        %7124 = vmatprep.subr.bf16.mxu0 0
        %7125 = vmatpush1.bf16.msra.mxu0 %v5172
        %7126 = vmatprep.subr.bf16.mxu0 0
        %7127 = vmatpush1.bf16.msra.mxu0 %v5173
        %7128 = vmatprep.subr.bf16.mxu0 0
        %7129 = vmatpush1.bf16.msra.mxu0 %v5174
        %7130 = vmatprep.subr.bf16.mxu0 0
        %7131 = vmatpush1.bf16.msra.mxu0 %v5175
        %7132 = vmatprep.subr.bf16.mxu0 0
        %7133 = vmatpush1.bf16.msra.mxu0 %v5176
        %7134 = vmatprep.mubr.bf16.mxu0 %v6946
        %7135 = vmatmul.mubr.bf16.gmra.mrb[0].mxu0 %v6945
        %v7136 = vpop.f32.mrb[0].mxu0
        %v7137 = vadd.f32 %v7088, %v7136
        %v7138 = vpop.f32.mrb[0].mxu0
        %v7139 = vpop.f32.mrb[0].mxu0
        %v7140 = vadd.f32 %v7091, %v7139
        %v7141 = vpop.f32.mrb[0].mxu0
        %7142 = vmatprep.mubr.bf16.mxu0 %v6954
        %7143 = vmatmul.mubr.bf16.gmra.mrb[0].mxu0 %v6953
        %v7144 = vpop.f32.mrb[0].mxu0
        %v7145 = vadd.f32 %v7096, %v7144
        %v7146 = vpop.f32.mrb[0].mxu0
        %v7147 = vpop.f32.mrb[0].mxu0
        %v7148 = vadd.f32 %v7099, %v7147
        %v7149 = vpop.f32.mrb[0].mxu0
        %7150 = vdwg.mxu0
        %7152 = vset.pattern.permute.xlu0 32
        %7153 = vperm.xlu0 %7152, %v6588
        %v7154 = vpop.permute.xlu0 %7153
        %7157 = vset.pattern.permute.xlu0 32
        %7158 = vperm.xlu0 %7157, %v6589
        %v7159 = vpop.permute.xlu0 %7158
        %7162 = vset.pattern.permute.xlu0 32
        %7163 = vperm.xlu0 %7162, %v6590
        %v7164 = vpop.permute.xlu0 %7163
        %7167 = vset.pattern.permute.xlu0 32
        %7168 = vperm.xlu0 %7167, %v6591
        %v7169 = vpop.permute.xlu0 %7168
        %v7171 = vsel %vm4177, %v6588, 0
        %v7173 = vsel %vm4177, %v6589, 0
        %v7175 = vsel %vm4177, %v6590, 0
        %v7177 = vsel %vm4177, %v6591, 0
        %7179 = vmatprep.subr.mxu0 0.0
        %7180 = vmatpush1.msra.mxu0 %v7137
        %7181 = vmatprep.subr.mxu0 0.0
        %7182 = vmatpush1.msra.mxu0 %v7140
        %7183 = vmatprep.subr.mxu0 0.0
        %7184 = vmatpush1.msra.mxu0 %v7145
        %7185 = vmatprep.subr.mxu0 0.0
        %7186 = vmatpush1.msra.mxu0 %v7148
        %7187 = vmatprep.subr.mxu0 0.0
        %7188 = vmatpush1.msra.mxu0 0.0
        %7189 = vmatprep.subr.mxu0 0.0
        %7190 = vmatpush1.msra.mxu0 0.0
        %7191 = vmatprep.subr.mxu0 0.0
        %7192 = vmatpush1.msra.mxu0 0.0
        %7193 = vmatprep.subr.mxu0 0.0
        %7194 = vmatpush1.msra.mxu0 0.0
        %7195 = vmatprep.subr.mxu0 0.0
        %7196 = vmatpush1.msra.mxu0 0.0
        %7197 = vmatprep.subr.mxu0 0.0
        %7198 = vmatpush1.msra.mxu0 0.0
        %7199 = vmatprep.subr.mxu0 0.0
        %7200 = vmatpush1.msra.mxu0 0.0
        %7201 = vmatprep.subr.mxu0 0.0
        %7202 = vmatpush1.msra.mxu0 0.0
        %7203 = vmatprep.subr.mxu0 0.0
        %7204 = vmatpush1.msra.mxu0 0.0
        %7205 = vmatprep.subr.mxu0 0.0
        %7206 = vmatpush1.msra.mxu0 0.0
        %7207 = vmatprep.subr.mxu0 0.0
        %7208 = vmatpush1.msra.mxu0 0.0
        %7209 = vmatprep.subr.mxu0 0.0
        %7210 = vmatpush1.msra.mxu0 0.0
        %7211 = vmatprep.subr.mxu0 0.0
        %7212 = vmatpush1.msra.mxu0 0.0
        %7213 = vmatprep.subr.mxu0 0.0
        %7214 = vmatpush1.msra.mxu0 0.0
        %7215 = vmatprep.subr.mxu0 0.0
        %7216 = vmatpush1.msra.mxu0 0.0
        %7217 = vmatprep.subr.mxu0 0.0
        %7218 = vmatpush1.msra.mxu0 0.0
        %7219 = vmatprep.subr.mxu0 0.0
        %7220 = vmatpush1.msra.mxu0 0.0
        %7221 = vmatprep.subr.mxu0 0.0
        %7222 = vmatpush1.msra.mxu0 0.0
        %7223 = vmatprep.subr.mxu0 0.0
        %7224 = vmatpush1.msra.mxu0 0.0
        %7225 = vmatprep.subr.mxu0 0.0
        %7226 = vmatpush1.msra.mxu0 0.0
        %7227 = vmatprep.subr.mxu0 0.0
        %7228 = vmatpush1.msra.mxu0 0.0
        %7229 = vmatprep.subr.mxu0 0.0
        %7230 = vmatpush1.msra.mxu0 0.0
        %7231 = vmatprep.subr.mxu0 0.0
        %7232 = vmatpush1.msra.mxu0 0.0
        %7233 = vmatprep.subr.mxu0 0.0
        %7234 = vmatpush1.msra.mxu0 0.0
        %7235 = vmatprep.subr.mxu0 0.0
        %7236 = vmatpush1.msra.mxu0 0.0
        %7237 = vmatprep.subr.mxu0 0.0
        %7238 = vmatpush1.msra.mxu0 0.0
        %7239 = vmatprep.subr.mxu0 0.0
        %7240 = vmatpush1.msra.mxu0 0.0
        %7241 = vmatprep.subr.mxu0 0.0
        %7242 = vmatpush1.msra.mxu0 0.0
        %7243 = vmatprep.mubr.f32.mxu0 0.0
        %7244 = vmatmul.mubr.f32.gmra.mrb[0].mxu0 %v7171
        %v7245 = vpop.f32.mrb[0].mxu0
        %v7246 = vadd.f32 %v7154, %v7245
        %v7247 = vpop.f32.mrb[0].mxu0
        %7248 = vmatprep.mubr.f32.mxu0 0.0
        %7249 = vmatmul.mubr.f32.gmra.mrb[0].mxu0 %v7173
        %v7250 = vpop.f32.mrb[0].mxu0
        %v7251 = vadd.f32 %v7159, %v7250
        %v7252 = vpop.f32.mrb[0].mxu0
        %7253 = vmatprep.mubr.f32.mxu0 0.0
        %7254 = vmatmul.mubr.f32.gmra.mrb[0].mxu0 %v7175
        %v7255 = vpop.f32.mrb[0].mxu0
        %v7256 = vadd.f32 %v7164, %v7255
        %v7257 = vpop.f32.mrb[0].mxu0
        %7258 = vmatprep.mubr.f32.mxu0 0.0
        %7259 = vmatmul.mubr.f32.gmra.mrb[0].mxu0 %v7177
        %v7260 = vpop.f32.mrb[0].mxu0
        %v7261 = vadd.f32 %v7169, %v7260
        %v7262 = vpop.f32.mrb[0].mxu0
        %7263 = vdwg.mxu0
        %vm7264 = vcmp.gt.f32.partialorder %v7246, 20.0
        %vm7265 = vcmp.gt.f32.partialorder %v7251, 20.0
        %vm7266 = vcmp.gt.f32.partialorder %v7256, 20.0
        %vm7267 = vcmp.gt.f32.partialorder %v7261, 20.0
        %v7268 = vmin.f32 %v7246, 20.0
        %v7269 = vmin.f32 %v7251, 20.0
        %v7270 = vmin.f32 %v7256, 20.0
        %v7271 = vmin.f32 %v7261, 20.0
        %v7272 = vmul.f32 %v7268, 1.442695
        %v7273 = vpow.pop %v7272
        %v7274 = vmul.f32 %v7269, 1.442695
        %v7275 = vpow.pop %v7274
        %v7276 = vmul.f32 %v7270, 1.442695
        %v7277 = vpow.pop %v7276
        %v7278 = vmul.f32 %v7271, 1.442695
        %v7279 = vpow.pop %v7278
        %v7280 = vadd.f32 %v7273, 1.0
        %v7281 = vlog2.pop %v7280
        %v7282 = vmul.f32 %v7281, 0.6931472
        %v7283 = vmul.f32 -0.5, %v7273
        %v7284 = vadd.f32 %v7283, 1.0
        %v7285 = vmul.f32 %v7284, %v7273
        %v7286 = vand.u32 2147483647, %v7273
        %vm7287 = vcmp.lt.f32.partialorder %v7286, 0.0004427343
        %v7288 = vsel %vm7287, %v7285, %v7282
        %v7289 = vadd.f32 %v7275, 1.0
        %v7290 = vlog2.pop %v7289
        %v7291 = vmul.f32 %v7290, 0.6931472
        %v7292 = vmul.f32 -0.5, %v7275
        %v7293 = vadd.f32 %v7292, 1.0
        %v7294 = vmul.f32 %v7293, %v7275
        %v7295 = vand.u32 2147483647, %v7275
        %vm7296 = vcmp.lt.f32.partialorder %v7295, 0.0004427343
        %v7297 = vsel %vm7296, %v7294, %v7291
        %v7298 = vadd.f32 %v7277, 1.0
        %v7299 = vlog2.pop %v7298
        %v7300 = vmul.f32 %v7299, 0.6931472
        %v7301 = vmul.f32 -0.5, %v7277
        %v7302 = vadd.f32 %v7301, 1.0
        %v7303 = vmul.f32 %v7302, %v7277
        %v7304 = vand.u32 2147483647, %v7277
        %vm7305 = vcmp.lt.f32.partialorder %v7304, 0.0004427343
        %v7306 = vsel %vm7305, %v7303, %v7300
        %v7307 = vadd.f32 %v7279, 1.0
        %v7308 = vlog2.pop %v7307
        %v7309 = vmul.f32 %v7308, 0.6931472
        %v7310 = vmul.f32 -0.5, %v7279
        %v7311 = vadd.f32 %v7310, 1.0
        %v7312 = vmul.f32 %v7311, %v7279
        %v7313 = vand.u32 2147483647, %v7279
        %vm7314 = vcmp.lt.f32.partialorder %v7313, 0.0004427343
        %v7315 = vsel %vm7314, %v7312, %v7309
        %v7316 = vsel %vm7264, %v7246, %v7288
        %v7317 = vsel %vm7265, %v7251, %v7297
        %v7318 = vsel %vm7266, %v7256, %v7306
        %v7319 = vsel %vm7267, %v7261, %v7315
        %v7320 = vsub.f32 %v7316, 0.6931472
        %v7321 = vsub.f32 %v7317, 0.6931472
        %v7322 = vsub.f32 %v7318, 0.6931472
        %v7323 = vsub.f32 %v7319, 0.6931472
        %7325 = vset.pattern.permute.xlu0 32
        %7326 = vperm.xlu0 %7325, %v6592
        %v7327 = vpop.permute.xlu0 %7326
        %7330 = vset.pattern.permute.xlu0 32
        %7331 = vperm.xlu0 %7330, %v6593
        %v7332 = vpop.permute.xlu0 %7331
        %7335 = vset.pattern.permute.xlu0 32
        %7336 = vperm.xlu0 %7335, %v6594
        %v7337 = vpop.permute.xlu0 %7336
        %7340 = vset.pattern.permute.xlu0 32
        %7341 = vperm.xlu0 %7340, %v6595
        %v7342 = vpop.permute.xlu0 %7341
        %v7344 = vsel %vm4177, %v6592, 0
        %v7346 = vsel %vm4177, %v6593, 0
        %v7348 = vsel %vm4177, %v6594, 0
        %v7350 = vsel %vm4177, %v6595, 0
        %7352 = vmatprep.subr.mxu0 0.0
        %7353 = vmatpush1.msra.mxu0 %v7320
        %7354 = vmatprep.subr.mxu0 0.0
        %7355 = vmatpush1.msra.mxu0 %v7321
        %7356 = vmatprep.subr.mxu0 0.0
        %7357 = vmatpush1.msra.mxu0 %v7322
        %7358 = vmatprep.subr.mxu0 0.0
        %7359 = vmatpush1.msra.mxu0 %v7323
        %7360 = vmatprep.subr.mxu0 0.0
        %7361 = vmatpush1.msra.mxu0 0.0
        %7362 = vmatprep.subr.mxu0 0.0
        %7363 = vmatpush1.msra.mxu0 0.0
        %7364 = vmatprep.subr.mxu0 0.0
        %7365 = vmatpush1.msra.mxu0 0.0
        %7366 = vmatprep.subr.mxu0 0.0
        %7367 = vmatpush1.msra.mxu0 0.0
        %7368 = vmatprep.subr.mxu0 0.0
        %7369 = vmatpush1.msra.mxu0 0.0
        %7370 = vmatprep.subr.mxu0 0.0
        %7371 = vmatpush1.msra.mxu0 0.0
        %7372 = vmatprep.subr.mxu0 0.0
        %7373 = vmatpush1.msra.mxu0 0.0
        %7374 = vmatprep.subr.mxu0 0.0
        %7375 = vmatpush1.msra.mxu0 0.0
        %7376 = vmatprep.subr.mxu0 0.0
        %7377 = vmatpush1.msra.mxu0 0.0
        %7378 = vmatprep.subr.mxu0 0.0
        %7379 = vmatpush1.msra.mxu0 0.0
        %7380 = vmatprep.subr.mxu0 0.0
        %7381 = vmatpush1.msra.mxu0 0.0
        %7382 = vmatprep.subr.mxu0 0.0
        %7383 = vmatpush1.msra.mxu0 0.0
        %7384 = vmatprep.subr.mxu0 0.0
        %7385 = vmatpush1.msra.mxu0 0.0
        %7386 = vmatprep.subr.mxu0 0.0
        %7387 = vmatpush1.msra.mxu0 0.0
        %7388 = vmatprep.subr.mxu0 0.0
        %7389 = vmatpush1.msra.mxu0 0.0
        %7390 = vmatprep.subr.mxu0 0.0
        %7391 = vmatpush1.msra.mxu0 0.0
        %7392 = vmatprep.subr.mxu0 0.0
        %7393 = vmatpush1.msra.mxu0 0.0
        %7394 = vmatprep.subr.mxu0 0.0
        %7395 = vmatpush1.msra.mxu0 0.0
        %7396 = vmatprep.subr.mxu0 0.0
        %7397 = vmatpush1.msra.mxu0 0.0
        %7398 = vmatprep.subr.mxu0 0.0
        %7399 = vmatpush1.msra.mxu0 0.0
        %7400 = vmatprep.subr.mxu0 0.0
        %7401 = vmatpush1.msra.mxu0 0.0
        %7402 = vmatprep.subr.mxu0 0.0
        %7403 = vmatpush1.msra.mxu0 0.0
        %7404 = vmatprep.subr.mxu0 0.0
        %7405 = vmatpush1.msra.mxu0 0.0
        %7406 = vmatprep.subr.mxu0 0.0
        %7407 = vmatpush1.msra.mxu0 0.0
        %7408 = vmatprep.subr.mxu0 0.0
        %7409 = vmatpush1.msra.mxu0 0.0
        %7410 = vmatprep.subr.mxu0 0.0
        %7411 = vmatpush1.msra.mxu0 0.0
        %7412 = vmatprep.subr.mxu0 0.0
        %7413 = vmatpush1.msra.mxu0 0.0
        %7414 = vmatprep.subr.mxu0 0.0
        %7415 = vmatpush1.msra.mxu0 0.0
        %7416 = vmatprep.mubr.f32.mxu0 0.0
        %7417 = vmatmul.mubr.f32.gmra.mrb[0].mxu0 %v7344
        %v7418 = vpop.f32.mrb[0].mxu0
        %v7419 = vadd.f32 %v7327, %v7418
        %v7420 = vpop.f32.mrb[0].mxu0
        %7421 = vmatprep.mubr.f32.mxu0 0.0
        %7422 = vmatmul.mubr.f32.gmra.mrb[0].mxu0 %v7346
        %v7423 = vpop.f32.mrb[0].mxu0
        %v7424 = vadd.f32 %v7332, %v7423
        %v7425 = vpop.f32.mrb[0].mxu0
        %7426 = vmatprep.mubr.f32.mxu0 0.0
        %7427 = vmatmul.mubr.f32.gmra.mrb[0].mxu0 %v7348
        %v7428 = vpop.f32.mrb[0].mxu0
        %v7429 = vadd.f32 %v7337, %v7428
        %v7430 = vpop.f32.mrb[0].mxu0
        %7431 = vmatprep.mubr.f32.mxu0 0.0
        %7432 = vmatmul.mubr.f32.gmra.mrb[0].mxu0 %v7350
        %v7433 = vpop.f32.mrb[0].mxu0
        %v7434 = vadd.f32 %v7342, %v7433
        %v7435 = vpop.f32.mrb[0].mxu0
        %7436 = vdwg.mxu0
        %v7437 = vadd.f32 %v6580, %v7419
        %v7438 = vadd.f32 %v6581, %v7424
        %v7439 = vadd.f32 %v6582, %v7429
        %v7440 = vadd.f32 %v6583, %v7434
        %v7441 = vld [vmem:[%s2 + $0x1e0] sm:$0xff]
        %v7442 = vld [vmem:[%s2 + $0x1e8] sm:$0xff]
        %v7443 = vld [vmem:[%s2 + $0x1f0] sm:$0xff]
        %v7444 = vld [vmem:[%s2 + $0x1f8] sm:$0xff]
        %v7445 = vld [vmem:[%s2 + $0x200] sm:$0xf]
        %7447 = vset.pattern.permute.xlu0 32
        %7448 = vperm.xlu0 %7447, %v7441
        %v7449 = vpop.permute.xlu0 %7448
        %7452 = vset.pattern.permute.xlu0 32
        %7453 = vperm.xlu0 %7452, %v7442
        %v7454 = vpop.permute.xlu0 %7453
        %7457 = vset.pattern.permute.xlu0 32
        %7458 = vperm.xlu0 %7457, %v7443
        %v7459 = vpop.permute.xlu0 %7458
        %7462 = vset.pattern.permute.xlu0 32
        %7463 = vperm.xlu0 %7462, %v7444
        %v7464 = vpop.permute.xlu0 %7463
        %v7466 = vsel %vm4177, %v7441, 0
        %v7468 = vsel %vm4177, %v7442, 0
        %v7470 = vsel %vm4177, %v7443, 0
        %v7472 = vsel %vm4177, %v7444, 0
        %7474 = vmatprep.subr.mxu0 0.0
        %7475 = vmatpush1.msra.mxu0 %v7437
        %7476 = vmatprep.subr.mxu0 0.0
        %7477 = vmatpush1.msra.mxu0 %v7438
        %7478 = vmatprep.subr.mxu0 0.0
        %7479 = vmatpush1.msra.mxu0 %v7439
        %7480 = vmatprep.subr.mxu0 0.0
        %7481 = vmatpush1.msra.mxu0 %v7440
        %7482 = vmatprep.subr.mxu0 0.0
        %7483 = vmatpush1.msra.mxu0 0.0
        %7484 = vmatprep.subr.mxu0 0.0
        %7485 = vmatpush1.msra.mxu0 0.0
        %7486 = vmatprep.subr.mxu0 0.0
        %7487 = vmatpush1.msra.mxu0 0.0
        %7488 = vmatprep.subr.mxu0 0.0
        %7489 = vmatpush1.msra.mxu0 0.0
        %7490 = vmatprep.subr.mxu0 0.0
        %7491 = vmatpush1.msra.mxu0 0.0
        %7492 = vmatprep.subr.mxu0 0.0
        %7493 = vmatpush1.msra.mxu0 0.0
        %7494 = vmatprep.subr.mxu0 0.0
        %7495 = vmatpush1.msra.mxu0 0.0
        %7496 = vmatprep.subr.mxu0 0.0
        %7497 = vmatpush1.msra.mxu0 0.0
        %7498 = vmatprep.subr.mxu0 0.0
        %7499 = vmatpush1.msra.mxu0 0.0
        %7500 = vmatprep.subr.mxu0 0.0
        %7501 = vmatpush1.msra.mxu0 0.0
        %7502 = vmatprep.subr.mxu0 0.0
        %7503 = vmatpush1.msra.mxu0 0.0
        %7504 = vmatprep.subr.mxu0 0.0
        %7505 = vmatpush1.msra.mxu0 0.0
        %7506 = vmatprep.subr.mxu0 0.0
        %7507 = vmatpush1.msra.mxu0 0.0
        %7508 = vmatprep.subr.mxu0 0.0
        %7509 = vmatpush1.msra.mxu0 0.0
        %7510 = vmatprep.subr.mxu0 0.0
        %7511 = vmatpush1.msra.mxu0 0.0
        %7512 = vmatprep.subr.mxu0 0.0
        %7513 = vmatpush1.msra.mxu0 0.0
        %7514 = vmatprep.subr.mxu0 0.0
        %7515 = vmatpush1.msra.mxu0 0.0
        %7516 = vmatprep.subr.mxu0 0.0
        %7517 = vmatpush1.msra.mxu0 0.0
        %7518 = vmatprep.subr.mxu0 0.0
        %7519 = vmatpush1.msra.mxu0 0.0
        %7520 = vmatprep.subr.mxu0 0.0
        %7521 = vmatpush1.msra.mxu0 0.0
        %7522 = vmatprep.subr.mxu0 0.0
        %7523 = vmatpush1.msra.mxu0 0.0
        %7524 = vmatprep.subr.mxu0 0.0
        %7525 = vmatpush1.msra.mxu0 0.0
        %7526 = vmatprep.subr.mxu0 0.0
        %7527 = vmatpush1.msra.mxu0 0.0
        %7528 = vmatprep.subr.mxu0 0.0
        %7529 = vmatpush1.msra.mxu0 0.0
        %7530 = vmatprep.subr.mxu0 0.0
        %7531 = vmatpush1.msra.mxu0 0.0
        %7532 = vmatprep.subr.mxu0 0.0
        %7533 = vmatpush1.msra.mxu0 0.0
        %7534 = vmatprep.subr.mxu0 0.0
        %7535 = vmatpush1.msra.mxu0 0.0
        %7536 = vmatprep.subr.mxu0 0.0
        %7537 = vmatpush1.msra.mxu0 0.0
        %7538 = vmatprep.mubr.f32.mxu0 0.0
        %7539 = vmatmul.mubr.f32.gmra.mrb[0].mxu0 %v7466
        %v7540 = vpop.f32.mrb[0].mxu0
        %v7541 = vadd.f32 %v7449, %v7540
        %v7542 = vpop.f32.mrb[0].mxu0
        %7543 = vmatprep.mubr.f32.mxu0 0.0
        %7544 = vmatmul.mubr.f32.gmra.mrb[0].mxu0 %v7468
        %v7545 = vpop.f32.mrb[0].mxu0
        %v7546 = vadd.f32 %v7454, %v7545
        %v7547 = vpop.f32.mrb[0].mxu0
        %7548 = vmatprep.mubr.f32.mxu0 0.0
        %7549 = vmatmul.mubr.f32.gmra.mrb[0].mxu0 %v7470
        %v7550 = vpop.f32.mrb[0].mxu0
        %v7551 = vadd.f32 %v7459, %v7550
        %v7552 = vpop.f32.mrb[0].mxu0
        %7553 = vmatprep.mubr.f32.mxu0 0.0
        %7554 = vmatmul.mubr.f32.gmra.mrb[0].mxu0 %v7472
        %v7555 = vpop.f32.mrb[0].mxu0
        %v7556 = vadd.f32 %v7464, %v7555
        %v7557 = vpop.f32.mrb[0].mxu0
        %7558 = vdwg.mxu0
        %vm7559 = vcmp.gt.f32.partialorder %v7541, 20.0
        %vm7560 = vcmp.gt.f32.partialorder %v7546, 20.0
        %vm7561 = vcmp.gt.f32.partialorder %v7551, 20.0
        %vm7562 = vcmp.gt.f32.partialorder %v7556, 20.0
        %v7563 = vmin.f32 %v7541, 20.0
        %v7564 = vmin.f32 %v7546, 20.0
        %v7565 = vmin.f32 %v7551, 20.0
        %v7566 = vmin.f32 %v7556, 20.0
        %v7567 = vmul.f32 %v7563, 1.442695
        %v7568 = vpow.pop %v7567
        %v7569 = vmul.f32 %v7564, 1.442695
        %v7570 = vpow.pop %v7569
        %v7571 = vmul.f32 %v7565, 1.442695
        %v7572 = vpow.pop %v7571
        %v7573 = vmul.f32 %v7566, 1.442695
        %v7574 = vpow.pop %v7573
        %v7575 = vadd.f32 %v7568, 1.0
        %v7576 = vlog2.pop %v7575
        %v7577 = vmul.f32 %v7576, 0.6931472
        %v7578 = vmul.f32 -0.5, %v7568
        %v7579 = vadd.f32 %v7578, 1.0
        %v7580 = vmul.f32 %v7579, %v7568
        %v7581 = vand.u32 2147483647, %v7568
        %vm7582 = vcmp.lt.f32.partialorder %v7581, 0.0004427343
        %v7583 = vsel %vm7582, %v7580, %v7577
        %v7584 = vadd.f32 %v7570, 1.0
        %v7585 = vlog2.pop %v7584
        %v7586 = vmul.f32 %v7585, 0.6931472
        %v7587 = vmul.f32 -0.5, %v7570
        %v7588 = vadd.f32 %v7587, 1.0
        %v7589 = vmul.f32 %v7588, %v7570
        %v7590 = vand.u32 2147483647, %v7570
        %vm7591 = vcmp.lt.f32.partialorder %v7590, 0.0004427343
        %v7592 = vsel %vm7591, %v7589, %v7586
        %v7593 = vadd.f32 %v7572, 1.0
        %v7594 = vlog2.pop %v7593
        %v7595 = vmul.f32 %v7594, 0.6931472
        %v7596 = vmul.f32 -0.5, %v7572
        %v7597 = vadd.f32 %v7596, 1.0
        %v7598 = vmul.f32 %v7597, %v7572
        %v7599 = vand.u32 2147483647, %v7572
        %vm7600 = vcmp.lt.f32.partialorder %v7599, 0.0004427343
        %v7601 = vsel %vm7600, %v7598, %v7595
        %v7602 = vadd.f32 %v7574, 1.0
        %v7603 = vlog2.pop %v7602
        %v7604 = vmul.f32 %v7603, 0.6931472
        %v7605 = vmul.f32 -0.5, %v7574
        %v7606 = vadd.f32 %v7605, 1.0
        %v7607 = vmul.f32 %v7606, %v7574
        %v7608 = vand.u32 2147483647, %v7574
        %vm7609 = vcmp.lt.f32.partialorder %v7608, 0.0004427343
        %v7610 = vsel %vm7609, %v7607, %v7604
        %v7611 = vsel %vm7559, %v7541, %v7583
        %v7612 = vsel %vm7560, %v7546, %v7592
        %v7613 = vsel %vm7561, %v7551, %v7601
        %v7614 = vsel %vm7562, %v7556, %v7610
        %v7615 = vsub.f32 %v7611, 0.6931472
        %v7616 = vsub.f32 %v7612, 0.6931472
        %v7617 = vsub.f32 %v7613, 0.6931472
        %v7618 = vsub.f32 %v7614, 0.6931472
        %7620 = vset.pattern.permute.xlu0 32
        %7621 = vperm.xlu0 %7620, %v7445
        %v7622 = vpop.permute.xlu0 %7621
        %v7624 = vsel %vm4177, %v7445, 0
        %7626 = vmatprep.subr.mxu0 0.0
        %7627 = vmatpush1.msra.mxu0 %v7615
        %7628 = vmatprep.subr.mxu0 0.0
        %7629 = vmatpush1.msra.mxu0 %v7616
        %7630 = vmatprep.subr.mxu0 0.0
        %7631 = vmatpush1.msra.mxu0 %v7617
        %7632 = vmatprep.subr.mxu0 0.0
        %7633 = vmatpush1.msra.mxu0 %v7618
        %7634 = vmatprep.subr.mxu0 0.0
        %7635 = vmatpush1.msra.mxu0 0.0
        %7636 = vmatprep.subr.mxu0 0.0
        %7637 = vmatpush1.msra.mxu0 0.0
        %7638 = vmatprep.subr.mxu0 0.0
        %7639 = vmatpush1.msra.mxu0 0.0
        %7640 = vmatprep.subr.mxu0 0.0
        %7641 = vmatpush1.msra.mxu0 0.0
        %7642 = vmatprep.subr.mxu0 0.0
        %7643 = vmatpush1.msra.mxu0 0.0
        %7644 = vmatprep.subr.mxu0 0.0
        %7645 = vmatpush1.msra.mxu0 0.0
        %7646 = vmatprep.subr.mxu0 0.0
        %7647 = vmatpush1.msra.mxu0 0.0
        %7648 = vmatprep.subr.mxu0 0.0
        %7649 = vmatpush1.msra.mxu0 0.0
        %7650 = vmatprep.subr.mxu0 0.0
        %7651 = vmatpush1.msra.mxu0 0.0
        %7652 = vmatprep.subr.mxu0 0.0
        %7653 = vmatpush1.msra.mxu0 0.0
        %7654 = vmatprep.subr.mxu0 0.0
        %7655 = vmatpush1.msra.mxu0 0.0
        %7656 = vmatprep.subr.mxu0 0.0
        %7657 = vmatpush1.msra.mxu0 0.0
        %7658 = vmatprep.subr.mxu0 0.0
        %7659 = vmatpush1.msra.mxu0 0.0
        %7660 = vmatprep.subr.mxu0 0.0
        %7661 = vmatpush1.msra.mxu0 0.0
        %7662 = vmatprep.subr.mxu0 0.0
        %7663 = vmatpush1.msra.mxu0 0.0
        %7664 = vmatprep.subr.mxu0 0.0
        %7665 = vmatpush1.msra.mxu0 0.0
        %7666 = vmatprep.subr.mxu0 0.0
        %7667 = vmatpush1.msra.mxu0 0.0
        %7668 = vmatprep.subr.mxu0 0.0
        %7669 = vmatpush1.msra.mxu0 0.0
        %7670 = vmatprep.subr.mxu0 0.0
        %7671 = vmatpush1.msra.mxu0 0.0
        %7672 = vmatprep.subr.mxu0 0.0
        %7673 = vmatpush1.msra.mxu0 0.0
        %7674 = vmatprep.subr.mxu0 0.0
        %7675 = vmatpush1.msra.mxu0 0.0
        %7676 = vmatprep.subr.mxu0 0.0
        %7677 = vmatpush1.msra.mxu0 0.0
        %7678 = vmatprep.subr.mxu0 0.0
        %7679 = vmatpush1.msra.mxu0 0.0
        %7680 = vmatprep.subr.mxu0 0.0
        %7681 = vmatpush1.msra.mxu0 0.0
        %7682 = vmatprep.subr.mxu0 0.0
        %7683 = vmatpush1.msra.mxu0 0.0
        %7684 = vmatprep.subr.mxu0 0.0
        %7685 = vmatpush1.msra.mxu0 0.0
        %7686 = vmatprep.subr.mxu0 0.0
        %7687 = vmatpush1.msra.mxu0 0.0
        %7688 = vmatprep.subr.mxu0 0.0
        %7689 = vmatpush1.msra.mxu0 0.0
        %7690 = vmatprep.mubr.f32.mxu0 0.0
        %7691 = vmatmul.mubr.f32.gmra.mrb[0].mxu0 %v7624
        %v7692 = vpop.f32.mrb[0].mxu0
        %v7693 = vadd.f32 %v7622, %v7692
        %v7694 = vpop.f32.mrb[0].mxu0
        %7695 = vdwg.mxu0
        %v7696 = vld [vmem:[%s5] sm:$0xff]
        %v7697 = vld [vmem:[%s5 + $0x8] sm:$0xff]
        %v7698 = vld [vmem:[%s5 + $0x10] sm:$0xff]
        %v7699 = vld [vmem:[%s5 + $0x18] sm:$0xff]
        %v7700 = vld [vmem:[%s5 + $0x20] sm:$0xff]
        %v7701 = vld [vmem:[%s5 + $0x28] sm:$0xff]
        %v7702 = vld [vmem:[%s5 + $0x30] sm:$0xff]
        %v7703 = vld [vmem:[%s5 + $0x38] sm:$0xff]
        %v7704 = vld [vmem:[%s5 + $0x40] sm:$0xff]
        %v7705 = vld [vmem:[%s5 + $0x48] sm:$0xff]
        %v7706 = vld [vmem:[%s5 + $0x50] sm:$0xff]
        %v7707 = vld [vmem:[%s5 + $0x58] sm:$0xff]
        %v7708 = vld [vmem:[%s5 + $0x60] sm:$0xff]
        %v7709 = vld [vmem:[%s5 + $0x68] sm:$0xff]
        %v7710 = vld [vmem:[%s5 + $0x70] sm:$0xff]
        %v7711 = vld [vmem:[%s5 + $0x78] sm:$0xff]
        %7712 = vmatprep.subr.mxu0 0.0
        %7713 = vmatpush1.msra.mxu0 %v7696
        %7714 = vmatprep.subr.mxu0 0.0
        %7715 = vmatpush1.msra.mxu0 %v7697
        %7716 = vmatprep.subr.mxu0 0.0
        %7717 = vmatpush1.msra.mxu0 %v7698
        %7718 = vmatprep.subr.mxu0 0.0
        %7719 = vmatpush1.msra.mxu0 %v7699
        %7720 = vmatprep.subr.mxu0 0.0
        %7721 = vmatpush1.msra.mxu0 %v7700
        %7722 = vmatprep.subr.mxu0 0.0
        %7723 = vmatpush1.msra.mxu0 %v7701
        %7724 = vmatprep.subr.mxu0 0.0
        %7725 = vmatpush1.msra.mxu0 %v7702
        %7726 = vmatprep.subr.mxu0 0.0
        %7727 = vmatpush1.msra.mxu0 %v7703
        %7728 = vmatprep.subr.mxu0 0.0
        %7729 = vmatpush1.msra.mxu0 %v7704
        %7730 = vmatprep.subr.mxu0 0.0
        %7731 = vmatpush1.msra.mxu0 %v7705
        %7732 = vmatprep.subr.mxu0 0.0
        %7733 = vmatpush1.msra.mxu0 %v7706
        %7734 = vmatprep.subr.mxu0 0.0
        %7735 = vmatpush1.msra.mxu0 %v7707
        %7736 = vmatprep.subr.mxu0 0.0
        %7737 = vmatpush1.msra.mxu0 %v7708
        %7738 = vmatprep.subr.mxu0 0.0
        %7739 = vmatpush1.msra.mxu0 %v7709
        %7740 = vmatprep.subr.mxu0 0.0
        %7741 = vmatpush1.msra.mxu0 %v7710
        %7742 = vmatprep.subr.mxu0 0.0
        %7743 = vmatpush1.msra.mxu0 %v7711
        %7744 = vmatprep.subr.mxu0 0.0
        %7745 = vmatpush1.msra.mxu0 0.0
        %7746 = vmatprep.subr.mxu0 0.0
        %7747 = vmatpush1.msra.mxu0 0.0
        %7748 = vmatprep.subr.mxu0 0.0
        %7749 = vmatpush1.msra.mxu0 0.0
        %7750 = vmatprep.subr.mxu0 0.0
        %7751 = vmatpush1.msra.mxu0 0.0
        %7752 = vmatprep.subr.mxu0 0.0
        %7753 = vmatpush1.msra.mxu0 0.0
        %7754 = vmatprep.subr.mxu0 0.0
        %7755 = vmatpush1.msra.mxu0 0.0
        %7756 = vmatprep.subr.mxu0 0.0
        %7757 = vmatpush1.msra.mxu0 0.0
        %7758 = vmatprep.subr.mxu0 0.0
        %7759 = vmatpush1.msra.mxu0 0.0
        %7760 = vmatprep.subr.mxu0 0.0
        %7761 = vmatpush1.msra.mxu0 0.0
        %7762 = vmatprep.subr.mxu0 0.0
        %7763 = vmatpush1.msra.mxu0 0.0
        %7764 = vmatprep.subr.mxu0 0.0
        %7765 = vmatpush1.msra.mxu0 0.0
        %7766 = vmatprep.subr.mxu0 0.0
        %7767 = vmatpush1.msra.mxu0 0.0
        %7768 = vmatprep.subr.mxu0 0.0
        %7769 = vmatpush1.msra.mxu0 0.0
        %7770 = vmatprep.subr.mxu0 0.0
        %7771 = vmatpush1.msra.mxu0 0.0
        %7772 = vmatprep.subr.mxu0 0.0
        %7773 = vmatpush1.msra.mxu0 0.0
        %7774 = vmatprep.subr.mxu0 0.0
        %7775 = vmatpush1.msra.mxu0 0.0
        %7776 = vmatprep.mubr.f32.mxu0 0.0
        %7777 = vmatmul.mubr.f32.gmra.mrb[0].mxu0 %v7693
        %v7778 = vpop.f32.mrb[0].mxu0
        %v7779 = vadd.f32 0.0, %v7778
        %v7780 = vpop.f32.mrb[0].mxu0
        %7781 = vdwg.mxu0
        %vm7782 = vcmp.gt.f32.partialorder %v7779, 20.0
        %v7783 = vmin.f32 %v7779, 20.0
        %v7784 = vmul.f32 %v7783, 1.442695
        %v7785 = vpow.pop %v7784
        %v7786 = vadd.f32 %v7785, 1.0
        %v7787 = vlog2.pop %v7786
        %v7788 = vmul.f32 %v7787, 0.6931472
        %v7789 = vmul.f32 -0.5, %v7785
        %v7790 = vadd.f32 %v7789, 1.0
        %v7791 = vmul.f32 %v7790, %v7785
        %v7792 = vand.u32 2147483647, %v7785
        %vm7793 = vcmp.lt.f32.partialorder %v7792, 0.0004427343
        %v7794 = vsel %vm7793, %v7791, %v7788
        %v7795 = vsel %vm7782, %v7779, %v7794
        %vm7796 = vcmp.eq.s32.totalorder %v1357, 0
        %vm7797 = vcmp.eq.s32.totalorder %v1357, 2
        %v7798 = vadd.f32 %v7795, 1.000001
        %v7799 = vadd.f32 %v7795, 1e-06
        %v7800 = vsel %vm7797, %v7798, %v7799
        %v7801 = vsel %vm7796, %v7779, %v7800
        %vm7802 = vcmask 125952
        %7803 = vst.msk [vmem:[%s317] sm:$0xf] %vm7802, %v7801
        %p7804 = scmp.lt.s32.totalorder %s17, 1
        %s7805 = scalar_select %p7804, %s17, 1
        %s7806 = smul.addr %s7805, 4
        %s7807 = scalar_lea.vmem %s6, %s7806
        // Predicated region
        $region83: #{atomistic_forward.1} parent=77 // pred_check
          %p7808 = pneg %p171
        $region84: #{atomistic_forward.1} parent=77 // pred_check_branch
          %7810 = sbr.rel (%p7808) target = $region86
        $region85: #{atomistic_forward.1} parent=77 // pred_region
          _
        $region86: #{atomistic_forward.1} parent=77 // pred_fallthru
          _
      $region78: #{atomistic_forward.1} parent=5 // pred_fallthru
        _
      %p7811 = scmp.le.s32.totalorder 2, %s12
      // Predicated region
      $region87: #{atomistic_forward.1} parent=5 // pred_check
        %p7812 = pneg %p7811
      $region88: #{atomistic_forward.1} parent=5 // pred_check_branch
        %7814 = sbr.rel (%p7812) target = $region90
      $region89: #{atomistic_forward.1} parent=5 // pred_region
        %s7815 = ssub.s32 %s12, 2
        // Predicated region
        $region91: #{atomistic_forward.1} parent=89 // pred_check
          %p7816 = pneg %p177
        $region92: #{atomistic_forward.1} parent=89 // pred_check_branch
          %7818 = sbr.rel (%p7816) target = $region94
        $region93: #{atomistic_forward.1} parent=89 // pred_region
          %p7819 = scmp.lt.s32.totalorder %s18, 1
          %s7820 = scalar_select %p7819, %s18, 1
          %s7821 = smul.addr %s7820, 4
          %s7822 = scalar_lea.vmem %s6, %s7821
        $region94: #{atomistic_forward.1} parent=89 // pred_fallthru
          _
      $region90: #{atomistic_forward.1} parent=5 // pred_fallthru
        _
    $region6: #{atomistic_forward.1} parent=1 // loop_footer
      %s16 = sadd.s32 1, %s12
    $region7: #{atomistic_forward.1} parent=1 // loop_footer_branch
      %11 = sbr.rel target = $region3
    $region8: #{atomistic_forward.1} parent=1 // loop_exit
      _

</llo_original>
